<compile_context>
chip_gen: v7x
topology: tpu7x:2x2x1
jax: 0.10.0
libtpu: 0.0.40
codegen_flags: <defaults>
</compile_context>

<pallas_src>
import jax
import jax.numpy as jnp
from jax.experimental import pallas as pl
from jax.experimental.pallas import tpu as pltpu

BN_EPS = 1e-5
EXPANSION = 4  # Bottleneck.expansion


# ----------------------------------------------------------------------------
# Fused Bottleneck kernel factory (one row-band of one image per grid step)
# ----------------------------------------------------------------------------
def _make_bottleneck_kernel(*, H, W, OH, OW, Cin, Cmid, Cout, s, d, TR, nb,
                            has_ds, res_arg):
    Wp = W + 2 * d                     # padded width held in the h1 scratch
    rows = (TR - 1) * s + 1            # h1 rows feeding conv2 for one band
    cols = (OW - 1) * s + 1
    Lx = rows + 2 * d                  # padded rows held in the h1 scratch
    M = TR * OW                        # output pixels per band

    def kernel(*refs):
        if res_arg:
            (x_ref, w1_ref, b1_ref, w2_ref, b2_ref, w3_ref, b3_ref, res_ref,
             o_ref, h1p_ref, patch_ref, cat_ref) = refs
        elif has_ds:
            (x_ref, w1_ref, b1_ref, w2_ref, b2_ref, w3_ref, b3_ref,
             o_ref, h1p_ref, patch_ref, cat_ref) = refs
        else:
            (x_ref, w1_ref, b1_ref, w2_ref, b2_ref, w3_ref, b3_ref,
             o_ref, h1p_ref, patch_ref) = refs
        b = pl.program_id(1)

        # ---- conv1 (1x1) + bn1 + relu on this row band (+ conv2 halo) ----
        if nb == 1:
            xband = x_ref[...]                                   # (H, W, Cin)
            nxr = H
        else:                                                    # s == 1 here
            start = jnp.maximum(jnp.minimum(b * TR - d, H - Lx), 0)
            xband = x_ref[pl.ds(start, Lx), :, :]                # (Lx, W, Cin)
            nxr = Lx
        h1 = jnp.dot(xband.reshape(nxr * W, Cin), w1_ref[...],
                     preferred_element_type=jnp.float32)
        h1 = jnp.maximum(h1 + b1_ref[...], 0.0).astype(jnp.bfloat16)
        h1 = h1.reshape(nxr, W, Cmid)

        # ---- scatter h1 into the zero-initialized padded VMEM scratch -----
        # (the zero border implements conv2's zero padding; ~45 KiB of VMEM
        #  stores per step, negligible)
        h1p_ref[...] = jnp.zeros((Lx, Wp, Cmid), jnp.bfloat16)
        if nb == 1:
            hc = min(H, rows + d)
            h1p_ref[d:d + hc, d:d + W, :] = h1[:hc]
        else:
            @pl.when(b == 0)                       # top image edge (shift -d)
            def _():
                h1p_ref[d:, d:d + W, :] = h1[:Lx - d]

            @pl.when(b == nb - 1)                  # bottom image edge (+d)
            def _():
                h1p_ref[:Lx - d, d:d + W, :] = h1[d:]

            if nb > 2:
                @pl.when(jnp.logical_and(b > 0, b < nb - 1))
                def _():
                    h1p_ref[:, d:d + W, :] = h1

        # ---- conv2 (3x3, dilated) as one im2col matmul (K = 9*Cmid) -------
        if s == 1:
            for t in range(9):
                ki, kj = divmod(t, 3)
                tap = h1p_ref[ki * d:ki * d + TR, kj * d:kj * d + OW, :]
                patch_ref[:, t * Cmid:(t + 1) * Cmid] = tap.reshape(M, Cmid)
        else:
            hv = h1p_ref[...]
            for t in range(9):
                ki, kj = divmod(t, 3)
                tap = hv[ki * d:ki * d + rows:s, kj * d:kj * d + cols:s, :]
                patch_ref[:, t * Cmid:(t + 1) * Cmid] = tap.reshape(M, Cmid)
        h2 = jnp.dot(patch_ref[...], w2_ref[...],
                     preferred_element_type=jnp.float32)
        h2 = jnp.maximum(h2 + b2_ref[...], 0.0).astype(jnp.bfloat16)

        # ---- conv3 (1x1) + bn3 (+ fused downsample | + identity) + relu ---
        def band_rows_of_x():
            if nb == 1:
                return x_ref[...]
            r0 = pl.multiple_of(b * TR, TR)
            return x_ref[pl.ds(r0, TR), :, :]

        if has_ds:
            # [h2 | x] against the K-concatenated [w3 ; wd]: one MXU matmul.
            cat_ref[:, :Cmid] = h2
            if res_arg:
                cat_ref[:, Cmid:] = res_ref[...]
            else:
                cat_ref[:, Cmid:] = band_rows_of_x().reshape(M, Cin)
            y = jnp.dot(cat_ref[...], w3_ref[...],
                        preferred_element_type=jnp.float32) + b3_ref[...]
        else:
            y = jnp.dot(h2, w3_ref[...],
                        preferred_element_type=jnp.float32) + b3_ref[...]
            y = y + band_rows_of_x().reshape(M, Cout).astype(jnp.float32)
        o_ref[...] = jnp.maximum(y, 0.0).astype(o_ref.dtype)

    return kernel


def _pick_bands(OH, H, s, d):
    """Number of output row-bands per image (second grid axis)."""
    if s != 1:
        return 1
    for nb in (4, 2):
        tr = OH // nb
        if OH % nb == 0 and tr >= 8 and H >= tr + 2 * d:
            return nb
    return 1


# ----------------------------------------------------------------------------
# Wrapper: one pallas_call per Bottleneck block, NHWC bf16 in/out
# ----------------------------------------------------------------------------
def bottleneck_apply_nhwc(prep, x):
    """One Bottleneck block.  x: (N, H, W, Cin) NHWC (cast to bf16).
    Returns (N, OH, OW, Cout) bf16 NHWC."""
    s, d = prep["stride"], prep["dilation"]
    has_ds = prep["has_ds"]
    N, H, W, Cin = x.shape
    Cmid = prep["b1"].shape[1]
    Cout = prep["b3"].shape[1]
    assert has_ds or s == 1, "identity residual requires stride == 1"
    OH, OW = (H - 1) // s + 1, (W - 1) // s + 1
    nb = _pick_bands(OH, H, s, d)
    TR = OH // nb
    M = TR * OW
    Lx = (TR - 1) * s + 1 + 2 * d
    res_arg = has_ds and s > 1
    xb = x.astype(jnp.bfloat16)

    kernel = _make_bottleneck_kernel(H=H, W=W, OH=OH, OW=OW, Cin=Cin,
                                     Cmid=Cmid, Cout=Cout, s=s, d=d, TR=TR,
                                     nb=nb, has_ds=has_ds, res_arg=res_arg)

    # Weight/bias blocks have constant index_maps (fetched once); x has a
    # per-image index_map, so it is fetched once per image and re-used across
    # the nb row-bands (consecutive grid steps see the same block index).
    in_specs = [
        pl.BlockSpec((None, H, W, Cin), lambda n, b: (n, 0, 0, 0)),
        pl.BlockSpec((Cin, Cmid), lambda n, b: (0, 0)),
        pl.BlockSpec((1, Cmid), lambda n, b: (0, 0)),
        pl.BlockSpec((9 * Cmid, Cmid), lambda n, b: (0, 0)),
        pl.BlockSpec((1, Cmid), lambda n, b: (0, 0)),
        pl.BlockSpec(prep["w3"].shape, lambda n, b: (0, 0)),
        pl.BlockSpec((1, Cout), lambda n, b: (0, 0)),
    ]
    args = [xb, prep["w1"], prep["b1"], prep["w2"], prep["b2"],
            prep["w3"], prep["b3"]]
    if res_arg:
        # TODO(synk): for stride>1 blocks the residual subsample is still a
        # host-side strided slice; stride==1 blocks read it from the x block.
        res = xb[:, ::s, ::s, :].reshape(N, OH * OW, Cin)
        in_specs.append(pl.BlockSpec((None, OH * OW, Cin),
                                     lambda n, b: (n, 0, 0)))
        args.append(res)

    scratch = [pltpu.VMEM((Lx, W + 2 * d, Cmid), jnp.bfloat16),   # padded h1
               pltpu.VMEM((M, 9 * Cmid), jnp.bfloat16)]           # im2col patch
    if has_ds:
        scratch.append(pltpu.VMEM((M, Cmid + Cin), jnp.bfloat16))  # [h2 | x]

    out = pl.pallas_call(
        kernel,
        out_shape=jax.ShapeDtypeStruct((N, OH * OW, Cout), jnp.bfloat16),
        grid=(N, nb),
        in_specs=in_specs,
        out_specs=pl.BlockSpec((None, M, Cout), lambda n, b: (n, b, 0)),
        scratch_shapes=scratch,
        compiler_params=pltpu.CompilerParams(
            dimension_semantics=("parallel", "parallel")),
    )(*args)
    return out.reshape(N, OH, OW, Cout)


# ----------------------------------------------------------------------------
# BN folding (eval mode) and parameter preparation
# ----------------------------------------------------------------------------
def fold_conv_bn(w, bn):
    """Fold eval-mode BatchNorm into the conv weight.  Returns a
    (KH*KW*Cin, Cout) bf16 matmul operand (tap-major then input-channel row
    order, matching the in-kernel im2col) and a (1, Cout) f32 bias."""
    Cout, Cin, KH, KW = w.shape
    scale = bn["gamma"] * jax.lax.rsqrt(bn["var"] + BN_EPS)
    bias = bn["beta"] - bn["mean"] * scale
    wf = w * scale[:, None, None, None]
    wm = jnp.transpose(wf, (2, 3, 1, 0)).reshape(KH * KW * Cin, Cout)
    return wm.astype(jnp.bfloat16), bias.reshape(1, Cout).astype(jnp.float32)


def prepare(params):
    """Trace-time preprocessing: BN folding and conv3/downsample K-concat."""
    w1, b1 = fold_conv_bn(params["conv1"], params["bn1"])   # (Cin, Cmid)
    w2, b2 = fold_conv_bn(params["conv2"], params["bn2"])   # (9*Cmid, Cmid)
    w3, b3 = fold_conv_bn(params["conv3"], params["bn3"])   # (Cmid, Cout)
    has_ds = params["downsample"] is not None
    if has_ds:
        wd, bd = fold_conv_bn(params["downsample"]["conv"],
                              params["downsample"]["bn"])   # (Cin, Cout)
        # conv3 and the 1x1 downsample share the output pixels: concatenate
        # along K so they run as ONE matmul (K = Cmid + Cin fills the
        # 256-deep MXU on v6e/v7x); their biases simply add.
        w3, b3 = jnp.concatenate([w3, wd], axis=0), b3 + bd
    return dict(w1=w1, b1=b1, w2=w2, b2=b2, w3=w3, b3=b3,
                stride=params["stride"], dilation=params["dilation"],
                has_ds=has_ds)


def bottleneck_forward(params, x_nchw):
    """PyTorch-interface single-block forward: NCHW f32 in / NCHW f32 out.
    For chained blocks prefer bottleneck_apply_nhwc (activations stay NHWC
    bf16; no per-block layout round-trips)."""
    x = jnp.transpose(x_nchw, (0, 2, 3, 1)).astype(jnp.bfloat16)
    y = bottleneck_apply_nhwc(prepare(params), x)
    return jnp.transpose(y.astype(jnp.float32), (0, 3, 1, 2))


# ----------------------------------------------------------------------------
# Pure-jnp reference mirroring the kernel's bf16-operand / f32-acc arithmetic
# ----------------------------------------------------------------------------
def bottleneck_ref_nhwc(prep, x):
    s, d = prep["stride"], prep["dilation"]
    N, H, W, Cin = x.shape
    Cmid = prep["b1"].shape[1]
    Cout = prep["b3"].shape[1]
    OH, OW = (H - 1) // s + 1, (W - 1) // s + 1
    xb = x.astype(jnp.bfloat16)
    h1 = jnp.dot(xb.reshape(-1, Cin), prep["w1"],
                 preferred_element_type=jnp.float32) + prep["b1"]
    h1 = jnp.maximum(h1, 0.0).astype(jnp.bfloat16).reshape(N, H, W, Cmid)
    h1p = jnp.pad(h1, ((0, 0), (d, d), (d, d), (0, 0)))
    rows, cols = (OH - 1) * s + 1, (OW - 1) * s + 1
    taps = []
    for t in range(9):
        ki, kj = divmod(t, 3)
        taps.append(h1p[:, ki * d:ki * d + rows:s, kj * d:kj * d + cols:s, :]
                    .reshape(N * OH * OW, Cmid))
    patch = jnp.concatenate(taps, axis=-1)
    h2 = jnp.dot(patch, prep["w2"],
                 preferred_element_type=jnp.float32) + prep["b2"]
    h2 = jnp.maximum(h2, 0.0).astype(jnp.bfloat16)
    if prep["has_ds"]:
        xs = xb[:, ::s, ::s, :].reshape(N * OH * OW, Cin)
        y = jnp.dot(jnp.concatenate([h2, xs], axis=-1), prep["w3"],
                    preferred_element_type=jnp.float32) + prep["b3"]
    else:
        y = jnp.dot(h2, prep["w3"],
                    preferred_element_type=jnp.float32) + prep["b3"]
        y = y + xb.reshape(N * OH * OW, Cout).astype(jnp.float32)
    y = jnp.maximum(y, 0.0).astype(jnp.bfloat16)
    return y.reshape(N, OH, OW, Cout)


# ----------------------------------------------------------------------------
# Deterministic parameter initialization (shapes follow Bottleneck.__init__)
# TODO(synk): pretrained-weight loading (model_zoo) has no Pallas equivalent;
#             parameters are initialized deterministically in-script instead.
# ----------------------------------------------------------------------------
def init_conv(key, cout, cin, kh, kw):
    fan_out = cout * kh * kw
    return jax.random.normal(key, (cout, cin, kh, kw),
                             jnp.float32) * (2.0 / fan_out) ** 0.5


def init_bn(key, c):
    k1, k2, k3 = jax.random.split(key, 3)
    return dict(gamma=1.0 + 0.1 * jax.random.normal(k1, (c,), jnp.float32),
                beta=0.1 * jax.random.normal(k2, (c,), jnp.float32),
                mean=0.1 * jax.random.normal(k3, (c,), jnp.float32),
                var=jnp.ones((c,), jnp.float32))


def init_bottleneck(key, inplanes, planes, stride=1, dilation=1):
    keys = jax.random.split(key, 8)
    p = dict(conv1=init_conv(keys[0], planes, inplanes, 1, 1),
             bn1=init_bn(keys[1], planes),
             conv2=init_conv(keys[2], planes, planes, 3, 3),
             bn2=init_bn(keys[3], planes),
             conv3=init_conv(keys[4], planes * EXPANSION, planes, 1, 1),
             bn3=init_bn(keys[5], planes * EXPANSION),
             stride=stride, dilation=dilation, downsample=None)
    if stride != 1 or inplanes != planes * EXPANSION:
        p["downsample"] = dict(
            conv=init_conv(keys[6], planes * EXPANSION, inplanes, 1, 1),
            bn=init_bn(keys[7], planes * EXPANSION))
    return p


# ----------------------------------------------------------------------------


if __name__ == "__main__":
    key = jax.random.PRNGKey(0)
    k1, k2, kx = jax.random.split(key, 3)

    # Block 1: 128 -> 512 channels, exercises the fused 1x1-conv+BN downsample.
    block1 = init_bottleneck(k1, inplanes=128, planes=128, stride=1, dilation=1)
    # Block 2: 512 -> 512 channels, exercises the identity residual path.
    block2 = init_bottleneck(k2, inplanes=512, planes=128, stride=1, dilation=1)

    x = jax.random.normal(kx, (2, 128, 16, 16), jnp.float32)   # NCHW

    prep1, prep2 = prepare(block1), prepare(block2)
    # NCHW -> NHWC bf16 once at the network boundary; activations stay NHWC
    # bf16 across the chained blocks.
    x_nhwc = jnp.transpose(x, (0, 2, 3, 1)).astype(jnp.bfloat16)

    @jax.jit
    def run(t):
        y1 = bottleneck_apply_nhwc(prep1, t)
        y2 = bottleneck_apply_nhwc(prep2, y1)
        return y1, y2

    y1, y2 = jax.block_until_ready(run(x_nhwc))
    out = jnp.transpose(y2.astype(jnp.float32), (0, 3, 1, 2))  # back to NCHW

    assert out.shape == (2, 512, 16, 16), out.shape
    assert bool(jnp.all(jnp.isfinite(out)))

    # Block-local numerical checks against the pure-jnp reference.
    r1 = bottleneck_ref_nhwc(prep1, x_nhwc)
    r2 = bottleneck_ref_nhwc(prep2, y1)
    y1f, r1f = y1.astype(jnp.float32), r1.astype(jnp.float32)
    y2f, r2f = y2.astype(jnp.float32), r2.astype(jnp.float32)
    assert bool(jnp.allclose(y1f, r1f, rtol=5e-2, atol=5e-2)), \
        float(jnp.max(jnp.abs(y1f - r1f)))
    assert bool(jnp.allclose(y2f, r2f, rtol=5e-2, atol=5e-2)), \
        float(jnp.max(jnp.abs(y2f - r2f)))

    print("KERNEL_OK")
</pallas_src>

<mosaic_0001>
module attributes {stable_mosaic.version = 11 : i64} {
  func.func @kernel(%arg0: i32, %arg1: i32, %arg2: memref<1x16x16x128xbf16, #tpu.memory_space<vmem>>, %arg3: memref<128x128xbf16, #tpu.memory_space<vmem>>, %arg4: memref<1x128xf32, #tpu.memory_space<vmem>>, %arg5: memref<1152x128xbf16, #tpu.memory_space<vmem>>, %arg6: memref<1x128xf32, #tpu.memory_space<vmem>>, %arg7: memref<256x512xbf16, #tpu.memory_space<vmem>>, %arg8: memref<1x512xf32, #tpu.memory_space<vmem>>, %arg9: memref<1x128x512xbf16, #tpu.memory_space<vmem>>, %arg10: memref<10x18x128xbf16, #tpu.memory_space<vmem>>, %arg11: memref<128x1152xbf16, #tpu.memory_space<vmem>>, %arg12: memref<128x256xbf16, #tpu.memory_space<vmem>>) attributes {dimension_semantics = [#tpu.dimension_semantics<parallel>, #tpu.dimension_semantics<parallel>], iteration_bounds = array<i64: 2, 2>, scalar_prefetch = 0 : i64, scratch_operands = 3 : i64, tpu.core_type = #tpu.core_type<tc>, window_params = [{transform_indices = @transform_0, window_bounds = array<i64: 1, 16, 16, 128>}, {pipeline_mode = #tpu.pipeline_mode<synchronous>, transform_indices = @transform_1, window_bounds = array<i64: 128, 128>}, {pipeline_mode = #tpu.pipeline_mode<synchronous>, transform_indices = @transform_2, window_bounds = array<i64: 1, 128>}, {pipeline_mode = #tpu.pipeline_mode<synchronous>, transform_indices = @transform_3, window_bounds = array<i64: 1152, 128>}, {pipeline_mode = #tpu.pipeline_mode<synchronous>, transform_indices = @transform_4, window_bounds = array<i64: 1, 128>}, {pipeline_mode = #tpu.pipeline_mode<synchronous>, transform_indices = @transform_5, window_bounds = array<i64: 256, 512>}, {pipeline_mode = #tpu.pipeline_mode<synchronous>, transform_indices = @transform_6, window_bounds = array<i64: 1, 512>}, {transform_indices = @transform_7, window_bounds = array<i64: 1, 128, 512>}]} {
    %c8_i32 = arith.constant 8 : i32
    %0 = arith.muli %arg1, %c8_i32 : i32
    %c1_i32 = arith.constant 1 : i32
    %1 = arith.subi %0, %c1_i32 : i32
    %c6_i32 = arith.constant 6 : i32
    %2 = arith.minsi %1, %c6_i32 : i32
    %c0_i32 = arith.constant 0 : i32
    %3 = arith.maxsi %2, %c0_i32 : i32
    %c0 = arith.constant 0 : index
    %4 = arith.index_cast %3 : i32 to index
    %c0_0 = arith.constant 0 : index
    %c0_1 = arith.constant 0 : index
    %5 = vector.load %arg2[%c0, %4, %c0_0, %c0_1] : memref<1x16x16x128xbf16, #tpu.memory_space<vmem>>, vector<1x10x16x128xbf16>
    %6 = vector.shape_cast %5 : vector<1x10x16x128xbf16> to vector<10x16x128xbf16>
    %7 = vector.shape_cast %6 : vector<10x16x128xbf16> to vector<160x128xbf16>
    %c0_2 = arith.constant 0 : index
    %c0_3 = arith.constant 0 : index
    %8 = vector.load %arg3[%c0_2, %c0_3] : memref<128x128xbf16, #tpu.memory_space<vmem>>, vector<128x128xbf16>
    %cst = arith.constant dense<0.000000e+00> : vector<160x128xf32>
    %9 = tpu.matmul %7, %8, %cst {dimension_numbers = #tpu.dot_dimension_numbers<[1], [0], [0], [1], [0, 0, 1, 1], [], []>} : vector<160x128xbf16>, vector<128x128xbf16>, vector<160x128xf32> -> vector<160x128xf32>
    %c0_4 = arith.constant 0 : index
    %c0_5 = arith.constant 0 : index
    %10 = vector.load %arg4[%c0_4, %c0_5] : memref<1x128xf32, #tpu.memory_space<vmem>>, vector<1x128xf32>
    %11 = vector.broadcast %10 : vector<1x128xf32> to vector<160x128xf32>
    %12 = arith.addf %9, %11 : vector<160x128xf32>
    %cst_6 = arith.constant 0.000000e+00 : f32
    %13 = vector.broadcast %cst_6 : f32 to vector<160x128xf32>
    %14 = arith.maximumf %12, %13 : vector<160x128xf32>
    %15 = arith.truncf %14 : vector<160x128xf32> to vector<160x128xbf16>
    %16 = vector.shape_cast %15 : vector<160x128xbf16> to vector<10x16x128xbf16>
    %cst_7 = arith.constant 0.000000e+00 : bf16
    %17 = vector.broadcast %cst_7 : bf16 to vector<10x18x128xbf16>
    %c0_8 = arith.constant 0 : index
    %c0_9 = arith.constant 0 : index
    %c0_10 = arith.constant 0 : index
    %18 = vector.load %arg10[%c0_8, %c0_9, %c0_10] : memref<10x18x128xbf16, #tpu.memory_space<vmem>>, vector<10x18x128xbf16>
    tpu.vector_store %arg10[%c0_8, %c0_9, %c0_10], %17 {strides = array<i32>} : memref<10x18x128xbf16, #tpu.memory_space<vmem>>, vector<10x18x128xbf16>,
    %c0_i32_11 = arith.constant 0 : i32
    %19 = arith.cmpi eq, %arg1, %c0_i32_11 : i32
    %20 = arith.extui %19 : i1 to i32
    %c0_i32_12 = arith.constant 0 : i32
    %21 = arith.cmpi ne, %20, %c0_i32_12 : i32
    scf.if %21 {
      %81 = vector.extract_strided_slice %16 {offsets = [0, 0, 0], sizes = [9, 16, 128], strides = [1, 1, 1]} : vector<10x16x128xbf16> to vector<9x16x128xbf16>
      %c1_77 = arith.constant 1 : index
      %c1_78 = arith.constant 1 : index
      %c0_79 = arith.constant 0 : index
      %82 = vector.load %arg10[%c1_77, %c1_78, %c0_79] : memref<10x18x128xbf16, #tpu.memory_space<vmem>>, vector<9x16x128xbf16>
      tpu.vector_store %arg10[%c1_77, %c1_78, %c0_79], %81 {strides = array<i32>} : memref<10x18x128xbf16, #tpu.memory_space<vmem>>, vector<9x16x128xbf16>,
    } else {
    }
    %c1_i32_13 = arith.constant 1 : i32
    %22 = arith.cmpi eq, %arg1, %c1_i32_13 : i32
    %23 = arith.extui %22 : i1 to i32
    %c0_i32_14 = arith.constant 0 : i32
    %24 = arith.cmpi ne, %23, %c0_i32_14 : i32
    scf.if %24 {
      %81 = vector.extract_strided_slice %16 {offsets = [1, 0, 0], sizes = [9, 16, 128], strides = [1, 1, 1]} : vector<10x16x128xbf16> to vector<9x16x128xbf16>
      %c0_77 = arith.constant 0 : index
      %c1_78 = arith.constant 1 : index
      %c0_79 = arith.constant 0 : index
      %82 = vector.load %arg10[%c0_77, %c1_78, %c0_79] : memref<10x18x128xbf16, #tpu.memory_space<vmem>>, vector<9x16x128xbf16>
      tpu.vector_store %arg10[%c0_77, %c1_78, %c0_79], %81 {strides = array<i32>} : memref<10x18x128xbf16, #tpu.memory_space<vmem>>, vector<9x16x128xbf16>,
    } else {
    }
    %c0_15 = arith.constant 0 : index
    %c0_16 = arith.constant 0 : index
    %c0_17 = arith.constant 0 : index
    %25 = vector.load %arg10[%c0_15, %c0_16, %c0_17] : memref<10x18x128xbf16, #tpu.memory_space<vmem>>, vector<8x16x128xbf16>
    %26 = vector.shape_cast %25 : vector<8x16x128xbf16> to vector<128x128xbf16>
    %c0_18 = arith.constant 0 : index
    %c0_19 = arith.constant 0 : index
    %27 = vector.load %arg11[%c0_18, %c0_19] : memref<128x1152xbf16, #tpu.memory_space<vmem>>, vector<128x128xbf16>
    tpu.vector_store %arg11[%c0_18, %c0_19], %26 {strides = array<i32>} : memref<128x1152xbf16, #tpu.memory_space<vmem>>, vector<128x128xbf16>,
    %c0_20 = arith.constant 0 : index
    %c1 = arith.constant 1 : index
    %c0_21 = arith.constant 0 : index
    %28 = vector.load %arg10[%c0_20, %c1, %c0_21] : memref<10x18x128xbf16, #tpu.memory_space<vmem>>, vector<8x16x128xbf16>
    %29 = vector.shape_cast %28 : vector<8x16x128xbf16> to vector<128x128xbf16>
    %c0_22 = arith.constant 0 : index
    %c128 = arith.constant 128 : index
    %30 = vector.load %arg11[%c0_22, %c128] : memref<128x1152xbf16, #tpu.memory_space<vmem>>, vector<128x128xbf16>
    tpu.vector_store %arg11[%c0_22, %c128], %29 {strides = array<i32>} : memref<128x1152xbf16, #tpu.memory_space<vmem>>, vector<128x128xbf16>,
    %c0_23 = arith.constant 0 : index
    %c2 = arith.constant 2 : index
    %c0_24 = arith.constant 0 : index
    %31 = vector.load %arg10[%c0_23, %c2, %c0_24] : memref<10x18x128xbf16, #tpu.memory_space<vmem>>, vector<8x16x128xbf16>
    %32 = vector.shape_cast %31 : vector<8x16x128xbf16> to vector<128x128xbf16>
    %c0_25 = arith.constant 0 : index
    %c256 = arith.constant 256 : index
    %33 = vector.load %arg11[%c0_25, %c256] : memref<128x1152xbf16, #tpu.memory_space<vmem>>, vector<128x128xbf16>
    tpu.vector_store %arg11[%c0_25, %c256], %32 {strides = array<i32>} : memref<128x1152xbf16, #tpu.memory_space<vmem>>, vector<128x128xbf16>,
    %c1_26 = arith.constant 1 : index
    %c0_27 = arith.constant 0 : index
    %c0_28 = arith.constant 0 : index
    %34 = vector.load %arg10[%c1_26, %c0_27, %c0_28] : memref<10x18x128xbf16, #tpu.memory_space<vmem>>, vector<8x16x128xbf16>
    %35 = vector.shape_cast %34 : vector<8x16x128xbf16> to vector<128x128xbf16>
    %c0_29 = arith.constant 0 : index
    %c384 = arith.constant 384 : index
    %36 = vector.load %arg11[%c0_29, %c384] : memref<128x1152xbf16, #tpu.memory_space<vmem>>, vector<128x128xbf16>
    tpu.vector_store %arg11[%c0_29, %c384], %35 {strides = array<i32>} : memref<128x1152xbf16, #tpu.memory_space<vmem>>, vector<128x128xbf16>,
    %c1_30 = arith.constant 1 : index
    %c1_31 = arith.constant 1 : index
    %c0_32 = arith.constant 0 : index
    %37 = vector.load %arg10[%c1_30, %c1_31, %c0_32] : memref<10x18x128xbf16, #tpu.memory_space<vmem>>, vector<8x16x128xbf16>
    %38 = vector.shape_cast %37 : vector<8x16x128xbf16> to vector<128x128xbf16>
    %c0_33 = arith.constant 0 : index
    %c512 = arith.constant 512 : index
    %39 = vector.load %arg11[%c0_33, %c512] : memref<128x1152xbf16, #tpu.memory_space<vmem>>, vector<128x128xbf16>
    tpu.vector_store %arg11[%c0_33, %c512], %38 {strides = array<i32>} : memref<128x1152xbf16, #tpu.memory_space<vmem>>, vector<128x128xbf16>,
    %c1_34 = arith.constant 1 : index
    %c2_35 = arith.constant 2 : index
    %c0_36 = arith.constant 0 : index
    %40 = vector.load %arg10[%c1_34, %c2_35, %c0_36] : memref<10x18x128xbf16, #tpu.memory_space<vmem>>, vector<8x16x128xbf16>
    %41 = vector.shape_cast %40 : vector<8x16x128xbf16> to vector<128x128xbf16>
    %c0_37 = arith.constant 0 : index
    %c640 = arith.constant 640 : index
    %42 = vector.load %arg11[%c0_37, %c640] : memref<128x1152xbf16, #tpu.memory_space<vmem>>, vector<128x128xbf16>
    tpu.vector_store %arg11[%c0_37, %c640], %41 {strides = array<i32>} : memref<128x1152xbf16, #tpu.memory_space<vmem>>, vector<128x128xbf16>,
    %c2_38 = arith.constant 2 : index
    %c0_39 = arith.constant 0 : index
    %c0_40 = arith.constant 0 : index
    %43 = vector.load %arg10[%c2_38, %c0_39, %c0_40] : memref<10x18x128xbf16, #tpu.memory_space<vmem>>, vector<8x16x128xbf16>
    %44 = vector.shape_cast %43 : vector<8x16x128xbf16> to vector<128x128xbf16>
    %c0_41 = arith.constant 0 : index
    %c768 = arith.constant 768 : index
    %45 = vector.load %arg11[%c0_41, %c768] : memref<128x1152xbf16, #tpu.memory_space<vmem>>, vector<128x128xbf16>
    tpu.vector_store %arg11[%c0_41, %c768], %44 {strides = array<i32>} : memref<128x1152xbf16, #tpu.memory_space<vmem>>, vector<128x128xbf16>,
    %c2_42 = arith.constant 2 : index
    %c1_43 = arith.constant 1 : index
    %c0_44 = arith.constant 0 : index
    %46 = vector.load %arg10[%c2_42, %c1_43, %c0_44] : memref<10x18x128xbf16, #tpu.memory_space<vmem>>, vector<8x16x128xbf16>
    %47 = vector.shape_cast %46 : vector<8x16x128xbf16> to vector<128x128xbf16>
    %c0_45 = arith.constant 0 : index
    %c896 = arith.constant 896 : index
    %48 = vector.load %arg11[%c0_45, %c896] : memref<128x1152xbf16, #tpu.memory_space<vmem>>, vector<128x128xbf16>
    tpu.vector_store %arg11[%c0_45, %c896], %47 {strides = array<i32>} : memref<128x1152xbf16, #tpu.memory_space<vmem>>, vector<128x128xbf16>,
    %c2_46 = arith.constant 2 : index
    %c2_47 = arith.constant 2 : index
    %c0_48 = arith.constant 0 : index
    %49 = vector.load %arg10[%c2_46, %c2_47, %c0_48] : memref<10x18x128xbf16, #tpu.memory_space<vmem>>, vector<8x16x128xbf16>
    %50 = vector.shape_cast %49 : vector<8x16x128xbf16> to vector<128x128xbf16>
    %c0_49 = arith.constant 0 : index
    %c1024 = arith.constant 1024 : index
    %51 = vector.load %arg11[%c0_49, %c1024] : memref<128x1152xbf16, #tpu.memory_space<vmem>>, vector<128x128xbf16>
    tpu.vector_store %arg11[%c0_49, %c1024], %50 {strides = array<i32>} : memref<128x1152xbf16, #tpu.memory_space<vmem>>, vector<128x128xbf16>,
    %c0_50 = arith.constant 0 : index
    %c0_51 = arith.constant 0 : index
    %52 = vector.load %arg11[%c0_50, %c0_51] : memref<128x1152xbf16, #tpu.memory_space<vmem>>, vector<128x1152xbf16>
    %c0_52 = arith.constant 0 : index
    %c0_53 = arith.constant 0 : index
    %53 = vector.load %arg5[%c0_52, %c0_53] : memref<1152x128xbf16, #tpu.memory_space<vmem>>, vector<1152x128xbf16>
    %cst_54 = arith.constant dense<0.000000e+00> : vector<128x128xf32>
    %54 = tpu.matmul %52, %53, %cst_54 {dimension_numbers = #tpu.dot_dimension_numbers<[1], [0], [0], [1], [0, 0, 1, 1], [], []>} : vector<128x1152xbf16>, vector<1152x128xbf16>, vector<128x128xf32> -> vector<128x128xf32>
    %c0_55 = arith.constant 0 : index
    %c0_56 = arith.constant 0 : index
    %55 = vector.load %arg6[%c0_55, %c0_56] : memref<1x128xf32, #tpu.memory_space<vmem>>, vector<1x128xf32>
    %56 = vector.broadcast %55 : vector<1x128xf32> to vector<128x128xf32>
    %57 = arith.addf %54, %56 : vector<128x128xf32>
    %cst_57 = arith.constant 0.000000e+00 : f32
    %58 = vector.broadcast %cst_57 : f32 to vector<128x128xf32>
    %59 = arith.maximumf %57, %58 : vector<128x128xf32>
    %60 = arith.truncf %59 : vector<128x128xf32> to vector<128x128xbf16>
    %c0_58 = arith.constant 0 : index
    %c0_59 = arith.constant 0 : index
    %61 = vector.load %arg12[%c0_58, %c0_59] : memref<128x256xbf16, #tpu.memory_space<vmem>>, vector<128x128xbf16>
    tpu.vector_store %arg12[%c0_58, %c0_59], %60 {strides = array<i32>} : memref<128x256xbf16, #tpu.memory_space<vmem>>, vector<128x128xbf16>,
    %c8_i32_60 = arith.constant 8 : i32
    %62 = arith.muli %arg1, %c8_i32_60 : i32
    %63 = tpu.assume_multiple %62, 8 : i32
    %c0_61 = arith.constant 0 : index
    %64 = arith.index_cast %63 : i32 to index
    %c0_62 = arith.constant 0 : index
    %c0_63 = arith.constant 0 : index
    %65 = vector.load %arg2[%c0_61, %64, %c0_62, %c0_63] : memref<1x16x16x128xbf16, #tpu.memory_space<vmem>>, vector<1x8x16x128xbf16>
    %66 = vector.shape_cast %65 : vector<1x8x16x128xbf16> to vector<8x16x128xbf16>
    %67 = vector.shape_cast %66 : vector<8x16x128xbf16> to vector<128x128xbf16>
    %c0_64 = arith.constant 0 : index
    %c128_65 = arith.constant 128 : index
    %68 = vector.load %arg12[%c0_64, %c128_65] : memref<128x256xbf16, #tpu.memory_space<vmem>>, vector<128x128xbf16>
    tpu.vector_store %arg12[%c0_64, %c128_65], %67 {strides = array<i32>} : memref<128x256xbf16, #tpu.memory_space<vmem>>, vector<128x128xbf16>,
    %c0_66 = arith.constant 0 : index
    %c0_67 = arith.constant 0 : index
    %69 = vector.load %arg12[%c0_66, %c0_67] : memref<128x256xbf16, #tpu.memory_space<vmem>>, vector<128x256xbf16>
    %c0_68 = arith.constant 0 : index
    %c0_69 = arith.constant 0 : index
    %70 = vector.load %arg7[%c0_68, %c0_69] : memref<256x512xbf16, #tpu.memory_space<vmem>>, vector<256x512xbf16>
    %cst_70 = arith.constant dense<0.000000e+00> : vector<128x512xf32>
    %71 = tpu.matmul %69, %70, %cst_70 {dimension_numbers = #tpu.dot_dimension_numbers<[1], [0], [0], [1], [0, 0, 1, 1], [], []>} : vector<128x256xbf16>, vector<256x512xbf16>, vector<128x512xf32> -> vector<128x512xf32>
    %c0_71 = arith.constant 0 : index
    %c0_72 = arith.constant 0 : index
    %72 = vector.load %arg8[%c0_71, %c0_72] : memref<1x512xf32, #tpu.memory_space<vmem>>, vector<1x512xf32>
    %73 = vector.broadcast %72 : vector<1x512xf32> to vector<128x512xf32>
    %74 = arith.addf %71, %73 : vector<128x512xf32>
    %cst_73 = arith.constant 0.000000e+00 : f32
    %75 = vector.broadcast %cst_73 : f32 to vector<128x512xf32>
    %76 = arith.maximumf %74, %75 : vector<128x512xf32>
    %77 = arith.truncf %76 : vector<128x512xf32> to vector<128x512xbf16>
    %c0_74 = arith.constant 0 : index
    %c0_75 = arith.constant 0 : index
    %c0_76 = arith.constant 0 : index
    %78 = vector.load %arg9[%c0_74, %c0_75, %c0_76] : memref<1x128x512xbf16, #tpu.memory_space<vmem>>, vector<1x128x512xbf16>
    %79 = vector.shape_cast %78 : vector<1x128x512xbf16> to vector<128x512xbf16>
    %80 = vector.shape_cast %77 : vector<128x512xbf16> to vector<1x128x512xbf16>
    tpu.vector_store %arg9[%c0_74, %c0_75, %c0_76], %80 {strides = array<i32>} : memref<1x128x512xbf16, #tpu.memory_space<vmem>>, vector<1x128x512xbf16>,
    return
  }
  func.func @transform_0(%arg0: i32, %arg1: i32) -> (i32, i32, i32, i32) {
    %c0_i32 = arith.constant 0 : i32
    %c0_i32_0 = arith.constant 0 : i32
    %c0_i32_1 = arith.constant 0 : i32
    %c0_i32_2 = arith.constant 0 : i32
    return %arg0, %c0_i32, %c0_i32_0, %c0_i32_1 : i32, i32, i32, i32
  }
  func.func @transform_1(%arg0: i32, %arg1: i32) -> (i32, i32) {
    %c0_i32 = arith.constant 0 : i32
    %c0_i32_0 = arith.constant 0 : i32
    %c0_i32_1 = arith.constant 0 : i32
    return %c0_i32, %c0_i32_0 : i32, i32
  }
  func.func @transform_2(%arg0: i32, %arg1: i32) -> (i32, i32) {
    %c0_i32 = arith.constant 0 : i32
    %c0_i32_0 = arith.constant 0 : i32
    %c0_i32_1 = arith.constant 0 : i32
    return %c0_i32, %c0_i32_0 : i32, i32
  }
  func.func @transform_3(%arg0: i32, %arg1: i32) -> (i32, i32) {
    %c0_i32 = arith.constant 0 : i32
    %c0_i32_0 = arith.constant 0 : i32
    %c0_i32_1 = arith.constant 0 : i32
    return %c0_i32, %c0_i32_0 : i32, i32
  }
  func.func @transform_4(%arg0: i32, %arg1: i32) -> (i32, i32) {
    %c0_i32 = arith.constant 0 : i32
    %c0_i32_0 = arith.constant 0 : i32
    %c0_i32_1 = arith.constant 0 : i32
    return %c0_i32, %c0_i32_0 : i32, i32
  }
  func.func @transform_5(%arg0: i32, %arg1: i32) -> (i32, i32) {
    %c0_i32 = arith.constant 0 : i32
    %c0_i32_0 = arith.constant 0 : i32
    %c0_i32_1 = arith.constant 0 : i32
    return %c0_i32, %c0_i32_0 : i32, i32
  }
  func.func @transform_6(%arg0: i32, %arg1: i32) -> (i32, i32) {
    %c0_i32 = arith.constant 0 : i32
    %c0_i32_0 = arith.constant 0 : i32
    %c0_i32_1 = arith.constant 0 : i32
    return %c0_i32, %c0_i32_0 : i32, i32
  }
  func.func @transform_7(%arg0: i32, %arg1: i32) -> (i32, i32, i32) {
    %c0_i32 = arith.constant 0 : i32
    %c0_i32_0 = arith.constant 0 : i32
    return %arg0, %arg1, %c0_i32 : i32, i32, i32
  }
}

module attributes {stable_mosaic.version = 11 : i64} {
  func.func @kernel(%arg0: i32, %arg1: i32, %arg2: memref<1x16x16x512xbf16, #tpu.memory_space<vmem>>, %arg3: memref<512x128xbf16, #tpu.memory_space<vmem>>, %arg4: memref<1x128xf32, #tpu.memory_space<vmem>>, %arg5: memref<1152x128xbf16, #tpu.memory_space<vmem>>, %arg6: memref<1x128xf32, #tpu.memory_space<vmem>>, %arg7: memref<128x512xbf16, #tpu.memory_space<vmem>>, %arg8: memref<1x512xf32, #tpu.memory_space<vmem>>, %arg9: memref<1x128x512xbf16, #tpu.memory_space<vmem>>, %arg10: memref<10x18x128xbf16, #tpu.memory_space<vmem>>, %arg11: memref<128x1152xbf16, #tpu.memory_space<vmem>>) attributes {dimension_semantics = [#tpu.dimension_semantics<parallel>, #tpu.dimension_semantics<parallel>], iteration_bounds = array<i64: 2, 2>, scalar_prefetch = 0 : i64, scratch_operands = 2 : i64, tpu.core_type = #tpu.core_type<tc>, window_params = [{transform_indices = @transform_0, window_bounds = array<i64: 1, 16, 16, 512>}, {pipeline_mode = #tpu.pipeline_mode<synchronous>, transform_indices = @transform_1, window_bounds = array<i64: 512, 128>}, {pipeline_mode = #tpu.pipeline_mode<synchronous>, transform_indices = @transform_2, window_bounds = array<i64: 1, 128>}, {pipeline_mode = #tpu.pipeline_mode<synchronous>, transform_indices = @transform_3, window_bounds = array<i64: 1152, 128>}, {pipeline_mode = #tpu.pipeline_mode<synchronous>, transform_indices = @transform_4, window_bounds = array<i64: 1, 128>}, {pipeline_mode = #tpu.pipeline_mode<synchronous>, transform_indices = @transform_5, window_bounds = array<i64: 128, 512>}, {pipeline_mode = #tpu.pipeline_mode<synchronous>, transform_indices = @transform_6, window_bounds = array<i64: 1, 512>}, {transform_indices = @transform_7, window_bounds = array<i64: 1, 128, 512>}]} {
    %c8_i32 = arith.constant 8 : i32
    %0 = arith.muli %arg1, %c8_i32 : i32
    %c1_i32 = arith.constant 1 : i32
    %1 = arith.subi %0, %c1_i32 : i32
    %c6_i32 = arith.constant 6 : i32
    %2 = arith.minsi %1, %c6_i32 : i32
    %c0_i32 = arith.constant 0 : i32
    %3 = arith.maxsi %2, %c0_i32 : i32
    %c0 = arith.constant 0 : index
    %4 = arith.index_cast %3 : i32 to index
    %c0_0 = arith.constant 0 : index
    %c0_1 = arith.constant 0 : index
    %5 = vector.load %arg2[%c0, %4, %c0_0, %c0_1] : memref<1x16x16x512xbf16, #tpu.memory_space<vmem>>, vector<1x10x16x512xbf16>
    %6 = vector.shape_cast %5 : vector<1x10x16x512xbf16> to vector<10x16x512xbf16>
    %7 = vector.shape_cast %6 : vector<10x16x512xbf16> to vector<160x512xbf16>
    %c0_2 = arith.constant 0 : index
    %c0_3 = arith.constant 0 : index
    %8 = vector.load %arg3[%c0_2, %c0_3] : memref<512x128xbf16, #tpu.memory_space<vmem>>, vector<512x128xbf16>
    %cst = arith.constant dense<0.000000e+00> : vector<160x128xf32>
    %9 = tpu.matmul %7, %8, %cst {dimension_numbers = #tpu.dot_dimension_numbers<[1], [0], [0], [1], [0, 0, 1, 1], [], []>} : vector<160x512xbf16>, vector<512x128xbf16>, vector<160x128xf32> -> vector<160x128xf32>
    %c0_4 = arith.constant 0 : index
    %c0_5 = arith.constant 0 : index
    %10 = vector.load %arg4[%c0_4, %c0_5] : memref<1x128xf32, #tpu.memory_space<vmem>>, vector<1x128xf32>
    %11 = vector.broadcast %10 : vector<1x128xf32> to vector<160x128xf32>
    %12 = arith.addf %9, %11 : vector<160x128xf32>
    %cst_6 = arith.constant 0.000000e+00 : f32
    %13 = vector.broadcast %cst_6 : f32 to vector<160x128xf32>
    %14 = arith.maximumf %12, %13 : vector<160x128xf32>
    %15 = arith.truncf %14 : vector<160x128xf32> to vector<160x128xbf16>
    %16 = vector.shape_cast %15 : vector<160x128xbf16> to vector<10x16x128xbf16>
    %cst_7 = arith.constant 0.000000e+00 : bf16
    %17 = vector.broadcast %cst_7 : bf16 to vector<10x18x128xbf16>
    %c0_8 = arith.constant 0 : index
    %c0_9 = arith.constant 0 : index
    %c0_10 = arith.constant 0 : index
    %18 = vector.load %arg10[%c0_8, %c0_9, %c0_10] : memref<10x18x128xbf16, #tpu.memory_space<vmem>>, vector<10x18x128xbf16>
    tpu.vector_store %arg10[%c0_8, %c0_9, %c0_10], %17 {strides = array<i32>} : memref<10x18x128xbf16, #tpu.memory_space<vmem>>, vector<10x18x128xbf16>,
    %c0_i32_11 = arith.constant 0 : i32
    %19 = arith.cmpi eq, %arg1, %c0_i32_11 : i32
    %20 = arith.extui %19 : i1 to i32
    %c0_i32_12 = arith.constant 0 : i32
    %21 = arith.cmpi ne, %20, %c0_i32_12 : i32
    scf.if %21 {
      %80 = vector.extract_strided_slice %16 {offsets = [0, 0, 0], sizes = [9, 16, 128], strides = [1, 1, 1]} : vector<10x16x128xbf16> to vector<9x16x128xbf16>
      %c1_71 = arith.constant 1 : index
      %c1_72 = arith.constant 1 : index
      %c0_73 = arith.constant 0 : index
      %81 = vector.load %arg10[%c1_71, %c1_72, %c0_73] : memref<10x18x128xbf16, #tpu.memory_space<vmem>>, vector<9x16x128xbf16>
      tpu.vector_store %arg10[%c1_71, %c1_72, %c0_73], %80 {strides = array<i32>} : memref<10x18x128xbf16, #tpu.memory_space<vmem>>, vector<9x16x128xbf16>,
    } else {
    }
    %c1_i32_13 = arith.constant 1 : i32
    %22 = arith.cmpi eq, %arg1, %c1_i32_13 : i32
    %23 = arith.extui %22 : i1 to i32
    %c0_i32_14 = arith.constant 0 : i32
    %24 = arith.cmpi ne, %23, %c0_i32_14 : i32
    scf.if %24 {
      %80 = vector.extract_strided_slice %16 {offsets = [1, 0, 0], sizes = [9, 16, 128], strides = [1, 1, 1]} : vector<10x16x128xbf16> to vector<9x16x128xbf16>
      %c0_71 = arith.constant 0 : index
      %c1_72 = arith.constant 1 : index
      %c0_73 = arith.constant 0 : index
      %81 = vector.load %arg10[%c0_71, %c1_72, %c0_73] : memref<10x18x128xbf16, #tpu.memory_space<vmem>>, vector<9x16x128xbf16>
      tpu.vector_store %arg10[%c0_71, %c1_72, %c0_73], %80 {strides = array<i32>} : memref<10x18x128xbf16, #tpu.memory_space<vmem>>, vector<9x16x128xbf16>,
    } else {
    }
    %c0_15 = arith.constant 0 : index
    %c0_16 = arith.constant 0 : index
    %c0_17 = arith.constant 0 : index
    %25 = vector.load %arg10[%c0_15, %c0_16, %c0_17] : memref<10x18x128xbf16, #tpu.memory_space<vmem>>, vector<8x16x128xbf16>
    %26 = vector.shape_cast %25 : vector<8x16x128xbf16> to vector<128x128xbf16>
    %c0_18 = arith.constant 0 : index
    %c0_19 = arith.constant 0 : index
    %27 = vector.load %arg11[%c0_18, %c0_19] : memref<128x1152xbf16, #tpu.memory_space<vmem>>, vector<128x128xbf16>
    tpu.vector_store %arg11[%c0_18, %c0_19], %26 {strides = array<i32>} : memref<128x1152xbf16, #tpu.memory_space<vmem>>, vector<128x128xbf16>,
    %c0_20 = arith.constant 0 : index
    %c1 = arith.constant 1 : index
    %c0_21 = arith.constant 0 : index
    %28 = vector.load %arg10[%c0_20, %c1, %c0_21] : memref<10x18x128xbf16, #tpu.memory_space<vmem>>, vector<8x16x128xbf16>
    %29 = vector.shape_cast %28 : vector<8x16x128xbf16> to vector<128x128xbf16>
    %c0_22 = arith.constant 0 : index
    %c128 = arith.constant 128 : index
    %30 = vector.load %arg11[%c0_22, %c128] : memref<128x1152xbf16, #tpu.memory_space<vmem>>, vector<128x128xbf16>
    tpu.vector_store %arg11[%c0_22, %c128], %29 {strides = array<i32>} : memref<128x1152xbf16, #tpu.memory_space<vmem>>, vector<128x128xbf16>,
    %c0_23 = arith.constant 0 : index
    %c2 = arith.constant 2 : index
    %c0_24 = arith.constant 0 : index
    %31 = vector.load %arg10[%c0_23, %c2, %c0_24] : memref<10x18x128xbf16, #tpu.memory_space<vmem>>, vector<8x16x128xbf16>
    %32 = vector.shape_cast %31 : vector<8x16x128xbf16> to vector<128x128xbf16>
    %c0_25 = arith.constant 0 : index
    %c256 = arith.constant 256 : index
    %33 = vector.load %arg11[%c0_25, %c256] : memref<128x1152xbf16, #tpu.memory_space<vmem>>, vector<128x128xbf16>
    tpu.vector_store %arg11[%c0_25, %c256], %32 {strides = array<i32>} : memref<128x1152xbf16, #tpu.memory_space<vmem>>, vector<128x128xbf16>,
    %c1_26 = arith.constant 1 : index
    %c0_27 = arith.constant 0 : index
    %c0_28 = arith.constant 0 : index
    %34 = vector.load %arg10[%c1_26, %c0_27, %c0_28] : memref<10x18x128xbf16, #tpu.memory_space<vmem>>, vector<8x16x128xbf16>
    %35 = vector.shape_cast %34 : vector<8x16x128xbf16> to vector<128x128xbf16>
    %c0_29 = arith.constant 0 : index
    %c384 = arith.constant 384 : index
    %36 = vector.load %arg11[%c0_29, %c384] : memref<128x1152xbf16, #tpu.memory_space<vmem>>, vector<128x128xbf16>
    tpu.vector_store %arg11[%c0_29, %c384], %35 {strides = array<i32>} : memref<128x1152xbf16, #tpu.memory_space<vmem>>, vector<128x128xbf16>,
    %c1_30 = arith.constant 1 : index
    %c1_31 = arith.constant 1 : index
    %c0_32 = arith.constant 0 : index
    %37 = vector.load %arg10[%c1_30, %c1_31, %c0_32] : memref<10x18x128xbf16, #tpu.memory_space<vmem>>, vector<8x16x128xbf16>
    %38 = vector.shape_cast %37 : vector<8x16x128xbf16> to vector<128x128xbf16>
    %c0_33 = arith.constant 0 : index
    %c512 = arith.constant 512 : index
    %39 = vector.load %arg11[%c0_33, %c512] : memref<128x1152xbf16, #tpu.memory_space<vmem>>, vector<128x128xbf16>
    tpu.vector_store %arg11[%c0_33, %c512], %38 {strides = array<i32>} : memref<128x1152xbf16, #tpu.memory_space<vmem>>, vector<128x128xbf16>,
    %c1_34 = arith.constant 1 : index
    %c2_35 = arith.constant 2 : index
    %c0_36 = arith.constant 0 : index
    %40 = vector.load %arg10[%c1_34, %c2_35, %c0_36] : memref<10x18x128xbf16, #tpu.memory_space<vmem>>, vector<8x16x128xbf16>
    %41 = vector.shape_cast %40 : vector<8x16x128xbf16> to vector<128x128xbf16>
    %c0_37 = arith.constant 0 : index
    %c640 = arith.constant 640 : index
    %42 = vector.load %arg11[%c0_37, %c640] : memref<128x1152xbf16, #tpu.memory_space<vmem>>, vector<128x128xbf16>
    tpu.vector_store %arg11[%c0_37, %c640], %41 {strides = array<i32>} : memref<128x1152xbf16, #tpu.memory_space<vmem>>, vector<128x128xbf16>,
    %c2_38 = arith.constant 2 : index
    %c0_39 = arith.constant 0 : index
    %c0_40 = arith.constant 0 : index
    %43 = vector.load %arg10[%c2_38, %c0_39, %c0_40] : memref<10x18x128xbf16, #tpu.memory_space<vmem>>, vector<8x16x128xbf16>
    %44 = vector.shape_cast %43 : vector<8x16x128xbf16> to vector<128x128xbf16>
    %c0_41 = arith.constant 0 : index
    %c768 = arith.constant 768 : index
    %45 = vector.load %arg11[%c0_41, %c768] : memref<128x1152xbf16, #tpu.memory_space<vmem>>, vector<128x128xbf16>
    tpu.vector_store %arg11[%c0_41, %c768], %44 {strides = array<i32>} : memref<128x1152xbf16, #tpu.memory_space<vmem>>, vector<128x128xbf16>,
    %c2_42 = arith.constant 2 : index
    %c1_43 = arith.constant 1 : index
    %c0_44 = arith.constant 0 : index
    %46 = vector.load %arg10[%c2_42, %c1_43, %c0_44] : memref<10x18x128xbf16, #tpu.memory_space<vmem>>, vector<8x16x128xbf16>
    %47 = vector.shape_cast %46 : vector<8x16x128xbf16> to vector<128x128xbf16>
    %c0_45 = arith.constant 0 : index
    %c896 = arith.constant 896 : index
    %48 = vector.load %arg11[%c0_45, %c896] : memref<128x1152xbf16, #tpu.memory_space<vmem>>, vector<128x128xbf16>
    tpu.vector_store %arg11[%c0_45, %c896], %47 {strides = array<i32>} : memref<128x1152xbf16, #tpu.memory_space<vmem>>, vector<128x128xbf16>,
    %c2_46 = arith.constant 2 : index
    %c2_47 = arith.constant 2 : index
    %c0_48 = arith.constant 0 : index
    %49 = vector.load %arg10[%c2_46, %c2_47, %c0_48] : memref<10x18x128xbf16, #tpu.memory_space<vmem>>, vector<8x16x128xbf16>
    %50 = vector.shape_cast %49 : vector<8x16x128xbf16> to vector<128x128xbf16>
    %c0_49 = arith.constant 0 : index
    %c1024 = arith.constant 1024 : index
    %51 = vector.load %arg11[%c0_49, %c1024] : memref<128x1152xbf16, #tpu.memory_space<vmem>>, vector<128x128xbf16>
    tpu.vector_store %arg11[%c0_49, %c1024], %50 {strides = array<i32>} : memref<128x1152xbf16, #tpu.memory_space<vmem>>, vector<128x128xbf16>,
    %c0_50 = arith.constant 0 : index
    %c0_51 = arith.constant 0 : index
    %52 = vector.load %arg11[%c0_50, %c0_51] : memref<128x1152xbf16, #tpu.memory_space<vmem>>, vector<128x1152xbf16>
    %c0_52 = arith.constant 0 : index
    %c0_53 = arith.constant 0 : index
    %53 = vector.load %arg5[%c0_52, %c0_53] : memref<1152x128xbf16, #tpu.memory_space<vmem>>, vector<1152x128xbf16>
    %cst_54 = arith.constant dense<0.000000e+00> : vector<128x128xf32>
    %54 = tpu.matmul %52, %53, %cst_54 {dimension_numbers = #tpu.dot_dimension_numbers<[1], [0], [0], [1], [0, 0, 1, 1], [], []>} : vector<128x1152xbf16>, vector<1152x128xbf16>, vector<128x128xf32> -> vector<128x128xf32>
    %c0_55 = arith.constant 0 : index
    %c0_56 = arith.constant 0 : index
    %55 = vector.load %arg6[%c0_55, %c0_56] : memref<1x128xf32, #tpu.memory_space<vmem>>, vector<1x128xf32>
    %56 = vector.broadcast %55 : vector<1x128xf32> to vector<128x128xf32>
    %57 = arith.addf %54, %56 : vector<128x128xf32>
    %cst_57 = arith.constant 0.000000e+00 : f32
    %58 = vector.broadcast %cst_57 : f32 to vector<128x128xf32>
    %59 = arith.maximumf %57, %58 : vector<128x128xf32>
    %60 = arith.truncf %59 : vector<128x128xf32> to vector<128x128xbf16>
    %c0_58 = arith.constant 0 : index
    %c0_59 = arith.constant 0 : index
    %61 = vector.load %arg7[%c0_58, %c0_59] : memref<128x512xbf16, #tpu.memory_space<vmem>>, vector<128x512xbf16>
    %cst_60 = arith.constant dense<0.000000e+00> : vector<128x512xf32>
    %62 = tpu.matmul %60, %61, %cst_60 {dimension_numbers = #tpu.dot_dimension_numbers<[1], [0], [0], [1], [0, 0, 1, 1], [], []>} : vector<128x128xbf16>, vector<128x512xbf16>, vector<128x512xf32> -> vector<128x512xf32>
    %c0_61 = arith.constant 0 : index
    %c0_62 = arith.constant 0 : index
    %63 = vector.load %arg8[%c0_61, %c0_62] : memref<1x512xf32, #tpu.memory_space<vmem>>, vector<1x512xf32>
    %64 = vector.broadcast %63 : vector<1x512xf32> to vector<128x512xf32>
    %65 = arith.addf %62, %64 : vector<128x512xf32>
    %c8_i32_63 = arith.constant 8 : i32
    %66 = arith.muli %arg1, %c8_i32_63 : i32
    %67 = tpu.assume_multiple %66, 8 : i32
    %c0_64 = arith.constant 0 : index
    %68 = arith.index_cast %67 : i32 to index
    %c0_65 = arith.constant 0 : index
    %c0_66 = arith.constant 0 : index
    %69 = vector.load %arg2[%c0_64, %68, %c0_65, %c0_66] : memref<1x16x16x512xbf16, #tpu.memory_space<vmem>>, vector<1x8x16x512xbf16>
    %70 = vector.shape_cast %69 : vector<1x8x16x512xbf16> to vector<8x16x512xbf16>
    %71 = vector.shape_cast %70 : vector<8x16x512xbf16> to vector<128x512xbf16>
    %72 = arith.extf %71 : vector<128x512xbf16> to vector<128x512xf32>
    %73 = arith.addf %65, %72 : vector<128x512xf32>
    %cst_67 = arith.constant 0.000000e+00 : f32
    %74 = vector.broadcast %cst_67 : f32 to vector<128x512xf32>
    %75 = arith.maximumf %73, %74 : vector<128x512xf32>
    %76 = arith.truncf %75 : vector<128x512xf32> to vector<128x512xbf16>
    %c0_68 = arith.constant 0 : index
    %c0_69 = arith.constant 0 : index
    %c0_70 = arith.constant 0 : index
    %77 = vector.load %arg9[%c0_68, %c0_69, %c0_70] : memref<1x128x512xbf16, #tpu.memory_space<vmem>>, vector<1x128x512xbf16>
    %78 = vector.shape_cast %77 : vector<1x128x512xbf16> to vector<128x512xbf16>
    %79 = vector.shape_cast %76 : vector<128x512xbf16> to vector<1x128x512xbf16>
    tpu.vector_store %arg9[%c0_68, %c0_69, %c0_70], %79 {strides = array<i32>} : memref<1x128x512xbf16, #tpu.memory_space<vmem>>, vector<1x128x512xbf16>,
    return
  }
  func.func @transform_0(%arg0: i32, %arg1: i32) -> (i32, i32, i32, i32) {
    %c0_i32 = arith.constant 0 : i32
    %c0_i32_0 = arith.constant 0 : i32
    %c0_i32_1 = arith.constant 0 : i32
    %c0_i32_2 = arith.constant 0 : i32
    return %arg0, %c0_i32, %c0_i32_0, %c0_i32_1 : i32, i32, i32, i32
  }
  func.func @transform_1(%arg0: i32, %arg1: i32) -> (i32, i32) {
    %c0_i32 = arith.constant 0 : i32
    %c0_i32_0 = arith.constant 0 : i32
    %c0_i32_1 = arith.constant 0 : i32
    return %c0_i32, %c0_i32_0 : i32, i32
  }
  func.func @transform_2(%arg0: i32, %arg1: i32) -> (i32, i32) {
    %c0_i32 = arith.constant 0 : i32
    %c0_i32_0 = arith.constant 0 : i32
    %c0_i32_1 = arith.constant 0 : i32
    return %c0_i32, %c0_i32_0 : i32, i32
  }
  func.func @transform_3(%arg0: i32, %arg1: i32) -> (i32, i32) {
    %c0_i32 = arith.constant 0 : i32
    %c0_i32_0 = arith.constant 0 : i32
    %c0_i32_1 = arith.constant 0 : i32
    return %c0_i32, %c0_i32_0 : i32, i32
  }
  func.func @transform_4(%arg0: i32, %arg1: i32) -> (i32, i32) {
    %c0_i32 = arith.constant 0 : i32
    %c0_i32_0 = arith.constant 0 : i32
    %c0_i32_1 = arith.constant 0 : i32
    return %c0_i32, %c0_i32_0 : i32, i32
  }
  func.func @transform_5(%arg0: i32, %arg1: i32) -> (i32, i32) {
    %c0_i32 = arith.constant 0 : i32
    %c0_i32_0 = arith.constant 0 : i32
    %c0_i32_1 = arith.constant 0 : i32
    return %c0_i32, %c0_i32_0 : i32, i32
  }
  func.func @transform_6(%arg0: i32, %arg1: i32) -> (i32, i32) {
    %c0_i32 = arith.constant 0 : i32
    %c0_i32_0 = arith.constant 0 : i32
    %c0_i32_1 = arith.constant 0 : i32
    return %c0_i32, %c0_i32_0 : i32, i32
  }
  func.func @transform_7(%arg0: i32, %arg1: i32) -> (i32, i32, i32) {
    %c0_i32 = arith.constant 0 : i32
    %c0_i32_0 = arith.constant 0 : i32
    return %arg0, %arg1, %c0_i32 : i32, i32, i32
  }
}

</mosaic_0001>

<llo_original>
// kernel: run.2
$region0: #{run.2}
  #allocation0 [shape = 'u32[]', space=smem, size = 0x4, offset = 0x4, fixed_abs, tag = 'smem constant byte address 0x4 - core index']
  #allocation1 [shape = 'u32[144,128]{1,0:T(1,128)}', space=vmem, size = 0x12000, scoped, tag = 'internal scratch']
  #allocation2 [shape = 'bf16[10,18,128]{2,1,0:T(8,128)(2,1)}', space=vmem, size = 0xf000, scoped, tag = 'scratch operand']
  #allocation3 [shape = 'bf16[128,1152]{1,0:T(16,128)(2,1)}', space=vmem, size = 0x48000, scoped, tag = 'scratch operand']
  #allocation4 [shape = 'bf16[128,256]{1,0:T(16,128)(2,1)}', space=vmem, size = 0x10000, scoped, tag = 'scratch operand']
  %s0 = inlined_call_operand.vmem [shape: bf16[2,16,16,128], index: 0, kind: input, shape index: {}]
  %s1 = inlined_call_operand.vmem [shape: bf16[128,128], index: 1, kind: input, shape index: {}]
  %s2 = inlined_call_operand.vmem [shape: f32[1,128], index: 2, kind: input, shape index: {}]
  %s3 = inlined_call_operand.vmem [shape: bf16[1152,128], index: 3, kind: input, shape index: {}]
  %s4 = inlined_call_operand.vmem [shape: f32[1,128], index: 4, kind: input, shape index: {}]
  %s5 = inlined_call_operand.vmem [shape: bf16[256,512], index: 5, kind: input, shape index: {}]
  %s6 = inlined_call_operand.vmem [shape: f32[1,512], index: 6, kind: input, shape index: {}]
  %s7 = inlined_call_operand.vmem [shape: bf16[2,256,512], index: 7, kind: output, shape index: {}]
  %s8 = sld [smem:[#allocation0]]
  $region69: #{run.2} parent=0
    _
  %s10 = ssub.s32 1, %s8
  %s11 = scalar_select 0, %s10, %s8
  loop: start=0, step=1, limit=6
  $region2: #{run.2} parent=0 // loop_pre_header
    _
  $region3: #{run.2} parent=0 // loop_header
    %s13 = sphi 0, %s17
    %p14 = scmp.ge.s32.totalorder %s13, 6
    %s20 = sphi 0, %s32
    %s21 = sphi 0, %s28
    %s22 = sphi 0, %s20
    %s23 = sphi 0, %s21
    %s24 = sphi 0, %s22
    %s25 = sphi 0, %s23
    %s35 = sphi 0, %s37
    %s38 = sphi 0, %s35
    %s39 = sphi 0, %s38
    %s55 = sphi 0, %s39
    %s59 = sphi 0, %s59
    %s61 = sphi 0, %s59
    %s62 = sphi 0, %s61
    %s76 = sphi 0, %s62
    %s80 = sphi 0, %s80
    %s82 = sphi 0, %s80
    %s83 = sphi 0, %s82
    %s97 = sphi 0, %s83
    %s101 = sphi 0, %s101
    %s103 = sphi 0, %s101
    %s104 = sphi 0, %s103
    %s118 = sphi 0, %s104
    %s122 = sphi 0, %s122
    %s124 = sphi 0, %s122
    %s125 = sphi 0, %s124
    %s139 = sphi 0, %s125
    %s143 = sphi 0, %s143
    %s145 = sphi 0, %s143
    %s146 = sphi 0, %s145
    %s160 = sphi 0, %s146
    %s164 = sphi 0, %s164
    %s166 = sphi 0, %s164
    %s167 = sphi 0, %s166
    %s181 = sphi 0, %s167
    %s189 = sphi 0, %s191
    %s192 = sphi 0, %s189
    %s193 = sphi 0, %s192
    %s209 = sphi 0, %s193
  $region4: #{run.2} parent=0 // loop_header_branch
    %16 = sbr.rel (%p14) target = $region8
  $region5: #{run.2} parent=0 // loop_body
    %s18 = ssub.s32 %s13, 1
    %s19 = ssub.s32 %s13, 2
    %s26 = sadd.s32 1, %s21
    %p27 = scmp.ge.s32.totalorder %s26, 2
    %s28 = scalar_select %p27, 0, %s26
    %s29 = sadd.s32 1, %s20
    %s30 = scalar_select %p27, %s29, %s20
    %p31 = scmp.ge.s32.totalorder %s30, 2
    %s32 = scalar_select %p31, 0, %s30
    %s33 = ssub.s32 %s20, %s32
    %p34 = scmp.eq.s32.totalorder %s33, 0
    %s36 = sadd.s32 %s35, 1
    %s37 = scalar_select %p34, %s35, %s36
    %p40 = pneg %p34
    %p41 = scmp.eq.s32.totalorder %s13, 3
    %p42 = por %p40, %p41
    %p43 = scmp.ne.s32.totalorder %s35, %s38
    %p44 = scmp.eq.s32.totalorder %s13, 0
    %p45 = por %p43, %p44
    %p46 = scmp.ne.s32.totalorder %s35, %s38
    %p47 = scmp.eq.s32.totalorder %s18, 3
    %p48 = por %p46, %p47
    %p49 = scmp.ne.s32.totalorder %s38, %s39
    %p50 = scmp.eq.s32.totalorder %s18, 0
    %p51 = por %p49, %p50
    %p52 = scmp.ne.s32.totalorder %s38, %s39
    %p53 = scmp.eq.s32.totalorder %s19, 3
    %p54 = por %p52, %p53
    %p56 = scmp.ne.s32.totalorder %s39, %s55
    %p57 = scmp.eq.s32.totalorder %s19, 0
    %p58 = por %p56, %p57
    %s60 = sadd.s32 %s59, 1
    %p63 = scmp.eq.s32.totalorder %s13, 3
    %p64 = scmp.ne.s32.totalorder %s59, %s61
    %p65 = scmp.eq.s32.totalorder %s13, 0
    %p66 = por %p64, %p65
    %p67 = scmp.ne.s32.totalorder %s59, %s61
    %p68 = scmp.eq.s32.totalorder %s18, 3
    %p69 = por %p67, %p68
    %p70 = scmp.ne.s32.totalorder %s61, %s62
    %p71 = scmp.eq.s32.totalorder %s18, 0
    %p72 = por %p70, %p71
    %p73 = scmp.ne.s32.totalorder %s61, %s62
    %p74 = scmp.eq.s32.totalorder %s19, 3
    %p75 = por %p73, %p74
    %p77 = scmp.ne.s32.totalorder %s62, %s76
    %p78 = scmp.eq.s32.totalorder %s19, 0
    %p79 = por %p77, %p78
    %s81 = sadd.s32 %s80, 1
    %p84 = scmp.eq.s32.totalorder %s13, 3
    %p85 = scmp.ne.s32.totalorder %s80, %s82
    %p86 = scmp.eq.s32.totalorder %s13, 0
    %p87 = por %p85, %p86
    %p88 = scmp.ne.s32.totalorder %s80, %s82
    %p89 = scmp.eq.s32.totalorder %s18, 3
    %p90 = por %p88, %p89
    %p91 = scmp.ne.s32.totalorder %s82, %s83
    %p92 = scmp.eq.s32.totalorder %s18, 0
    %p93 = por %p91, %p92
    %p94 = scmp.ne.s32.totalorder %s82, %s83
    %p95 = scmp.eq.s32.totalorder %s19, 3
    %p96 = por %p94, %p95
    %p98 = scmp.ne.s32.totalorder %s83, %s97
    %p99 = scmp.eq.s32.totalorder %s19, 0
    %p100 = por %p98, %p99
    %s102 = sadd.s32 %s101, 1
    %p105 = scmp.eq.s32.totalorder %s13, 3
    %p106 = scmp.ne.s32.totalorder %s101, %s103
    %p107 = scmp.eq.s32.totalorder %s13, 0
    %p108 = por %p106, %p107
    %p109 = scmp.ne.s32.totalorder %s101, %s103
    %p110 = scmp.eq.s32.totalorder %s18, 3
    %p111 = por %p109, %p110
    %p112 = scmp.ne.s32.totalorder %s103, %s104
    %p113 = scmp.eq.s32.totalorder %s18, 0
    %p114 = por %p112, %p113
    %p115 = scmp.ne.s32.totalorder %s103, %s104
    %p116 = scmp.eq.s32.totalorder %s19, 3
    %p117 = por %p115, %p116
    %p119 = scmp.ne.s32.totalorder %s104, %s118
    %p120 = scmp.eq.s32.totalorder %s19, 0
    %p121 = por %p119, %p120
    %s123 = sadd.s32 %s122, 1
    %p126 = scmp.eq.s32.totalorder %s13, 3
    %p127 = scmp.ne.s32.totalorder %s122, %s124
    %p128 = scmp.eq.s32.totalorder %s13, 0
    %p129 = por %p127, %p128
    %p130 = scmp.ne.s32.totalorder %s122, %s124
    %p131 = scmp.eq.s32.totalorder %s18, 3
    %p132 = por %p130, %p131
    %p133 = scmp.ne.s32.totalorder %s124, %s125
    %p134 = scmp.eq.s32.totalorder %s18, 0
    %p135 = por %p133, %p134
    %p136 = scmp.ne.s32.totalorder %s124, %s125
    %p137 = scmp.eq.s32.totalorder %s19, 3
    %p138 = por %p136, %p137
    %p140 = scmp.ne.s32.totalorder %s125, %s139
    %p141 = scmp.eq.s32.totalorder %s19, 0
    %p142 = por %p140, %p141
    %s144 = sadd.s32 %s143, 1
    %p147 = scmp.eq.s32.totalorder %s13, 3
    %p148 = scmp.ne.s32.totalorder %s143, %s145
    %p149 = scmp.eq.s32.totalorder %s13, 0
    %p150 = por %p148, %p149
    %p151 = scmp.ne.s32.totalorder %s143, %s145
    %p152 = scmp.eq.s32.totalorder %s18, 3
    %p153 = por %p151, %p152
    %p154 = scmp.ne.s32.totalorder %s145, %s146
    %p155 = scmp.eq.s32.totalorder %s18, 0
    %p156 = por %p154, %p155
    %p157 = scmp.ne.s32.totalorder %s145, %s146
    %p158 = scmp.eq.s32.totalorder %s19, 3
    %p159 = por %p157, %p158
    %p161 = scmp.ne.s32.totalorder %s146, %s160
    %p162 = scmp.eq.s32.totalorder %s19, 0
    %p163 = por %p161, %p162
    %s165 = sadd.s32 %s164, 1
    %p168 = scmp.eq.s32.totalorder %s13, 3
    %p169 = scmp.ne.s32.totalorder %s164, %s166
    %p170 = scmp.eq.s32.totalorder %s13, 0
    %p171 = por %p169, %p170
    %p172 = scmp.ne.s32.totalorder %s164, %s166
    %p173 = scmp.eq.s32.totalorder %s18, 3
    %p174 = por %p172, %p173
    %p175 = scmp.ne.s32.totalorder %s166, %s167
    %p176 = scmp.eq.s32.totalorder %s18, 0
    %p177 = por %p175, %p176
    %p178 = scmp.ne.s32.totalorder %s166, %s167
    %p179 = scmp.eq.s32.totalorder %s19, 3
    %p180 = por %p178, %p179
    %p182 = scmp.ne.s32.totalorder %s167, %s181
    %p183 = scmp.eq.s32.totalorder %s19, 0
    %p184 = por %p182, %p183
    %s185 = ssub.s32 %s20, %s32
    %s186 = ssub.s32 %s21, %s28
    %s187 = sor.u32 %s185, %s186
    %p188 = scmp.eq.s32.totalorder %s187, 0
    %s190 = sadd.s32 %s189, 1
    %s191 = scalar_select %p188, %s189, %s190
    %p194 = pneg %p188
    %p195 = scmp.eq.s32.totalorder %s13, 3
    %p196 = por %p194, %p195
    %p197 = scmp.ne.s32.totalorder %s189, %s192
    %p198 = scmp.eq.s32.totalorder %s13, 0
    %p199 = por %p197, %p198
    %p200 = scmp.ne.s32.totalorder %s189, %s192
    %p201 = scmp.eq.s32.totalorder %s18, 3
    %p202 = por %p200, %p201
    %p203 = scmp.ne.s32.totalorder %s192, %s193
    %p204 = scmp.eq.s32.totalorder %s18, 0
    %p205 = por %p203, %p204
    %p206 = scmp.ne.s32.totalorder %s192, %s193
    %p207 = scmp.eq.s32.totalorder %s19, 3
    %p208 = por %p206, %p207
    %p210 = scmp.ne.s32.totalorder %s193, %s209
    %p211 = scmp.eq.s32.totalorder %s19, 0
    %p212 = por %p210, %p211
    %p213 = scmp.le.s32.totalorder 1, %s13
    %p214 = scmp.lt.s32.totalorder %s13, 5
    %p215 = pnand %p213, %p214
    %p216 = pneg %p215
    // Predicated region
    $region9: #{run.2} parent=5 // pred_check
      _
    $region10: #{run.2} parent=5 // pred_check_branch
      %218 = sbr.rel (%p215) target = $region12
    $region11: #{run.2} parent=5 // pred_region
      %s219 = ssub.s32 %s13, 1
      // Predicated region
      $region13: #{run.2} parent=11 // pred_check
        %p220 = pneg %p72
      $region14: #{run.2} parent=11 // pred_check_branch
        %222 = sbr.rel (%p220) target = $region16
      $region15: #{run.2} parent=11 // pred_region
        _
      $region16: #{run.2} parent=11 // pred_fallthru
        _
      // Predicated region
      $region17: #{run.2} parent=11 // pred_check
        %p223 = pneg %p93
      $region18: #{run.2} parent=11 // pred_check_branch
        %225 = sbr.rel (%p223) target = $region20
      $region19: #{run.2} parent=11 // pred_region
        _
      $region20: #{run.2} parent=11 // pred_fallthru
        _
      // Predicated region
      $region21: #{run.2} parent=11 // pred_check
        %p226 = pneg %p114
      $region22: #{run.2} parent=11 // pred_check_branch
        %228 = sbr.rel (%p226) target = $region24
      $region23: #{run.2} parent=11 // pred_region
        _
      $region24: #{run.2} parent=11 // pred_fallthru
        _
      // Predicated region
      $region25: #{run.2} parent=11 // pred_check
        %p229 = pneg %p135
      $region26: #{run.2} parent=11 // pred_check_branch
        %231 = sbr.rel (%p229) target = $region28
      $region27: #{run.2} parent=11 // pred_region
        _
      $region28: #{run.2} parent=11 // pred_fallthru
        _
      // Predicated region
      $region29: #{run.2} parent=11 // pred_check
        %p232 = pneg %p156
      $region30: #{run.2} parent=11 // pred_check_branch
        %234 = sbr.rel (%p232) target = $region32
      $region31: #{run.2} parent=11 // pred_region
        _
      $region32: #{run.2} parent=11 // pred_fallthru
        _
      // Predicated region
      $region33: #{run.2} parent=11 // pred_check
        %p235 = pneg %p177
      $region34: #{run.2} parent=11 // pred_check_branch
        %237 = sbr.rel (%p235) target = $region36
      $region35: #{run.2} parent=11 // pred_region
        _
      $region36: #{run.2} parent=11 // pred_fallthru
        _
    $region12: #{run.2} parent=5 // pred_fallthru
      _
    %p238 = scmp.lt.s32.totalorder %s13, 4
    // Predicated region
    $region37: #{run.2} parent=5 // pred_check
      %p239 = pneg %p238
    $region38: #{run.2} parent=5 // pred_check_branch
      %241 = sbr.rel (%p239) target = $region40
    $region39: #{run.2} parent=5 // pred_region
      // Predicated region
      $region41: #{run.2} parent=39 // pred_check
        %p242 = pneg %p45
      $region42: #{run.2} parent=39 // pred_check_branch
        %244 = sbr.rel (%p242) target = $region44
      $region43: #{run.2} parent=39 // pred_region
        %p245 = scmp.lt.s32.totalorder %s20, 1
        %s246 = scalar_select %p245, %s20, 1
        %s247 = smul.addr %s246, 32
        %s248 = smul.addr %s247, 4
        %s249 = scalar_lea.vmem %s0, %s248
      $region44: #{run.2} parent=39 // pred_fallthru
        _
    $region40: #{run.2} parent=5 // pred_fallthru
      _
    %p250 = scmp.le.s32.totalorder 1, %s13
    %p251 = scmp.lt.s32.totalorder %s13, 5
    %p252 = pnand %p250, %p251
    %p253 = pneg %p252
    // Predicated region
    $region45: #{run.2} parent=5 // pred_check
      _
    $region46: #{run.2} parent=5 // pred_check_branch
      %255 = sbr.rel (%p252) target = $region48
    $region47: #{run.2} parent=5 // pred_region
      %s256 = ssub.s32 %s13, 1
      %p257 = scmp.lt.s32.totalorder %s22, 1
      %s258 = scalar_select %p257, %s22, 1
      %s259 = smul.addr %s258, 32
      %s260 = smul.addr %s259, 4
      %s261 = scalar_lea.vmem %s0, %s260
      %p262 = pneg %p51
      %p263 = pneg %p48
      %p264 = pneg %p72
      %p265 = pneg %p69
      %p266 = pneg %p93
      %p267 = pneg %p90
      %p268 = pneg %p114
      %p269 = pneg %p111
      %p270 = pneg %p135
      %p271 = pneg %p132
      %p272 = pneg %p156
      %p273 = pneg %p153
      %p274 = pneg %p177
      %p275 = pneg %p174
      %p276 = pneg %p205
      %p277 = pneg %p202
      %s278 = smul.u32 16, %s23
      %p279 = scmp.lt.s32.totalorder %s22, 1
      %s280 = scalar_select %p279, %s22, 1
      %p281 = scmp.lt.s32.totalorder %s278, 31
      %s282 = scalar_select %p281, %s278, 31
      %s283 = smul.addr %s282, 4
      %s284 = smul.addr %s280, 128
      %s285 = sadd.s32 %s283, %s284
      %s286 = smul.addr %s285, 4
      %s287 = scalar_lea.vmem %s7, %s286
      %p288 = scmp.lt.s32.totalorder %s22, 1
      %s289 = scalar_select %p288, %s22, 1
      %s290 = smul.addr %s289, 32
      %s291 = smul.addr %s290, 4
      %s292 = scalar_lea.vmem %s0, %s291
      %s293 = smul.u32 16, %s23
      %p294 = scmp.lt.s32.totalorder %s22, 1
      %s295 = scalar_select %p294, %s22, 1
      %p296 = scmp.lt.s32.totalorder %s293, 31
      %s297 = scalar_select %p296, %s293, 31
      %s298 = smul.addr %s297, 4
      %s299 = smul.addr %s295, 128
      %s300 = sadd.s32 %s298, %s299
      %s301 = smul.addr %s300, 4
      %s302 = scalar_lea.vmem %s7, %s301
      %s303 = smul.u32 16, %s23
      %s305 = smul.u32 %s23, 8
      %s306 = ssub.s32 %s305, 1
      %p307 = scmp.lt.s32.totalorder %s306, 6
      %s308 = scalar_select %p307, %s306, 6
      %p309 = scmp.gt.s32.totalorder %s308, 0
      %s310 = scalar_select %p309, %s308, 0
      %s311 = smul.u32 %s310, 2
      %s312 = smul.addr %s311, 4
      %s313 = scalar_lea.vmem %s292, %s312
      %v314 = vld [vmem:[%s313] sm:$0xf]
      %v315 = vld [vmem:[%s313 + $0x4] sm:$0xf]
      %v316 = vld [vmem:[%s313 + $0x8] sm:$0xf]
      %v317 = vld [vmem:[%s313 + $0xc] sm:$0xf]
      %v318 = vld [vmem:[%s313 + $0x10] sm:$0xf]
      %v319 = vld [vmem:[%s313 + $0x14] sm:$0xf]
      %v320 = vld [vmem:[%s313 + $0x18] sm:$0xf]
      %v321 = vld [vmem:[%s313 + $0x1c] sm:$0xf]
      %v322 = vld [vmem:[%s313 + $0x20] sm:$0xf]
      %v323 = vld [vmem:[%s313 + $0x24] sm:$0xf]
      %v324 = vld [vmem:[%s313 + $0x28] sm:$0xf]
      %v325 = vld [vmem:[%s313 + $0x2c] sm:$0xf]
      %v326 = vld [vmem:[%s313 + $0x30] sm:$0xf]
      %v327 = vld [vmem:[%s313 + $0x34] sm:$0xf]
      %v328 = vld [vmem:[%s313 + $0x38] sm:$0xf]
      %v329 = vld [vmem:[%s313 + $0x3c] sm:$0xf]
      %v330 = vld [vmem:[%s313 + $0x40] sm:$0xf]
      %v331 = vld [vmem:[%s313 + $0x44] sm:$0xf]
      %v332 = vld [vmem:[%s313 + $0x48] sm:$0xf]
      %v333 = vld [vmem:[%s313 + $0x4c] sm:$0xf]
      %v334 = vld [vmem:[%s1] sm:$0xf]
      %v335 = vld [vmem:[%s1 + $0x4] sm:$0xf]
      %v336 = vld [vmem:[%s1 + $0x8] sm:$0xf]
      %v337 = vld [vmem:[%s1 + $0xc] sm:$0xf]
      %v338 = vld [vmem:[%s1 + $0x10] sm:$0xf]
      %v339 = vld [vmem:[%s1 + $0x14] sm:$0xf]
      %v340 = vld [vmem:[%s1 + $0x18] sm:$0xf]
      %v341 = vld [vmem:[%s1 + $0x1c] sm:$0xf]
      %v342 = vld [vmem:[%s1 + $0x20] sm:$0xf]
      %v343 = vld [vmem:[%s1 + $0x24] sm:$0xf]
      %v344 = vld [vmem:[%s1 + $0x28] sm:$0xf]
      %v345 = vld [vmem:[%s1 + $0x2c] sm:$0xf]
      %v346 = vld [vmem:[%s1 + $0x30] sm:$0xf]
      %v347 = vld [vmem:[%s1 + $0x34] sm:$0xf]
      %v348 = vld [vmem:[%s1 + $0x38] sm:$0xf]
      %v349 = vld [vmem:[%s1 + $0x3c] sm:$0xf]
      %v350 = vld [vmem:[%s2] sm:$0x1]
      %v352 = vlaneseq
      %v353 = vshrl.u32 %v352, 7
      %v354 = vsub.s32 0, %v353
      %v355 = vrot.slane %v350, %v354
      %v377 = vunpack.c.l.b16 %v314
      %v378 = vunpack.c.l.b16 %v315
      %v379 = vunpack.c.l.b16 %v316
      %v380 = vunpack.c.l.b16 %v317
      %v381 = vunpack.c.l.b16 %v318
      %v382 = vunpack.c.l.b16 %v319
      %v383 = vunpack.c.l.b16 %v320
      %v384 = vunpack.c.l.b16 %v321
      %v385 = vunpack.c.l.b16 %v322
      %v386 = vunpack.c.l.b16 %v323
      %v387 = vunpack.c.l.b16 %v324
      %v388 = vunpack.c.l.b16 %v325
      %v389 = vunpack.c.l.b16 %v326
      %v390 = vunpack.c.l.b16 %v327
      %v391 = vunpack.c.l.b16 %v328
      %v392 = vunpack.c.l.b16 %v329
      %v393 = vunpack.c.l.b16 %v330
      %v394 = vunpack.c.l.b16 %v331
      %v395 = vunpack.c.l.b16 %v332
      %v396 = vunpack.c.l.b16 %v333
      %v397 = vpack.c.b16 %v378, %v377
      %v398 = vpack.c.b16 %v380, %v379
      %v399 = vpack.c.b16 %v382, %v381
      %v400 = vpack.c.b16 %v384, %v383
      %v401 = vpack.c.b16 %v386, %v385
      %v402 = vpack.c.b16 %v388, %v387
      %v403 = vpack.c.b16 %v390, %v389
      %v404 = vpack.c.b16 %v392, %v391
      %v405 = vpack.c.b16 %v394, %v393
      %v406 = vpack.c.b16 %v396, %v395
      %v433 = vunpack.c.l.b16 %v334
      %v434 = vunpack.c.l.b16 %v335
      %v435 = vunpack.c.l.b16 %v336
      %v436 = vunpack.c.l.b16 %v337
      %v437 = vunpack.c.l.b16 %v338
      %v438 = vunpack.c.l.b16 %v339
      %v439 = vunpack.c.l.b16 %v340
      %v440 = vunpack.c.l.b16 %v341
      %v441 = vunpack.c.l.b16 %v342
      %v442 = vunpack.c.l.b16 %v343
      %v443 = vunpack.c.l.b16 %v344
      %v444 = vunpack.c.l.b16 %v345
      %v445 = vunpack.c.l.b16 %v346
      %v446 = vunpack.c.l.b16 %v347
      %v447 = vunpack.c.l.b16 %v348
      %v448 = vunpack.c.l.b16 %v349
      %v449 = vpack.c.b16 %v434, %v433
      %v450 = vpack.c.b16 %v436, %v435
      %v451 = vpack.c.b16 %v438, %v437
      %v452 = vpack.c.b16 %v440, %v439
      %v453 = vpack.c.b16 %v442, %v441
      %v454 = vpack.c.b16 %v444, %v443
      %v455 = vpack.c.b16 %v446, %v445
      %v456 = vpack.c.b16 %v448, %v447
      %465 = vmatprep.subr.bf16.mxu0 0
      %466 = vmatpush1.bf16.msra.mxu0 %v449
      %467 = vmatprep.subr.bf16.mxu0 0
      %468 = vmatpush1.bf16.msra.mxu0 %v450
      %469 = vmatprep.subr.bf16.mxu0 0
      %470 = vmatpush1.bf16.msra.mxu0 %v451
      %471 = vmatprep.subr.bf16.mxu0 0
      %472 = vmatpush1.bf16.msra.mxu0 %v452
      %473 = vmatprep.subr.bf16.mxu0 0
      %474 = vmatpush1.bf16.msra.mxu0 %v453
      %475 = vmatprep.subr.bf16.mxu0 0
      %476 = vmatpush1.bf16.msra.mxu0 %v454
      %477 = vmatprep.subr.bf16.mxu0 0
      %478 = vmatpush1.bf16.msra.mxu0 %v455
      %479 = vmatprep.subr.bf16.mxu0 0
      %480 = vmatpush1.bf16.msra.mxu0 %v456
      %481 = vmatprep.subr.bf16.mxu0 0
      %482 = vmatpush1.bf16.msra.mxu0 0
      %483 = vmatprep.subr.bf16.mxu0 0
      %484 = vmatpush1.bf16.msra.mxu0 0
      %485 = vmatprep.subr.bf16.mxu0 0
      %486 = vmatpush1.bf16.msra.mxu0 0
      %487 = vmatprep.subr.bf16.mxu0 0
      %488 = vmatpush1.bf16.msra.mxu0 0
      %489 = vmatprep.subr.bf16.mxu0 0
      %490 = vmatpush1.bf16.msra.mxu0 0
      %491 = vmatprep.subr.bf16.mxu0 0
      %492 = vmatpush1.bf16.msra.mxu0 0
      %493 = vmatprep.subr.bf16.mxu0 0
      %494 = vmatpush1.bf16.msra.mxu0 0
      %495 = vmatprep.subr.bf16.mxu0 0
      %496 = vmatpush1.bf16.msra.mxu0 0
      %497 = vmatprep.mubr.bf16.mxu0 0
      %498 = vmatmul.mubr.bf16.gmra.mrb[0].mxu0 %v397
      %v499 = vpop.f32.mrb[0].mxu0
      %v500 = vadd.f32 %v355, %v499
      %v501 = vpop.f32.mrb[0].mxu0
      %v502 = vpop.f32.mrb[0].mxu0
      %v503 = vadd.f32 %v355, %v502
      %v504 = vpop.f32.mrb[0].mxu0
      %505 = vmatprep.mubr.bf16.mxu0 0
      %506 = vmatmul.mubr.bf16.gmra.mrb[0].mxu0 %v398
      %v507 = vpop.f32.mrb[0].mxu0
      %v508 = vadd.f32 %v355, %v507
      %v509 = vpop.f32.mrb[0].mxu0
      %v510 = vpop.f32.mrb[0].mxu0
      %v511 = vadd.f32 %v355, %v510
      %v512 = vpop.f32.mrb[0].mxu0
      %513 = vmatprep.mubr.bf16.mxu0 0
      %514 = vmatmul.mubr.bf16.gmra.mrb[0].mxu0 %v399
      %v515 = vpop.f32.mrb[0].mxu0
      %v516 = vadd.f32 %v355, %v515
      %v517 = vpop.f32.mrb[0].mxu0
      %v518 = vpop.f32.mrb[0].mxu0
      %v519 = vadd.f32 %v355, %v518
      %v520 = vpop.f32.mrb[0].mxu0
      %521 = vmatprep.mubr.bf16.mxu0 0
      %522 = vmatmul.mubr.bf16.gmra.mrb[0].mxu0 %v400
      %v523 = vpop.f32.mrb[0].mxu0
      %v524 = vadd.f32 %v355, %v523
      %v525 = vpop.f32.mrb[0].mxu0
      %v526 = vpop.f32.mrb[0].mxu0
      %v527 = vadd.f32 %v355, %v526
      %v528 = vpop.f32.mrb[0].mxu0
      %529 = vmatprep.mubr.bf16.mxu0 0
      %530 = vmatmul.mubr.bf16.gmra.mrb[0].mxu0 %v401
      %v531 = vpop.f32.mrb[0].mxu0
      %v532 = vadd.f32 %v355, %v531
      %v533 = vpop.f32.mrb[0].mxu0
      %v534 = vpop.f32.mrb[0].mxu0
      %v535 = vadd.f32 %v355, %v534
      %v536 = vpop.f32.mrb[0].mxu0
      %537 = vmatprep.mubr.bf16.mxu0 0
      %538 = vmatmul.mubr.bf16.gmra.mrb[0].mxu0 %v402
      %v539 = vpop.f32.mrb[0].mxu0
      %v540 = vadd.f32 %v355, %v539
      %v541 = vpop.f32.mrb[0].mxu0
      %v542 = vpop.f32.mrb[0].mxu0
      %v543 = vadd.f32 %v355, %v542
      %v544 = vpop.f32.mrb[0].mxu0
      %545 = vmatprep.mubr.bf16.mxu0 0
      %546 = vmatmul.mubr.bf16.gmra.mrb[0].mxu0 %v403
      %v547 = vpop.f32.mrb[0].mxu0
      %v548 = vadd.f32 %v355, %v547
      %v549 = vpop.f32.mrb[0].mxu0
      %v550 = vpop.f32.mrb[0].mxu0
      %v551 = vadd.f32 %v355, %v550
      %v552 = vpop.f32.mrb[0].mxu0
      %553 = vmatprep.mubr.bf16.mxu0 0
      %554 = vmatmul.mubr.bf16.gmra.mrb[0].mxu0 %v404
      %v555 = vpop.f32.mrb[0].mxu0
      %v556 = vadd.f32 %v355, %v555
      %v557 = vpop.f32.mrb[0].mxu0
      %v558 = vpop.f32.mrb[0].mxu0
      %v559 = vadd.f32 %v355, %v558
      %v560 = vpop.f32.mrb[0].mxu0
      %561 = vmatprep.mubr.bf16.mxu0 0
      %562 = vmatmul.mubr.bf16.gmra.mrb[0].mxu0 %v405
      %v563 = vpop.f32.mrb[0].mxu0
      %v564 = vadd.f32 %v355, %v563
      %v565 = vpop.f32.mrb[0].mxu0
      %v566 = vpop.f32.mrb[0].mxu0
      %v567 = vadd.f32 %v355, %v566
      %v568 = vpop.f32.mrb[0].mxu0
      %569 = vmatprep.mubr.bf16.mxu0 0
      %570 = vmatmul.mubr.bf16.gmra.mrb[0].mxu0 %v406
      %v571 = vpop.f32.mrb[0].mxu0
      %v572 = vadd.f32 %v355, %v571
      %v573 = vpop.f32.mrb[0].mxu0
      %v574 = vpop.f32.mrb[0].mxu0
      %v575 = vadd.f32 %v355, %v574
      %v576 = vpop.f32.mrb[0].mxu0
      %577 = vdwg.mxu0
      %v578 = vmax.f32 %v500, 0.0
      %v579 = vmax.f32 %v503, 0.0
      %v580 = vmax.f32 %v508, 0.0
      %v581 = vmax.f32 %v511, 0.0
      %v582 = vmax.f32 %v516, 0.0
      %v583 = vmax.f32 %v519, 0.0
      %v584 = vmax.f32 %v524, 0.0
      %v585 = vmax.f32 %v527, 0.0
      %v586 = vmax.f32 %v532, 0.0
      %v587 = vmax.f32 %v535, 0.0
      %v588 = vmax.f32 %v540, 0.0
      %v589 = vmax.f32 %v543, 0.0
      %v590 = vmax.f32 %v548, 0.0
      %v591 = vmax.f32 %v551, 0.0
      %v592 = vmax.f32 %v556, 0.0
      %v593 = vmax.f32 %v559, 0.0
      %v594 = vmax.f32 %v564, 0.0
      %v595 = vmax.f32 %v567, 0.0
      %v596 = vmax.f32 %v572, 0.0
      %v597 = vmax.f32 %v575, 0.0
      %v598 = vpack.c.bf16 %v579, %v578
      %v599 = vpack.c.bf16 %v581, %v580
      %v600 = vpack.c.bf16 %v583, %v582
      %v601 = vpack.c.bf16 %v585, %v584
      %v602 = vpack.c.bf16 %v587, %v586
      %v603 = vpack.c.bf16 %v589, %v588
      %v604 = vpack.c.bf16 %v591, %v590
      %v605 = vpack.c.bf16 %v593, %v592
      %v606 = vpack.c.bf16 %v595, %v594
      %v607 = vpack.c.bf16 %v597, %v596
      %608 = vst [vmem:[#allocation2] sm:$0xf] 0
      %609 = vst [vmem:[#allocation2 + $0x4] sm:$0xf] 0
      %610 = vst [vmem:[#allocation2 + $0x8] sm:$0x1] 0
      %611 = vst [vmem:[#allocation2 + $0xc] sm:$0xf] 0
      %612 = vst [vmem:[#allocation2 + $0x10] sm:$0xf] 0
      %613 = vst [vmem:[#allocation2 + $0x14] sm:$0x1] 0
      %614 = vst [vmem:[#allocation2 + $0x18] sm:$0xf] 0
      %615 = vst [vmem:[#allocation2 + $0x1c] sm:$0xf] 0
      %616 = vst [vmem:[#allocation2 + $0x20] sm:$0x1] 0
      %617 = vst [vmem:[#allocation2 + $0x24] sm:$0xf] 0
      %618 = vst [vmem:[#allocation2 + $0x28] sm:$0xf] 0
      %619 = vst [vmem:[#allocation2 + $0x2c] sm:$0x1] 0
      %620 = vst [vmem:[#allocation2 + $0x30] sm:$0xf] 0
      %621 = vst [vmem:[#allocation2 + $0x34] sm:$0xf] 0
      %622 = vst [vmem:[#allocation2 + $0x38] sm:$0x1] 0
      %623 = vst [vmem:[#allocation2 + $0x3c] sm:$0xf] 0
      %624 = vst [vmem:[#allocation2 + $0x40] sm:$0xf] 0
      %625 = vst [vmem:[#allocation2 + $0x44] sm:$0x1] 0
      %626 = vst [vmem:[#allocation2 + $0x48] sm:$0xf] 0
      %627 = vst [vmem:[#allocation2 + $0x4c] sm:$0xf] 0
      %628 = vst [vmem:[#allocation2 + $0x50] sm:$0x1] 0
      %629 = vst [vmem:[#allocation2 + $0x54] sm:$0xf] 0
      %630 = vst [vmem:[#allocation2 + $0x58] sm:$0xf] 0
      %631 = vst [vmem:[#allocation2 + $0x5c] sm:$0x1] 0
      %632 = vst [vmem:[#allocation2 + $0x60] sm:$0xf] 0
      %633 = vst [vmem:[#allocation2 + $0x64] sm:$0xf] 0
      %634 = vst [vmem:[#allocation2 + $0x68] sm:$0x1] 0
      %635 = vst [vmem:[#allocation2 + $0x6c] sm:$0xf] 0
      %636 = vst [vmem:[#allocation2 + $0x70] sm:$0xf] 0
      %637 = vst [vmem:[#allocation2 + $0x74] sm:$0x1] 0
      %p638 = scmp.eq.s32.totalorder %s23, 0
      // Predicated region
      $region49: #{run.2} parent=47 // pred_check
        %p639 = pneg %p638
      $region50: #{run.2} parent=47 // pred_check_branch
        %641 = sbr.rel (%p639) target = $region52
      $region51: #{run.2} parent=47 // pred_region
        %v651 = vunpack.c.l.b16 %v598
        %v652 = vunpack.c.h.b16 %v598
        %v653 = vunpack.c.l.b16 %v599
        %v654 = vunpack.c.h.b16 %v599
        %v655 = vunpack.c.l.b16 %v600
        %v656 = vunpack.c.h.b16 %v600
        %v657 = vunpack.c.l.b16 %v601
        %v658 = vunpack.c.h.b16 %v601
        %v659 = vunpack.c.l.b16 %v602
        %v660 = vunpack.c.h.b16 %v602
        %v661 = vunpack.c.l.b16 %v603
        %v662 = vunpack.c.h.b16 %v603
        %v663 = vunpack.c.l.b16 %v604
        %v664 = vunpack.c.h.b16 %v604
        %v665 = vunpack.c.l.b16 %v605
        %v666 = vunpack.c.h.b16 %v605
        %v667 = vunpack.c.l.b16 %v606
        %v668 = vunpack.c.h.b16 %v606
        %v669 = vpack.c.b16 %v651, %v651
        %v670 = vpack.c.b16 %v652, %v652
        %v671 = vpack.c.b16 %v653, %v653
        %v672 = vpack.c.b16 %v654, %v654
        %v673 = vpack.c.b16 %v655, %v655
        %v674 = vpack.c.b16 %v656, %v656
        %v675 = vpack.c.b16 %v657, %v657
        %v676 = vpack.c.b16 %v658, %v658
        %v677 = vpack.c.b16 %v659, %v659
        %v678 = vpack.c.b16 %v660, %v660
        %v679 = vpack.c.b16 %v661, %v661
        %v680 = vpack.c.b16 %v662, %v662
        %v681 = vpack.c.b16 %v663, %v663
        %v682 = vpack.c.b16 %v664, %v664
        %v683 = vpack.c.b16 %v665, %v665
        %v684 = vpack.c.b16 %v666, %v666
        %v685 = vpack.c.b16 %v667, %v667
        %v686 = vpack.c.b16 %v668, %v668
        %vm687 = vsmask.f32 256
        %vm688 = vsmask.f32 4368
        %vm689 = vmor %vm687, %vm688
        %v691 = vshrl.u32 %v669, 16
        %v693 = vrot.slane %v691, 7
        %v694 = vshll.u32 %v669, 16
        %v696 = vor.u32 %v693, %v694
        %v697 = vrot.slane %v693, 4
        %v699 = vshrl.u32 %v670, 16
        %v701 = vrot.slane %v699, 7
        %v702 = vshll.u32 %v670, 16
        %v704 = vor.u32 %v701, %v702
        %v705 = vsel %vm689, %v697, %v704
        %v706 = vrot.slane %v701, 4
        %v708 = vshrl.u32 %v671, 16
        %v710 = vrot.slane %v708, 7
        %v711 = vshll.u32 %v671, 16
        %v713 = vor.u32 %v710, %v711
        %v714 = vrot.slane %v710, 4
        %v716 = vshrl.u32 %v672, 16
        %v718 = vrot.slane %v716, 7
        %v719 = vshll.u32 %v672, 16
        %v721 = vor.u32 %v718, %v719
        %v722 = vsel %vm689, %v714, %v721
        %v723 = vrot.slane %v718, 4
        %v725 = vshrl.u32 %v673, 16
        %v727 = vrot.slane %v725, 7
        %v728 = vshll.u32 %v673, 16
        %v730 = vor.u32 %v727, %v728
        %v731 = vrot.slane %v727, 4
        %v733 = vshrl.u32 %v674, 16
        %v735 = vrot.slane %v733, 7
        %v736 = vshll.u32 %v674, 16
        %v738 = vor.u32 %v735, %v736
        %v739 = vsel %vm689, %v731, %v738
        %v740 = vrot.slane %v735, 4
        %v742 = vshrl.u32 %v675, 16
        %v744 = vrot.slane %v742, 7
        %v745 = vshll.u32 %v675, 16
        %v747 = vor.u32 %v744, %v745
        %v748 = vrot.slane %v744, 4
        %v750 = vshrl.u32 %v676, 16
        %v752 = vrot.slane %v750, 7
        %v753 = vshll.u32 %v676, 16
        %v755 = vor.u32 %v752, %v753
        %v756 = vsel %vm689, %v748, %v755
        %v757 = vrot.slane %v752, 4
        %v759 = vshrl.u32 %v677, 16
        %v761 = vrot.slane %v759, 7
        %v762 = vshll.u32 %v677, 16
        %v764 = vor.u32 %v761, %v762
        %v765 = vrot.slane %v761, 4
        %v767 = vshrl.u32 %v678, 16
        %v769 = vrot.slane %v767, 7
        %v770 = vshll.u32 %v678, 16
        %v772 = vor.u32 %v769, %v770
        %v773 = vsel %vm689, %v765, %v772
        %v774 = vrot.slane %v769, 4
        %v776 = vshrl.u32 %v679, 16
        %v778 = vrot.slane %v776, 7
        %v779 = vshll.u32 %v679, 16
        %v781 = vor.u32 %v778, %v779
        %v782 = vrot.slane %v778, 4
        %v784 = vshrl.u32 %v680, 16
        %v786 = vrot.slane %v784, 7
        %v787 = vshll.u32 %v680, 16
        %v789 = vor.u32 %v786, %v787
        %v790 = vsel %vm689, %v782, %v789
        %v791 = vrot.slane %v786, 4
        %v793 = vshrl.u32 %v681, 16
        %v795 = vrot.slane %v793, 7
        %v796 = vshll.u32 %v681, 16
        %v798 = vor.u32 %v795, %v796
        %v799 = vrot.slane %v795, 4
        %v801 = vshrl.u32 %v682, 16
        %v803 = vrot.slane %v801, 7
        %v804 = vshll.u32 %v682, 16
        %v806 = vor.u32 %v803, %v804
        %v807 = vsel %vm689, %v799, %v806
        %v808 = vrot.slane %v803, 4
        %v810 = vshrl.u32 %v683, 16
        %v812 = vrot.slane %v810, 7
        %v813 = vshll.u32 %v683, 16
        %v815 = vor.u32 %v812, %v813
        %v816 = vrot.slane %v812, 4
        %v818 = vshrl.u32 %v684, 16
        %v820 = vrot.slane %v818, 7
        %v821 = vshll.u32 %v684, 16
        %v823 = vor.u32 %v820, %v821
        %v824 = vsel %vm689, %v816, %v823
        %v825 = vrot.slane %v820, 4
        %v827 = vshrl.u32 %v685, 16
        %v829 = vrot.slane %v827, 7
        %v830 = vshll.u32 %v685, 16
        %v832 = vor.u32 %v829, %v830
        %v833 = vrot.slane %v829, 4
        %v835 = vshrl.u32 %v686, 16
        %v837 = vrot.slane %v835, 7
        %v838 = vshll.u32 %v686, 16
        %v840 = vor.u32 %v837, %v838
        %v841 = vsel %vm689, %v833, %v840
        %v842 = vrot.slane %v837, 4
        %s870 = scalar_lea.vmem [#allocation2], 12
        %vm871 = vcmask 1043456
        %vm872 = vsmask.f32 7938
        %vm873 = vmand %vm871, %vm872
        %v874 = vld [vmem:[%s870] sm:$0xf]
        %v875 = vsel %vm873, %v696, %v874
        %876 = vst [vmem:[%s870] sm:$0xf] %v875
        %877 = vst [vmem:[%s870 + $0x4] sm:$0xf] %v705
        %vm878 = vcmask 1040384
        %vm879 = vmand %vm878, %vm687
        %v880 = vld [vmem:[%s870 + $0x8] sm:$0x1]
        %v881 = vsel %vm879, %v706, %v880
        %882 = vst [vmem:[%s870 + $0x8] sm:$0x1] %v881
        %v883 = vld [vmem:[%s870 + $0xc] sm:$0xf]
        %v884 = vsel %vm873, %v713, %v883
        %885 = vst [vmem:[%s870 + $0xc] sm:$0xf] %v884
        %886 = vst [vmem:[%s870 + $0x10] sm:$0xf] %v722
        %v887 = vld [vmem:[%s870 + $0x14] sm:$0x1]
        %v888 = vsel %vm879, %v723, %v887
        %889 = vst [vmem:[%s870 + $0x14] sm:$0x1] %v888
        %v890 = vld [vmem:[%s870 + $0x18] sm:$0xf]
        %v891 = vsel %vm873, %v730, %v890
        %892 = vst [vmem:[%s870 + $0x18] sm:$0xf] %v891
        %893 = vst [vmem:[%s870 + $0x1c] sm:$0xf] %v739
        %v894 = vld [vmem:[%s870 + $0x20] sm:$0x1]
        %v895 = vsel %vm879, %v740, %v894
        %896 = vst [vmem:[%s870 + $0x20] sm:$0x1] %v895
        %v897 = vld [vmem:[%s870 + $0x24] sm:$0xf]
        %v898 = vsel %vm873, %v747, %v897
        %899 = vst [vmem:[%s870 + $0x24] sm:$0xf] %v898
        %900 = vst [vmem:[%s870 + $0x28] sm:$0xf] %v756
        %v901 = vld [vmem:[%s870 + $0x2c] sm:$0x1]
        %v902 = vsel %vm879, %v757, %v901
        %903 = vst [vmem:[%s870 + $0x2c] sm:$0x1] %v902
        %v904 = vld [vmem:[%s870 + $0x30] sm:$0xf]
        %v905 = vsel %vm873, %v764, %v904
        %906 = vst [vmem:[%s870 + $0x30] sm:$0xf] %v905
        %907 = vst [vmem:[%s870 + $0x34] sm:$0xf] %v773
        %v908 = vld [vmem:[%s870 + $0x38] sm:$0x1]
        %v909 = vsel %vm879, %v774, %v908
        %910 = vst [vmem:[%s870 + $0x38] sm:$0x1] %v909
        %v911 = vld [vmem:[%s870 + $0x3c] sm:$0xf]
        %v912 = vsel %vm873, %v781, %v911
        %913 = vst [vmem:[%s870 + $0x3c] sm:$0xf] %v912
        %914 = vst [vmem:[%s870 + $0x40] sm:$0xf] %v790
        %v915 = vld [vmem:[%s870 + $0x44] sm:$0x1]
        %v916 = vsel %vm879, %v791, %v915
        %917 = vst [vmem:[%s870 + $0x44] sm:$0x1] %v916
        %v918 = vld [vmem:[%s870 + $0x48] sm:$0xf]
        %v919 = vsel %vm873, %v798, %v918
        %920 = vst [vmem:[%s870 + $0x48] sm:$0xf] %v919
        %921 = vst [vmem:[%s870 + $0x4c] sm:$0xf] %v807
        %v922 = vld [vmem:[%s870 + $0x50] sm:$0x1]
        %v923 = vsel %vm879, %v808, %v922
        %924 = vst [vmem:[%s870 + $0x50] sm:$0x1] %v923
        %v925 = vld [vmem:[%s870 + $0x54] sm:$0xf]
        %v926 = vsel %vm873, %v815, %v925
        %927 = vst [vmem:[%s870 + $0x54] sm:$0xf] %v926
        %928 = vst [vmem:[%s870 + $0x58] sm:$0xf] %v824
        %v929 = vld [vmem:[%s870 + $0x5c] sm:$0x1]
        %v930 = vsel %vm879, %v825, %v929
        %931 = vst [vmem:[%s870 + $0x5c] sm:$0x1] %v930
        %v932 = vld [vmem:[%s870 + $0x60] sm:$0xf]
        %v933 = vsel %vm873, %v832, %v932
        %934 = vst [vmem:[%s870 + $0x60] sm:$0xf] %v933
        %935 = vst [vmem:[%s870 + $0x64] sm:$0xf] %v841
        %v936 = vld [vmem:[%s870 + $0x68] sm:$0x1]
        %v937 = vsel %vm879, %v842, %v936
        %938 = vst [vmem:[%s870 + $0x68] sm:$0x1] %v937
      $region52: #{run.2} parent=47 // pred_fallthru
        _
      %p939 = scmp.eq.s32.totalorder %s23, 1
      // Predicated region
      $region53: #{run.2} parent=47 // pred_check
        %p940 = pneg %p939
      $region54: #{run.2} parent=47 // pred_check_branch
        %942 = sbr.rel (%p940) target = $region56
      $region55: #{run.2} parent=47 // pred_region
        %v952 = vunpack.c.l.b16 %v599
        %v953 = vunpack.c.h.b16 %v599
        %v954 = vunpack.c.l.b16 %v600
        %v955 = vunpack.c.h.b16 %v600
        %v956 = vunpack.c.l.b16 %v601
        %v957 = vunpack.c.h.b16 %v601
        %v958 = vunpack.c.l.b16 %v602
        %v959 = vunpack.c.h.b16 %v602
        %v960 = vunpack.c.l.b16 %v603
        %v961 = vunpack.c.h.b16 %v603
        %v962 = vunpack.c.l.b16 %v604
        %v963 = vunpack.c.h.b16 %v604
        %v964 = vunpack.c.l.b16 %v605
        %v965 = vunpack.c.h.b16 %v605
        %v966 = vunpack.c.l.b16 %v606
        %v967 = vunpack.c.h.b16 %v606
        %v968 = vunpack.c.l.b16 %v607
        %v969 = vunpack.c.h.b16 %v607
        %v970 = vpack.c.b16 %v952, %v952
        %v971 = vpack.c.b16 %v953, %v953
        %v972 = vpack.c.b16 %v954, %v954
        %v973 = vpack.c.b16 %v955, %v955
        %v974 = vpack.c.b16 %v956, %v956
        %v975 = vpack.c.b16 %v957, %v957
        %v976 = vpack.c.b16 %v958, %v958
        %v977 = vpack.c.b16 %v959, %v959
        %v978 = vpack.c.b16 %v960, %v960
        %v979 = vpack.c.b16 %v961, %v961
        %v980 = vpack.c.b16 %v962, %v962
        %v981 = vpack.c.b16 %v963, %v963
        %v982 = vpack.c.b16 %v964, %v964
        %v983 = vpack.c.b16 %v965, %v965
        %v984 = vpack.c.b16 %v966, %v966
        %v985 = vpack.c.b16 %v967, %v967
        %v986 = vpack.c.b16 %v968, %v968
        %v987 = vpack.c.b16 %v969, %v969
        %vm988 = vsmask.f32 256
        %vm989 = vsmask.f32 4368
        %vm990 = vmor %vm988, %vm989
        %v992 = vshrl.u32 %v970, 16
        %v994 = vrot.slane %v992, 7
        %v995 = vshll.u32 %v970, 16
        %v997 = vor.u32 %v994, %v995
        %v998 = vrot.slane %v994, 4
        %v1000 = vshrl.u32 %v971, 16
        %v1002 = vrot.slane %v1000, 7
        %v1003 = vshll.u32 %v971, 16
        %v1005 = vor.u32 %v1002, %v1003
        %v1006 = vsel %vm990, %v998, %v1005
        %v1007 = vrot.slane %v1002, 4
        %v1009 = vshrl.u32 %v972, 16
        %v1011 = vrot.slane %v1009, 7
        %v1012 = vshll.u32 %v972, 16
        %v1014 = vor.u32 %v1011, %v1012
        %v1015 = vrot.slane %v1011, 4
        %v1017 = vshrl.u32 %v973, 16
        %v1019 = vrot.slane %v1017, 7
        %v1020 = vshll.u32 %v973, 16
        %v1022 = vor.u32 %v1019, %v1020
        %v1023 = vsel %vm990, %v1015, %v1022
        %v1024 = vrot.slane %v1019, 4
        %v1026 = vshrl.u32 %v974, 16
        %v1028 = vrot.slane %v1026, 7
        %v1029 = vshll.u32 %v974, 16
        %v1031 = vor.u32 %v1028, %v1029
        %v1032 = vrot.slane %v1028, 4
        %v1034 = vshrl.u32 %v975, 16
        %v1036 = vrot.slane %v1034, 7
        %v1037 = vshll.u32 %v975, 16
        %v1039 = vor.u32 %v1036, %v1037
        %v1040 = vsel %vm990, %v1032, %v1039
        %v1041 = vrot.slane %v1036, 4
        %v1043 = vshrl.u32 %v976, 16
        %v1045 = vrot.slane %v1043, 7
        %v1046 = vshll.u32 %v976, 16
        %v1048 = vor.u32 %v1045, %v1046
        %v1049 = vrot.slane %v1045, 4
        %v1051 = vshrl.u32 %v977, 16
        %v1053 = vrot.slane %v1051, 7
        %v1054 = vshll.u32 %v977, 16
        %v1056 = vor.u32 %v1053, %v1054
        %v1057 = vsel %vm990, %v1049, %v1056
        %v1058 = vrot.slane %v1053, 4
        %v1060 = vshrl.u32 %v978, 16
        %v1062 = vrot.slane %v1060, 7
        %v1063 = vshll.u32 %v978, 16
        %v1065 = vor.u32 %v1062, %v1063
        %v1066 = vrot.slane %v1062, 4
        %v1068 = vshrl.u32 %v979, 16
        %v1070 = vrot.slane %v1068, 7
        %v1071 = vshll.u32 %v979, 16
        %v1073 = vor.u32 %v1070, %v1071
        %v1074 = vsel %vm990, %v1066, %v1073
        %v1075 = vrot.slane %v1070, 4
        %v1077 = vshrl.u32 %v980, 16
        %v1079 = vrot.slane %v1077, 7
        %v1080 = vshll.u32 %v980, 16
        %v1082 = vor.u32 %v1079, %v1080
        %v1083 = vrot.slane %v1079, 4
        %v1085 = vshrl.u32 %v981, 16
        %v1087 = vrot.slane %v1085, 7
        %v1088 = vshll.u32 %v981, 16
        %v1090 = vor.u32 %v1087, %v1088
        %v1091 = vsel %vm990, %v1083, %v1090
        %v1092 = vrot.slane %v1087, 4
        %v1094 = vshrl.u32 %v982, 16
        %v1096 = vrot.slane %v1094, 7
        %v1097 = vshll.u32 %v982, 16
        %v1099 = vor.u32 %v1096, %v1097
        %v1100 = vrot.slane %v1096, 4
        %v1102 = vshrl.u32 %v983, 16
        %v1104 = vrot.slane %v1102, 7
        %v1105 = vshll.u32 %v983, 16
        %v1107 = vor.u32 %v1104, %v1105
        %v1108 = vsel %vm990, %v1100, %v1107
        %v1109 = vrot.slane %v1104, 4
        %v1111 = vshrl.u32 %v984, 16
        %v1113 = vrot.slane %v1111, 7
        %v1114 = vshll.u32 %v984, 16
        %v1116 = vor.u32 %v1113, %v1114
        %v1117 = vrot.slane %v1113, 4
        %v1119 = vshrl.u32 %v985, 16
        %v1121 = vrot.slane %v1119, 7
        %v1122 = vshll.u32 %v985, 16
        %v1124 = vor.u32 %v1121, %v1122
        %v1125 = vsel %vm990, %v1117, %v1124
        %v1126 = vrot.slane %v1121, 4
        %v1128 = vshrl.u32 %v986, 16
        %v1130 = vrot.slane %v1128, 7
        %v1131 = vshll.u32 %v986, 16
        %v1133 = vor.u32 %v1130, %v1131
        %v1134 = vrot.slane %v1130, 4
        %v1136 = vshrl.u32 %v987, 16
        %v1138 = vrot.slane %v1136, 7
        %v1139 = vshll.u32 %v987, 16
        %v1141 = vor.u32 %v1138, %v1139
        %v1142 = vsel %vm990, %v1134, %v1141
        %v1143 = vrot.slane %v1138, 4
        %vm1171 = vcmask 1043456
        %vm1172 = vsmask.f32 7938
        %vm1173 = vmand %vm1171, %vm1172
        %v1174 = vld [vmem:[#allocation2] sm:$0xf]
        %v1175 = vsel %vm1173, %v997, %v1174
        %1176 = vst [vmem:[#allocation2] sm:$0xf] %v1175
        %1177 = vst [vmem:[#allocation2 + $0x4] sm:$0xf] %v1006
        %vm1178 = vcmask 1040384
        %vm1179 = vmand %vm1178, %vm988
        %v1180 = vld [vmem:[#allocation2 + $0x8] sm:$0x1]
        %v1181 = vsel %vm1179, %v1007, %v1180
        %1182 = vst [vmem:[#allocation2 + $0x8] sm:$0x1] %v1181
        %v1183 = vld [vmem:[#allocation2 + $0xc] sm:$0xf]
        %v1184 = vsel %vm1173, %v1014, %v1183
        %1185 = vst [vmem:[#allocation2 + $0xc] sm:$0xf] %v1184
        %1186 = vst [vmem:[#allocation2 + $0x10] sm:$0xf] %v1023
        %v1187 = vld [vmem:[#allocation2 + $0x14] sm:$0x1]
        %v1188 = vsel %vm1179, %v1024, %v1187
        %1189 = vst [vmem:[#allocation2 + $0x14] sm:$0x1] %v1188
        %v1190 = vld [vmem:[#allocation2 + $0x18] sm:$0xf]
        %v1191 = vsel %vm1173, %v1031, %v1190
        %1192 = vst [vmem:[#allocation2 + $0x18] sm:$0xf] %v1191
        %1193 = vst [vmem:[#allocation2 + $0x1c] sm:$0xf] %v1040
        %v1194 = vld [vmem:[#allocation2 + $0x20] sm:$0x1]
        %v1195 = vsel %vm1179, %v1041, %v1194
        %1196 = vst [vmem:[#allocation2 + $0x20] sm:$0x1] %v1195
        %v1197 = vld [vmem:[#allocation2 + $0x24] sm:$0xf]
        %v1198 = vsel %vm1173, %v1048, %v1197
        %1199 = vst [vmem:[#allocation2 + $0x24] sm:$0xf] %v1198
        %1200 = vst [vmem:[#allocation2 + $0x28] sm:$0xf] %v1057
        %v1201 = vld [vmem:[#allocation2 + $0x2c] sm:$0x1]
        %v1202 = vsel %vm1179, %v1058, %v1201
        %1203 = vst [vmem:[#allocation2 + $0x2c] sm:$0x1] %v1202
        %v1204 = vld [vmem:[#allocation2 + $0x30] sm:$0xf]
        %v1205 = vsel %vm1173, %v1065, %v1204
        %1206 = vst [vmem:[#allocation2 + $0x30] sm:$0xf] %v1205
        %1207 = vst [vmem:[#allocation2 + $0x34] sm:$0xf] %v1074
        %v1208 = vld [vmem:[#allocation2 + $0x38] sm:$0x1]
        %v1209 = vsel %vm1179, %v1075, %v1208
        %1210 = vst [vmem:[#allocation2 + $0x38] sm:$0x1] %v1209
        %v1211 = vld [vmem:[#allocation2 + $0x3c] sm:$0xf]
        %v1212 = vsel %vm1173, %v1082, %v1211
        %1213 = vst [vmem:[#allocation2 + $0x3c] sm:$0xf] %v1212
        %1214 = vst [vmem:[#allocation2 + $0x40] sm:$0xf] %v1091
        %v1215 = vld [vmem:[#allocation2 + $0x44] sm:$0x1]
        %v1216 = vsel %vm1179, %v1092, %v1215
        %1217 = vst [vmem:[#allocation2 + $0x44] sm:$0x1] %v1216
        %v1218 = vld [vmem:[#allocation2 + $0x48] sm:$0xf]
        %v1219 = vsel %vm1173, %v1099, %v1218
        %1220 = vst [vmem:[#allocation2 + $0x48] sm:$0xf] %v1219
        %1221 = vst [vmem:[#allocation2 + $0x4c] sm:$0xf] %v1108
        %v1222 = vld [vmem:[#allocation2 + $0x50] sm:$0x1]
        %v1223 = vsel %vm1179, %v1109, %v1222
        %1224 = vst [vmem:[#allocation2 + $0x50] sm:$0x1] %v1223
        %v1225 = vld [vmem:[#allocation2 + $0x54] sm:$0xf]
        %v1226 = vsel %vm1173, %v1116, %v1225
        %1227 = vst [vmem:[#allocation2 + $0x54] sm:$0xf] %v1226
        %1228 = vst [vmem:[#allocation2 + $0x58] sm:$0xf] %v1125
        %v1229 = vld [vmem:[#allocation2 + $0x5c] sm:$0x1]
        %v1230 = vsel %vm1179, %v1126, %v1229
        %1231 = vst [vmem:[#allocation2 + $0x5c] sm:$0x1] %v1230
        %v1232 = vld [vmem:[#allocation2 + $0x60] sm:$0xf]
        %v1233 = vsel %vm1173, %v1133, %v1232
        %1234 = vst [vmem:[#allocation2 + $0x60] sm:$0xf] %v1233
        %1235 = vst [vmem:[#allocation2 + $0x64] sm:$0xf] %v1142
        %v1236 = vld [vmem:[#allocation2 + $0x68] sm:$0x1]
        %v1237 = vsel %vm1179, %v1143, %v1236
        %1238 = vst [vmem:[#allocation2 + $0x68] sm:$0x1] %v1237
      $region56: #{run.2} parent=47 // pred_fallthru
        _
      %v1239 = vld [vmem:[#allocation2] sm:$0xf]
      %v1240 = vld [vmem:[#allocation2 + $0x4] sm:$0xf]
      %v1241 = vld [vmem:[#allocation2 + $0xc] sm:$0xf]
      %v1242 = vld [vmem:[#allocation2 + $0x10] sm:$0xf]
      %v1243 = vld [vmem:[#allocation2 + $0x18] sm:$0xf]
      %v1244 = vld [vmem:[#allocation2 + $0x1c] sm:$0xf]
      %v1245 = vld [vmem:[#allocation2 + $0x24] sm:$0xf]
      %v1246 = vld [vmem:[#allocation2 + $0x28] sm:$0xf]
      %v1247 = vld [vmem:[#allocation2 + $0x30] sm:$0xf]
      %v1248 = vld [vmem:[#allocation2 + $0x34] sm:$0xf]
      %v1249 = vld [vmem:[#allocation2 + $0x3c] sm:$0xf]
      %v1250 = vld [vmem:[#allocation2 + $0x40] sm:$0xf]
      %v1251 = vld [vmem:[#allocation2 + $0x48] sm:$0xf]
      %v1252 = vld [vmem:[#allocation2 + $0x4c] sm:$0xf]
      %v1253 = vld [vmem:[#allocation2 + $0x54] sm:$0xf]
      %v1254 = vld [vmem:[#allocation2 + $0x58] sm:$0xf]
      %v1271 = vunpack.c.l.b16 %v1239
      %v1272 = vunpack.c.l.b16 %v1240
      %v1273 = vunpack.c.l.b16 %v1241
      %v1274 = vunpack.c.l.b16 %v1242
      %v1275 = vunpack.c.l.b16 %v1243
      %v1276 = vunpack.c.l.b16 %v1244
      %v1277 = vunpack.c.l.b16 %v1245
      %v1278 = vunpack.c.l.b16 %v1246
      %v1279 = vunpack.c.l.b16 %v1247
      %v1280 = vunpack.c.l.b16 %v1248
      %v1281 = vunpack.c.l.b16 %v1249
      %v1282 = vunpack.c.l.b16 %v1250
      %v1283 = vunpack.c.l.b16 %v1251
      %v1284 = vunpack.c.l.b16 %v1252
      %v1285 = vunpack.c.l.b16 %v1253
      %v1286 = vunpack.c.l.b16 %v1254
      %v1287 = vpack.c.b16 %v1272, %v1271
      %v1288 = vpack.c.b16 %v1274, %v1273
      %v1289 = vpack.c.b16 %v1276, %v1275
      %v1290 = vpack.c.b16 %v1278, %v1277
      %v1291 = vpack.c.b16 %v1280, %v1279
      %v1292 = vpack.c.b16 %v1282, %v1281
      %v1293 = vpack.c.b16 %v1284, %v1283
      %v1294 = vpack.c.b16 %v1286, %v1285
      %1303 = vst [vmem:[#allocation3] sm:$0xff] %v1287
      %1304 = vst [vmem:[#allocation3 + $0x48] sm:$0xff] %v1288
      %1305 = vst [vmem:[#allocation3 + $0x90] sm:$0xff] %v1289
      %1306 = vst [vmem:[#allocation3 + $0xd8] sm:$0xff] %v1290
      %1307 = vst [vmem:[#allocation3 + $0x120] sm:$0xff] %v1291
      %1308 = vst [vmem:[#allocation3 + $0x168] sm:$0xff] %v1292
      %1309 = vst [vmem:[#allocation3 + $0x1b0] sm:$0xff] %v1293
      %1310 = vst [vmem:[#allocation3 + $0x1f8] sm:$0xff] %v1294
      %v1311 = vld [vmem:[#allocation2] sm:$0xf]
      %v1312 = vld [vmem:[#allocation2 + $0x4] sm:$0xf]
      %v1313 = vld [vmem:[#allocation2 + $0x8] sm:$0x1]
      %v1314 = vld [vmem:[#allocation2 + $0xc] sm:$0xf]
      %v1315 = vld [vmem:[#allocation2 + $0x10] sm:$0xf]
      %v1316 = vld [vmem:[#allocation2 + $0x14] sm:$0x1]
      %v1317 = vld [vmem:[#allocation2 + $0x18] sm:$0xf]
      %v1318 = vld [vmem:[#allocation2 + $0x1c] sm:$0xf]
      %v1319 = vld [vmem:[#allocation2 + $0x20] sm:$0x1]
      %v1320 = vld [vmem:[#allocation2 + $0x24] sm:$0xf]
      %v1321 = vld [vmem:[#allocation2 + $0x28] sm:$0xf]
      %v1322 = vld [vmem:[#allocation2 + $0x2c] sm:$0x1]
      %v1323 = vld [vmem:[#allocation2 + $0x30] sm:$0xf]
      %v1324 = vld [vmem:[#allocation2 + $0x34] sm:$0xf]
      %v1325 = vld [vmem:[#allocation2 + $0x38] sm:$0x1]
      %v1326 = vld [vmem:[#allocation2 + $0x3c] sm:$0xf]
      %v1327 = vld [vmem:[#allocation2 + $0x40] sm:$0xf]
      %v1328 = vld [vmem:[#allocation2 + $0x44] sm:$0x1]
      %v1329 = vld [vmem:[#allocation2 + $0x48] sm:$0xf]
      %v1330 = vld [vmem:[#allocation2 + $0x4c] sm:$0xf]
      %v1331 = vld [vmem:[#allocation2 + $0x50] sm:$0x1]
      %v1332 = vld [vmem:[#allocation2 + $0x54] sm:$0xf]
      %v1333 = vld [vmem:[#allocation2 + $0x58] sm:$0xf]
      %v1334 = vld [vmem:[#allocation2 + $0x5c] sm:$0x1]
      %vm1335 = vsmask.f32 3328
      %vm1336 = vsmask.f32 7440
      %vm1337 = vmor %vm1335, %vm1336
      %v1339 = vshrl.u32 %v1311, 16
      %v1341 = vrot.slane %v1339, 4
      %v1342 = vshll.u32 %v1311, 16
      %v1344 = vrot.slane %v1342, 5
      %v1345 = vor.u32 %v1341, %v1344
      %v1346 = vrot.slane %v1345, 4
      %v1348 = vshll.u32 %v1312, 16
      %v1350 = vrot.slane %v1348, 5
      %v1351 = vsel %vm1337, %v1346, %v1350
      %v1352 = vshrl.u32 %v1312, 16
      %v1354 = vrot.slane %v1352, 4
      %v1355 = vor.u32 %v1354, %v1350
      %v1356 = vrot.slane %v1355, 4
      %v1358 = vshll.u32 %v1313, 16
      %v1360 = vrot.slane %v1358, 5
      %v1361 = vsel %vm1337, %v1356, %v1360
      %v1363 = vshrl.u32 %v1314, 16
      %v1365 = vrot.slane %v1363, 4
      %v1366 = vshll.u32 %v1314, 16
      %v1368 = vrot.slane %v1366, 5
      %v1369 = vor.u32 %v1365, %v1368
      %v1370 = vrot.slane %v1369, 4
      %v1372 = vshll.u32 %v1315, 16
      %v1374 = vrot.slane %v1372, 5
      %v1375 = vsel %vm1337, %v1370, %v1374
      %v1376 = vshrl.u32 %v1315, 16
      %v1378 = vrot.slane %v1376, 4
      %v1379 = vor.u32 %v1378, %v1374
      %v1380 = vrot.slane %v1379, 4
      %v1382 = vshll.u32 %v1316, 16
      %v1384 = vrot.slane %v1382, 5
      %v1385 = vsel %vm1337, %v1380, %v1384
      %v1387 = vshrl.u32 %v1317, 16
      %v1389 = vrot.slane %v1387, 4
      %v1390 = vshll.u32 %v1317, 16
      %v1392 = vrot.slane %v1390, 5
      %v1393 = vor.u32 %v1389, %v1392
      %v1394 = vrot.slane %v1393, 4
      %v1396 = vshll.u32 %v1318, 16
      %v1398 = vrot.slane %v1396, 5
      %v1399 = vsel %vm1337, %v1394, %v1398
      %v1400 = vshrl.u32 %v1318, 16
      %v1402 = vrot.slane %v1400, 4
      %v1403 = vor.u32 %v1402, %v1398
      %v1404 = vrot.slane %v1403, 4
      %v1406 = vshll.u32 %v1319, 16
      %v1408 = vrot.slane %v1406, 5
      %v1409 = vsel %vm1337, %v1404, %v1408
      %v1411 = vshrl.u32 %v1320, 16
      %v1413 = vrot.slane %v1411, 4
      %v1414 = vshll.u32 %v1320, 16
      %v1416 = vrot.slane %v1414, 5
      %v1417 = vor.u32 %v1413, %v1416
      %v1418 = vrot.slane %v1417, 4
      %v1420 = vshll.u32 %v1321, 16
      %v1422 = vrot.slane %v1420, 5
      %v1423 = vsel %vm1337, %v1418, %v1422
      %v1424 = vshrl.u32 %v1321, 16
      %v1426 = vrot.slane %v1424, 4
      %v1427 = vor.u32 %v1426, %v1422
      %v1428 = vrot.slane %v1427, 4
      %v1430 = vshll.u32 %v1322, 16
      %v1432 = vrot.slane %v1430, 5
      %v1433 = vsel %vm1337, %v1428, %v1432
      %v1435 = vshrl.u32 %v1323, 16
      %v1437 = vrot.slane %v1435, 4
      %v1438 = vshll.u32 %v1323, 16
      %v1440 = vrot.slane %v1438, 5
      %v1441 = vor.u32 %v1437, %v1440
      %v1442 = vrot.slane %v1441, 4
      %v1444 = vshll.u32 %v1324, 16
      %v1446 = vrot.slane %v1444, 5
      %v1447 = vsel %vm1337, %v1442, %v1446
      %v1448 = vshrl.u32 %v1324, 16
      %v1450 = vrot.slane %v1448, 4
      %v1451 = vor.u32 %v1450, %v1446
      %v1452 = vrot.slane %v1451, 4
      %v1454 = vshll.u32 %v1325, 16
      %v1456 = vrot.slane %v1454, 5
      %v1457 = vsel %vm1337, %v1452, %v1456
      %v1459 = vshrl.u32 %v1326, 16
      %v1461 = vrot.slane %v1459, 4
      %v1462 = vshll.u32 %v1326, 16
      %v1464 = vrot.slane %v1462, 5
      %v1465 = vor.u32 %v1461, %v1464
      %v1466 = vrot.slane %v1465, 4
      %v1468 = vshll.u32 %v1327, 16
      %v1470 = vrot.slane %v1468, 5
      %v1471 = vsel %vm1337, %v1466, %v1470
      %v1472 = vshrl.u32 %v1327, 16
      %v1474 = vrot.slane %v1472, 4
      %v1475 = vor.u32 %v1474, %v1470
      %v1476 = vrot.slane %v1475, 4
      %v1478 = vshll.u32 %v1328, 16
      %v1480 = vrot.slane %v1478, 5
      %v1481 = vsel %vm1337, %v1476, %v1480
      %v1483 = vshrl.u32 %v1329, 16
      %v1485 = vrot.slane %v1483, 4
      %v1486 = vshll.u32 %v1329, 16
      %v1488 = vrot.slane %v1486, 5
      %v1489 = vor.u32 %v1485, %v1488
      %v1490 = vrot.slane %v1489, 4
      %v1492 = vshll.u32 %v1330, 16
      %v1494 = vrot.slane %v1492, 5
      %v1495 = vsel %vm1337, %v1490, %v1494
      %v1496 = vshrl.u32 %v1330, 16
      %v1498 = vrot.slane %v1496, 4
      %v1499 = vor.u32 %v1498, %v1494
      %v1500 = vrot.slane %v1499, 4
      %v1502 = vshll.u32 %v1331, 16
      %v1504 = vrot.slane %v1502, 5
      %v1505 = vsel %vm1337, %v1500, %v1504
      %v1507 = vshrl.u32 %v1332, 16
      %v1509 = vrot.slane %v1507, 4
      %v1510 = vshll.u32 %v1332, 16
      %v1512 = vrot.slane %v1510, 5
      %v1513 = vor.u32 %v1509, %v1512
      %v1514 = vrot.slane %v1513, 4
      %v1516 = vshll.u32 %v1333, 16
      %v1518 = vrot.slane %v1516, 5
      %v1519 = vsel %vm1337, %v1514, %v1518
      %v1520 = vshrl.u32 %v1333, 16
      %v1522 = vrot.slane %v1520, 4
      %v1523 = vor.u32 %v1522, %v1518
      %v1524 = vrot.slane %v1523, 4
      %v1526 = vshll.u32 %v1334, 16
      %v1528 = vrot.slane %v1526, 5
      %v1529 = vsel %vm1337, %v1524, %v1528
      %v1530 = vunpack.c.l.b16 %v1351
      %v1531 = vunpack.c.l.b16 %v1361
      %v1532 = vunpack.c.l.b16 %v1375
      %v1533 = vunpack.c.l.b16 %v1385
      %v1534 = vunpack.c.l.b16 %v1399
      %v1535 = vunpack.c.l.b16 %v1409
      %v1536 = vunpack.c.l.b16 %v1423
      %v1537 = vunpack.c.l.b16 %v1433
      %v1538 = vunpack.c.l.b16 %v1447
      %v1539 = vunpack.c.l.b16 %v1457
      %v1540 = vunpack.c.l.b16 %v1471
      %v1541 = vunpack.c.l.b16 %v1481
      %v1542 = vunpack.c.l.b16 %v1495
      %v1543 = vunpack.c.l.b16 %v1505
      %v1544 = vunpack.c.l.b16 %v1519
      %v1545 = vunpack.c.l.b16 %v1529
      %v1546 = vpack.c.b16 %v1531, %v1530
      %v1547 = vpack.c.b16 %v1533, %v1532
      %v1548 = vpack.c.b16 %v1535, %v1534
      %v1549 = vpack.c.b16 %v1537, %v1536
      %v1550 = vpack.c.b16 %v1539, %v1538
      %v1551 = vpack.c.b16 %v1541, %v1540
      %v1552 = vpack.c.b16 %v1543, %v1542
      %v1553 = vpack.c.b16 %v1545, %v1544
      %1562 = vst [vmem:[#allocation3 + $0x8] sm:$0xff] %v1546
      %1563 = vst [vmem:[#allocation3 + $0x50] sm:$0xff] %v1547
      %1564 = vst [vmem:[#allocation3 + $0x98] sm:$0xff] %v1548
      %1565 = vst [vmem:[#allocation3 + $0xe0] sm:$0xff] %v1549
      %1566 = vst [vmem:[#allocation3 + $0x128] sm:$0xff] %v1550
      %1567 = vst [vmem:[#allocation3 + $0x170] sm:$0xff] %v1551
      %1568 = vst [vmem:[#allocation3 + $0x1b8] sm:$0xff] %v1552
      %1569 = vst [vmem:[#allocation3 + $0x200] sm:$0xff] %v1553
      %v1570 = vld [vmem:[#allocation2] sm:$0xe]
      %v1571 = vld [vmem:[#allocation2 + $0x4] sm:$0xf]
      %v1572 = vld [vmem:[#allocation2 + $0x8] sm:$0x1]
      %v1573 = vld [vmem:[#allocation2 + $0xc] sm:$0xe]
      %v1574 = vld [vmem:[#allocation2 + $0x10] sm:$0xf]
      %v1575 = vld [vmem:[#allocation2 + $0x14] sm:$0x1]
      %v1576 = vld [vmem:[#allocation2 + $0x18] sm:$0xe]
      %v1577 = vld [vmem:[#allocation2 + $0x1c] sm:$0xf]
      %v1578 = vld [vmem:[#allocation2 + $0x20] sm:$0x1]
      %v1579 = vld [vmem:[#allocation2 + $0x24] sm:$0xe]
      %v1580 = vld [vmem:[#allocation2 + $0x28] sm:$0xf]
      %v1581 = vld [vmem:[#allocation2 + $0x2c] sm:$0x1]
      %v1582 = vld [vmem:[#allocation2 + $0x30] sm:$0xe]
      %v1583 = vld [vmem:[#allocation2 + $0x34] sm:$0xf]
      %v1584 = vld [vmem:[#allocation2 + $0x38] sm:$0x1]
      %v1585 = vld [vmem:[#allocation2 + $0x3c] sm:$0xe]
      %v1586 = vld [vmem:[#allocation2 + $0x40] sm:$0xf]
      %v1587 = vld [vmem:[#allocation2 + $0x44] sm:$0x1]
      %v1588 = vld [vmem:[#allocation2 + $0x48] sm:$0xe]
      %v1589 = vld [vmem:[#allocation2 + $0x4c] sm:$0xf]
      %v1590 = vld [vmem:[#allocation2 + $0x50] sm:$0x1]
      %v1591 = vld [vmem:[#allocation2 + $0x54] sm:$0xe]
      %v1592 = vld [vmem:[#allocation2 + $0x58] sm:$0xf]
      %v1593 = vld [vmem:[#allocation2 + $0x5c] sm:$0x1]
      %vm1618 = vcmask 1042432
      %vm1619 = vcmask 1046532
      %vm1620 = vmor %vm1618, %vm1619
      %v1621 = vrot.slane %v1570, 5
      %v1622 = vrot.slane %v1621, 4
      %v1623 = vrot.slane %v1571, 5
      %v1624 = vsel %vm1620, %v1622, %v1623
      %v1625 = vrot.slane %v1623, 4
      %v1626 = vrot.slane %v1572, 5
      %v1627 = vsel %vm1620, %v1625, %v1626
      %v1628 = vrot.slane %v1573, 5
      %v1629 = vrot.slane %v1628, 4
      %v1630 = vrot.slane %v1574, 5
      %v1631 = vsel %vm1620, %v1629, %v1630
      %v1632 = vrot.slane %v1630, 4
      %v1633 = vrot.slane %v1575, 5
      %v1634 = vsel %vm1620, %v1632, %v1633
      %v1635 = vrot.slane %v1576, 5
      %v1636 = vrot.slane %v1635, 4
      %v1637 = vrot.slane %v1577, 5
      %v1638 = vsel %vm1620, %v1636, %v1637
      %v1639 = vrot.slane %v1637, 4
      %v1640 = vrot.slane %v1578, 5
      %v1641 = vsel %vm1620, %v1639, %v1640
      %v1642 = vrot.slane %v1579, 5
      %v1643 = vrot.slane %v1642, 4
      %v1644 = vrot.slane %v1580, 5
      %v1645 = vsel %vm1620, %v1643, %v1644
      %v1646 = vrot.slane %v1644, 4
      %v1647 = vrot.slane %v1581, 5
      %v1648 = vsel %vm1620, %v1646, %v1647
      %v1649 = vrot.slane %v1582, 5
      %v1650 = vrot.slane %v1649, 4
      %v1651 = vrot.slane %v1583, 5
      %v1652 = vsel %vm1620, %v1650, %v1651
      %v1653 = vrot.slane %v1651, 4
      %v1654 = vrot.slane %v1584, 5
      %v1655 = vsel %vm1620, %v1653, %v1654
      %v1656 = vrot.slane %v1585, 5
      %v1657 = vrot.slane %v1656, 4
      %v1658 = vrot.slane %v1586, 5
      %v1659 = vsel %vm1620, %v1657, %v1658
      %v1660 = vrot.slane %v1658, 4
      %v1661 = vrot.slane %v1587, 5
      %v1662 = vsel %vm1620, %v1660, %v1661
      %v1663 = vrot.slane %v1588, 5
      %v1664 = vrot.slane %v1663, 4
      %v1665 = vrot.slane %v1589, 5
      %v1666 = vsel %vm1620, %v1664, %v1665
      %v1667 = vrot.slane %v1665, 4
      %v1668 = vrot.slane %v1590, 5
      %v1669 = vsel %vm1620, %v1667, %v1668
      %v1670 = vrot.slane %v1591, 5
      %v1671 = vrot.slane %v1670, 4
      %v1672 = vrot.slane %v1592, 5
      %v1673 = vsel %vm1620, %v1671, %v1672
      %v1674 = vrot.slane %v1672, 4
      %v1675 = vrot.slane %v1593, 5
      %v1676 = vsel %vm1620, %v1674, %v1675
      %v1677 = vunpack.c.l.b16 %v1624
      %v1678 = vunpack.c.l.b16 %v1627
      %v1679 = vunpack.c.l.b16 %v1631
      %v1680 = vunpack.c.l.b16 %v1634
      %v1681 = vunpack.c.l.b16 %v1638
      %v1682 = vunpack.c.l.b16 %v1641
      %v1683 = vunpack.c.l.b16 %v1645
      %v1684 = vunpack.c.l.b16 %v1648
      %v1685 = vunpack.c.l.b16 %v1652
      %v1686 = vunpack.c.l.b16 %v1655
      %v1687 = vunpack.c.l.b16 %v1659
      %v1688 = vunpack.c.l.b16 %v1662
      %v1689 = vunpack.c.l.b16 %v1666
      %v1690 = vunpack.c.l.b16 %v1669
      %v1691 = vunpack.c.l.b16 %v1673
      %v1692 = vunpack.c.l.b16 %v1676
      %v1693 = vpack.c.b16 %v1678, %v1677
      %v1694 = vpack.c.b16 %v1680, %v1679
      %v1695 = vpack.c.b16 %v1682, %v1681
      %v1696 = vpack.c.b16 %v1684, %v1683
      %v1697 = vpack.c.b16 %v1686, %v1685
      %v1698 = vpack.c.b16 %v1688, %v1687
      %v1699 = vpack.c.b16 %v1690, %v1689
      %v1700 = vpack.c.b16 %v1692, %v1691
      %1709 = vst [vmem:[#allocation3 + $0x10] sm:$0xff] %v1693
      %1710 = vst [vmem:[#allocation3 + $0x58] sm:$0xff] %v1694
      %1711 = vst [vmem:[#allocation3 + $0xa0] sm:$0xff] %v1695
      %1712 = vst [vmem:[#allocation3 + $0xe8] sm:$0xff] %v1696
      %1713 = vst [vmem:[#allocation3 + $0x130] sm:$0xff] %v1697
      %1714 = vst [vmem:[#allocation3 + $0x178] sm:$0xff] %v1698
      %1715 = vst [vmem:[#allocation3 + $0x1c0] sm:$0xff] %v1699
      %1716 = vst [vmem:[#allocation3 + $0x208] sm:$0xff] %v1700
      %s1717 = scalar_lea.vmem [#allocation2], 12
      %v1718 = vld [vmem:[%s1717] sm:$0xf]
      %v1719 = vld [vmem:[%s1717 + $0x4] sm:$0xf]
      %v1720 = vld [vmem:[%s1717 + $0xc] sm:$0xf]
      %v1721 = vld [vmem:[%s1717 + $0x10] sm:$0xf]
      %v1722 = vld [vmem:[%s1717 + $0x18] sm:$0xf]
      %v1723 = vld [vmem:[%s1717 + $0x1c] sm:$0xf]
      %v1724 = vld [vmem:[%s1717 + $0x24] sm:$0xf]
      %v1725 = vld [vmem:[%s1717 + $0x28] sm:$0xf]
      %v1726 = vld [vmem:[%s1717 + $0x30] sm:$0xf]
      %v1727 = vld [vmem:[%s1717 + $0x34] sm:$0xf]
      %v1728 = vld [vmem:[%s1717 + $0x3c] sm:$0xf]
      %v1729 = vld [vmem:[%s1717 + $0x40] sm:$0xf]
      %v1730 = vld [vmem:[%s1717 + $0x48] sm:$0xf]
      %v1731 = vld [vmem:[%s1717 + $0x4c] sm:$0xf]
      %v1732 = vld [vmem:[%s1717 + $0x54] sm:$0xf]
      %v1733 = vld [vmem:[%s1717 + $0x58] sm:$0xf]
      %v1750 = vunpack.c.l.b16 %v1718
      %v1751 = vunpack.c.l.b16 %v1719
      %v1752 = vunpack.c.l.b16 %v1720
      %v1753 = vunpack.c.l.b16 %v1721
      %v1754 = vunpack.c.l.b16 %v1722
      %v1755 = vunpack.c.l.b16 %v1723
      %v1756 = vunpack.c.l.b16 %v1724
      %v1757 = vunpack.c.l.b16 %v1725
      %v1758 = vunpack.c.l.b16 %v1726
      %v1759 = vunpack.c.l.b16 %v1727
      %v1760 = vunpack.c.l.b16 %v1728
      %v1761 = vunpack.c.l.b16 %v1729
      %v1762 = vunpack.c.l.b16 %v1730
      %v1763 = vunpack.c.l.b16 %v1731
      %v1764 = vunpack.c.l.b16 %v1732
      %v1765 = vunpack.c.l.b16 %v1733
      %v1766 = vpack.c.b16 %v1751, %v1750
      %v1767 = vpack.c.b16 %v1753, %v1752
      %v1768 = vpack.c.b16 %v1755, %v1754
      %v1769 = vpack.c.b16 %v1757, %v1756
      %v1770 = vpack.c.b16 %v1759, %v1758
      %v1771 = vpack.c.b16 %v1761, %v1760
      %v1772 = vpack.c.b16 %v1763, %v1762
      %v1773 = vpack.c.b16 %v1765, %v1764
      %1782 = vst [vmem:[#allocation3 + $0x18] sm:$0xff] %v1766
      %1783 = vst [vmem:[#allocation3 + $0x60] sm:$0xff] %v1767
      %1784 = vst [vmem:[#allocation3 + $0xa8] sm:$0xff] %v1768
      %1785 = vst [vmem:[#allocation3 + $0xf0] sm:$0xff] %v1769
      %1786 = vst [vmem:[#allocation3 + $0x138] sm:$0xff] %v1770
      %1787 = vst [vmem:[#allocation3 + $0x180] sm:$0xff] %v1771
      %1788 = vst [vmem:[#allocation3 + $0x1c8] sm:$0xff] %v1772
      %1789 = vst [vmem:[#allocation3 + $0x210] sm:$0xff] %v1773
      %v1790 = vld [vmem:[%s1717] sm:$0xf]
      %v1791 = vld [vmem:[%s1717 + $0x4] sm:$0xf]
      %v1792 = vld [vmem:[%s1717 + $0x8] sm:$0x1]
      %v1793 = vld [vmem:[%s1717 + $0xc] sm:$0xf]
      %v1794 = vld [vmem:[%s1717 + $0x10] sm:$0xf]
      %v1795 = vld [vmem:[%s1717 + $0x14] sm:$0x1]
      %v1796 = vld [vmem:[%s1717 + $0x18] sm:$0xf]
      %v1797 = vld [vmem:[%s1717 + $0x1c] sm:$0xf]
      %v1798 = vld [vmem:[%s1717 + $0x20] sm:$0x1]
      %v1799 = vld [vmem:[%s1717 + $0x24] sm:$0xf]
      %v1800 = vld [vmem:[%s1717 + $0x28] sm:$0xf]
      %v1801 = vld [vmem:[%s1717 + $0x2c] sm:$0x1]
      %v1802 = vld [vmem:[%s1717 + $0x30] sm:$0xf]
      %v1803 = vld [vmem:[%s1717 + $0x34] sm:$0xf]
      %v1804 = vld [vmem:[%s1717 + $0x38] sm:$0x1]
      %v1805 = vld [vmem:[%s1717 + $0x3c] sm:$0xf]
      %v1806 = vld [vmem:[%s1717 + $0x40] sm:$0xf]
      %v1807 = vld [vmem:[%s1717 + $0x44] sm:$0x1]
      %v1808 = vld [vmem:[%s1717 + $0x48] sm:$0xf]
      %v1809 = vld [vmem:[%s1717 + $0x4c] sm:$0xf]
      %v1810 = vld [vmem:[%s1717 + $0x50] sm:$0x1]
      %v1811 = vld [vmem:[%s1717 + $0x54] sm:$0xf]
      %v1812 = vld [vmem:[%s1717 + $0x58] sm:$0xf]
      %v1813 = vld [vmem:[%s1717 + $0x5c] sm:$0x1]
      %v1815 = vshrl.u32 %v1790, 16
      %v1817 = vrot.slane %v1815, 4
      %v1818 = vshll.u32 %v1790, 16
      %v1820 = vrot.slane %v1818, 5
      %v1821 = vor.u32 %v1817, %v1820
      %v1822 = vrot.slane %v1821, 4
      %v1824 = vshll.u32 %v1791, 16
      %v1826 = vrot.slane %v1824, 5
      %v1827 = vsel %vm1337, %v1822, %v1826
      %v1828 = vshrl.u32 %v1791, 16
      %v1830 = vrot.slane %v1828, 4
      %v1831 = vor.u32 %v1830, %v1826
      %v1832 = vrot.slane %v1831, 4
      %v1834 = vshll.u32 %v1792, 16
      %v1836 = vrot.slane %v1834, 5
      %v1837 = vsel %vm1337, %v1832, %v1836
      %v1839 = vshrl.u32 %v1793, 16
      %v1841 = vrot.slane %v1839, 4
      %v1842 = vshll.u32 %v1793, 16
      %v1844 = vrot.slane %v1842, 5
      %v1845 = vor.u32 %v1841, %v1844
      %v1846 = vrot.slane %v1845, 4
      %v1848 = vshll.u32 %v1794, 16
      %v1850 = vrot.slane %v1848, 5
      %v1851 = vsel %vm1337, %v1846, %v1850
      %v1852 = vshrl.u32 %v1794, 16
      %v1854 = vrot.slane %v1852, 4
      %v1855 = vor.u32 %v1854, %v1850
      %v1856 = vrot.slane %v1855, 4
      %v1858 = vshll.u32 %v1795, 16
      %v1860 = vrot.slane %v1858, 5
      %v1861 = vsel %vm1337, %v1856, %v1860
      %v1863 = vshrl.u32 %v1796, 16
      %v1865 = vrot.slane %v1863, 4
      %v1866 = vshll.u32 %v1796, 16
      %v1868 = vrot.slane %v1866, 5
      %v1869 = vor.u32 %v1865, %v1868
      %v1870 = vrot.slane %v1869, 4
      %v1872 = vshll.u32 %v1797, 16
      %v1874 = vrot.slane %v1872, 5
      %v1875 = vsel %vm1337, %v1870, %v1874
      %v1876 = vshrl.u32 %v1797, 16
      %v1878 = vrot.slane %v1876, 4
      %v1879 = vor.u32 %v1878, %v1874
      %v1880 = vrot.slane %v1879, 4
      %v1882 = vshll.u32 %v1798, 16
      %v1884 = vrot.slane %v1882, 5
      %v1885 = vsel %vm1337, %v1880, %v1884
      %v1887 = vshrl.u32 %v1799, 16
      %v1889 = vrot.slane %v1887, 4
      %v1890 = vshll.u32 %v1799, 16
      %v1892 = vrot.slane %v1890, 5
      %v1893 = vor.u32 %v1889, %v1892
      %v1894 = vrot.slane %v1893, 4
      %v1896 = vshll.u32 %v1800, 16
      %v1898 = vrot.slane %v1896, 5
      %v1899 = vsel %vm1337, %v1894, %v1898
      %v1900 = vshrl.u32 %v1800, 16
      %v1902 = vrot.slane %v1900, 4
      %v1903 = vor.u32 %v1902, %v1898
      %v1904 = vrot.slane %v1903, 4
      %v1906 = vshll.u32 %v1801, 16
      %v1908 = vrot.slane %v1906, 5
      %v1909 = vsel %vm1337, %v1904, %v1908
      %v1911 = vshrl.u32 %v1802, 16
      %v1913 = vrot.slane %v1911, 4
      %v1914 = vshll.u32 %v1802, 16
      %v1916 = vrot.slane %v1914, 5
      %v1917 = vor.u32 %v1913, %v1916
      %v1918 = vrot.slane %v1917, 4
      %v1920 = vshll.u32 %v1803, 16
      %v1922 = vrot.slane %v1920, 5
      %v1923 = vsel %vm1337, %v1918, %v1922
      %v1924 = vshrl.u32 %v1803, 16
      %v1926 = vrot.slane %v1924, 4
      %v1927 = vor.u32 %v1926, %v1922
      %v1928 = vrot.slane %v1927, 4
      %v1930 = vshll.u32 %v1804, 16
      %v1932 = vrot.slane %v1930, 5
      %v1933 = vsel %vm1337, %v1928, %v1932
      %v1935 = vshrl.u32 %v1805, 16
      %v1937 = vrot.slane %v1935, 4
      %v1938 = vshll.u32 %v1805, 16
      %v1940 = vrot.slane %v1938, 5
      %v1941 = vor.u32 %v1937, %v1940
      %v1942 = vrot.slane %v1941, 4
      %v1944 = vshll.u32 %v1806, 16
      %v1946 = vrot.slane %v1944, 5
      %v1947 = vsel %vm1337, %v1942, %v1946
      %v1948 = vshrl.u32 %v1806, 16
      %v1950 = vrot.slane %v1948, 4
      %v1951 = vor.u32 %v1950, %v1946
      %v1952 = vrot.slane %v1951, 4
      %v1954 = vshll.u32 %v1807, 16
      %v1956 = vrot.slane %v1954, 5
      %v1957 = vsel %vm1337, %v1952, %v1956
      %v1959 = vshrl.u32 %v1808, 16
      %v1961 = vrot.slane %v1959, 4
      %v1962 = vshll.u32 %v1808, 16
      %v1964 = vrot.slane %v1962, 5
      %v1965 = vor.u32 %v1961, %v1964
      %v1966 = vrot.slane %v1965, 4
      %v1968 = vshll.u32 %v1809, 16
      %v1970 = vrot.slane %v1968, 5
      %v1971 = vsel %vm1337, %v1966, %v1970
      %v1972 = vshrl.u32 %v1809, 16
      %v1974 = vrot.slane %v1972, 4
      %v1975 = vor.u32 %v1974, %v1970
      %v1976 = vrot.slane %v1975, 4
      %v1978 = vshll.u32 %v1810, 16
      %v1980 = vrot.slane %v1978, 5
      %v1981 = vsel %vm1337, %v1976, %v1980
      %v1983 = vshrl.u32 %v1811, 16
      %v1985 = vrot.slane %v1983, 4
      %v1986 = vshll.u32 %v1811, 16
      %v1988 = vrot.slane %v1986, 5
      %v1989 = vor.u32 %v1985, %v1988
      %v1990 = vrot.slane %v1989, 4
      %v1992 = vshll.u32 %v1812, 16
      %v1994 = vrot.slane %v1992, 5
      %v1995 = vsel %vm1337, %v1990, %v1994
      %v1996 = vshrl.u32 %v1812, 16
      %v1998 = vrot.slane %v1996, 4
      %v1999 = vor.u32 %v1998, %v1994
      %v2000 = vrot.slane %v1999, 4
      %v2002 = vshll.u32 %v1813, 16
      %v2004 = vrot.slane %v2002, 5
      %v2005 = vsel %vm1337, %v2000, %v2004
      %v2006 = vunpack.c.l.b16 %v1827
      %v2007 = vunpack.c.l.b16 %v1837
      %v2008 = vunpack.c.l.b16 %v1851
      %v2009 = vunpack.c.l.b16 %v1861
      %v2010 = vunpack.c.l.b16 %v1875
      %v2011 = vunpack.c.l.b16 %v1885
      %v2012 = vunpack.c.l.b16 %v1899
      %v2013 = vunpack.c.l.b16 %v1909
      %v2014 = vunpack.c.l.b16 %v1923
      %v2015 = vunpack.c.l.b16 %v1933
      %v2016 = vunpack.c.l.b16 %v1947
      %v2017 = vunpack.c.l.b16 %v1957
      %v2018 = vunpack.c.l.b16 %v1971
      %v2019 = vunpack.c.l.b16 %v1981
      %v2020 = vunpack.c.l.b16 %v1995
      %v2021 = vunpack.c.l.b16 %v2005
      %v2022 = vpack.c.b16 %v2007, %v2006
      %v2023 = vpack.c.b16 %v2009, %v2008
      %v2024 = vpack.c.b16 %v2011, %v2010
      %v2025 = vpack.c.b16 %v2013, %v2012
      %v2026 = vpack.c.b16 %v2015, %v2014
      %v2027 = vpack.c.b16 %v2017, %v2016
      %v2028 = vpack.c.b16 %v2019, %v2018
      %v2029 = vpack.c.b16 %v2021, %v2020
      %2038 = vst [vmem:[#allocation3 + $0x20] sm:$0xff] %v2022
      %2039 = vst [vmem:[#allocation3 + $0x68] sm:$0xff] %v2023
      %2040 = vst [vmem:[#allocation3 + $0xb0] sm:$0xff] %v2024
      %2041 = vst [vmem:[#allocation3 + $0xf8] sm:$0xff] %v2025
      %2042 = vst [vmem:[#allocation3 + $0x140] sm:$0xff] %v2026
      %2043 = vst [vmem:[#allocation3 + $0x188] sm:$0xff] %v2027
      %2044 = vst [vmem:[#allocation3 + $0x1d0] sm:$0xff] %v2028
      %2045 = vst [vmem:[#allocation3 + $0x218] sm:$0xff] %v2029
      %v2046 = vld [vmem:[%s1717] sm:$0xe]
      %v2047 = vld [vmem:[%s1717 + $0x4] sm:$0xf]
      %v2048 = vld [vmem:[%s1717 + $0x8] sm:$0x1]
      %v2049 = vld [vmem:[%s1717 + $0xc] sm:$0xe]
      %v2050 = vld [vmem:[%s1717 + $0x10] sm:$0xf]
      %v2051 = vld [vmem:[%s1717 + $0x14] sm:$0x1]
      %v2052 = vld [vmem:[%s1717 + $0x18] sm:$0xe]
      %v2053 = vld [vmem:[%s1717 + $0x1c] sm:$0xf]
      %v2054 = vld [vmem:[%s1717 + $0x20] sm:$0x1]
      %v2055 = vld [vmem:[%s1717 + $0x24] sm:$0xe]
      %v2056 = vld [vmem:[%s1717 + $0x28] sm:$0xf]
      %v2057 = vld [vmem:[%s1717 + $0x2c] sm:$0x1]
      %v2058 = vld [vmem:[%s1717 + $0x30] sm:$0xe]
      %v2059 = vld [vmem:[%s1717 + $0x34] sm:$0xf]
      %v2060 = vld [vmem:[%s1717 + $0x38] sm:$0x1]
      %v2061 = vld [vmem:[%s1717 + $0x3c] sm:$0xe]
      %v2062 = vld [vmem:[%s1717 + $0x40] sm:$0xf]
      %v2063 = vld [vmem:[%s1717 + $0x44] sm:$0x1]
      %v2064 = vld [vmem:[%s1717 + $0x48] sm:$0xe]
      %v2065 = vld [vmem:[%s1717 + $0x4c] sm:$0xf]
      %v2066 = vld [vmem:[%s1717 + $0x50] sm:$0x1]
      %v2067 = vld [vmem:[%s1717 + $0x54] sm:$0xe]
      %v2068 = vld [vmem:[%s1717 + $0x58] sm:$0xf]
      %v2069 = vld [vmem:[%s1717 + $0x5c] sm:$0x1]
      %v2094 = vrot.slane %v2046, 5
      %v2095 = vrot.slane %v2094, 4
      %v2096 = vrot.slane %v2047, 5
      %v2097 = vsel %vm1620, %v2095, %v2096
      %v2098 = vrot.slane %v2096, 4
      %v2099 = vrot.slane %v2048, 5
      %v2100 = vsel %vm1620, %v2098, %v2099
      %v2101 = vrot.slane %v2049, 5
      %v2102 = vrot.slane %v2101, 4
      %v2103 = vrot.slane %v2050, 5
      %v2104 = vsel %vm1620, %v2102, %v2103
      %v2105 = vrot.slane %v2103, 4
      %v2106 = vrot.slane %v2051, 5
      %v2107 = vsel %vm1620, %v2105, %v2106
      %v2108 = vrot.slane %v2052, 5
      %v2109 = vrot.slane %v2108, 4
      %v2110 = vrot.slane %v2053, 5
      %v2111 = vsel %vm1620, %v2109, %v2110
      %v2112 = vrot.slane %v2110, 4
      %v2113 = vrot.slane %v2054, 5
      %v2114 = vsel %vm1620, %v2112, %v2113
      %v2115 = vrot.slane %v2055, 5
      %v2116 = vrot.slane %v2115, 4
      %v2117 = vrot.slane %v2056, 5
      %v2118 = vsel %vm1620, %v2116, %v2117
      %v2119 = vrot.slane %v2117, 4
      %v2120 = vrot.slane %v2057, 5
      %v2121 = vsel %vm1620, %v2119, %v2120
      %v2122 = vrot.slane %v2058, 5
      %v2123 = vrot.slane %v2122, 4
      %v2124 = vrot.slane %v2059, 5
      %v2125 = vsel %vm1620, %v2123, %v2124
      %v2126 = vrot.slane %v2124, 4
      %v2127 = vrot.slane %v2060, 5
      %v2128 = vsel %vm1620, %v2126, %v2127
      %v2129 = vrot.slane %v2061, 5
      %v2130 = vrot.slane %v2129, 4
      %v2131 = vrot.slane %v2062, 5
      %v2132 = vsel %vm1620, %v2130, %v2131
      %v2133 = vrot.slane %v2131, 4
      %v2134 = vrot.slane %v2063, 5
      %v2135 = vsel %vm1620, %v2133, %v2134
      %v2136 = vrot.slane %v2064, 5
      %v2137 = vrot.slane %v2136, 4
      %v2138 = vrot.slane %v2065, 5
      %v2139 = vsel %vm1620, %v2137, %v2138
      %v2140 = vrot.slane %v2138, 4
      %v2141 = vrot.slane %v2066, 5
      %v2142 = vsel %vm1620, %v2140, %v2141
      %v2143 = vrot.slane %v2067, 5
      %v2144 = vrot.slane %v2143, 4
      %v2145 = vrot.slane %v2068, 5
      %v2146 = vsel %vm1620, %v2144, %v2145
      %v2147 = vrot.slane %v2145, 4
      %v2148 = vrot.slane %v2069, 5
      %v2149 = vsel %vm1620, %v2147, %v2148
      %v2150 = vunpack.c.l.b16 %v2097
      %v2151 = vunpack.c.l.b16 %v2100
      %v2152 = vunpack.c.l.b16 %v2104
      %v2153 = vunpack.c.l.b16 %v2107
      %v2154 = vunpack.c.l.b16 %v2111
      %v2155 = vunpack.c.l.b16 %v2114
      %v2156 = vunpack.c.l.b16 %v2118
      %v2157 = vunpack.c.l.b16 %v2121
      %v2158 = vunpack.c.l.b16 %v2125
      %v2159 = vunpack.c.l.b16 %v2128
      %v2160 = vunpack.c.l.b16 %v2132
      %v2161 = vunpack.c.l.b16 %v2135
      %v2162 = vunpack.c.l.b16 %v2139
      %v2163 = vunpack.c.l.b16 %v2142
      %v2164 = vunpack.c.l.b16 %v2146
      %v2165 = vunpack.c.l.b16 %v2149
      %v2166 = vpack.c.b16 %v2151, %v2150
      %v2167 = vpack.c.b16 %v2153, %v2152
      %v2168 = vpack.c.b16 %v2155, %v2154
      %v2169 = vpack.c.b16 %v2157, %v2156
      %v2170 = vpack.c.b16 %v2159, %v2158
      %v2171 = vpack.c.b16 %v2161, %v2160
      %v2172 = vpack.c.b16 %v2163, %v2162
      %v2173 = vpack.c.b16 %v2165, %v2164
      %2182 = vst [vmem:[#allocation3 + $0x28] sm:$0xff] %v2166
      %2183 = vst [vmem:[#allocation3 + $0x70] sm:$0xff] %v2167
      %2184 = vst [vmem:[#allocation3 + $0xb8] sm:$0xff] %v2168
      %2185 = vst [vmem:[#allocation3 + $0x100] sm:$0xff] %v2169
      %2186 = vst [vmem:[#allocation3 + $0x148] sm:$0xff] %v2170
      %2187 = vst [vmem:[#allocation3 + $0x190] sm:$0xff] %v2171
      %2188 = vst [vmem:[#allocation3 + $0x1d8] sm:$0xff] %v2172
      %2189 = vst [vmem:[#allocation3 + $0x220] sm:$0xff] %v2173
      %s2190 = scalar_lea.vmem [#allocation2], 24
      %v2191 = vld [vmem:[%s2190] sm:$0xf]
      %v2192 = vld [vmem:[%s2190 + $0x4] sm:$0xf]
      %v2193 = vld [vmem:[%s2190 + $0xc] sm:$0xf]
      %v2194 = vld [vmem:[%s2190 + $0x10] sm:$0xf]
      %v2195 = vld [vmem:[%s2190 + $0x18] sm:$0xf]
      %v2196 = vld [vmem:[%s2190 + $0x1c] sm:$0xf]
      %v2197 = vld [vmem:[%s2190 + $0x24] sm:$0xf]
      %v2198 = vld [vmem:[%s2190 + $0x28] sm:$0xf]
      %v2199 = vld [vmem:[%s2190 + $0x30] sm:$0xf]
      %v2200 = vld [vmem:[%s2190 + $0x34] sm:$0xf]
      %v2201 = vld [vmem:[%s2190 + $0x3c] sm:$0xf]
      %v2202 = vld [vmem:[%s2190 + $0x40] sm:$0xf]
      %v2203 = vld [vmem:[%s2190 + $0x48] sm:$0xf]
      %v2204 = vld [vmem:[%s2190 + $0x4c] sm:$0xf]
      %v2205 = vld [vmem:[%s2190 + $0x54] sm:$0xf]
      %v2206 = vld [vmem:[%s2190 + $0x58] sm:$0xf]
      %v2223 = vunpack.c.l.b16 %v2191
      %v2224 = vunpack.c.l.b16 %v2192
      %v2225 = vunpack.c.l.b16 %v2193
      %v2226 = vunpack.c.l.b16 %v2194
      %v2227 = vunpack.c.l.b16 %v2195
      %v2228 = vunpack.c.l.b16 %v2196
      %v2229 = vunpack.c.l.b16 %v2197
      %v2230 = vunpack.c.l.b16 %v2198
      %v2231 = vunpack.c.l.b16 %v2199
      %v2232 = vunpack.c.l.b16 %v2200
      %v2233 = vunpack.c.l.b16 %v2201
      %v2234 = vunpack.c.l.b16 %v2202
      %v2235 = vunpack.c.l.b16 %v2203
      %v2236 = vunpack.c.l.b16 %v2204
      %v2237 = vunpack.c.l.b16 %v2205
      %v2238 = vunpack.c.l.b16 %v2206
      %v2239 = vpack.c.b16 %v2224, %v2223
      %v2240 = vpack.c.b16 %v2226, %v2225
      %v2241 = vpack.c.b16 %v2228, %v2227
      %v2242 = vpack.c.b16 %v2230, %v2229
      %v2243 = vpack.c.b16 %v2232, %v2231
      %v2244 = vpack.c.b16 %v2234, %v2233
      %v2245 = vpack.c.b16 %v2236, %v2235
      %v2246 = vpack.c.b16 %v2238, %v2237
      %2255 = vst [vmem:[#allocation3 + $0x30] sm:$0xff] %v2239
      %2256 = vst [vmem:[#allocation3 + $0x78] sm:$0xff] %v2240
      %2257 = vst [vmem:[#allocation3 + $0xc0] sm:$0xff] %v2241
      %2258 = vst [vmem:[#allocation3 + $0x108] sm:$0xff] %v2242
      %2259 = vst [vmem:[#allocation3 + $0x150] sm:$0xff] %v2243
      %2260 = vst [vmem:[#allocation3 + $0x198] sm:$0xff] %v2244
      %2261 = vst [vmem:[#allocation3 + $0x1e0] sm:$0xff] %v2245
      %2262 = vst [vmem:[#allocation3 + $0x228] sm:$0xff] %v2246
      %v2263 = vld [vmem:[%s2190] sm:$0xf]
      %v2264 = vld [vmem:[%s2190 + $0x4] sm:$0xf]
      %v2265 = vld [vmem:[%s2190 + $0x8] sm:$0x1]
      %v2266 = vld [vmem:[%s2190 + $0xc] sm:$0xf]
      %v2267 = vld [vmem:[%s2190 + $0x10] sm:$0xf]
      %v2268 = vld [vmem:[%s2190 + $0x14] sm:$0x1]
      %v2269 = vld [vmem:[%s2190 + $0x18] sm:$0xf]
      %v2270 = vld [vmem:[%s2190 + $0x1c] sm:$0xf]
      %v2271 = vld [vmem:[%s2190 + $0x20] sm:$0x1]
      %v2272 = vld [vmem:[%s2190 + $0x24] sm:$0xf]
      %v2273 = vld [vmem:[%s2190 + $0x28] sm:$0xf]
      %v2274 = vld [vmem:[%s2190 + $0x2c] sm:$0x1]
      %v2275 = vld [vmem:[%s2190 + $0x30] sm:$0xf]
      %v2276 = vld [vmem:[%s2190 + $0x34] sm:$0xf]
      %v2277 = vld [vmem:[%s2190 + $0x38] sm:$0x1]
      %v2278 = vld [vmem:[%s2190 + $0x3c] sm:$0xf]
      %v2279 = vld [vmem:[%s2190 + $0x40] sm:$0xf]
      %v2280 = vld [vmem:[%s2190 + $0x44] sm:$0x1]
      %v2281 = vld [vmem:[%s2190 + $0x48] sm:$0xf]
      %v2282 = vld [vmem:[%s2190 + $0x4c] sm:$0xf]
      %v2283 = vld [vmem:[%s2190 + $0x50] sm:$0x1]
      %v2284 = vld [vmem:[%s2190 + $0x54] sm:$0xf]
      %v2285 = vld [vmem:[%s2190 + $0x58] sm:$0xf]
      %v2286 = vld [vmem:[%s2190 + $0x5c] sm:$0x1]
      %v2288 = vshrl.u32 %v2263, 16
      %v2290 = vrot.slane %v2288, 4
      %v2291 = vshll.u32 %v2263, 16
      %v2293 = vrot.slane %v2291, 5
      %v2294 = vor.u32 %v2290, %v2293
      %v2295 = vrot.slane %v2294, 4
      %v2297 = vshll.u32 %v2264, 16
      %v2299 = vrot.slane %v2297, 5
      %v2300 = vsel %vm1337, %v2295, %v2299
      %v2301 = vshrl.u32 %v2264, 16
      %v2303 = vrot.slane %v2301, 4
      %v2304 = vor.u32 %v2303, %v2299
      %v2305 = vrot.slane %v2304, 4
      %v2307 = vshll.u32 %v2265, 16
      %v2309 = vrot.slane %v2307, 5
      %v2310 = vsel %vm1337, %v2305, %v2309
      %v2312 = vshrl.u32 %v2266, 16
      %v2314 = vrot.slane %v2312, 4
      %v2315 = vshll.u32 %v2266, 16
      %v2317 = vrot.slane %v2315, 5
      %v2318 = vor.u32 %v2314, %v2317
      %v2319 = vrot.slane %v2318, 4
      %v2321 = vshll.u32 %v2267, 16
      %v2323 = vrot.slane %v2321, 5
      %v2324 = vsel %vm1337, %v2319, %v2323
      %v2325 = vshrl.u32 %v2267, 16
      %v2327 = vrot.slane %v2325, 4
      %v2328 = vor.u32 %v2327, %v2323
      %v2329 = vrot.slane %v2328, 4
      %v2331 = vshll.u32 %v2268, 16
      %v2333 = vrot.slane %v2331, 5
      %v2334 = vsel %vm1337, %v2329, %v2333
      %v2336 = vshrl.u32 %v2269, 16
      %v2338 = vrot.slane %v2336, 4
      %v2339 = vshll.u32 %v2269, 16
      %v2341 = vrot.slane %v2339, 5
      %v2342 = vor.u32 %v2338, %v2341
      %v2343 = vrot.slane %v2342, 4
      %v2345 = vshll.u32 %v2270, 16
      %v2347 = vrot.slane %v2345, 5
      %v2348 = vsel %vm1337, %v2343, %v2347
      %v2349 = vshrl.u32 %v2270, 16
      %v2351 = vrot.slane %v2349, 4
      %v2352 = vor.u32 %v2351, %v2347
      %v2353 = vrot.slane %v2352, 4
      %v2355 = vshll.u32 %v2271, 16
      %v2357 = vrot.slane %v2355, 5
      %v2358 = vsel %vm1337, %v2353, %v2357
      %v2360 = vshrl.u32 %v2272, 16
      %v2362 = vrot.slane %v2360, 4
      %v2363 = vshll.u32 %v2272, 16
      %v2365 = vrot.slane %v2363, 5
      %v2366 = vor.u32 %v2362, %v2365
      %v2367 = vrot.slane %v2366, 4
      %v2369 = vshll.u32 %v2273, 16
      %v2371 = vrot.slane %v2369, 5
      %v2372 = vsel %vm1337, %v2367, %v2371
      %v2373 = vshrl.u32 %v2273, 16
      %v2375 = vrot.slane %v2373, 4
      %v2376 = vor.u32 %v2375, %v2371
      %v2377 = vrot.slane %v2376, 4
      %v2379 = vshll.u32 %v2274, 16
      %v2381 = vrot.slane %v2379, 5
      %v2382 = vsel %vm1337, %v2377, %v2381
      %v2384 = vshrl.u32 %v2275, 16
      %v2386 = vrot.slane %v2384, 4
      %v2387 = vshll.u32 %v2275, 16
      %v2389 = vrot.slane %v2387, 5
      %v2390 = vor.u32 %v2386, %v2389
      %v2391 = vrot.slane %v2390, 4
      %v2393 = vshll.u32 %v2276, 16
      %v2395 = vrot.slane %v2393, 5
      %v2396 = vsel %vm1337, %v2391, %v2395
      %v2397 = vshrl.u32 %v2276, 16
      %v2399 = vrot.slane %v2397, 4
      %v2400 = vor.u32 %v2399, %v2395
      %v2401 = vrot.slane %v2400, 4
      %v2403 = vshll.u32 %v2277, 16
      %v2405 = vrot.slane %v2403, 5
      %v2406 = vsel %vm1337, %v2401, %v2405
      %v2408 = vshrl.u32 %v2278, 16
      %v2410 = vrot.slane %v2408, 4
      %v2411 = vshll.u32 %v2278, 16
      %v2413 = vrot.slane %v2411, 5
      %v2414 = vor.u32 %v2410, %v2413
      %v2415 = vrot.slane %v2414, 4
      %v2417 = vshll.u32 %v2279, 16
      %v2419 = vrot.slane %v2417, 5
      %v2420 = vsel %vm1337, %v2415, %v2419
      %v2421 = vshrl.u32 %v2279, 16
      %v2423 = vrot.slane %v2421, 4
      %v2424 = vor.u32 %v2423, %v2419
      %v2425 = vrot.slane %v2424, 4
      %v2427 = vshll.u32 %v2280, 16
      %v2429 = vrot.slane %v2427, 5
      %v2430 = vsel %vm1337, %v2425, %v2429
      %v2432 = vshrl.u32 %v2281, 16
      %v2434 = vrot.slane %v2432, 4
      %v2435 = vshll.u32 %v2281, 16
      %v2437 = vrot.slane %v2435, 5
      %v2438 = vor.u32 %v2434, %v2437
      %v2439 = vrot.slane %v2438, 4
      %v2441 = vshll.u32 %v2282, 16
      %v2443 = vrot.slane %v2441, 5
      %v2444 = vsel %vm1337, %v2439, %v2443
      %v2445 = vshrl.u32 %v2282, 16
      %v2447 = vrot.slane %v2445, 4
      %v2448 = vor.u32 %v2447, %v2443
      %v2449 = vrot.slane %v2448, 4
      %v2451 = vshll.u32 %v2283, 16
      %v2453 = vrot.slane %v2451, 5
      %v2454 = vsel %vm1337, %v2449, %v2453
      %v2456 = vshrl.u32 %v2284, 16
      %v2458 = vrot.slane %v2456, 4
      %v2459 = vshll.u32 %v2284, 16
      %v2461 = vrot.slane %v2459, 5
      %v2462 = vor.u32 %v2458, %v2461
      %v2463 = vrot.slane %v2462, 4
      %v2465 = vshll.u32 %v2285, 16
      %v2467 = vrot.slane %v2465, 5
      %v2468 = vsel %vm1337, %v2463, %v2467
      %v2469 = vshrl.u32 %v2285, 16
      %v2471 = vrot.slane %v2469, 4
      %v2472 = vor.u32 %v2471, %v2467
      %v2473 = vrot.slane %v2472, 4
      %v2475 = vshll.u32 %v2286, 16
      %v2477 = vrot.slane %v2475, 5
      %v2478 = vsel %vm1337, %v2473, %v2477
      %v2479 = vunpack.c.l.b16 %v2300
      %v2480 = vunpack.c.l.b16 %v2310
      %v2481 = vunpack.c.l.b16 %v2324
      %v2482 = vunpack.c.l.b16 %v2334
      %v2483 = vunpack.c.l.b16 %v2348
      %v2484 = vunpack.c.l.b16 %v2358
      %v2485 = vunpack.c.l.b16 %v2372
      %v2486 = vunpack.c.l.b16 %v2382
      %v2487 = vunpack.c.l.b16 %v2396
      %v2488 = vunpack.c.l.b16 %v2406
      %v2489 = vunpack.c.l.b16 %v2420
      %v2490 = vunpack.c.l.b16 %v2430
      %v2491 = vunpack.c.l.b16 %v2444
      %v2492 = vunpack.c.l.b16 %v2454
      %v2493 = vunpack.c.l.b16 %v2468
      %v2494 = vunpack.c.l.b16 %v2478
      %v2495 = vpack.c.b16 %v2480, %v2479
      %v2496 = vpack.c.b16 %v2482, %v2481
      %v2497 = vpack.c.b16 %v2484, %v2483
      %v2498 = vpack.c.b16 %v2486, %v2485
      %v2499 = vpack.c.b16 %v2488, %v2487
      %v2500 = vpack.c.b16 %v2490, %v2489
      %v2501 = vpack.c.b16 %v2492, %v2491
      %v2502 = vpack.c.b16 %v2494, %v2493
      %2511 = vst [vmem:[#allocation3 + $0x38] sm:$0xff] %v2495
      %2512 = vst [vmem:[#allocation3 + $0x80] sm:$0xff] %v2496
      %2513 = vst [vmem:[#allocation3 + $0xc8] sm:$0xff] %v2497
      %2514 = vst [vmem:[#allocation3 + $0x110] sm:$0xff] %v2498
      %2515 = vst [vmem:[#allocation3 + $0x158] sm:$0xff] %v2499
      %2516 = vst [vmem:[#allocation3 + $0x1a0] sm:$0xff] %v2500
      %2517 = vst [vmem:[#allocation3 + $0x1e8] sm:$0xff] %v2501
      %2518 = vst [vmem:[#allocation3 + $0x230] sm:$0xff] %v2502
      %v2519 = vld [vmem:[%s2190] sm:$0xe]
      %v2520 = vld [vmem:[%s2190 + $0x4] sm:$0xf]
      %v2521 = vld [vmem:[%s2190 + $0x8] sm:$0x1]
      %v2522 = vld [vmem:[%s2190 + $0xc] sm:$0xe]
      %v2523 = vld [vmem:[%s2190 + $0x10] sm:$0xf]
      %v2524 = vld [vmem:[%s2190 + $0x14] sm:$0x1]
      %v2525 = vld [vmem:[%s2190 + $0x18] sm:$0xe]
      %v2526 = vld [vmem:[%s2190 + $0x1c] sm:$0xf]
      %v2527 = vld [vmem:[%s2190 + $0x20] sm:$0x1]
      %v2528 = vld [vmem:[%s2190 + $0x24] sm:$0xe]
      %v2529 = vld [vmem:[%s2190 + $0x28] sm:$0xf]
      %v2530 = vld [vmem:[%s2190 + $0x2c] sm:$0x1]
      %v2531 = vld [vmem:[%s2190 + $0x30] sm:$0xe]
      %v2532 = vld [vmem:[%s2190 + $0x34] sm:$0xf]
      %v2533 = vld [vmem:[%s2190 + $0x38] sm:$0x1]
      %v2534 = vld [vmem:[%s2190 + $0x3c] sm:$0xe]
      %v2535 = vld [vmem:[%s2190 + $0x40] sm:$0xf]
      %v2536 = vld [vmem:[%s2190 + $0x44] sm:$0x1]
      %v2537 = vld [vmem:[%s2190 + $0x48] sm:$0xe]
      %v2538 = vld [vmem:[%s2190 + $0x4c] sm:$0xf]
      %v2539 = vld [vmem:[%s2190 + $0x50] sm:$0x1]
      %v2540 = vld [vmem:[%s2190 + $0x54] sm:$0xe]
      %v2541 = vld [vmem:[%s2190 + $0x58] sm:$0xf]
      %v2542 = vld [vmem:[%s2190 + $0x5c] sm:$0x1]
      %v2567 = vrot.slane %v2519, 5
      %v2568 = vrot.slane %v2567, 4
      %v2569 = vrot.slane %v2520, 5
      %v2570 = vsel %vm1620, %v2568, %v2569
      %v2571 = vrot.slane %v2569, 4
      %v2572 = vrot.slane %v2521, 5
      %v2573 = vsel %vm1620, %v2571, %v2572
      %v2574 = vrot.slane %v2522, 5
      %v2575 = vrot.slane %v2574, 4
      %v2576 = vrot.slane %v2523, 5
      %v2577 = vsel %vm1620, %v2575, %v2576
      %v2578 = vrot.slane %v2576, 4
      %v2579 = vrot.slane %v2524, 5
      %v2580 = vsel %vm1620, %v2578, %v2579
      %v2581 = vrot.slane %v2525, 5
      %v2582 = vrot.slane %v2581, 4
      %v2583 = vrot.slane %v2526, 5
      %v2584 = vsel %vm1620, %v2582, %v2583
      %v2585 = vrot.slane %v2583, 4
      %v2586 = vrot.slane %v2527, 5
      %v2587 = vsel %vm1620, %v2585, %v2586
      %v2588 = vrot.slane %v2528, 5
      %v2589 = vrot.slane %v2588, 4
      %v2590 = vrot.slane %v2529, 5
      %v2591 = vsel %vm1620, %v2589, %v2590
      %v2592 = vrot.slane %v2590, 4
      %v2593 = vrot.slane %v2530, 5
      %v2594 = vsel %vm1620, %v2592, %v2593
      %v2595 = vrot.slane %v2531, 5
      %v2596 = vrot.slane %v2595, 4
      %v2597 = vrot.slane %v2532, 5
      %v2598 = vsel %vm1620, %v2596, %v2597
      %v2599 = vrot.slane %v2597, 4
      %v2600 = vrot.slane %v2533, 5
      %v2601 = vsel %vm1620, %v2599, %v2600
      %v2602 = vrot.slane %v2534, 5
      %v2603 = vrot.slane %v2602, 4
      %v2604 = vrot.slane %v2535, 5
      %v2605 = vsel %vm1620, %v2603, %v2604
      %v2606 = vrot.slane %v2604, 4
      %v2607 = vrot.slane %v2536, 5
      %v2608 = vsel %vm1620, %v2606, %v2607
      %v2609 = vrot.slane %v2537, 5
      %v2610 = vrot.slane %v2609, 4
      %v2611 = vrot.slane %v2538, 5
      %v2612 = vsel %vm1620, %v2610, %v2611
      %v2613 = vrot.slane %v2611, 4
      %v2614 = vrot.slane %v2539, 5
      %v2615 = vsel %vm1620, %v2613, %v2614
      %v2616 = vrot.slane %v2540, 5
      %v2617 = vrot.slane %v2616, 4
      %v2618 = vrot.slane %v2541, 5
      %v2619 = vsel %vm1620, %v2617, %v2618
      %v2620 = vrot.slane %v2618, 4
      %v2621 = vrot.slane %v2542, 5
      %v2622 = vsel %vm1620, %v2620, %v2621
      %v2623 = vunpack.c.l.b16 %v2570
      %v2624 = vunpack.c.l.b16 %v2573
      %v2625 = vunpack.c.l.b16 %v2577
      %v2626 = vunpack.c.l.b16 %v2580
      %v2627 = vunpack.c.l.b16 %v2584
      %v2628 = vunpack.c.l.b16 %v2587
      %v2629 = vunpack.c.l.b16 %v2591
      %v2630 = vunpack.c.l.b16 %v2594
      %v2631 = vunpack.c.l.b16 %v2598
      %v2632 = vunpack.c.l.b16 %v2601
      %v2633 = vunpack.c.l.b16 %v2605
      %v2634 = vunpack.c.l.b16 %v2608
      %v2635 = vunpack.c.l.b16 %v2612
      %v2636 = vunpack.c.l.b16 %v2615
      %v2637 = vunpack.c.l.b16 %v2619
      %v2638 = vunpack.c.l.b16 %v2622
      %v2639 = vpack.c.b16 %v2624, %v2623
      %v2640 = vpack.c.b16 %v2626, %v2625
      %v2641 = vpack.c.b16 %v2628, %v2627
      %v2642 = vpack.c.b16 %v2630, %v2629
      %v2643 = vpack.c.b16 %v2632, %v2631
      %v2644 = vpack.c.b16 %v2634, %v2633
      %v2645 = vpack.c.b16 %v2636, %v2635
      %v2646 = vpack.c.b16 %v2638, %v2637
      %2655 = vst [vmem:[#allocation3 + $0x40] sm:$0xff] %v2639
      %2656 = vst [vmem:[#allocation3 + $0x88] sm:$0xff] %v2640
      %2657 = vst [vmem:[#allocation3 + $0xd0] sm:$0xff] %v2641
      %2658 = vst [vmem:[#allocation3 + $0x118] sm:$0xff] %v2642
      %2659 = vst [vmem:[#allocation3 + $0x160] sm:$0xff] %v2643
      %2660 = vst [vmem:[#allocation3 + $0x1a8] sm:$0xff] %v2644
      %2661 = vst [vmem:[#allocation3 + $0x1f0] sm:$0xff] %v2645
      %2662 = vst [vmem:[#allocation3 + $0x238] sm:$0xff] %v2646
      %v2663 = vld [vmem:[#allocation3] sm:$0xff]
      %v2664 = vld [vmem:[#allocation3 + $0x8] sm:$0xff]
      %v2665 = vld [vmem:[#allocation3 + $0x10] sm:$0xff]
      %v2666 = vld [vmem:[#allocation3 + $0x18] sm:$0xff]
      %v2667 = vld [vmem:[#allocation3 + $0x20] sm:$0xff]
      %v2668 = vld [vmem:[#allocation3 + $0x28] sm:$0xff]
      %v2669 = vld [vmem:[#allocation3 + $0x30] sm:$0xff]
      %v2670 = vld [vmem:[#allocation3 + $0x38] sm:$0xff]
      %v2671 = vld [vmem:[#allocation3 + $0x40] sm:$0xff]
      %v2672 = vld [vmem:[#allocation3 + $0x48] sm:$0xff]
      %v2673 = vld [vmem:[#allocation3 + $0x50] sm:$0xff]
      %v2674 = vld [vmem:[#allocation3 + $0x58] sm:$0xff]
      %v2675 = vld [vmem:[#allocation3 + $0x60] sm:$0xff]
      %v2676 = vld [vmem:[#allocation3 + $0x68] sm:$0xff]
      %v2677 = vld [vmem:[#allocation3 + $0x70] sm:$0xff]
      %v2678 = vld [vmem:[#allocation3 + $0x78] sm:$0xff]
      %v2679 = vld [vmem:[#allocation3 + $0x80] sm:$0xff]
      %v2680 = vld [vmem:[#allocation3 + $0x88] sm:$0xff]
      %v2681 = vld [vmem:[#allocation3 + $0x90] sm:$0xff]
      %v2682 = vld [vmem:[#allocation3 + $0x98] sm:$0xff]
      %v2683 = vld [vmem:[#allocation3 + $0xa0] sm:$0xff]
      %v2684 = vld [vmem:[#allocation3 + $0xa8] sm:$0xff]
      %v2685 = vld [vmem:[#allocation3 + $0xb0] sm:$0xff]
      %v2686 = vld [vmem:[#allocation3 + $0xb8] sm:$0xff]
      %v2687 = vld [vmem:[#allocation3 + $0xc0] sm:$0xff]
      %v2688 = vld [vmem:[#allocation3 + $0xc8] sm:$0xff]
      %v2689 = vld [vmem:[#allocation3 + $0xd0] sm:$0xff]
      %v2690 = vld [vmem:[#allocation3 + $0xd8] sm:$0xff]
      %v2691 = vld [vmem:[#allocation3 + $0xe0] sm:$0xff]
      %v2692 = vld [vmem:[#allocation3 + $0xe8] sm:$0xff]
      %v2693 = vld [vmem:[#allocation3 + $0xf0] sm:$0xff]
      %v2694 = vld [vmem:[#allocation3 + $0xf8] sm:$0xff]
      %v2695 = vld [vmem:[#allocation3 + $0x100] sm:$0xff]
      %v2696 = vld [vmem:[#allocation3 + $0x108] sm:$0xff]
      %v2697 = vld [vmem:[#allocation3 + $0x110] sm:$0xff]
      %v2698 = vld [vmem:[#allocation3 + $0x118] sm:$0xff]
      %v2699 = vld [vmem:[#allocation3 + $0x120] sm:$0xff]
      %v2700 = vld [vmem:[#allocation3 + $0x128] sm:$0xff]
      %v2701 = vld [vmem:[#allocation3 + $0x130] sm:$0xff]
      %v2702 = vld [vmem:[#allocation3 + $0x138] sm:$0xff]
      %v2703 = vld [vmem:[#allocation3 + $0x140] sm:$0xff]
      %v2704 = vld [vmem:[#allocation3 + $0x148] sm:$0xff]
      %v2705 = vld [vmem:[#allocation3 + $0x150] sm:$0xff]
      %v2706 = vld [vmem:[#allocation3 + $0x158] sm:$0xff]
      %v2707 = vld [vmem:[#allocation3 + $0x160] sm:$0xff]
      %v2708 = vld [vmem:[#allocation3 + $0x168] sm:$0xff]
      %v2709 = vld [vmem:[#allocation3 + $0x170] sm:$0xff]
      %v2710 = vld [vmem:[#allocation3 + $0x178] sm:$0xff]
      %v2711 = vld [vmem:[#allocation3 + $0x180] sm:$0xff]
      %v2712 = vld [vmem:[#allocation3 + $0x188] sm:$0xff]
      %v2713 = vld [vmem:[#allocation3 + $0x190] sm:$0xff]
      %v2714 = vld [vmem:[#allocation3 + $0x198] sm:$0xff]
      %v2715 = vld [vmem:[#allocation3 + $0x1a0] sm:$0xff]
      %v2716 = vld [vmem:[#allocation3 + $0x1a8] sm:$0xff]
      %v2717 = vld [vmem:[#allocation3 + $0x1b0] sm:$0xff]
      %v2718 = vld [vmem:[#allocation3 + $0x1b8] sm:$0xff]
      %v2719 = vld [vmem:[#allocation3 + $0x1c0] sm:$0xff]
      %v2720 = vld [vmem:[#allocation3 + $0x1c8] sm:$0xff]
      %v2721 = vld [vmem:[#allocation3 + $0x1d0] sm:$0xff]
      %v2722 = vld [vmem:[#allocation3 + $0x1d8] sm:$0xff]
      %v2723 = vld [vmem:[#allocation3 + $0x1e0] sm:$0xff]
      %v2724 = vld [vmem:[#allocation3 + $0x1e8] sm:$0xff]
      %v2725 = vld [vmem:[#allocation3 + $0x1f0] sm:$0xff]
      %v2726 = vld [vmem:[#allocation3 + $0x1f8] sm:$0xff]
      %v2727 = vld [vmem:[#allocation3 + $0x200] sm:$0xff]
      %v2728 = vld [vmem:[#allocation3 + $0x208] sm:$0xff]
      %v2729 = vld [vmem:[#allocation3 + $0x210] sm:$0xff]
      %v2730 = vld [vmem:[#allocation3 + $0x218] sm:$0xff]
      %v2731 = vld [vmem:[#allocation3 + $0x220] sm:$0xff]
      %v2732 = vld [vmem:[#allocation3 + $0x228] sm:$0xff]
      %v2733 = vld [vmem:[#allocation3 + $0x230] sm:$0xff]
      %v2734 = vld [vmem:[#allocation3 + $0x238] sm:$0xff]
      %v2735 = vld [vmem:[%s3] sm:$0xf]
      %v2736 = vld [vmem:[%s3 + $0x4] sm:$0xf]
      %v2737 = vld [vmem:[%s3 + $0x8] sm:$0xf]
      %v2738 = vld [vmem:[%s3 + $0xc] sm:$0xf]
      %v2739 = vld [vmem:[%s3 + $0x10] sm:$0xf]
      %v2740 = vld [vmem:[%s3 + $0x14] sm:$0xf]
      %v2741 = vld [vmem:[%s3 + $0x18] sm:$0xf]
      %v2742 = vld [vmem:[%s3 + $0x1c] sm:$0xf]
      %v2743 = vld [vmem:[%s3 + $0x20] sm:$0xf]
      %v2744 = vld [vmem:[%s3 + $0x24] sm:$0xf]
      %v2745 = vld [vmem:[%s3 + $0x28] sm:$0xf]
      %v2746 = vld [vmem:[%s3 + $0x2c] sm:$0xf]
      %v2747 = vld [vmem:[%s3 + $0x30] sm:$0xf]
      %v2748 = vld [vmem:[%s3 + $0x34] sm:$0xf]
      %v2749 = vld [vmem:[%s3 + $0x38] sm:$0xf]
      %v2750 = vld [vmem:[%s3 + $0x3c] sm:$0xf]
      %v2751 = vld [vmem:[%s3 + $0x40] sm:$0xf]
      %v2752 = vld [vmem:[%s3 + $0x44] sm:$0xf]
      %v2753 = vld [vmem:[%s3 + $0x48] sm:$0xf]
      %v2754 = vld [vmem:[%s3 + $0x4c] sm:$0xf]
      %v2755 = vld [vmem:[%s3 + $0x50] sm:$0xf]
      %v2756 = vld [vmem:[%s3 + $0x54] sm:$0xf]
      %v2757 = vld [vmem:[%s3 + $0x58] sm:$0xf]
      %v2758 = vld [vmem:[%s3 + $0x5c] sm:$0xf]
      %v2759 = vld [vmem:[%s3 + $0x60] sm:$0xf]
      %v2760 = vld [vmem:[%s3 + $0x64] sm:$0xf]
      %v2761 = vld [vmem:[%s3 + $0x68] sm:$0xf]
      %v2762 = vld [vmem:[%s3 + $0x6c] sm:$0xf]
      %v2763 = vld [vmem:[%s3 + $0x70] sm:$0xf]
      %v2764 = vld [vmem:[%s3 + $0x74] sm:$0xf]
      %v2765 = vld [vmem:[%s3 + $0x78] sm:$0xf]
      %v2766 = vld [vmem:[%s3 + $0x7c] sm:$0xf]
      %v2767 = vld [vmem:[%s3 + $0x80] sm:$0xf]
      %v2768 = vld [vmem:[%s3 + $0x84] sm:$0xf]
      %v2769 = vld [vmem:[%s3 + $0x88] sm:$0xf]
      %v2770 = vld [vmem:[%s3 + $0x8c] sm:$0xf]
      %v2771 = vld [vmem:[%s3 + $0x90] sm:$0xf]
      %v2772 = vld [vmem:[%s3 + $0x94] sm:$0xf]
      %v2773 = vld [vmem:[%s3 + $0x98] sm:$0xf]
      %v2774 = vld [vmem:[%s3 + $0x9c] sm:$0xf]
      %v2775 = vld [vmem:[%s3 + $0xa0] sm:$0xf]
      %v2776 = vld [vmem:[%s3 + $0xa4] sm:$0xf]
      %v2777 = vld [vmem:[%s3 + $0xa8] sm:$0xf]
      %v2778 = vld [vmem:[%s3 + $0xac] sm:$0xf]
      %v2779 = vld [vmem:[%s3 + $0xb0] sm:$0xf]
      %v2780 = vld [vmem:[%s3 + $0xb4] sm:$0xf]
      %v2781 = vld [vmem:[%s3 + $0xb8] sm:$0xf]
      %v2782 = vld [vmem:[%s3 + $0xbc] sm:$0xf]
      %v2783 = vld [vmem:[%s3 + $0xc0] sm:$0xf]
      %v2784 = vld [vmem:[%s3 + $0xc4] sm:$0xf]
      %v2785 = vld [vmem:[%s3 + $0xc8] sm:$0xf]
      %v2786 = vld [vmem:[%s3 + $0xcc] sm:$0xf]
      %v2787 = vld [vmem:[%s3 + $0xd0] sm:$0xf]
      %v2788 = vld [vmem:[%s3 + $0xd4] sm:$0xf]
      %v2789 = vld [vmem:[%s3 + $0xd8] sm:$0xf]
      %v2790 = vld [vmem:[%s3 + $0xdc] sm:$0xf]
      %v2791 = vld [vmem:[%s3 + $0xe0] sm:$0xf]
      %v2792 = vld [vmem:[%s3 + $0xe4] sm:$0xf]
      %v2793 = vld [vmem:[%s3 + $0xe8] sm:$0xf]
      %v2794 = vld [vmem:[%s3 + $0xec] sm:$0xf]
      %v2795 = vld [vmem:[%s3 + $0xf0] sm:$0xf]
      %v2796 = vld [vmem:[%s3 + $0xf4] sm:$0xf]
      %v2797 = vld [vmem:[%s3 + $0xf8] sm:$0xf]
      %v2798 = vld [vmem:[%s3 + $0xfc] sm:$0xf]
      %v2799 = vld [vmem:[%s3 + $0x100] sm:$0xf]
      %v2800 = vld [vmem:[%s3 + $0x104] sm:$0xf]
      %v2801 = vld [vmem:[%s3 + $0x108] sm:$0xf]
      %v2802 = vld [vmem:[%s3 + $0x10c] sm:$0xf]
      %v2803 = vld [vmem:[%s3 + $0x110] sm:$0xf]
      %v2804 = vld [vmem:[%s3 + $0x114] sm:$0xf]
      %v2805 = vld [vmem:[%s3 + $0x118] sm:$0xf]
      %v2806 = vld [vmem:[%s3 + $0x11c] sm:$0xf]
      %v2807 = vld [vmem:[%s3 + $0x120] sm:$0xf]
      %v2808 = vld [vmem:[%s3 + $0x124] sm:$0xf]
      %v2809 = vld [vmem:[%s3 + $0x128] sm:$0xf]
      %v2810 = vld [vmem:[%s3 + $0x12c] sm:$0xf]
      %v2811 = vld [vmem:[%s3 + $0x130] sm:$0xf]
      %v2812 = vld [vmem:[%s3 + $0x134] sm:$0xf]
      %v2813 = vld [vmem:[%s3 + $0x138] sm:$0xf]
      %v2814 = vld [vmem:[%s3 + $0x13c] sm:$0xf]
      %v2815 = vld [vmem:[%s3 + $0x140] sm:$0xf]
      %v2816 = vld [vmem:[%s3 + $0x144] sm:$0xf]
      %v2817 = vld [vmem:[%s3 + $0x148] sm:$0xf]
      %v2818 = vld [vmem:[%s3 + $0x14c] sm:$0xf]
      %v2819 = vld [vmem:[%s3 + $0x150] sm:$0xf]
      %v2820 = vld [vmem:[%s3 + $0x154] sm:$0xf]
      %v2821 = vld [vmem:[%s3 + $0x158] sm:$0xf]
      %v2822 = vld [vmem:[%s3 + $0x15c] sm:$0xf]
      %v2823 = vld [vmem:[%s3 + $0x160] sm:$0xf]
      %v2824 = vld [vmem:[%s3 + $0x164] sm:$0xf]
      %v2825 = vld [vmem:[%s3 + $0x168] sm:$0xf]
      %v2826 = vld [vmem:[%s3 + $0x16c] sm:$0xf]
      %v2827 = vld [vmem:[%s3 + $0x170] sm:$0xf]
      %v2828 = vld [vmem:[%s3 + $0x174] sm:$0xf]
      %v2829 = vld [vmem:[%s3 + $0x178] sm:$0xf]
      %v2830 = vld [vmem:[%s3 + $0x17c] sm:$0xf]
      %v2831 = vld [vmem:[%s3 + $0x180] sm:$0xf]
      %v2832 = vld [vmem:[%s3 + $0x184] sm:$0xf]
      %v2833 = vld [vmem:[%s3 + $0x188] sm:$0xf]
      %v2834 = vld [vmem:[%s3 + $0x18c] sm:$0xf]
      %v2835 = vld [vmem:[%s3 + $0x190] sm:$0xf]
      %v2836 = vld [vmem:[%s3 + $0x194] sm:$0xf]
      %v2837 = vld [vmem:[%s3 + $0x198] sm:$0xf]
      %v2838 = vld [vmem:[%s3 + $0x19c] sm:$0xf]
      %v2839 = vld [vmem:[%s3 + $0x1a0] sm:$0xf]
      %v2840 = vld [vmem:[%s3 + $0x1a4] sm:$0xf]
      %v2841 = vld [vmem:[%s3 + $0x1a8] sm:$0xf]
      %v2842 = vld [vmem:[%s3 + $0x1ac] sm:$0xf]
      %v2843 = vld [vmem:[%s3 + $0x1b0] sm:$0xf]
      %v2844 = vld [vmem:[%s3 + $0x1b4] sm:$0xf]
      %v2845 = vld [vmem:[%s3 + $0x1b8] sm:$0xf]
      %v2846 = vld [vmem:[%s3 + $0x1bc] sm:$0xf]
      %v2847 = vld [vmem:[%s3 + $0x1c0] sm:$0xf]
      %v2848 = vld [vmem:[%s3 + $0x1c4] sm:$0xf]
      %v2849 = vld [vmem:[%s3 + $0x1c8] sm:$0xf]
      %v2850 = vld [vmem:[%s3 + $0x1cc] sm:$0xf]
      %v2851 = vld [vmem:[%s3 + $0x1d0] sm:$0xf]
      %v2852 = vld [vmem:[%s3 + $0x1d4] sm:$0xf]
      %v2853 = vld [vmem:[%s3 + $0x1d8] sm:$0xf]
      %v2854 = vld [vmem:[%s3 + $0x1dc] sm:$0xf]
      %v2855 = vld [vmem:[%s3 + $0x1e0] sm:$0xf]
      %v2856 = vld [vmem:[%s3 + $0x1e4] sm:$0xf]
      %v2857 = vld [vmem:[%s3 + $0x1e8] sm:$0xf]
      %v2858 = vld [vmem:[%s3 + $0x1ec] sm:$0xf]
      %v2859 = vld [vmem:[%s3 + $0x1f0] sm:$0xf]
      %v2860 = vld [vmem:[%s3 + $0x1f4] sm:$0xf]
      %v2861 = vld [vmem:[%s3 + $0x1f8] sm:$0xf]
      %v2862 = vld [vmem:[%s3 + $0x1fc] sm:$0xf]
      %v2863 = vld [vmem:[%s3 + $0x200] sm:$0xf]
      %v2864 = vld [vmem:[%s3 + $0x204] sm:$0xf]
      %v2865 = vld [vmem:[%s3 + $0x208] sm:$0xf]
      %v2866 = vld [vmem:[%s3 + $0x20c] sm:$0xf]
      %v2867 = vld [vmem:[%s3 + $0x210] sm:$0xf]
      %v2868 = vld [vmem:[%s3 + $0x214] sm:$0xf]
      %v2869 = vld [vmem:[%s3 + $0x218] sm:$0xf]
      %v2870 = vld [vmem:[%s3 + $0x21c] sm:$0xf]
      %v2871 = vld [vmem:[%s3 + $0x220] sm:$0xf]
      %v2872 = vld [vmem:[%s3 + $0x224] sm:$0xf]
      %v2873 = vld [vmem:[%s3 + $0x228] sm:$0xf]
      %v2874 = vld [vmem:[%s3 + $0x22c] sm:$0xf]
      %v2875 = vld [vmem:[%s3 + $0x230] sm:$0xf]
      %v2876 = vld [vmem:[%s3 + $0x234] sm:$0xf]
      %v2877 = vld [vmem:[%s3 + $0x238] sm:$0xf]
      %v2878 = vld [vmem:[%s3 + $0x23c] sm:$0xf]
      %v2879 = vld [vmem:[%s4] sm:$0x1]
      %v2881 = vlaneseq
      %v2882 = vshrl.u32 %v2881, 7
      %v2883 = vsub.s32 0, %v2882
      %v2884 = vrot.slane %v2879, %v2883
      %v3030 = vunpack.c.l.b16 %v2735
      %v3031 = vunpack.c.l.b16 %v2736
      %v3032 = vunpack.c.l.b16 %v2737
      %v3033 = vunpack.c.l.b16 %v2738
      %v3034 = vunpack.c.l.b16 %v2739
      %v3035 = vunpack.c.l.b16 %v2740
      %v3036 = vunpack.c.l.b16 %v2741
      %v3037 = vunpack.c.l.b16 %v2742
      %v3038 = vunpack.c.l.b16 %v2743
      %v3039 = vunpack.c.l.b16 %v2744
      %v3040 = vunpack.c.l.b16 %v2745
      %v3041 = vunpack.c.l.b16 %v2746
      %v3042 = vunpack.c.l.b16 %v2747
      %v3043 = vunpack.c.l.b16 %v2748
      %v3044 = vunpack.c.l.b16 %v2749
      %v3045 = vunpack.c.l.b16 %v2750
      %v3046 = vunpack.c.l.b16 %v2751
      %v3047 = vunpack.c.l.b16 %v2752
      %v3048 = vunpack.c.l.b16 %v2753
      %v3049 = vunpack.c.l.b16 %v2754
      %v3050 = vunpack.c.l.b16 %v2755
      %v3051 = vunpack.c.l.b16 %v2756
      %v3052 = vunpack.c.l.b16 %v2757
      %v3053 = vunpack.c.l.b16 %v2758
      %v3054 = vunpack.c.l.b16 %v2759
      %v3055 = vunpack.c.l.b16 %v2760
      %v3056 = vunpack.c.l.b16 %v2761
      %v3057 = vunpack.c.l.b16 %v2762
      %v3058 = vunpack.c.l.b16 %v2763
      %v3059 = vunpack.c.l.b16 %v2764
      %v3060 = vunpack.c.l.b16 %v2765
      %v3061 = vunpack.c.l.b16 %v2766
      %v3062 = vunpack.c.l.b16 %v2767
      %v3063 = vunpack.c.l.b16 %v2768
      %v3064 = vunpack.c.l.b16 %v2769
      %v3065 = vunpack.c.l.b16 %v2770
      %v3066 = vunpack.c.l.b16 %v2771
      %v3067 = vunpack.c.l.b16 %v2772
      %v3068 = vunpack.c.l.b16 %v2773
      %v3069 = vunpack.c.l.b16 %v2774
      %v3070 = vunpack.c.l.b16 %v2775
      %v3071 = vunpack.c.l.b16 %v2776
      %v3072 = vunpack.c.l.b16 %v2777
      %v3073 = vunpack.c.l.b16 %v2778
      %v3074 = vunpack.c.l.b16 %v2779
      %v3075 = vunpack.c.l.b16 %v2780
      %v3076 = vunpack.c.l.b16 %v2781
      %v3077 = vunpack.c.l.b16 %v2782
      %v3078 = vunpack.c.l.b16 %v2783
      %v3079 = vunpack.c.l.b16 %v2784
      %v3080 = vunpack.c.l.b16 %v2785
      %v3081 = vunpack.c.l.b16 %v2786
      %v3082 = vunpack.c.l.b16 %v2787
      %v3083 = vunpack.c.l.b16 %v2788
      %v3084 = vunpack.c.l.b16 %v2789
      %v3085 = vunpack.c.l.b16 %v2790
      %v3086 = vunpack.c.l.b16 %v2791
      %v3087 = vunpack.c.l.b16 %v2792
      %v3088 = vunpack.c.l.b16 %v2793
      %v3089 = vunpack.c.l.b16 %v2794
      %v3090 = vunpack.c.l.b16 %v2795
      %v3091 = vunpack.c.l.b16 %v2796
      %v3092 = vunpack.c.l.b16 %v2797
      %v3093 = vunpack.c.l.b16 %v2798
      %v3094 = vunpack.c.l.b16 %v2799
      %v3095 = vunpack.c.l.b16 %v2800
      %v3096 = vunpack.c.l.b16 %v2801
      %v3097 = vunpack.c.l.b16 %v2802
      %v3098 = vunpack.c.l.b16 %v2803
      %v3099 = vunpack.c.l.b16 %v2804
      %v3100 = vunpack.c.l.b16 %v2805
      %v3101 = vunpack.c.l.b16 %v2806
      %v3102 = vunpack.c.l.b16 %v2807
      %v3103 = vunpack.c.l.b16 %v2808
      %v3104 = vunpack.c.l.b16 %v2809
      %v3105 = vunpack.c.l.b16 %v2810
      %v3106 = vunpack.c.l.b16 %v2811
      %v3107 = vunpack.c.l.b16 %v2812
      %v3108 = vunpack.c.l.b16 %v2813
      %v3109 = vunpack.c.l.b16 %v2814
      %v3110 = vunpack.c.l.b16 %v2815
      %v3111 = vunpack.c.l.b16 %v2816
      %v3112 = vunpack.c.l.b16 %v2817
      %v3113 = vunpack.c.l.b16 %v2818
      %v3114 = vunpack.c.l.b16 %v2819
      %v3115 = vunpack.c.l.b16 %v2820
      %v3116 = vunpack.c.l.b16 %v2821
      %v3117 = vunpack.c.l.b16 %v2822
      %v3118 = vunpack.c.l.b16 %v2823
      %v3119 = vunpack.c.l.b16 %v2824
      %v3120 = vunpack.c.l.b16 %v2825
      %v3121 = vunpack.c.l.b16 %v2826
      %v3122 = vunpack.c.l.b16 %v2827
      %v3123 = vunpack.c.l.b16 %v2828
      %v3124 = vunpack.c.l.b16 %v2829
      %v3125 = vunpack.c.l.b16 %v2830
      %v3126 = vunpack.c.l.b16 %v2831
      %v3127 = vunpack.c.l.b16 %v2832
      %v3128 = vunpack.c.l.b16 %v2833
      %v3129 = vunpack.c.l.b16 %v2834
      %v3130 = vunpack.c.l.b16 %v2835
      %v3131 = vunpack.c.l.b16 %v2836
      %v3132 = vunpack.c.l.b16 %v2837
      %v3133 = vunpack.c.l.b16 %v2838
      %v3134 = vunpack.c.l.b16 %v2839
      %v3135 = vunpack.c.l.b16 %v2840
      %v3136 = vunpack.c.l.b16 %v2841
      %v3137 = vunpack.c.l.b16 %v2842
      %v3138 = vunpack.c.l.b16 %v2843
      %v3139 = vunpack.c.l.b16 %v2844
      %v3140 = vunpack.c.l.b16 %v2845
      %v3141 = vunpack.c.l.b16 %v2846
      %v3142 = vunpack.c.l.b16 %v2847
      %v3143 = vunpack.c.l.b16 %v2848
      %v3144 = vunpack.c.l.b16 %v2849
      %v3145 = vunpack.c.l.b16 %v2850
      %v3146 = vunpack.c.l.b16 %v2851
      %v3147 = vunpack.c.l.b16 %v2852
      %v3148 = vunpack.c.l.b16 %v2853
      %v3149 = vunpack.c.l.b16 %v2854
      %v3150 = vunpack.c.l.b16 %v2855
      %v3151 = vunpack.c.l.b16 %v2856
      %v3152 = vunpack.c.l.b16 %v2857
      %v3153 = vunpack.c.l.b16 %v2858
      %v3154 = vunpack.c.l.b16 %v2859
      %v3155 = vunpack.c.l.b16 %v2860
      %v3156 = vunpack.c.l.b16 %v2861
      %v3157 = vunpack.c.l.b16 %v2862
      %v3158 = vunpack.c.l.b16 %v2863
      %v3159 = vunpack.c.l.b16 %v2864
      %v3160 = vunpack.c.l.b16 %v2865
      %v3161 = vunpack.c.l.b16 %v2866
      %v3162 = vunpack.c.l.b16 %v2867
      %v3163 = vunpack.c.l.b16 %v2868
      %v3164 = vunpack.c.l.b16 %v2869
      %v3165 = vunpack.c.l.b16 %v2870
      %v3166 = vunpack.c.l.b16 %v2871
      %v3167 = vunpack.c.l.b16 %v2872
      %v3168 = vunpack.c.l.b16 %v2873
      %v3169 = vunpack.c.l.b16 %v2874
      %v3170 = vunpack.c.l.b16 %v2875
      %v3171 = vunpack.c.l.b16 %v2876
      %v3172 = vunpack.c.l.b16 %v2877
      %v3173 = vunpack.c.l.b16 %v2878
      %v3174 = vpack.c.b16 %v3031, %v3030
      %v3175 = vpack.c.b16 %v3033, %v3032
      %v3176 = vpack.c.b16 %v3035, %v3034
      %v3177 = vpack.c.b16 %v3037, %v3036
      %v3178 = vpack.c.b16 %v3039, %v3038
      %v3179 = vpack.c.b16 %v3041, %v3040
      %v3180 = vpack.c.b16 %v3043, %v3042
      %v3181 = vpack.c.b16 %v3045, %v3044
      %v3182 = vpack.c.b16 %v3047, %v3046
      %v3183 = vpack.c.b16 %v3049, %v3048
      %v3184 = vpack.c.b16 %v3051, %v3050
      %v3185 = vpack.c.b16 %v3053, %v3052
      %v3186 = vpack.c.b16 %v3055, %v3054
      %v3187 = vpack.c.b16 %v3057, %v3056
      %v3188 = vpack.c.b16 %v3059, %v3058
      %v3189 = vpack.c.b16 %v3061, %v3060
      %v3190 = vpack.c.b16 %v3063, %v3062
      %v3191 = vpack.c.b16 %v3065, %v3064
      %v3192 = vpack.c.b16 %v3067, %v3066
      %v3193 = vpack.c.b16 %v3069, %v3068
      %v3194 = vpack.c.b16 %v3071, %v3070
      %v3195 = vpack.c.b16 %v3073, %v3072
      %v3196 = vpack.c.b16 %v3075, %v3074
      %v3197 = vpack.c.b16 %v3077, %v3076
      %v3198 = vpack.c.b16 %v3079, %v3078
      %v3199 = vpack.c.b16 %v3081, %v3080
      %v3200 = vpack.c.b16 %v3083, %v3082
      %v3201 = vpack.c.b16 %v3085, %v3084
      %v3202 = vpack.c.b16 %v3087, %v3086
      %v3203 = vpack.c.b16 %v3089, %v3088
      %v3204 = vpack.c.b16 %v3091, %v3090
      %v3205 = vpack.c.b16 %v3093, %v3092
      %v3206 = vpack.c.b16 %v3095, %v3094
      %v3207 = vpack.c.b16 %v3097, %v3096
      %v3208 = vpack.c.b16 %v3099, %v3098
      %v3209 = vpack.c.b16 %v3101, %v3100
      %v3210 = vpack.c.b16 %v3103, %v3102
      %v3211 = vpack.c.b16 %v3105, %v3104
      %v3212 = vpack.c.b16 %v3107, %v3106
      %v3213 = vpack.c.b16 %v3109, %v3108
      %v3214 = vpack.c.b16 %v3111, %v3110
      %v3215 = vpack.c.b16 %v3113, %v3112
      %v3216 = vpack.c.b16 %v3115, %v3114
      %v3217 = vpack.c.b16 %v3117, %v3116
      %v3218 = vpack.c.b16 %v3119, %v3118
      %v3219 = vpack.c.b16 %v3121, %v3120
      %v3220 = vpack.c.b16 %v3123, %v3122
      %v3221 = vpack.c.b16 %v3125, %v3124
      %v3222 = vpack.c.b16 %v3127, %v3126
      %v3223 = vpack.c.b16 %v3129, %v3128
      %v3224 = vpack.c.b16 %v3131, %v3130
      %v3225 = vpack.c.b16 %v3133, %v3132
      %v3226 = vpack.c.b16 %v3135, %v3134
      %v3227 = vpack.c.b16 %v3137, %v3136
      %v3228 = vpack.c.b16 %v3139, %v3138
      %v3229 = vpack.c.b16 %v3141, %v3140
      %v3230 = vpack.c.b16 %v3143, %v3142
      %v3231 = vpack.c.b16 %v3145, %v3144
      %v3232 = vpack.c.b16 %v3147, %v3146
      %v3233 = vpack.c.b16 %v3149, %v3148
      %v3234 = vpack.c.b16 %v3151, %v3150
      %v3235 = vpack.c.b16 %v3153, %v3152
      %v3236 = vpack.c.b16 %v3155, %v3154
      %v3237 = vpack.c.b16 %v3157, %v3156
      %v3238 = vpack.c.b16 %v3159, %v3158
      %v3239 = vpack.c.b16 %v3161, %v3160
      %v3240 = vpack.c.b16 %v3163, %v3162
      %v3241 = vpack.c.b16 %v3165, %v3164
      %v3242 = vpack.c.b16 %v3167, %v3166
      %v3243 = vpack.c.b16 %v3169, %v3168
      %v3244 = vpack.c.b16 %v3171, %v3170
      %v3245 = vpack.c.b16 %v3173, %v3172
      %3318 = vmatprep.subr.bf16.mxu0 0
      %3319 = vmatpush1.bf16.msra.mxu0 %v3174
      %3320 = vmatprep.subr.bf16.mxu0 0
      %3321 = vmatpush1.bf16.msra.mxu0 %v3175
      %3322 = vmatprep.subr.bf16.mxu0 0
      %3323 = vmatpush1.bf16.msra.mxu0 %v3176
      %3324 = vmatprep.subr.bf16.mxu0 0
      %3325 = vmatpush1.bf16.msra.mxu0 %v3177
      %3326 = vmatprep.subr.bf16.mxu0 0
      %3327 = vmatpush1.bf16.msra.mxu0 %v3178
      %3328 = vmatprep.subr.bf16.mxu0 0
      %3329 = vmatpush1.bf16.msra.mxu0 %v3179
      %3330 = vmatprep.subr.bf16.mxu0 0
      %3331 = vmatpush1.bf16.msra.mxu0 %v3180
      %3332 = vmatprep.subr.bf16.mxu0 0
      %3333 = vmatpush1.bf16.msra.mxu0 %v3181
      %3334 = vmatprep.subr.bf16.mxu0 0
      %3335 = vmatpush1.bf16.msra.mxu0 %v3182
      %3336 = vmatprep.subr.bf16.mxu0 0
      %3337 = vmatpush1.bf16.msra.mxu0 %v3183
      %3338 = vmatprep.subr.bf16.mxu0 0
      %3339 = vmatpush1.bf16.msra.mxu0 %v3184
      %3340 = vmatprep.subr.bf16.mxu0 0
      %3341 = vmatpush1.bf16.msra.mxu0 %v3185
      %3342 = vmatprep.subr.bf16.mxu0 0
      %3343 = vmatpush1.bf16.msra.mxu0 %v3186
      %3344 = vmatprep.subr.bf16.mxu0 0
      %3345 = vmatpush1.bf16.msra.mxu0 %v3187
      %3346 = vmatprep.subr.bf16.mxu0 0
      %3347 = vmatpush1.bf16.msra.mxu0 %v3188
      %3348 = vmatprep.subr.bf16.mxu0 0
      %3349 = vmatpush1.bf16.msra.mxu0 %v3189
      %3350 = vmatprep.mubr.bf16.mxu0 %v2664
      %3351 = vmatmul.mubr.bf16.gmra.mrb[0].mxu0 %v2663
      %v3352 = vpop.f32.mrb[0].mxu0
      %v3353 = vadd.f32 %v2884, %v3352
      %v3354 = vpop.f32.mrb[0].mxu0
      %v3355 = vpop.f32.mrb[0].mxu0
      %v3356 = vadd.f32 %v2884, %v3355
      %v3357 = vpop.f32.mrb[0].mxu0
      %3358 = vmatprep.mubr.bf16.mxu0 %v2673
      %3359 = vmatmul.mubr.bf16.gmra.mrb[0].mxu0 %v2672
      %v3360 = vpop.f32.mrb[0].mxu0
      %v3361 = vadd.f32 %v2884, %v3360
      %v3362 = vpop.f32.mrb[0].mxu0
      %v3363 = vpop.f32.mrb[0].mxu0
      %v3364 = vadd.f32 %v2884, %v3363
      %v3365 = vpop.f32.mrb[0].mxu0
      %3366 = vmatprep.mubr.bf16.mxu0 %v2682
      %3367 = vmatmul.mubr.bf16.gmra.mrb[0].mxu0 %v2681
      %v3368 = vpop.f32.mrb[0].mxu0
      %v3369 = vadd.f32 %v2884, %v3368
      %v3370 = vpop.f32.mrb[0].mxu0
      %v3371 = vpop.f32.mrb[0].mxu0
      %v3372 = vadd.f32 %v2884, %v3371
      %v3373 = vpop.f32.mrb[0].mxu0
      %3374 = vmatprep.mubr.bf16.mxu0 %v2691
      %3375 = vmatmul.mubr.bf16.gmra.mrb[0].mxu0 %v2690
      %v3376 = vpop.f32.mrb[0].mxu0
      %v3377 = vadd.f32 %v2884, %v3376
      %v3378 = vpop.f32.mrb[0].mxu0
      %v3379 = vpop.f32.mrb[0].mxu0
      %v3380 = vadd.f32 %v2884, %v3379
      %v3381 = vpop.f32.mrb[0].mxu0
      %3382 = vmatprep.mubr.bf16.mxu0 %v2700
      %3383 = vmatmul.mubr.bf16.gmra.mrb[0].mxu0 %v2699
      %v3384 = vpop.f32.mrb[0].mxu0
      %v3385 = vadd.f32 %v2884, %v3384
      %v3386 = vpop.f32.mrb[0].mxu0
      %v3387 = vpop.f32.mrb[0].mxu0
      %v3388 = vadd.f32 %v2884, %v3387
      %v3389 = vpop.f32.mrb[0].mxu0
      %3390 = vmatprep.mubr.bf16.mxu0 %v2709
      %3391 = vmatmul.mubr.bf16.gmra.mrb[0].mxu0 %v2708
      %v3392 = vpop.f32.mrb[0].mxu0
      %v3393 = vadd.f32 %v2884, %v3392
      %v3394 = vpop.f32.mrb[0].mxu0
      %v3395 = vpop.f32.mrb[0].mxu0
      %v3396 = vadd.f32 %v2884, %v3395
      %v3397 = vpop.f32.mrb[0].mxu0
      %3398 = vmatprep.mubr.bf16.mxu0 %v2718
      %3399 = vmatmul.mubr.bf16.gmra.mrb[0].mxu0 %v2717
      %v3400 = vpop.f32.mrb[0].mxu0
      %v3401 = vadd.f32 %v2884, %v3400
      %v3402 = vpop.f32.mrb[0].mxu0
      %v3403 = vpop.f32.mrb[0].mxu0
      %v3404 = vadd.f32 %v2884, %v3403
      %v3405 = vpop.f32.mrb[0].mxu0
      %3406 = vmatprep.mubr.bf16.mxu0 %v2727
      %3407 = vmatmul.mubr.bf16.gmra.mrb[0].mxu0 %v2726
      %v3408 = vpop.f32.mrb[0].mxu0
      %v3409 = vadd.f32 %v2884, %v3408
      %v3410 = vpop.f32.mrb[0].mxu0
      %v3411 = vpop.f32.mrb[0].mxu0
      %v3412 = vadd.f32 %v2884, %v3411
      %v3413 = vpop.f32.mrb[0].mxu0
      %3414 = vdwg.mxu0
      %3415 = vmatprep.subr.bf16.mxu0 0
      %3416 = vmatpush1.bf16.msra.mxu0 %v3190
      %3417 = vmatprep.subr.bf16.mxu0 0
      %3418 = vmatpush1.bf16.msra.mxu0 %v3191
      %3419 = vmatprep.subr.bf16.mxu0 0
      %3420 = vmatpush1.bf16.msra.mxu0 %v3192
      %3421 = vmatprep.subr.bf16.mxu0 0
      %3422 = vmatpush1.bf16.msra.mxu0 %v3193
      %3423 = vmatprep.subr.bf16.mxu0 0
      %3424 = vmatpush1.bf16.msra.mxu0 %v3194
      %3425 = vmatprep.subr.bf16.mxu0 0
      %3426 = vmatpush1.bf16.msra.mxu0 %v3195
      %3427 = vmatprep.subr.bf16.mxu0 0
      %3428 = vmatpush1.bf16.msra.mxu0 %v3196
      %3429 = vmatprep.subr.bf16.mxu0 0
      %3430 = vmatpush1.bf16.msra.mxu0 %v3197
      %3431 = vmatprep.subr.bf16.mxu0 0
      %3432 = vmatpush1.bf16.msra.mxu0 %v3198
      %3433 = vmatprep.subr.bf16.mxu0 0
      %3434 = vmatpush1.bf16.msra.mxu0 %v3199
      %3435 = vmatprep.subr.bf16.mxu0 0
      %3436 = vmatpush1.bf16.msra.mxu0 %v3200
      %3437 = vmatprep.subr.bf16.mxu0 0
      %3438 = vmatpush1.bf16.msra.mxu0 %v3201
      %3439 = vmatprep.subr.bf16.mxu0 0
      %3440 = vmatpush1.bf16.msra.mxu0 %v3202
      %3441 = vmatprep.subr.bf16.mxu0 0
      %3442 = vmatpush1.bf16.msra.mxu0 %v3203
      %3443 = vmatprep.subr.bf16.mxu0 0
      %3444 = vmatpush1.bf16.msra.mxu0 %v3204
      %3445 = vmatprep.subr.bf16.mxu0 0
      %3446 = vmatpush1.bf16.msra.mxu0 %v3205
      %3447 = vmatprep.mubr.bf16.mxu0 %v2666
      %3448 = vmatmul.mubr.bf16.gmra.mrb[0].mxu0 %v2665
      %v3449 = vpop.f32.mrb[0].mxu0
      %v3450 = vadd.f32 %v3353, %v3449
      %v3451 = vpop.f32.mrb[0].mxu0
      %v3452 = vpop.f32.mrb[0].mxu0
      %v3453 = vadd.f32 %v3356, %v3452
      %v3454 = vpop.f32.mrb[0].mxu0
      %3455 = vmatprep.mubr.bf16.mxu0 %v2675
      %3456 = vmatmul.mubr.bf16.gmra.mrb[0].mxu0 %v2674
      %v3457 = vpop.f32.mrb[0].mxu0
      %v3458 = vadd.f32 %v3361, %v3457
      %v3459 = vpop.f32.mrb[0].mxu0
      %v3460 = vpop.f32.mrb[0].mxu0
      %v3461 = vadd.f32 %v3364, %v3460
      %v3462 = vpop.f32.mrb[0].mxu0
      %3463 = vmatprep.mubr.bf16.mxu0 %v2684
      %3464 = vmatmul.mubr.bf16.gmra.mrb[0].mxu0 %v2683
      %v3465 = vpop.f32.mrb[0].mxu0
      %v3466 = vadd.f32 %v3369, %v3465
      %v3467 = vpop.f32.mrb[0].mxu0
      %v3468 = vpop.f32.mrb[0].mxu0
      %v3469 = vadd.f32 %v3372, %v3468
      %v3470 = vpop.f32.mrb[0].mxu0
      %3471 = vmatprep.mubr.bf16.mxu0 %v2693
      %3472 = vmatmul.mubr.bf16.gmra.mrb[0].mxu0 %v2692
      %v3473 = vpop.f32.mrb[0].mxu0
      %v3474 = vadd.f32 %v3377, %v3473
      %v3475 = vpop.f32.mrb[0].mxu0
      %v3476 = vpop.f32.mrb[0].mxu0
      %v3477 = vadd.f32 %v3380, %v3476
      %v3478 = vpop.f32.mrb[0].mxu0
      %3479 = vmatprep.mubr.bf16.mxu0 %v2702
      %3480 = vmatmul.mubr.bf16.gmra.mrb[0].mxu0 %v2701
      %v3481 = vpop.f32.mrb[0].mxu0
      %v3482 = vadd.f32 %v3385, %v3481
      %v3483 = vpop.f32.mrb[0].mxu0
      %v3484 = vpop.f32.mrb[0].mxu0
      %v3485 = vadd.f32 %v3388, %v3484
      %v3486 = vpop.f32.mrb[0].mxu0
      %3487 = vmatprep.mubr.bf16.mxu0 %v2711
      %3488 = vmatmul.mubr.bf16.gmra.mrb[0].mxu0 %v2710
      %v3489 = vpop.f32.mrb[0].mxu0
      %v3490 = vadd.f32 %v3393, %v3489
      %v3491 = vpop.f32.mrb[0].mxu0
      %v3492 = vpop.f32.mrb[0].mxu0
      %v3493 = vadd.f32 %v3396, %v3492
      %v3494 = vpop.f32.mrb[0].mxu0
      %3495 = vmatprep.mubr.bf16.mxu0 %v2720
      %3496 = vmatmul.mubr.bf16.gmra.mrb[0].mxu0 %v2719
      %v3497 = vpop.f32.mrb[0].mxu0
      %v3498 = vadd.f32 %v3401, %v3497
      %v3499 = vpop.f32.mrb[0].mxu0
      %v3500 = vpop.f32.mrb[0].mxu0
      %v3501 = vadd.f32 %v3404, %v3500
      %v3502 = vpop.f32.mrb[0].mxu0
      %3503 = vmatprep.mubr.bf16.mxu0 %v2729
      %3504 = vmatmul.mubr.bf16.gmra.mrb[0].mxu0 %v2728
      %v3505 = vpop.f32.mrb[0].mxu0
      %v3506 = vadd.f32 %v3409, %v3505
      %v3507 = vpop.f32.mrb[0].mxu0
      %v3508 = vpop.f32.mrb[0].mxu0
      %v3509 = vadd.f32 %v3412, %v3508
      %v3510 = vpop.f32.mrb[0].mxu0
      %3511 = vdwg.mxu0
      %3512 = vmatprep.subr.bf16.mxu0 0
      %3513 = vmatpush1.bf16.msra.mxu0 %v3206
      %3514 = vmatprep.subr.bf16.mxu0 0
      %3515 = vmatpush1.bf16.msra.mxu0 %v3207
      %3516 = vmatprep.subr.bf16.mxu0 0
      %3517 = vmatpush1.bf16.msra.mxu0 %v3208
      %3518 = vmatprep.subr.bf16.mxu0 0
      %3519 = vmatpush1.bf16.msra.mxu0 %v3209
      %3520 = vmatprep.subr.bf16.mxu0 0
      %3521 = vmatpush1.bf16.msra.mxu0 %v3210
      %3522 = vmatprep.subr.bf16.mxu0 0
      %3523 = vmatpush1.bf16.msra.mxu0 %v3211
      %3524 = vmatprep.subr.bf16.mxu0 0
      %3525 = vmatpush1.bf16.msra.mxu0 %v3212
      %3526 = vmatprep.subr.bf16.mxu0 0
      %3527 = vmatpush1.bf16.msra.mxu0 %v3213
      %3528 = vmatprep.subr.bf16.mxu0 0
      %3529 = vmatpush1.bf16.msra.mxu0 %v3214
      %3530 = vmatprep.subr.bf16.mxu0 0
      %3531 = vmatpush1.bf16.msra.mxu0 %v3215
      %3532 = vmatprep.subr.bf16.mxu0 0
      %3533 = vmatpush1.bf16.msra.mxu0 %v3216
      %3534 = vmatprep.subr.bf16.mxu0 0
      %3535 = vmatpush1.bf16.msra.mxu0 %v3217
      %3536 = vmatprep.subr.bf16.mxu0 0
      %3537 = vmatpush1.bf16.msra.mxu0 %v3218
      %3538 = vmatprep.subr.bf16.mxu0 0
      %3539 = vmatpush1.bf16.msra.mxu0 %v3219
      %3540 = vmatprep.subr.bf16.mxu0 0
      %3541 = vmatpush1.bf16.msra.mxu0 %v3220
      %3542 = vmatprep.subr.bf16.mxu0 0
      %3543 = vmatpush1.bf16.msra.mxu0 %v3221
      %3544 = vmatprep.mubr.bf16.mxu0 %v2668
      %3545 = vmatmul.mubr.bf16.gmra.mrb[0].mxu0 %v2667
      %v3546 = vpop.f32.mrb[0].mxu0
      %v3547 = vadd.f32 %v3450, %v3546
      %v3548 = vpop.f32.mrb[0].mxu0
      %v3549 = vpop.f32.mrb[0].mxu0
      %v3550 = vadd.f32 %v3453, %v3549
      %v3551 = vpop.f32.mrb[0].mxu0
      %3552 = vmatprep.mubr.bf16.mxu0 %v2677
      %3553 = vmatmul.mubr.bf16.gmra.mrb[0].mxu0 %v2676
      %v3554 = vpop.f32.mrb[0].mxu0
      %v3555 = vadd.f32 %v3458, %v3554
      %v3556 = vpop.f32.mrb[0].mxu0
      %v3557 = vpop.f32.mrb[0].mxu0
      %v3558 = vadd.f32 %v3461, %v3557
      %v3559 = vpop.f32.mrb[0].mxu0
      %3560 = vmatprep.mubr.bf16.mxu0 %v2686
      %3561 = vmatmul.mubr.bf16.gmra.mrb[0].mxu0 %v2685
      %v3562 = vpop.f32.mrb[0].mxu0
      %v3563 = vadd.f32 %v3466, %v3562
      %v3564 = vpop.f32.mrb[0].mxu0
      %v3565 = vpop.f32.mrb[0].mxu0
      %v3566 = vadd.f32 %v3469, %v3565
      %v3567 = vpop.f32.mrb[0].mxu0
      %3568 = vmatprep.mubr.bf16.mxu0 %v2695
      %3569 = vmatmul.mubr.bf16.gmra.mrb[0].mxu0 %v2694
      %v3570 = vpop.f32.mrb[0].mxu0
      %v3571 = vadd.f32 %v3474, %v3570
      %v3572 = vpop.f32.mrb[0].mxu0
      %v3573 = vpop.f32.mrb[0].mxu0
      %v3574 = vadd.f32 %v3477, %v3573
      %v3575 = vpop.f32.mrb[0].mxu0
      %3576 = vmatprep.mubr.bf16.mxu0 %v2704
      %3577 = vmatmul.mubr.bf16.gmra.mrb[0].mxu0 %v2703
      %v3578 = vpop.f32.mrb[0].mxu0
      %v3579 = vadd.f32 %v3482, %v3578
      %v3580 = vpop.f32.mrb[0].mxu0
      %v3581 = vpop.f32.mrb[0].mxu0
      %v3582 = vadd.f32 %v3485, %v3581
      %v3583 = vpop.f32.mrb[0].mxu0
      %3584 = vmatprep.mubr.bf16.mxu0 %v2713
      %3585 = vmatmul.mubr.bf16.gmra.mrb[0].mxu0 %v2712
      %v3586 = vpop.f32.mrb[0].mxu0
      %v3587 = vadd.f32 %v3490, %v3586
      %v3588 = vpop.f32.mrb[0].mxu0
      %v3589 = vpop.f32.mrb[0].mxu0
      %v3590 = vadd.f32 %v3493, %v3589
      %v3591 = vpop.f32.mrb[0].mxu0
      %3592 = vmatprep.mubr.bf16.mxu0 %v2722
      %3593 = vmatmul.mubr.bf16.gmra.mrb[0].mxu0 %v2721
      %v3594 = vpop.f32.mrb[0].mxu0
      %v3595 = vadd.f32 %v3498, %v3594
      %v3596 = vpop.f32.mrb[0].mxu0
      %v3597 = vpop.f32.mrb[0].mxu0
      %v3598 = vadd.f32 %v3501, %v3597
      %v3599 = vpop.f32.mrb[0].mxu0
      %3600 = vmatprep.mubr.bf16.mxu0 %v2731
      %3601 = vmatmul.mubr.bf16.gmra.mrb[0].mxu0 %v2730
      %v3602 = vpop.f32.mrb[0].mxu0
      %v3603 = vadd.f32 %v3506, %v3602
      %v3604 = vpop.f32.mrb[0].mxu0
      %v3605 = vpop.f32.mrb[0].mxu0
      %v3606 = vadd.f32 %v3509, %v3605
      %v3607 = vpop.f32.mrb[0].mxu0
      %3608 = vdwg.mxu0
      %3609 = vmatprep.subr.bf16.mxu0 0
      %3610 = vmatpush1.bf16.msra.mxu0 %v3222
      %3611 = vmatprep.subr.bf16.mxu0 0
      %3612 = vmatpush1.bf16.msra.mxu0 %v3223
      %3613 = vmatprep.subr.bf16.mxu0 0
      %3614 = vmatpush1.bf16.msra.mxu0 %v3224
      %3615 = vmatprep.subr.bf16.mxu0 0
      %3616 = vmatpush1.bf16.msra.mxu0 %v3225
      %3617 = vmatprep.subr.bf16.mxu0 0
      %3618 = vmatpush1.bf16.msra.mxu0 %v3226
      %3619 = vmatprep.subr.bf16.mxu0 0
      %3620 = vmatpush1.bf16.msra.mxu0 %v3227
      %3621 = vmatprep.subr.bf16.mxu0 0
      %3622 = vmatpush1.bf16.msra.mxu0 %v3228
      %3623 = vmatprep.subr.bf16.mxu0 0
      %3624 = vmatpush1.bf16.msra.mxu0 %v3229
      %3625 = vmatprep.subr.bf16.mxu0 0
      %3626 = vmatpush1.bf16.msra.mxu0 %v3230
      %3627 = vmatprep.subr.bf16.mxu0 0
      %3628 = vmatpush1.bf16.msra.mxu0 %v3231
      %3629 = vmatprep.subr.bf16.mxu0 0
      %3630 = vmatpush1.bf16.msra.mxu0 %v3232
      %3631 = vmatprep.subr.bf16.mxu0 0
      %3632 = vmatpush1.bf16.msra.mxu0 %v3233
      %3633 = vmatprep.subr.bf16.mxu0 0
      %3634 = vmatpush1.bf16.msra.mxu0 %v3234
      %3635 = vmatprep.subr.bf16.mxu0 0
      %3636 = vmatpush1.bf16.msra.mxu0 %v3235
      %3637 = vmatprep.subr.bf16.mxu0 0
      %3638 = vmatpush1.bf16.msra.mxu0 %v3236
      %3639 = vmatprep.subr.bf16.mxu0 0
      %3640 = vmatpush1.bf16.msra.mxu0 %v3237
      %3641 = vmatprep.mubr.bf16.mxu0 %v2670
      %3642 = vmatmul.mubr.bf16.gmra.mrb[0].mxu0 %v2669
      %v3643 = vpop.f32.mrb[0].mxu0
      %v3644 = vadd.f32 %v3547, %v3643
      %v3645 = vpop.f32.mrb[0].mxu0
      %v3646 = vpop.f32.mrb[0].mxu0
      %v3647 = vadd.f32 %v3550, %v3646
      %v3648 = vpop.f32.mrb[0].mxu0
      %3649 = vmatprep.mubr.bf16.mxu0 %v2679
      %3650 = vmatmul.mubr.bf16.gmra.mrb[0].mxu0 %v2678
      %v3651 = vpop.f32.mrb[0].mxu0
      %v3652 = vadd.f32 %v3555, %v3651
      %v3653 = vpop.f32.mrb[0].mxu0
      %v3654 = vpop.f32.mrb[0].mxu0
      %v3655 = vadd.f32 %v3558, %v3654
      %v3656 = vpop.f32.mrb[0].mxu0
      %3657 = vmatprep.mubr.bf16.mxu0 %v2688
      %3658 = vmatmul.mubr.bf16.gmra.mrb[0].mxu0 %v2687
      %v3659 = vpop.f32.mrb[0].mxu0
      %v3660 = vadd.f32 %v3563, %v3659
      %v3661 = vpop.f32.mrb[0].mxu0
      %v3662 = vpop.f32.mrb[0].mxu0
      %v3663 = vadd.f32 %v3566, %v3662
      %v3664 = vpop.f32.mrb[0].mxu0
      %3665 = vmatprep.mubr.bf16.mxu0 %v2697
      %3666 = vmatmul.mubr.bf16.gmra.mrb[0].mxu0 %v2696
      %v3667 = vpop.f32.mrb[0].mxu0
      %v3668 = vadd.f32 %v3571, %v3667
      %v3669 = vpop.f32.mrb[0].mxu0
      %v3670 = vpop.f32.mrb[0].mxu0
      %v3671 = vadd.f32 %v3574, %v3670
      %v3672 = vpop.f32.mrb[0].mxu0
      %3673 = vmatprep.mubr.bf16.mxu0 %v2706
      %3674 = vmatmul.mubr.bf16.gmra.mrb[0].mxu0 %v2705
      %v3675 = vpop.f32.mrb[0].mxu0
      %v3676 = vadd.f32 %v3579, %v3675
      %v3677 = vpop.f32.mrb[0].mxu0
      %v3678 = vpop.f32.mrb[0].mxu0
      %v3679 = vadd.f32 %v3582, %v3678
      %v3680 = vpop.f32.mrb[0].mxu0
      %3681 = vmatprep.mubr.bf16.mxu0 %v2715
      %3682 = vmatmul.mubr.bf16.gmra.mrb[0].mxu0 %v2714
      %v3683 = vpop.f32.mrb[0].mxu0
      %v3684 = vadd.f32 %v3587, %v3683
      %v3685 = vpop.f32.mrb[0].mxu0
      %v3686 = vpop.f32.mrb[0].mxu0
      %v3687 = vadd.f32 %v3590, %v3686
      %v3688 = vpop.f32.mrb[0].mxu0
      %3689 = vmatprep.mubr.bf16.mxu0 %v2724
      %3690 = vmatmul.mubr.bf16.gmra.mrb[0].mxu0 %v2723
      %v3691 = vpop.f32.mrb[0].mxu0
      %v3692 = vadd.f32 %v3595, %v3691
      %v3693 = vpop.f32.mrb[0].mxu0
      %v3694 = vpop.f32.mrb[0].mxu0
      %v3695 = vadd.f32 %v3598, %v3694
      %v3696 = vpop.f32.mrb[0].mxu0
      %3697 = vmatprep.mubr.bf16.mxu0 %v2733
      %3698 = vmatmul.mubr.bf16.gmra.mrb[0].mxu0 %v2732
      %v3699 = vpop.f32.mrb[0].mxu0
      %v3700 = vadd.f32 %v3603, %v3699
      %v3701 = vpop.f32.mrb[0].mxu0
      %v3702 = vpop.f32.mrb[0].mxu0
      %v3703 = vadd.f32 %v3606, %v3702
      %v3704 = vpop.f32.mrb[0].mxu0
      %3705 = vdwg.mxu0
      %3706 = vmatprep.subr.bf16.mxu0 0
      %3707 = vmatpush1.bf16.msra.mxu0 %v3238
      %3708 = vmatprep.subr.bf16.mxu0 0
      %3709 = vmatpush1.bf16.msra.mxu0 %v3239
      %3710 = vmatprep.subr.bf16.mxu0 0
      %3711 = vmatpush1.bf16.msra.mxu0 %v3240
      %3712 = vmatprep.subr.bf16.mxu0 0
      %3713 = vmatpush1.bf16.msra.mxu0 %v3241
      %3714 = vmatprep.subr.bf16.mxu0 0
      %3715 = vmatpush1.bf16.msra.mxu0 %v3242
      %3716 = vmatprep.subr.bf16.mxu0 0
      %3717 = vmatpush1.bf16.msra.mxu0 %v3243
      %3718 = vmatprep.subr.bf16.mxu0 0
      %3719 = vmatpush1.bf16.msra.mxu0 %v3244
      %3720 = vmatprep.subr.bf16.mxu0 0
      %3721 = vmatpush1.bf16.msra.mxu0 %v3245
      %3722 = vmatprep.subr.bf16.mxu0 0
      %3723 = vmatpush1.bf16.msra.mxu0 0
      %3724 = vmatprep.subr.bf16.mxu0 0
      %3725 = vmatpush1.bf16.msra.mxu0 0
      %3726 = vmatprep.subr.bf16.mxu0 0
      %3727 = vmatpush1.bf16.msra.mxu0 0
      %3728 = vmatprep.subr.bf16.mxu0 0
      %3729 = vmatpush1.bf16.msra.mxu0 0
      %3730 = vmatprep.subr.bf16.mxu0 0
      %3731 = vmatpush1.bf16.msra.mxu0 0
      %3732 = vmatprep.subr.bf16.mxu0 0
      %3733 = vmatpush1.bf16.msra.mxu0 0
      %3734 = vmatprep.subr.bf16.mxu0 0
      %3735 = vmatpush1.bf16.msra.mxu0 0
      %3736 = vmatprep.subr.bf16.mxu0 0
      %3737 = vmatpush1.bf16.msra.mxu0 0
      %3738 = vmatprep.mubr.bf16.mxu0 0
      %3739 = vmatmul.mubr.bf16.gmra.mrb[0].mxu0 %v2671
      %v3740 = vpop.f32.mrb[0].mxu0
      %v3741 = vadd.f32 %v3644, %v3740
      %v3742 = vpop.f32.mrb[0].mxu0
      %v3743 = vpop.f32.mrb[0].mxu0
      %v3744 = vadd.f32 %v3647, %v3743
      %v3745 = vpop.f32.mrb[0].mxu0
      %3746 = vmatprep.mubr.bf16.mxu0 0
      %3747 = vmatmul.mubr.bf16.gmra.mrb[0].mxu0 %v2680
      %v3748 = vpop.f32.mrb[0].mxu0
      %v3749 = vadd.f32 %v3652, %v3748
      %v3750 = vpop.f32.mrb[0].mxu0
      %v3751 = vpop.f32.mrb[0].mxu0
      %v3752 = vadd.f32 %v3655, %v3751
      %v3753 = vpop.f32.mrb[0].mxu0
      %3754 = vmatprep.mubr.bf16.mxu0 0
      %3755 = vmatmul.mubr.bf16.gmra.mrb[0].mxu0 %v2689
      %v3756 = vpop.f32.mrb[0].mxu0
      %v3757 = vadd.f32 %v3660, %v3756
      %v3758 = vpop.f32.mrb[0].mxu0
      %v3759 = vpop.f32.mrb[0].mxu0
      %v3760 = vadd.f32 %v3663, %v3759
      %v3761 = vpop.f32.mrb[0].mxu0
      %3762 = vmatprep.mubr.bf16.mxu0 0
      %3763 = vmatmul.mubr.bf16.gmra.mrb[0].mxu0 %v2698
      %v3764 = vpop.f32.mrb[0].mxu0
      %v3765 = vadd.f32 %v3668, %v3764
      %v3766 = vpop.f32.mrb[0].mxu0
      %v3767 = vpop.f32.mrb[0].mxu0
      %v3768 = vadd.f32 %v3671, %v3767
      %v3769 = vpop.f32.mrb[0].mxu0
      %3770 = vmatprep.mubr.bf16.mxu0 0
      %3771 = vmatmul.mubr.bf16.gmra.mrb[0].mxu0 %v2707
      %v3772 = vpop.f32.mrb[0].mxu0
      %v3773 = vadd.f32 %v3676, %v3772
      %v3774 = vpop.f32.mrb[0].mxu0
      %v3775 = vpop.f32.mrb[0].mxu0
      %v3776 = vadd.f32 %v3679, %v3775
      %v3777 = vpop.f32.mrb[0].mxu0
      %3778 = vmatprep.mubr.bf16.mxu0 0
      %3779 = vmatmul.mubr.bf16.gmra.mrb[0].mxu0 %v2716
      %v3780 = vpop.f32.mrb[0].mxu0
      %v3781 = vadd.f32 %v3684, %v3780
      %v3782 = vpop.f32.mrb[0].mxu0
      %v3783 = vpop.f32.mrb[0].mxu0
      %v3784 = vadd.f32 %v3687, %v3783
      %v3785 = vpop.f32.mrb[0].mxu0
      %3786 = vmatprep.mubr.bf16.mxu0 0
      %3787 = vmatmul.mubr.bf16.gmra.mrb[0].mxu0 %v2725
      %v3788 = vpop.f32.mrb[0].mxu0
      %v3789 = vadd.f32 %v3692, %v3788
      %v3790 = vpop.f32.mrb[0].mxu0
      %v3791 = vpop.f32.mrb[0].mxu0
      %v3792 = vadd.f32 %v3695, %v3791
      %v3793 = vpop.f32.mrb[0].mxu0
      %3794 = vmatprep.mubr.bf16.mxu0 0
      %3795 = vmatmul.mubr.bf16.gmra.mrb[0].mxu0 %v2734
      %v3796 = vpop.f32.mrb[0].mxu0
      %v3797 = vadd.f32 %v3700, %v3796
      %v3798 = vpop.f32.mrb[0].mxu0
      %v3799 = vpop.f32.mrb[0].mxu0
      %v3800 = vadd.f32 %v3703, %v3799
      %v3801 = vpop.f32.mrb[0].mxu0
      %3802 = vdwg.mxu0
      %v3803 = vmax.f32 %v3741, 0.0
      %v3804 = vmax.f32 %v3744, 0.0
      %v3805 = vmax.f32 %v3749, 0.0
      %v3806 = vmax.f32 %v3752, 0.0
      %v3807 = vmax.f32 %v3757, 0.0
      %v3808 = vmax.f32 %v3760, 0.0
      %v3809 = vmax.f32 %v3765, 0.0
      %v3810 = vmax.f32 %v3768, 0.0
      %v3811 = vmax.f32 %v3773, 0.0
      %v3812 = vmax.f32 %v3776, 0.0
      %v3813 = vmax.f32 %v3781, 0.0
      %v3814 = vmax.f32 %v3784, 0.0
      %v3815 = vmax.f32 %v3789, 0.0
      %v3816 = vmax.f32 %v3792, 0.0
      %v3817 = vmax.f32 %v3797, 0.0
      %v3818 = vmax.f32 %v3800, 0.0
      %v3819 = vpack.c.bf16 %v3804, %v3803
      %v3820 = vpack.c.bf16 %v3806, %v3805
      %v3821 = vpack.c.bf16 %v3808, %v3807
      %v3822 = vpack.c.bf16 %v3810, %v3809
      %v3823 = vpack.c.bf16 %v3812, %v3811
      %v3824 = vpack.c.bf16 %v3814, %v3813
      %v3825 = vpack.c.bf16 %v3816, %v3815
      %v3826 = vpack.c.bf16 %v3818, %v3817
      %3827 = vst [vmem:[#allocation4] sm:$0xff] %v3819
      %3828 = vst [vmem:[#allocation4 + $0x10] sm:$0xff] %v3820
      %3829 = vst [vmem:[#allocation4 + $0x20] sm:$0xff] %v3821
      %3830 = vst [vmem:[#allocation4 + $0x30] sm:$0xff] %v3822
      %3831 = vst [vmem:[#allocation4 + $0x40] sm:$0xff] %v3823
      %3832 = vst [vmem:[#allocation4 + $0x50] sm:$0xff] %v3824
      %3833 = vst [vmem:[#allocation4 + $0x60] sm:$0xff] %v3825
      %3834 = vst [vmem:[#allocation4 + $0x70] sm:$0xff] %v3826
      %s3835 = smul.u32 %s305, 2
      %s3836 = smul.addr %s3835, 4
      %s3837 = scalar_lea.vmem %s292, %s3836
      %v3838 = vld [vmem:[%s3837] sm:$0xf]
      %v3839 = vld [vmem:[%s3837 + $0x4] sm:$0xf]
      %v3840 = vld [vmem:[%s3837 + $0x8] sm:$0xf]
      %v3841 = vld [vmem:[%s3837 + $0xc] sm:$0xf]
      %v3842 = vld [vmem:[%s3837 + $0x10] sm:$0xf]
      %v3843 = vld [vmem:[%s3837 + $0x14] sm:$0xf]
      %v3844 = vld [vmem:[%s3837 + $0x18] sm:$0xf]
      %v3845 = vld [vmem:[%s3837 + $0x1c] sm:$0xf]
      %v3846 = vld [vmem:[%s3837 + $0x20] sm:$0xf]
      %v3847 = vld [vmem:[%s3837 + $0x24] sm:$0xf]
      %v3848 = vld [vmem:[%s3837 + $0x28] sm:$0xf]
      %v3849 = vld [vmem:[%s3837 + $0x2c] sm:$0xf]
      %v3850 = vld [vmem:[%s3837 + $0x30] sm:$0xf]
      %v3851 = vld [vmem:[%s3837 + $0x34] sm:$0xf]
      %v3852 = vld [vmem:[%s3837 + $0x38] sm:$0xf]
      %v3853 = vld [vmem:[%s3837 + $0x3c] sm:$0xf]
      %v3870 = vunpack.c.l.b16 %v3838
      %v3871 = vunpack.c.l.b16 %v3839
      %v3872 = vunpack.c.l.b16 %v3840
      %v3873 = vunpack.c.l.b16 %v3841
      %v3874 = vunpack.c.l.b16 %v3842
      %v3875 = vunpack.c.l.b16 %v3843
      %v3876 = vunpack.c.l.b16 %v3844
      %v3877 = vunpack.c.l.b16 %v3845
      %v3878 = vunpack.c.l.b16 %v3846
      %v3879 = vunpack.c.l.b16 %v3847
      %v3880 = vunpack.c.l.b16 %v3848
      %v3881 = vunpack.c.l.b16 %v3849
      %v3882 = vunpack.c.l.b16 %v3850
      %v3883 = vunpack.c.l.b16 %v3851
      %v3884 = vunpack.c.l.b16 %v3852
      %v3885 = vunpack.c.l.b16 %v3853
      %v3886 = vpack.c.b16 %v3871, %v3870
      %v3887 = vpack.c.b16 %v3873, %v3872
      %v3888 = vpack.c.b16 %v3875, %v3874
      %v3889 = vpack.c.b16 %v3877, %v3876
      %v3890 = vpack.c.b16 %v3879, %v3878
      %v3891 = vpack.c.b16 %v3881, %v3880
      %v3892 = vpack.c.b16 %v3883, %v3882
      %v3893 = vpack.c.b16 %v3885, %v3884
      %3902 = vst [vmem:[#allocation4 + $0x8] sm:$0xff] %v3886
      %3903 = vst [vmem:[#allocation4 + $0x18] sm:$0xff] %v3887
      %3904 = vst [vmem:[#allocation4 + $0x28] sm:$0xff] %v3888
      %3905 = vst [vmem:[#allocation4 + $0x38] sm:$0xff] %v3889
      %3906 = vst [vmem:[#allocation4 + $0x48] sm:$0xff] %v3890
      %3907 = vst [vmem:[#allocation4 + $0x58] sm:$0xff] %v3891
      %3908 = vst [vmem:[#allocation4 + $0x68] sm:$0xff] %v3892
      %3909 = vst [vmem:[#allocation4 + $0x78] sm:$0xff] %v3893
      %v3910 = vld [vmem:[#allocation4] sm:$0xff]
      %v3911 = vld [vmem:[#allocation4 + $0x8] sm:$0xff]
      %v3912 = vld [vmem:[#allocation4 + $0x10] sm:$0xff]
      %v3913 = vld [vmem:[#allocation4 + $0x18] sm:$0xff]
      %v3914 = vld [vmem:[#allocation4 + $0x20] sm:$0xff]
      %v3915 = vld [vmem:[#allocation4 + $0x28] sm:$0xff]
      %v3916 = vld [vmem:[#allocation4 + $0x30] sm:$0xff]
      %v3917 = vld [vmem:[#allocation4 + $0x38] sm:$0xff]
      %v3918 = vld [vmem:[#allocation4 + $0x40] sm:$0xff]
      %v3919 = vld [vmem:[#allocation4 + $0x48] sm:$0xff]
      %v3920 = vld [vmem:[#allocation4 + $0x50] sm:$0xff]
      %v3921 = vld [vmem:[#allocation4 + $0x58] sm:$0xff]
      %v3922 = vld [vmem:[#allocation4 + $0x60] sm:$0xff]
      %v3923 = vld [vmem:[#allocation4 + $0x68] sm:$0xff]
      %v3924 = vld [vmem:[#allocation4 + $0x70] sm:$0xff]
      %v3925 = vld [vmem:[#allocation4 + $0x78] sm:$0xff]
      %v3926 = vld [vmem:[%s5] sm:$0xff]
      %v3927 = vld [vmem:[%s5 + $0x8] sm:$0xff]
      %v3928 = vld [vmem:[%s5 + $0x10] sm:$0xff]
      %v3929 = vld [vmem:[%s5 + $0x18] sm:$0xff]
      %v3930 = vld [vmem:[%s5 + $0x20] sm:$0xff]
      %v3931 = vld [vmem:[%s5 + $0x28] sm:$0xff]
      %v3932 = vld [vmem:[%s5 + $0x30] sm:$0xff]
      %v3933 = vld [vmem:[%s5 + $0x38] sm:$0xff]
      %v3934 = vld [vmem:[%s5 + $0x40] sm:$0xff]
      %v3935 = vld [vmem:[%s5 + $0x48] sm:$0xff]
      %v3936 = vld [vmem:[%s5 + $0x50] sm:$0xff]
      %v3937 = vld [vmem:[%s5 + $0x58] sm:$0xff]
      %v3938 = vld [vmem:[%s5 + $0x60] sm:$0xff]
      %v3939 = vld [vmem:[%s5 + $0x68] sm:$0xff]
      %v3940 = vld [vmem:[%s5 + $0x70] sm:$0xff]
      %v3941 = vld [vmem:[%s5 + $0x78] sm:$0xff]
      %v3942 = vld [vmem:[%s5 + $0x80] sm:$0xff]
      %v3943 = vld [vmem:[%s5 + $0x88] sm:$0xff]
      %v3944 = vld [vmem:[%s5 + $0x90] sm:$0xff]
      %v3945 = vld [vmem:[%s5 + $0x98] sm:$0xff]
      %v3946 = vld [vmem:[%s5 + $0xa0] sm:$0xff]
      %v3947 = vld [vmem:[%s5 + $0xa8] sm:$0xff]
      %v3948 = vld [vmem:[%s5 + $0xb0] sm:$0xff]
      %v3949 = vld [vmem:[%s5 + $0xb8] sm:$0xff]
      %v3950 = vld [vmem:[%s5 + $0xc0] sm:$0xff]
      %v3951 = vld [vmem:[%s5 + $0xc8] sm:$0xff]
      %v3952 = vld [vmem:[%s5 + $0xd0] sm:$0xff]
      %v3953 = vld [vmem:[%s5 + $0xd8] sm:$0xff]
      %v3954 = vld [vmem:[%s5 + $0xe0] sm:$0xff]
      %v3955 = vld [vmem:[%s5 + $0xe8] sm:$0xff]
      %v3956 = vld [vmem:[%s5 + $0xf0] sm:$0xff]
      %v3957 = vld [vmem:[%s5 + $0xf8] sm:$0xff]
      %v3958 = vld [vmem:[%s5 + $0x100] sm:$0xff]
      %v3959 = vld [vmem:[%s5 + $0x108] sm:$0xff]
      %v3960 = vld [vmem:[%s5 + $0x110] sm:$0xff]
      %v3961 = vld [vmem:[%s5 + $0x118] sm:$0xff]
      %v3962 = vld [vmem:[%s5 + $0x120] sm:$0xff]
      %v3963 = vld [vmem:[%s5 + $0x128] sm:$0xff]
      %v3964 = vld [vmem:[%s5 + $0x130] sm:$0xff]
      %v3965 = vld [vmem:[%s5 + $0x138] sm:$0xff]
      %v3966 = vld [vmem:[%s5 + $0x140] sm:$0xff]
      %v3967 = vld [vmem:[%s5 + $0x148] sm:$0xff]
      %v3968 = vld [vmem:[%s5 + $0x150] sm:$0xff]
      %v3969 = vld [vmem:[%s5 + $0x158] sm:$0xff]
      %v3970 = vld [vmem:[%s5 + $0x160] sm:$0xff]
      %v3971 = vld [vmem:[%s5 + $0x168] sm:$0xff]
      %v3972 = vld [vmem:[%s5 + $0x170] sm:$0xff]
      %v3973 = vld [vmem:[%s5 + $0x178] sm:$0xff]
      %v3974 = vld [vmem:[%s5 + $0x180] sm:$0xff]
      %v3975 = vld [vmem:[%s5 + $0x188] sm:$0xff]
      %v3976 = vld [vmem:[%s5 + $0x190] sm:$0xff]
      %v3977 = vld [vmem:[%s5 + $0x198] sm:$0xff]
      %v3978 = vld [vmem:[%s5 + $0x1a0] sm:$0xff]
      %v3979 = vld [vmem:[%s5 + $0x1a8] sm:$0xff]
      %v3980 = vld [vmem:[%s5 + $0x1b0] sm:$0xff]
      %v3981 = vld [vmem:[%s5 + $0x1b8] sm:$0xff]
      %v3982 = vld [vmem:[%s5 + $0x1c0] sm:$0xff]
      %v3983 = vld [vmem:[%s5 + $0x1c8] sm:$0xff]
      %v3984 = vld [vmem:[%s5 + $0x1d0] sm:$0xff]
      %v3985 = vld [vmem:[%s5 + $0x1d8] sm:$0xff]
      %v3986 = vld [vmem:[%s5 + $0x1e0] sm:$0xff]
      %v3987 = vld [vmem:[%s5 + $0x1e8] sm:$0xff]
      %v3988 = vld [vmem:[%s5 + $0x1f0] sm:$0xff]
      %v3989 = vld [vmem:[%s5 + $0x1f8] sm:$0xff]
      %v3990 = vld [vmem:[%s6] sm:$0xf]
      %v3992 = vlaneseq
      %v3993 = vshrl.u32 %v3992, 7
      %v3994 = vsub.s32 0, %v3993
      %v3995 = vrot.slane %v3990, %v3994
      %v3996 = vlaneseq
      %v3997 = vshrl.u32 %v3996, 7
      %v3998 = vsub.s32 1, %v3997
      %v3999 = vrot.slane %v3990, %v3998
      %v4000 = vlaneseq
      %v4001 = vshrl.u32 %v4000, 7
      %v4002 = vsub.s32 2, %v4001
      %v4003 = vrot.slane %v3990, %v4002
      %v4004 = vlaneseq
      %v4005 = vshrl.u32 %v4004, 7
      %v4006 = vsub.s32 3, %v4005
      %v4007 = vrot.slane %v3990, %v4006
      %v4076 = vunpack.c.l.b16 %v3926
      %v4077 = vunpack.c.h.b16 %v3926
      %v4078 = vunpack.c.l.b16 %v3927
      %v4079 = vunpack.c.h.b16 %v3927
      %v4080 = vunpack.c.l.b16 %v3928
      %v4081 = vunpack.c.h.b16 %v3928
      %v4082 = vunpack.c.l.b16 %v3929
      %v4083 = vunpack.c.h.b16 %v3929
      %v4084 = vunpack.c.l.b16 %v3930
      %v4085 = vunpack.c.h.b16 %v3930
      %v4086 = vunpack.c.l.b16 %v3931
      %v4087 = vunpack.c.h.b16 %v3931
      %v4088 = vunpack.c.l.b16 %v3932
      %v4089 = vunpack.c.h.b16 %v3932
      %v4090 = vunpack.c.l.b16 %v3933
      %v4091 = vunpack.c.h.b16 %v3933
      %v4092 = vunpack.c.l.b16 %v3934
      %v4093 = vunpack.c.h.b16 %v3934
      %v4094 = vunpack.c.l.b16 %v3935
      %v4095 = vunpack.c.h.b16 %v3935
      %v4096 = vunpack.c.l.b16 %v3936
      %v4097 = vunpack.c.h.b16 %v3936
      %v4098 = vunpack.c.l.b16 %v3937
      %v4099 = vunpack.c.h.b16 %v3937
      %v4100 = vunpack.c.l.b16 %v3938
      %v4101 = vunpack.c.h.b16 %v3938
      %v4102 = vunpack.c.l.b16 %v3939
      %v4103 = vunpack.c.h.b16 %v3939
      %v4104 = vunpack.c.l.b16 %v3940
      %v4105 = vunpack.c.h.b16 %v3940
      %v4106 = vunpack.c.l.b16 %v3941
      %v4107 = vunpack.c.h.b16 %v3941
      %v4108 = vunpack.c.l.b16 %v3942
      %v4109 = vunpack.c.h.b16 %v3942
      %v4110 = vunpack.c.l.b16 %v3943
      %v4111 = vunpack.c.h.b16 %v3943
      %v4112 = vunpack.c.l.b16 %v3944
      %v4113 = vunpack.c.h.b16 %v3944
      %v4114 = vunpack.c.l.b16 %v3945
      %v4115 = vunpack.c.h.b16 %v3945
      %v4116 = vunpack.c.l.b16 %v3946
      %v4117 = vunpack.c.h.b16 %v3946
      %v4118 = vunpack.c.l.b16 %v3947
      %v4119 = vunpack.c.h.b16 %v3947
      %v4120 = vunpack.c.l.b16 %v3948
      %v4121 = vunpack.c.h.b16 %v3948
      %v4122 = vunpack.c.l.b16 %v3949
      %v4123 = vunpack.c.h.b16 %v3949
      %v4124 = vunpack.c.l.b16 %v3950
      %v4125 = vunpack.c.h.b16 %v3950
      %v4126 = vunpack.c.l.b16 %v3951
      %v4127 = vunpack.c.h.b16 %v3951
      %v4128 = vunpack.c.l.b16 %v3952
      %v4129 = vunpack.c.h.b16 %v3952
      %v4130 = vunpack.c.l.b16 %v3953
      %v4131 = vunpack.c.h.b16 %v3953
      %v4132 = vunpack.c.l.b16 %v3954
      %v4133 = vunpack.c.h.b16 %v3954
      %v4134 = vunpack.c.l.b16 %v3955
      %v4135 = vunpack.c.h.b16 %v3955
      %v4136 = vunpack.c.l.b16 %v3956
      %v4137 = vunpack.c.h.b16 %v3956
      %v4138 = vunpack.c.l.b16 %v3957
      %v4139 = vunpack.c.h.b16 %v3957
      %v4140 = vunpack.c.l.b16 %v3958
      %v4141 = vunpack.c.h.b16 %v3958
      %v4142 = vunpack.c.l.b16 %v3959
      %v4143 = vunpack.c.h.b16 %v3959
      %v4144 = vunpack.c.l.b16 %v3960
      %v4145 = vunpack.c.h.b16 %v3960
      %v4146 = vunpack.c.l.b16 %v3961
      %v4147 = vunpack.c.h.b16 %v3961
      %v4148 = vunpack.c.l.b16 %v3962
      %v4149 = vunpack.c.h.b16 %v3962
      %v4150 = vunpack.c.l.b16 %v3963
      %v4151 = vunpack.c.h.b16 %v3963
      %v4152 = vunpack.c.l.b16 %v3964
      %v4153 = vunpack.c.h.b16 %v3964
      %v4154 = vunpack.c.l.b16 %v3965
      %v4155 = vunpack.c.h.b16 %v3965
      %v4156 = vunpack.c.l.b16 %v3966
      %v4157 = vunpack.c.h.b16 %v3966
      %v4158 = vunpack.c.l.b16 %v3967
      %v4159 = vunpack.c.h.b16 %v3967
      %v4160 = vunpack.c.l.b16 %v3968
      %v4161 = vunpack.c.h.b16 %v3968
      %v4162 = vunpack.c.l.b16 %v3969
      %v4163 = vunpack.c.h.b16 %v3969
      %v4164 = vunpack.c.l.b16 %v3970
      %v4165 = vunpack.c.h.b16 %v3970
      %v4166 = vunpack.c.l.b16 %v3971
      %v4167 = vunpack.c.h.b16 %v3971
      %v4168 = vunpack.c.l.b16 %v3972
      %v4169 = vunpack.c.h.b16 %v3972
      %v4170 = vunpack.c.l.b16 %v3973
      %v4171 = vunpack.c.h.b16 %v3973
      %v4172 = vunpack.c.l.b16 %v3974
      %v4173 = vunpack.c.h.b16 %v3974
      %v4174 = vunpack.c.l.b16 %v3975
      %v4175 = vunpack.c.h.b16 %v3975
      %v4176 = vunpack.c.l.b16 %v3976
      %v4177 = vunpack.c.h.b16 %v3976
      %v4178 = vunpack.c.l.b16 %v3977
      %v4179 = vunpack.c.h.b16 %v3977
      %v4180 = vunpack.c.l.b16 %v3978
      %v4181 = vunpack.c.h.b16 %v3978
      %v4182 = vunpack.c.l.b16 %v3979
      %v4183 = vunpack.c.h.b16 %v3979
      %v4184 = vunpack.c.l.b16 %v3980
      %v4185 = vunpack.c.h.b16 %v3980
      %v4186 = vunpack.c.l.b16 %v3981
      %v4187 = vunpack.c.h.b16 %v3981
      %v4188 = vunpack.c.l.b16 %v3982
      %v4189 = vunpack.c.h.b16 %v3982
      %v4190 = vunpack.c.l.b16 %v3983
      %v4191 = vunpack.c.h.b16 %v3983
      %v4192 = vunpack.c.l.b16 %v3984
      %v4193 = vunpack.c.h.b16 %v3984
      %v4194 = vunpack.c.l.b16 %v3985
      %v4195 = vunpack.c.h.b16 %v3985
      %v4196 = vunpack.c.l.b16 %v3986
      %v4197 = vunpack.c.h.b16 %v3986
      %v4198 = vunpack.c.l.b16 %v3987
      %v4199 = vunpack.c.h.b16 %v3987
      %v4200 = vunpack.c.l.b16 %v3988
      %v4201 = vunpack.c.h.b16 %v3988
      %v4202 = vunpack.c.l.b16 %v3989
      %v4203 = vunpack.c.h.b16 %v3989
      %v4204 = vpack.c.b16 %v4080, %v4076
      %v4205 = vpack.c.b16 %v4081, %v4077
      %v4206 = vpack.c.b16 %v4082, %v4078
      %v4207 = vpack.c.b16 %v4083, %v4079
      %v4208 = vpack.c.b16 %v4088, %v4084
      %v4209 = vpack.c.b16 %v4089, %v4085
      %v4210 = vpack.c.b16 %v4090, %v4086
      %v4211 = vpack.c.b16 %v4091, %v4087
      %v4212 = vpack.c.b16 %v4096, %v4092
      %v4213 = vpack.c.b16 %v4097, %v4093
      %v4214 = vpack.c.b16 %v4098, %v4094
      %v4215 = vpack.c.b16 %v4099, %v4095
      %v4216 = vpack.c.b16 %v4104, %v4100
      %v4217 = vpack.c.b16 %v4105, %v4101
      %v4218 = vpack.c.b16 %v4106, %v4102
      %v4219 = vpack.c.b16 %v4107, %v4103
      %v4220 = vpack.c.b16 %v4112, %v4108
      %v4221 = vpack.c.b16 %v4113, %v4109
      %v4222 = vpack.c.b16 %v4114, %v4110
      %v4223 = vpack.c.b16 %v4115, %v4111
      %v4224 = vpack.c.b16 %v4120, %v4116
      %v4225 = vpack.c.b16 %v4121, %v4117
      %v4226 = vpack.c.b16 %v4122, %v4118
      %v4227 = vpack.c.b16 %v4123, %v4119
      %v4228 = vpack.c.b16 %v4128, %v4124
      %v4229 = vpack.c.b16 %v4129, %v4125
      %v4230 = vpack.c.b16 %v4130, %v4126
      %v4231 = vpack.c.b16 %v4131, %v4127
      %v4232 = vpack.c.b16 %v4136, %v4132
      %v4233 = vpack.c.b16 %v4137, %v4133
      %v4234 = vpack.c.b16 %v4138, %v4134
      %v4235 = vpack.c.b16 %v4139, %v4135
      %v4236 = vpack.c.b16 %v4144, %v4140
      %v4237 = vpack.c.b16 %v4145, %v4141
      %v4238 = vpack.c.b16 %v4146, %v4142
      %v4239 = vpack.c.b16 %v4147, %v4143
      %v4240 = vpack.c.b16 %v4152, %v4148
      %v4241 = vpack.c.b16 %v4153, %v4149
      %v4242 = vpack.c.b16 %v4154, %v4150
      %v4243 = vpack.c.b16 %v4155, %v4151
      %v4244 = vpack.c.b16 %v4160, %v4156
      %v4245 = vpack.c.b16 %v4161, %v4157
      %v4246 = vpack.c.b16 %v4162, %v4158
      %v4247 = vpack.c.b16 %v4163, %v4159
      %v4248 = vpack.c.b16 %v4168, %v4164
      %v4249 = vpack.c.b16 %v4169, %v4165
      %v4250 = vpack.c.b16 %v4170, %v4166
      %v4251 = vpack.c.b16 %v4171, %v4167
      %v4252 = vpack.c.b16 %v4176, %v4172
      %v4253 = vpack.c.b16 %v4177, %v4173
      %v4254 = vpack.c.b16 %v4178, %v4174
      %v4255 = vpack.c.b16 %v4179, %v4175
      %v4256 = vpack.c.b16 %v4184, %v4180
      %v4257 = vpack.c.b16 %v4185, %v4181
      %v4258 = vpack.c.b16 %v4186, %v4182
      %v4259 = vpack.c.b16 %v4187, %v4183
      %v4260 = vpack.c.b16 %v4192, %v4188
      %v4261 = vpack.c.b16 %v4193, %v4189
      %v4262 = vpack.c.b16 %v4194, %v4190
      %v4263 = vpack.c.b16 %v4195, %v4191
      %v4264 = vpack.c.b16 %v4200, %v4196
      %v4265 = vpack.c.b16 %v4201, %v4197
      %v4266 = vpack.c.b16 %v4202, %v4198
      %v4267 = vpack.c.b16 %v4203, %v4199
      %4332 = vmatprep.subr.bf16.mxu0 %v4205
      %4333 = vmatpush1.bf16.msra.mxu0 %v4204
      %4334 = vmatprep.subr.bf16.mxu0 %v4209
      %4335 = vmatpush1.bf16.msra.mxu0 %v4208
      %4336 = vmatprep.subr.bf16.mxu0 %v4213
      %4337 = vmatpush1.bf16.msra.mxu0 %v4212
      %4338 = vmatprep.subr.bf16.mxu0 %v4217
      %4339 = vmatpush1.bf16.msra.mxu0 %v4216
      %4340 = vmatprep.subr.bf16.mxu0 %v4221
      %4341 = vmatpush1.bf16.msra.mxu0 %v4220
      %4342 = vmatprep.subr.bf16.mxu0 %v4225
      %4343 = vmatpush1.bf16.msra.mxu0 %v4224
      %4344 = vmatprep.subr.bf16.mxu0 %v4229
      %4345 = vmatpush1.bf16.msra.mxu0 %v4228
      %4346 = vmatprep.subr.bf16.mxu0 %v4233
      %4347 = vmatpush1.bf16.msra.mxu0 %v4232
      %4348 = vmatprep.subr.bf16.mxu0 %v4237
      %4349 = vmatpush1.bf16.msra.mxu0 %v4236
      %4350 = vmatprep.subr.bf16.mxu0 %v4241
      %4351 = vmatpush1.bf16.msra.mxu0 %v4240
      %4352 = vmatprep.subr.bf16.mxu0 %v4245
      %4353 = vmatpush1.bf16.msra.mxu0 %v4244
      %4354 = vmatprep.subr.bf16.mxu0 %v4249
      %4355 = vmatpush1.bf16.msra.mxu0 %v4248
      %4356 = vmatprep.subr.bf16.mxu0 %v4253
      %4357 = vmatpush1.bf16.msra.mxu0 %v4252
      %4358 = vmatprep.subr.bf16.mxu0 %v4257
      %4359 = vmatpush1.bf16.msra.mxu0 %v4256
      %4360 = vmatprep.subr.bf16.mxu0 %v4261
      %4361 = vmatpush1.bf16.msra.mxu0 %v4260
      %4362 = vmatprep.subr.bf16.mxu0 %v4265
      %4363 = vmatpush1.bf16.msra.mxu0 %v4264
      %4364 = vmatprep.mubr.bf16.mxu0 %v3911
      %4365 = vmatmul.mubr.bf16.gmra.mrb[0].mxu0 %v3910
      %v4366 = vpop.f32.mrb[0].mxu0
      %v4367 = vadd.f32 %v3995, %v4366
      %v4368 = vpop.f32.mrb[0].mxu0
      %v4369 = vadd.f32 %v3999, %v4368
      %v4370 = vpop.f32.mrb[0].mxu0
      %v4371 = vadd.f32 %v3995, %v4370
      %v4372 = vpop.f32.mrb[0].mxu0
      %v4373 = vadd.f32 %v3999, %v4372
      %4374 = vmatprep.mubr.bf16.mxu0 %v3913
      %4375 = vmatmul.mubr.bf16.gmra.mrb[0].mxu0 %v3912
      %v4376 = vpop.f32.mrb[0].mxu0
      %v4377 = vadd.f32 %v3995, %v4376
      %v4378 = vpop.f32.mrb[0].mxu0
      %v4379 = vadd.f32 %v3999, %v4378
      %v4380 = vpop.f32.mrb[0].mxu0
      %v4381 = vadd.f32 %v3995, %v4380
      %v4382 = vpop.f32.mrb[0].mxu0
      %v4383 = vadd.f32 %v3999, %v4382
      %4384 = vmatprep.mubr.bf16.mxu0 %v3915
      %4385 = vmatmul.mubr.bf16.gmra.mrb[0].mxu0 %v3914
      %v4386 = vpop.f32.mrb[0].mxu0
      %v4387 = vadd.f32 %v3995, %v4386
      %v4388 = vpop.f32.mrb[0].mxu0
      %v4389 = vadd.f32 %v3999, %v4388
      %v4390 = vpop.f32.mrb[0].mxu0
      %v4391 = vadd.f32 %v3995, %v4390
      %v4392 = vpop.f32.mrb[0].mxu0
      %v4393 = vadd.f32 %v3999, %v4392
      %4394 = vmatprep.mubr.bf16.mxu0 %v3917
      %4395 = vmatmul.mubr.bf16.gmra.mrb[0].mxu0 %v3916
      %v4396 = vpop.f32.mrb[0].mxu0
      %v4397 = vadd.f32 %v3995, %v4396
      %v4398 = vpop.f32.mrb[0].mxu0
      %v4399 = vadd.f32 %v3999, %v4398
      %v4400 = vpop.f32.mrb[0].mxu0
      %v4401 = vadd.f32 %v3995, %v4400
      %v4402 = vpop.f32.mrb[0].mxu0
      %v4403 = vadd.f32 %v3999, %v4402
      %4404 = vmatprep.mubr.bf16.mxu0 %v3919
      %4405 = vmatmul.mubr.bf16.gmra.mrb[0].mxu0 %v3918
      %v4406 = vpop.f32.mrb[0].mxu0
      %v4407 = vadd.f32 %v3995, %v4406
      %v4408 = vpop.f32.mrb[0].mxu0
      %v4409 = vadd.f32 %v3999, %v4408
      %v4410 = vpop.f32.mrb[0].mxu0
      %v4411 = vadd.f32 %v3995, %v4410
      %v4412 = vpop.f32.mrb[0].mxu0
      %v4413 = vadd.f32 %v3999, %v4412
      %4414 = vmatprep.mubr.bf16.mxu0 %v3921
      %4415 = vmatmul.mubr.bf16.gmra.mrb[0].mxu0 %v3920
      %v4416 = vpop.f32.mrb[0].mxu0
      %v4417 = vadd.f32 %v3995, %v4416
      %v4418 = vpop.f32.mrb[0].mxu0
      %v4419 = vadd.f32 %v3999, %v4418
      %v4420 = vpop.f32.mrb[0].mxu0
      %v4421 = vadd.f32 %v3995, %v4420
      %v4422 = vpop.f32.mrb[0].mxu0
      %v4423 = vadd.f32 %v3999, %v4422
      %4424 = vmatprep.mubr.bf16.mxu0 %v3923
      %4425 = vmatmul.mubr.bf16.gmra.mrb[0].mxu0 %v3922
      %v4426 = vpop.f32.mrb[0].mxu0
      %v4427 = vadd.f32 %v3995, %v4426
      %v4428 = vpop.f32.mrb[0].mxu0
      %v4429 = vadd.f32 %v3999, %v4428
      %v4430 = vpop.f32.mrb[0].mxu0
      %v4431 = vadd.f32 %v3995, %v4430
      %v4432 = vpop.f32.mrb[0].mxu0
      %v4433 = vadd.f32 %v3999, %v4432
      %4434 = vmatprep.mubr.bf16.mxu0 %v3925
      %4435 = vmatmul.mubr.bf16.gmra.mrb[0].mxu0 %v3924
      %v4436 = vpop.f32.mrb[0].mxu0
      %v4437 = vadd.f32 %v3995, %v4436
      %v4438 = vpop.f32.mrb[0].mxu0
      %v4439 = vadd.f32 %v3999, %v4438
      %v4440 = vpop.f32.mrb[0].mxu0
      %v4441 = vadd.f32 %v3995, %v4440
      %v4442 = vpop.f32.mrb[0].mxu0
      %v4443 = vadd.f32 %v3999, %v4442
      %4444 = vdwg.mxu0
      %4445 = vmatprep.subr.bf16.mxu0 %v4207
      %4446 = vmatpush1.bf16.msra.mxu0 %v4206
      %4447 = vmatprep.subr.bf16.mxu0 %v4211
      %4448 = vmatpush1.bf16.msra.mxu0 %v4210
      %4449 = vmatprep.subr.bf16.mxu0 %v4215
      %4450 = vmatpush1.bf16.msra.mxu0 %v4214
      %4451 = vmatprep.subr.bf16.mxu0 %v4219
      %4452 = vmatpush1.bf16.msra.mxu0 %v4218
      %4453 = vmatprep.subr.bf16.mxu0 %v4223
      %4454 = vmatpush1.bf16.msra.mxu0 %v4222
      %4455 = vmatprep.subr.bf16.mxu0 %v4227
      %4456 = vmatpush1.bf16.msra.mxu0 %v4226
      %4457 = vmatprep.subr.bf16.mxu0 %v4231
      %4458 = vmatpush1.bf16.msra.mxu0 %v4230
      %4459 = vmatprep.subr.bf16.mxu0 %v4235
      %4460 = vmatpush1.bf16.msra.mxu0 %v4234
      %4461 = vmatprep.subr.bf16.mxu0 %v4239
      %4462 = vmatpush1.bf16.msra.mxu0 %v4238
      %4463 = vmatprep.subr.bf16.mxu0 %v4243
      %4464 = vmatpush1.bf16.msra.mxu0 %v4242
      %4465 = vmatprep.subr.bf16.mxu0 %v4247
      %4466 = vmatpush1.bf16.msra.mxu0 %v4246
      %4467 = vmatprep.subr.bf16.mxu0 %v4251
      %4468 = vmatpush1.bf16.msra.mxu0 %v4250
      %4469 = vmatprep.subr.bf16.mxu0 %v4255
      %4470 = vmatpush1.bf16.msra.mxu0 %v4254
      %4471 = vmatprep.subr.bf16.mxu0 %v4259
      %4472 = vmatpush1.bf16.msra.mxu0 %v4258
      %4473 = vmatprep.subr.bf16.mxu0 %v4263
      %4474 = vmatpush1.bf16.msra.mxu0 %v4262
      %4475 = vmatprep.subr.bf16.mxu0 %v4267
      %4476 = vmatpush1.bf16.msra.mxu0 %v4266
      %4477 = vmatprep.mubr.bf16.mxu0 %v3911
      %4478 = vmatmul.mubr.bf16.gmra.mrb[0].mxu0 %v3910
      %v4479 = vpop.f32.mrb[0].mxu0
      %v4480 = vadd.f32 %v4003, %v4479
      %v4481 = vpop.f32.mrb[0].mxu0
      %v4482 = vadd.f32 %v4007, %v4481
      %v4483 = vpop.f32.mrb[0].mxu0
      %v4484 = vadd.f32 %v4003, %v4483
      %v4485 = vpop.f32.mrb[0].mxu0
      %v4486 = vadd.f32 %v4007, %v4485
      %4487 = vmatprep.mubr.bf16.mxu0 %v3913
      %4488 = vmatmul.mubr.bf16.gmra.mrb[0].mxu0 %v3912
      %v4489 = vpop.f32.mrb[0].mxu0
      %v4490 = vadd.f32 %v4003, %v4489
      %v4491 = vpop.f32.mrb[0].mxu0
      %v4492 = vadd.f32 %v4007, %v4491
      %v4493 = vpop.f32.mrb[0].mxu0
      %v4494 = vadd.f32 %v4003, %v4493
      %v4495 = vpop.f32.mrb[0].mxu0
      %v4496 = vadd.f32 %v4007, %v4495
      %4497 = vmatprep.mubr.bf16.mxu0 %v3915
      %4498 = vmatmul.mubr.bf16.gmra.mrb[0].mxu0 %v3914
      %v4499 = vpop.f32.mrb[0].mxu0
      %v4500 = vadd.f32 %v4003, %v4499
      %v4501 = vpop.f32.mrb[0].mxu0
      %v4502 = vadd.f32 %v4007, %v4501
      %v4503 = vpop.f32.mrb[0].mxu0
      %v4504 = vadd.f32 %v4003, %v4503
      %v4505 = vpop.f32.mrb[0].mxu0
      %v4506 = vadd.f32 %v4007, %v4505
      %4507 = vmatprep.mubr.bf16.mxu0 %v3917
      %4508 = vmatmul.mubr.bf16.gmra.mrb[0].mxu0 %v3916
      %v4509 = vpop.f32.mrb[0].mxu0
      %v4510 = vadd.f32 %v4003, %v4509
      %v4511 = vpop.f32.mrb[0].mxu0
      %v4512 = vadd.f32 %v4007, %v4511
      %v4513 = vpop.f32.mrb[0].mxu0
      %v4514 = vadd.f32 %v4003, %v4513
      %v4515 = vpop.f32.mrb[0].mxu0
      %v4516 = vadd.f32 %v4007, %v4515
      %4517 = vmatprep.mubr.bf16.mxu0 %v3919
      %4518 = vmatmul.mubr.bf16.gmra.mrb[0].mxu0 %v3918
      %v4519 = vpop.f32.mrb[0].mxu0
      %v4520 = vadd.f32 %v4003, %v4519
      %v4521 = vpop.f32.mrb[0].mxu0
      %v4522 = vadd.f32 %v4007, %v4521
      %v4523 = vpop.f32.mrb[0].mxu0
      %v4524 = vadd.f32 %v4003, %v4523
      %v4525 = vpop.f32.mrb[0].mxu0
      %v4526 = vadd.f32 %v4007, %v4525
      %4527 = vmatprep.mubr.bf16.mxu0 %v3921
      %4528 = vmatmul.mubr.bf16.gmra.mrb[0].mxu0 %v3920
      %v4529 = vpop.f32.mrb[0].mxu0
      %v4530 = vadd.f32 %v4003, %v4529
      %v4531 = vpop.f32.mrb[0].mxu0
      %v4532 = vadd.f32 %v4007, %v4531
      %v4533 = vpop.f32.mrb[0].mxu0
      %v4534 = vadd.f32 %v4003, %v4533
      %v4535 = vpop.f32.mrb[0].mxu0
      %v4536 = vadd.f32 %v4007, %v4535
      %4537 = vmatprep.mubr.bf16.mxu0 %v3923
      %4538 = vmatmul.mubr.bf16.gmra.mrb[0].mxu0 %v3922
      %v4539 = vpop.f32.mrb[0].mxu0
      %v4540 = vadd.f32 %v4003, %v4539
      %v4541 = vpop.f32.mrb[0].mxu0
      %v4542 = vadd.f32 %v4007, %v4541
      %v4543 = vpop.f32.mrb[0].mxu0
      %v4544 = vadd.f32 %v4003, %v4543
      %v4545 = vpop.f32.mrb[0].mxu0
      %v4546 = vadd.f32 %v4007, %v4545
      %4547 = vmatprep.mubr.bf16.mxu0 %v3925
      %4548 = vmatmul.mubr.bf16.gmra.mrb[0].mxu0 %v3924
      %v4549 = vpop.f32.mrb[0].mxu0
      %v4550 = vadd.f32 %v4003, %v4549
      %v4551 = vpop.f32.mrb[0].mxu0
      %v4552 = vadd.f32 %v4007, %v4551
      %v4553 = vpop.f32.mrb[0].mxu0
      %v4554 = vadd.f32 %v4003, %v4553
      %v4555 = vpop.f32.mrb[0].mxu0
      %v4556 = vadd.f32 %v4007, %v4555
      %4557 = vdwg.mxu0
      %v4558 = vmax.f32 %v4367, 0.0
      %v4559 = vmax.f32 %v4369, 0.0
      %v4560 = vmax.f32 %v4480, 0.0
      %v4561 = vmax.f32 %v4482, 0.0
      %v4562 = vmax.f32 %v4371, 0.0
      %v4563 = vmax.f32 %v4373, 0.0
      %v4564 = vmax.f32 %v4484, 0.0
      %v4565 = vmax.f32 %v4486, 0.0
      %v4566 = vmax.f32 %v4377, 0.0
      %v4567 = vmax.f32 %v4379, 0.0
      %v4568 = vmax.f32 %v4490, 0.0
      %v4569 = vmax.f32 %v4492, 0.0
      %v4570 = vmax.f32 %v4381, 0.0
      %v4571 = vmax.f32 %v4383, 0.0
      %v4572 = vmax.f32 %v4494, 0.0
      %v4573 = vmax.f32 %v4496, 0.0
      %v4574 = vmax.f32 %v4387, 0.0
      %v4575 = vmax.f32 %v4389, 0.0
      %v4576 = vmax.f32 %v4500, 0.0
      %v4577 = vmax.f32 %v4502, 0.0
      %v4578 = vmax.f32 %v4391, 0.0
      %v4579 = vmax.f32 %v4393, 0.0
      %v4580 = vmax.f32 %v4504, 0.0
      %v4581 = vmax.f32 %v4506, 0.0
      %v4582 = vmax.f32 %v4397, 0.0
      %v4583 = vmax.f32 %v4399, 0.0
      %v4584 = vmax.f32 %v4510, 0.0
      %v4585 = vmax.f32 %v4512, 0.0
      %v4586 = vmax.f32 %v4401, 0.0
      %v4587 = vmax.f32 %v4403, 0.0
      %v4588 = vmax.f32 %v4514, 0.0
      %v4589 = vmax.f32 %v4516, 0.0
      %v4590 = vmax.f32 %v4407, 0.0
      %v4591 = vmax.f32 %v4409, 0.0
      %v4592 = vmax.f32 %v4520, 0.0
      %v4593 = vmax.f32 %v4522, 0.0
      %v4594 = vmax.f32 %v4411, 0.0
      %v4595 = vmax.f32 %v4413, 0.0
      %v4596 = vmax.f32 %v4524, 0.0
      %v4597 = vmax.f32 %v4526, 0.0
      %v4598 = vmax.f32 %v4417, 0.0
      %v4599 = vmax.f32 %v4419, 0.0
      %v4600 = vmax.f32 %v4530, 0.0
      %v4601 = vmax.f32 %v4532, 0.0
      %v4602 = vmax.f32 %v4421, 0.0
      %v4603 = vmax.f32 %v4423, 0.0
      %v4604 = vmax.f32 %v4534, 0.0
      %v4605 = vmax.f32 %v4536, 0.0
      %v4606 = vmax.f32 %v4427, 0.0
      %v4607 = vmax.f32 %v4429, 0.0
      %v4608 = vmax.f32 %v4540, 0.0
      %v4609 = vmax.f32 %v4542, 0.0
      %v4610 = vmax.f32 %v4431, 0.0
      %v4611 = vmax.f32 %v4433, 0.0
      %v4612 = vmax.f32 %v4544, 0.0
      %v4613 = vmax.f32 %v4546, 0.0
      %v4614 = vmax.f32 %v4437, 0.0
      %v4615 = vmax.f32 %v4439, 0.0
      %v4616 = vmax.f32 %v4550, 0.0
      %v4617 = vmax.f32 %v4552, 0.0
      %v4618 = vmax.f32 %v4441, 0.0
      %v4619 = vmax.f32 %v4443, 0.0
      %v4620 = vmax.f32 %v4554, 0.0
      %v4621 = vmax.f32 %v4556, 0.0
      %v4622 = vpack.c.bf16 %v4562, %v4558
      %v4623 = vpack.c.bf16 %v4563, %v4559
      %v4624 = vpack.c.bf16 %v4564, %v4560
      %v4625 = vpack.c.bf16 %v4565, %v4561
      %v4626 = vpack.c.bf16 %v4570, %v4566
      %v4627 = vpack.c.bf16 %v4571, %v4567
      %v4628 = vpack.c.bf16 %v4572, %v4568
      %v4629 = vpack.c.bf16 %v4573, %v4569
      %v4630 = vpack.c.bf16 %v4578, %v4574
      %v4631 = vpack.c.bf16 %v4579, %v4575
      %v4632 = vpack.c.bf16 %v4580, %v4576
      %v4633 = vpack.c.bf16 %v4581, %v4577
      %v4634 = vpack.c.bf16 %v4586, %v4582
      %v4635 = vpack.c.bf16 %v4587, %v4583
      %v4636 = vpack.c.bf16 %v4588, %v4584
      %v4637 = vpack.c.bf16 %v4589, %v4585
      %v4638 = vpack.c.bf16 %v4594, %v4590
      %v4639 = vpack.c.bf16 %v4595, %v4591
      %v4640 = vpack.c.bf16 %v4596, %v4592
      %v4641 = vpack.c.bf16 %v4597, %v4593
      %v4642 = vpack.c.bf16 %v4602, %v4598
      %v4643 = vpack.c.bf16 %v4603, %v4599
      %v4644 = vpack.c.bf16 %v4604, %v4600
      %v4645 = vpack.c.bf16 %v4605, %v4601
      %v4646 = vpack.c.bf16 %v4610, %v4606
      %v4647 = vpack.c.bf16 %v4611, %v4607
      %v4648 = vpack.c.bf16 %v4612, %v4608
      %v4649 = vpack.c.bf16 %v4613, %v4609
      %v4650 = vpack.c.bf16 %v4618, %v4614
      %v4651 = vpack.c.bf16 %v4619, %v4615
      %v4652 = vpack.c.bf16 %v4620, %v4616
      %v4653 = vpack.c.bf16 %v4621, %v4617
      %v4686 = vunpack.c.l.b16 %v4622
      %v4687 = vunpack.c.l.b16 %v4623
      %v4688 = vunpack.c.l.b16 %v4624
      %v4689 = vunpack.c.l.b16 %v4625
      %v4690 = vunpack.c.h.b16 %v4622
      %v4691 = vunpack.c.h.b16 %v4623
      %v4692 = vunpack.c.h.b16 %v4624
      %v4693 = vunpack.c.h.b16 %v4625
      %v4694 = vunpack.c.l.b16 %v4626
      %v4695 = vunpack.c.l.b16 %v4627
      %v4696 = vunpack.c.l.b16 %v4628
      %v4697 = vunpack.c.l.b16 %v4629
      %v4698 = vunpack.c.h.b16 %v4626
      %v4699 = vunpack.c.h.b16 %v4627
      %v4700 = vunpack.c.h.b16 %v4628
      %v4701 = vunpack.c.h.b16 %v4629
      %v4702 = vunpack.c.l.b16 %v4630
      %v4703 = vunpack.c.l.b16 %v4631
      %v4704 = vunpack.c.l.b16 %v4632
      %v4705 = vunpack.c.l.b16 %v4633
      %v4706 = vunpack.c.h.b16 %v4630
      %v4707 = vunpack.c.h.b16 %v4631
      %v4708 = vunpack.c.h.b16 %v4632
      %v4709 = vunpack.c.h.b16 %v4633
      %v4710 = vunpack.c.l.b16 %v4634
      %v4711 = vunpack.c.l.b16 %v4635
      %v4712 = vunpack.c.l.b16 %v4636
      %v4713 = vunpack.c.l.b16 %v4637
      %v4714 = vunpack.c.h.b16 %v4634
      %v4715 = vunpack.c.h.b16 %v4635
      %v4716 = vunpack.c.h.b16 %v4636
      %v4717 = vunpack.c.h.b16 %v4637
      %v4718 = vunpack.c.l.b16 %v4638
      %v4719 = vunpack.c.l.b16 %v4639
      %v4720 = vunpack.c.l.b16 %v4640
      %v4721 = vunpack.c.l.b16 %v4641
      %v4722 = vunpack.c.h.b16 %v4638
      %v4723 = vunpack.c.h.b16 %v4639
      %v4724 = vunpack.c.h.b16 %v4640
      %v4725 = vunpack.c.h.b16 %v4641
      %v4726 = vunpack.c.l.b16 %v4642
      %v4727 = vunpack.c.l.b16 %v4643
      %v4728 = vunpack.c.l.b16 %v4644
      %v4729 = vunpack.c.l.b16 %v4645
      %v4730 = vunpack.c.h.b16 %v4642
      %v4731 = vunpack.c.h.b16 %v4643
      %v4732 = vunpack.c.h.b16 %v4644
      %v4733 = vunpack.c.h.b16 %v4645
      %v4734 = vunpack.c.l.b16 %v4646
      %v4735 = vunpack.c.l.b16 %v4647
      %v4736 = vunpack.c.l.b16 %v4648
      %v4737 = vunpack.c.l.b16 %v4649
      %v4738 = vunpack.c.h.b16 %v4646
      %v4739 = vunpack.c.h.b16 %v4647
      %v4740 = vunpack.c.h.b16 %v4648
      %v4741 = vunpack.c.h.b16 %v4649
      %v4742 = vunpack.c.l.b16 %v4650
      %v4743 = vunpack.c.l.b16 %v4651
      %v4744 = vunpack.c.l.b16 %v4652
      %v4745 = vunpack.c.l.b16 %v4653
      %v4746 = vunpack.c.h.b16 %v4650
      %v4747 = vunpack.c.h.b16 %v4651
      %v4748 = vunpack.c.h.b16 %v4652
      %v4749 = vunpack.c.h.b16 %v4653
      %v4750 = vpack.c.b16 %v4687, %v4686
      %v4751 = vpack.c.b16 %v4689, %v4688
      %v4752 = vpack.c.b16 %v4691, %v4690
      %v4753 = vpack.c.b16 %v4693, %v4692
      %v4754 = vpack.c.b16 %v4695, %v4694
      %v4755 = vpack.c.b16 %v4697, %v4696
      %v4756 = vpack.c.b16 %v4699, %v4698
      %v4757 = vpack.c.b16 %v4701, %v4700
      %v4758 = vpack.c.b16 %v4703, %v4702
      %v4759 = vpack.c.b16 %v4705, %v4704
      %v4760 = vpack.c.b16 %v4707, %v4706
      %v4761 = vpack.c.b16 %v4709, %v4708
      %v4762 = vpack.c.b16 %v4711, %v4710
      %v4763 = vpack.c.b16 %v4713, %v4712
      %v4764 = vpack.c.b16 %v4715, %v4714
      %v4765 = vpack.c.b16 %v4717, %v4716
      %v4766 = vpack.c.b16 %v4719, %v4718
      %v4767 = vpack.c.b16 %v4721, %v4720
      %v4768 = vpack.c.b16 %v4723, %v4722
      %v4769 = vpack.c.b16 %v4725, %v4724
      %v4770 = vpack.c.b16 %v4727, %v4726
      %v4771 = vpack.c.b16 %v4729, %v4728
      %v4772 = vpack.c.b16 %v4731, %v4730
      %v4773 = vpack.c.b16 %v4733, %v4732
      %v4774 = vpack.c.b16 %v4735, %v4734
      %v4775 = vpack.c.b16 %v4737, %v4736
      %v4776 = vpack.c.b16 %v4739, %v4738
      %v4777 = vpack.c.b16 %v4741, %v4740
      %v4778 = vpack.c.b16 %v4743, %v4742
      %v4779 = vpack.c.b16 %v4745, %v4744
      %v4780 = vpack.c.b16 %v4747, %v4746
      %v4781 = vpack.c.b16 %v4749, %v4748
      %4814 = vst [vmem:[%s302] sm:$0xff] %v4750
      %4815 = vst [vmem:[%s302 + $0x8] sm:$0xff] %v4751
      %4816 = vst [vmem:[%s302 + $0x10] sm:$0xff] %v4752
      %4817 = vst [vmem:[%s302 + $0x18] sm:$0xff] %v4753
      %4818 = vst [vmem:[%s302 + $0x20] sm:$0xff] %v4754
      %4819 = vst [vmem:[%s302 + $0x28] sm:$0xff] %v4755
      %4820 = vst [vmem:[%s302 + $0x30] sm:$0xff] %v4756
      %4821 = vst [vmem:[%s302 + $0x38] sm:$0xff] %v4757
      %4822 = vst [vmem:[%s302 + $0x40] sm:$0xff] %v4758
      %4823 = vst [vmem:[%s302 + $0x48] sm:$0xff] %v4759
      %4824 = vst [vmem:[%s302 + $0x50] sm:$0xff] %v4760
      %4825 = vst [vmem:[%s302 + $0x58] sm:$0xff] %v4761
      %4826 = vst [vmem:[%s302 + $0x60] sm:$0xff] %v4762
      %4827 = vst [vmem:[%s302 + $0x68] sm:$0xff] %v4763
      %4828 = vst [vmem:[%s302 + $0x70] sm:$0xff] %v4764
      %4829 = vst [vmem:[%s302 + $0x78] sm:$0xff] %v4765
      %4830 = vst [vmem:[%s302 + $0x80] sm:$0xff] %v4766
      %4831 = vst [vmem:[%s302 + $0x88] sm:$0xff] %v4767
      %4832 = vst [vmem:[%s302 + $0x90] sm:$0xff] %v4768
      %4833 = vst [vmem:[%s302 + $0x98] sm:$0xff] %v4769
      %4834 = vst [vmem:[%s302 + $0xa0] sm:$0xff] %v4770
      %4835 = vst [vmem:[%s302 + $0xa8] sm:$0xff] %v4771
      %4836 = vst [vmem:[%s302 + $0xb0] sm:$0xff] %v4772
      %4837 = vst [vmem:[%s302 + $0xb8] sm:$0xff] %v4773
      %4838 = vst [vmem:[%s302 + $0xc0] sm:$0xff] %v4774
      %4839 = vst [vmem:[%s302 + $0xc8] sm:$0xff] %v4775
      %4840 = vst [vmem:[%s302 + $0xd0] sm:$0xff] %v4776
      %4841 = vst [vmem:[%s302 + $0xd8] sm:$0xff] %v4777
      %4842 = vst [vmem:[%s302 + $0xe0] sm:$0xff] %v4778
      %4843 = vst [vmem:[%s302 + $0xe8] sm:$0xff] %v4779
      %4844 = vst [vmem:[%s302 + $0xf0] sm:$0xff] %v4780
      %4845 = vst [vmem:[%s302 + $0xf8] sm:$0xff] %v4781
      %s4846 = smul.u32 16, %s23
      %p4847 = scmp.lt.s32.totalorder %s22, 1
      %s4848 = scalar_select %p4847, %s22, 1
      %p4849 = scmp.lt.s32.totalorder %s4846, 31
      %s4850 = scalar_select %p4849, %s4846, 31
      %s4851 = smul.addr %s4850, 4
      %s4852 = smul.addr %s4848, 128
      %s4853 = sadd.s32 %s4851, %s4852
      %s4854 = smul.addr %s4853, 4
      %s4855 = scalar_lea.vmem %s7, %s4854
      // Predicated region
      $region57: #{run.2} parent=47 // pred_check
        %p4856 = pneg %p202
      $region58: #{run.2} parent=47 // pred_check_branch
        %4858 = sbr.rel (%p4856) target = $region60
      $region59: #{run.2} parent=47 // pred_region
        %s4859 = smul.u32 16, %s23
      $region60: #{run.2} parent=47 // pred_fallthru
        _
    $region48: #{run.2} parent=5 // pred_fallthru
      _
    %p4860 = scmp.le.s32.totalorder 2, %s13
    // Predicated region
    $region61: #{run.2} parent=5 // pred_check
      %p4861 = pneg %p4860
    $region62: #{run.2} parent=5 // pred_check_branch
      %4863 = sbr.rel (%p4861) target = $region64
    $region63: #{run.2} parent=5 // pred_region
      %s4864 = ssub.s32 %s13, 2
      // Predicated region
      $region65: #{run.2} parent=63 // pred_check
        %p4865 = pneg %p208
      $region66: #{run.2} parent=63 // pred_check_branch
        %4867 = sbr.rel (%p4865) target = $region68
      $region67: #{run.2} parent=63 // pred_region
        %s4868 = smul.u32 16, %s25
        %p4869 = scmp.lt.s32.totalorder %s24, 1
        %s4870 = scalar_select %p4869, %s24, 1
        %p4871 = scmp.lt.s32.totalorder %s4868, 31
        %s4872 = scalar_select %p4871, %s4868, 31
        %s4873 = smul.addr %s4872, 4
        %s4874 = smul.addr %s4870, 128
        %s4875 = sadd.s32 %s4873, %s4874
        %s4876 = smul.addr %s4875, 4
        %s4877 = scalar_lea.vmem %s7, %s4876
      $region68: #{run.2} parent=63 // pred_fallthru
        _
    $region64: #{run.2} parent=5 // pred_fallthru
      _
  $region6: #{run.2} parent=0 // loop_footer
    %s17 = sadd.s32 1, %s13
  $region7: #{run.2} parent=0 // loop_footer_branch
    %12 = sbr.rel target = $region3
  $region8: #{run.2} parent=0 // loop_exit
    _

// kernel: run.3
$region0: #{run.3}
  #allocation0 [shape = 'u32[]', space=smem, size = 0x4, offset = 0x4, fixed_abs, tag = 'smem constant byte address 0x4 - core index']
  #allocation1 [shape = 'u32[144,128]{1,0:T(1,128)}', space=vmem, size = 0x12000, scoped, tag = 'internal scratch']
  #allocation2 [shape = 'bf16[10,18,128]{2,1,0:T(8,128)(2,1)}', space=vmem, size = 0xf000, scoped, tag = 'scratch operand']
  #allocation3 [shape = 'bf16[128,1152]{1,0:T(16,128)(2,1)}', space=vmem, size = 0x48000, scoped, tag = 'scratch operand']
  %s0 = inlined_call_operand.vmem [shape: bf16[2,16,16,512], index: 0, kind: input, shape index: {}]
  %s1 = inlined_call_operand.vmem [shape: bf16[512,128], index: 1, kind: input, shape index: {}]
  %s2 = inlined_call_operand.vmem [shape: f32[1,128], index: 2, kind: input, shape index: {}]
  %s3 = inlined_call_operand.vmem [shape: bf16[1152,128], index: 3, kind: input, shape index: {}]
  %s4 = inlined_call_operand.vmem [shape: f32[1,128], index: 4, kind: input, shape index: {}]
  %s5 = inlined_call_operand.vmem [shape: bf16[128,512], index: 5, kind: input, shape index: {}]
  %s6 = inlined_call_operand.vmem [shape: f32[1,512], index: 6, kind: input, shape index: {}]
  %s7 = inlined_call_operand.hbm [shape: bf16[2,256,512], index: 7, kind: output, shape index: {}]
  %s8 = sld [smem:[#allocation0]]
  $region69: #{run.3} parent=0
    _
  %s10 = ssub.s32 1, %s8
  %s11 = scalar_select 0, %s10, %s8
  $region1: #{run.3} parent=0
    #allocation4 [shape = 'u8[262144]{0}', space=vmem, size = 0x40000, scoped, tag = 'output window, operand 0']
    #allocation5 [shape = 's32[2]{0}', space=sflag, size = 0x8, scoped, tag = 'scoped memory for run.3']
    %12 = vsyncpa [#allocation5], 0
    %s13 = scalar_lea.sflag [#allocation5], 1
    %14 = vsyncpa %s13, 0
    loop: start=0, step=1, limit=6
    $region2: #{run.3} parent=1 // loop_pre_header
      _
    $region3: #{run.3} parent=1 // loop_header
      %s16 = sphi 0, %s20
      %p17 = scmp.ge.s32.totalorder %s16, 6
      %s23 = sphi 0, %s35
      %s24 = sphi 0, %s31
      %s25 = sphi 0, %s23
      %s26 = sphi 0, %s24
      %s27 = sphi 0, %s25
      %s28 = sphi 0, %s26
      %s38 = sphi 0, %s40
      %s41 = sphi 0, %s38
      %s42 = sphi 0, %s41
      %s58 = sphi 0, %s42
      %s62 = sphi 0, %s62
      %s64 = sphi 0, %s62
      %s65 = sphi 0, %s64
      %s79 = sphi 0, %s65
      %s83 = sphi 0, %s83
      %s85 = sphi 0, %s83
      %s86 = sphi 0, %s85
      %s100 = sphi 0, %s86
      %s104 = sphi 0, %s104
      %s106 = sphi 0, %s104
      %s107 = sphi 0, %s106
      %s121 = sphi 0, %s107
      %s125 = sphi 0, %s125
      %s127 = sphi 0, %s125
      %s128 = sphi 0, %s127
      %s142 = sphi 0, %s128
      %s146 = sphi 0, %s146
      %s148 = sphi 0, %s146
      %s149 = sphi 0, %s148
      %s163 = sphi 0, %s149
      %s167 = sphi 0, %s167
      %s169 = sphi 0, %s167
      %s170 = sphi 0, %s169
      %s184 = sphi 0, %s170
      %s192 = sphi 0, %s194
      %s195 = sphi 0, %s192
      %s196 = sphi 0, %s195
      %s212 = sphi 0, %s196
    $region4: #{run.3} parent=1 // loop_header_branch
      %19 = sbr.rel (%p17) target = $region8
    $region5: #{run.3} parent=1 // loop_body
      %s21 = ssub.s32 %s16, 1
      %s22 = ssub.s32 %s16, 2
      %s29 = sadd.s32 1, %s24
      %p30 = scmp.ge.s32.totalorder %s29, 2
      %s31 = scalar_select %p30, 0, %s29
      %s32 = sadd.s32 1, %s23
      %s33 = scalar_select %p30, %s32, %s23
      %p34 = scmp.ge.s32.totalorder %s33, 2
      %s35 = scalar_select %p34, 0, %s33
      %s36 = ssub.s32 %s23, %s35
      %p37 = scmp.eq.s32.totalorder %s36, 0
      %s39 = sadd.s32 %s38, 1
      %s40 = scalar_select %p37, %s38, %s39
      %p43 = pneg %p37
      %p44 = scmp.eq.s32.totalorder %s16, 3
      %p45 = por %p43, %p44
      %p46 = scmp.ne.s32.totalorder %s38, %s41
      %p47 = scmp.eq.s32.totalorder %s16, 0
      %p48 = por %p46, %p47
      %p49 = scmp.ne.s32.totalorder %s38, %s41
      %p50 = scmp.eq.s32.totalorder %s21, 3
      %p51 = por %p49, %p50
      %p52 = scmp.ne.s32.totalorder %s41, %s42
      %p53 = scmp.eq.s32.totalorder %s21, 0
      %p54 = por %p52, %p53
      %p55 = scmp.ne.s32.totalorder %s41, %s42
      %p56 = scmp.eq.s32.totalorder %s22, 3
      %p57 = por %p55, %p56
      %p59 = scmp.ne.s32.totalorder %s42, %s58
      %p60 = scmp.eq.s32.totalorder %s22, 0
      %p61 = por %p59, %p60
      %s63 = sadd.s32 %s62, 1
      %p66 = scmp.eq.s32.totalorder %s16, 3
      %p67 = scmp.ne.s32.totalorder %s62, %s64
      %p68 = scmp.eq.s32.totalorder %s16, 0
      %p69 = por %p67, %p68
      %p70 = scmp.ne.s32.totalorder %s62, %s64
      %p71 = scmp.eq.s32.totalorder %s21, 3
      %p72 = por %p70, %p71
      %p73 = scmp.ne.s32.totalorder %s64, %s65
      %p74 = scmp.eq.s32.totalorder %s21, 0
      %p75 = por %p73, %p74
      %p76 = scmp.ne.s32.totalorder %s64, %s65
      %p77 = scmp.eq.s32.totalorder %s22, 3
      %p78 = por %p76, %p77
      %p80 = scmp.ne.s32.totalorder %s65, %s79
      %p81 = scmp.eq.s32.totalorder %s22, 0
      %p82 = por %p80, %p81
      %s84 = sadd.s32 %s83, 1
      %p87 = scmp.eq.s32.totalorder %s16, 3
      %p88 = scmp.ne.s32.totalorder %s83, %s85
      %p89 = scmp.eq.s32.totalorder %s16, 0
      %p90 = por %p88, %p89
      %p91 = scmp.ne.s32.totalorder %s83, %s85
      %p92 = scmp.eq.s32.totalorder %s21, 3
      %p93 = por %p91, %p92
      %p94 = scmp.ne.s32.totalorder %s85, %s86
      %p95 = scmp.eq.s32.totalorder %s21, 0
      %p96 = por %p94, %p95
      %p97 = scmp.ne.s32.totalorder %s85, %s86
      %p98 = scmp.eq.s32.totalorder %s22, 3
      %p99 = por %p97, %p98
      %p101 = scmp.ne.s32.totalorder %s86, %s100
      %p102 = scmp.eq.s32.totalorder %s22, 0
      %p103 = por %p101, %p102
      %s105 = sadd.s32 %s104, 1
      %p108 = scmp.eq.s32.totalorder %s16, 3
      %p109 = scmp.ne.s32.totalorder %s104, %s106
      %p110 = scmp.eq.s32.totalorder %s16, 0
      %p111 = por %p109, %p110
      %p112 = scmp.ne.s32.totalorder %s104, %s106
      %p113 = scmp.eq.s32.totalorder %s21, 3
      %p114 = por %p112, %p113
      %p115 = scmp.ne.s32.totalorder %s106, %s107
      %p116 = scmp.eq.s32.totalorder %s21, 0
      %p117 = por %p115, %p116
      %p118 = scmp.ne.s32.totalorder %s106, %s107
      %p119 = scmp.eq.s32.totalorder %s22, 3
      %p120 = por %p118, %p119
      %p122 = scmp.ne.s32.totalorder %s107, %s121
      %p123 = scmp.eq.s32.totalorder %s22, 0
      %p124 = por %p122, %p123
      %s126 = sadd.s32 %s125, 1
      %p129 = scmp.eq.s32.totalorder %s16, 3
      %p130 = scmp.ne.s32.totalorder %s125, %s127
      %p131 = scmp.eq.s32.totalorder %s16, 0
      %p132 = por %p130, %p131
      %p133 = scmp.ne.s32.totalorder %s125, %s127
      %p134 = scmp.eq.s32.totalorder %s21, 3
      %p135 = por %p133, %p134
      %p136 = scmp.ne.s32.totalorder %s127, %s128
      %p137 = scmp.eq.s32.totalorder %s21, 0
      %p138 = por %p136, %p137
      %p139 = scmp.ne.s32.totalorder %s127, %s128
      %p140 = scmp.eq.s32.totalorder %s22, 3
      %p141 = por %p139, %p140
      %p143 = scmp.ne.s32.totalorder %s128, %s142
      %p144 = scmp.eq.s32.totalorder %s22, 0
      %p145 = por %p143, %p144
      %s147 = sadd.s32 %s146, 1
      %p150 = scmp.eq.s32.totalorder %s16, 3
      %p151 = scmp.ne.s32.totalorder %s146, %s148
      %p152 = scmp.eq.s32.totalorder %s16, 0
      %p153 = por %p151, %p152
      %p154 = scmp.ne.s32.totalorder %s146, %s148
      %p155 = scmp.eq.s32.totalorder %s21, 3
      %p156 = por %p154, %p155
      %p157 = scmp.ne.s32.totalorder %s148, %s149
      %p158 = scmp.eq.s32.totalorder %s21, 0
      %p159 = por %p157, %p158
      %p160 = scmp.ne.s32.totalorder %s148, %s149
      %p161 = scmp.eq.s32.totalorder %s22, 3
      %p162 = por %p160, %p161
      %p164 = scmp.ne.s32.totalorder %s149, %s163
      %p165 = scmp.eq.s32.totalorder %s22, 0
      %p166 = por %p164, %p165
      %s168 = sadd.s32 %s167, 1
      %p171 = scmp.eq.s32.totalorder %s16, 3
      %p172 = scmp.ne.s32.totalorder %s167, %s169
      %p173 = scmp.eq.s32.totalorder %s16, 0
      %p174 = por %p172, %p173
      %p175 = scmp.ne.s32.totalorder %s167, %s169
      %p176 = scmp.eq.s32.totalorder %s21, 3
      %p177 = por %p175, %p176
      %p178 = scmp.ne.s32.totalorder %s169, %s170
      %p179 = scmp.eq.s32.totalorder %s21, 0
      %p180 = por %p178, %p179
      %p181 = scmp.ne.s32.totalorder %s169, %s170
      %p182 = scmp.eq.s32.totalorder %s22, 3
      %p183 = por %p181, %p182
      %p185 = scmp.ne.s32.totalorder %s170, %s184
      %p186 = scmp.eq.s32.totalorder %s22, 0
      %p187 = por %p185, %p186
      %s188 = ssub.s32 %s23, %s35
      %s189 = ssub.s32 %s24, %s31
      %s190 = sor.u32 %s188, %s189
      %p191 = scmp.eq.s32.totalorder %s190, 0
      %s193 = sadd.s32 %s192, 1
      %s194 = scalar_select %p191, %s192, %s193
      %p197 = pneg %p191
      %p198 = scmp.eq.s32.totalorder %s16, 3
      %p199 = por %p197, %p198
      %p200 = scmp.ne.s32.totalorder %s192, %s195
      %p201 = scmp.eq.s32.totalorder %s16, 0
      %p202 = por %p200, %p201
      %p203 = scmp.ne.s32.totalorder %s192, %s195
      %p204 = scmp.eq.s32.totalorder %s21, 3
      %p205 = por %p203, %p204
      %p206 = scmp.ne.s32.totalorder %s195, %s196
      %p207 = scmp.eq.s32.totalorder %s21, 0
      %p208 = por %p206, %p207
      %p209 = scmp.ne.s32.totalorder %s195, %s196
      %p210 = scmp.eq.s32.totalorder %s22, 3
      %p211 = por %p209, %p210
      %p213 = scmp.ne.s32.totalorder %s196, %s212
      %p214 = scmp.eq.s32.totalorder %s22, 0
      %p215 = por %p213, %p214
      %p216 = scmp.le.s32.totalorder 1, %s16
      %p217 = scmp.lt.s32.totalorder %s16, 5
      %p218 = pnand %p216, %p217
      %p219 = pneg %p218
      // Predicated region
      $region9: #{run.3} parent=5 // pred_check
        _
      $region10: #{run.3} parent=5 // pred_check_branch
        %221 = sbr.rel (%p218) target = $region12
      $region11: #{run.3} parent=5 // pred_region
        %s222 = ssub.s32 %s16, 1
        // Predicated region
        $region13: #{run.3} parent=11 // pred_check
          %p223 = pneg %p75
        $region14: #{run.3} parent=11 // pred_check_branch
          %225 = sbr.rel (%p223) target = $region16
        $region15: #{run.3} parent=11 // pred_region
          _
        $region16: #{run.3} parent=11 // pred_fallthru
          _
        // Predicated region
        $region17: #{run.3} parent=11 // pred_check
          %p226 = pneg %p96
        $region18: #{run.3} parent=11 // pred_check_branch
          %228 = sbr.rel (%p226) target = $region20
        $region19: #{run.3} parent=11 // pred_region
          _
        $region20: #{run.3} parent=11 // pred_fallthru
          _
        // Predicated region
        $region21: #{run.3} parent=11 // pred_check
          %p229 = pneg %p117
        $region22: #{run.3} parent=11 // pred_check_branch
          %231 = sbr.rel (%p229) target = $region24
        $region23: #{run.3} parent=11 // pred_region
          _
        $region24: #{run.3} parent=11 // pred_fallthru
          _
        // Predicated region
        $region25: #{run.3} parent=11 // pred_check
          %p232 = pneg %p138
        $region26: #{run.3} parent=11 // pred_check_branch
          %234 = sbr.rel (%p232) target = $region28
        $region27: #{run.3} parent=11 // pred_region
          _
        $region28: #{run.3} parent=11 // pred_fallthru
          _
        // Predicated region
        $region29: #{run.3} parent=11 // pred_check
          %p235 = pneg %p159
        $region30: #{run.3} parent=11 // pred_check_branch
          %237 = sbr.rel (%p235) target = $region32
        $region31: #{run.3} parent=11 // pred_region
          _
        $region32: #{run.3} parent=11 // pred_fallthru
          _
        // Predicated region
        $region33: #{run.3} parent=11 // pred_check
          %p238 = pneg %p180
        $region34: #{run.3} parent=11 // pred_check_branch
          %240 = sbr.rel (%p238) target = $region36
        $region35: #{run.3} parent=11 // pred_region
          _
        $region36: #{run.3} parent=11 // pred_fallthru
          _
      $region12: #{run.3} parent=5 // pred_fallthru
        _
      %p241 = scmp.lt.s32.totalorder %s16, 4
      // Predicated region
      $region37: #{run.3} parent=5 // pred_check
        %p242 = pneg %p241
      $region38: #{run.3} parent=5 // pred_check_branch
        %244 = sbr.rel (%p242) target = $region40
      $region39: #{run.3} parent=5 // pred_region
        // Predicated region
        $region41: #{run.3} parent=39 // pred_check
          %p245 = pneg %p48
        $region42: #{run.3} parent=39 // pred_check_branch
          %247 = sbr.rel (%p245) target = $region44
        $region43: #{run.3} parent=39 // pred_region
          %p248 = scmp.lt.s32.totalorder %s23, 1
          %s249 = scalar_select %p248, %s23, 1
          %s250 = smul.addr %s249, 128
          %s251 = smul.addr %s250, 4
          %s252 = scalar_lea.vmem %s0, %s251
        $region44: #{run.3} parent=39 // pred_fallthru
          _
      $region40: #{run.3} parent=5 // pred_fallthru
        _
      %p253 = scmp.le.s32.totalorder 1, %s16
      %p254 = scmp.lt.s32.totalorder %s16, 5
      %p255 = pnand %p253, %p254
      %p256 = pneg %p255
      // Predicated region
      $region45: #{run.3} parent=5 // pred_check
        _
      $region46: #{run.3} parent=5 // pred_check_branch
        %258 = sbr.rel (%p255) target = $region48
      $region47: #{run.3} parent=5 // pred_region
        %s259 = ssub.s32 %s16, 1
        %p260 = scmp.lt.s32.totalorder %s25, 1
        %s261 = scalar_select %p260, %s25, 1
        %s262 = smul.addr %s261, 128
        %s263 = smul.addr %s262, 4
        %s264 = scalar_lea.vmem %s0, %s263
        %p265 = pneg %p54
        %p266 = pneg %p51
        %p267 = pneg %p75
        %p268 = pneg %p72
        %p269 = pneg %p96
        %p270 = pneg %p93
        %p271 = pneg %p117
        %p272 = pneg %p114
        %p273 = pneg %p138
        %p274 = pneg %p135
        %p275 = pneg %p159
        %p276 = pneg %p156
        %p277 = pneg %p180
        %p278 = pneg %p177
        %p279 = pneg %p208
        %p280 = pneg %p205
        %s281 = sand.u32 %s195, 1
        %s282 = scalar_lea.sflag [#allocation5], %s281
        %s283 = sand.u32 %s195, 1
        %s284 = smul.addr %s283, 256
        %s285 = scalar_lea.vmem [#allocation4], %s284
        %p286 = scmp.lt.s32.totalorder %s25, 1
        %s287 = scalar_select %p286, %s25, 1
        %s288 = smul.addr %s287, 128
        %s289 = smul.addr %s288, 4
        %s290 = scalar_lea.vmem %s0, %s289
        %s291 = smul.u32 16, %s26
        %s293 = smul.u32 %s26, 8
        %s294 = ssub.s32 %s293, 1
        %p295 = scmp.lt.s32.totalorder %s294, 6
        %s296 = scalar_select %p295, %s294, 6
        %p297 = scmp.gt.s32.totalorder %s296, 0
        %s298 = scalar_select %p297, %s296, 0
        %s299 = smul.u32 %s298, 8
        %s300 = smul.addr %s299, 4
        %s301 = scalar_lea.vmem %s290, %s300
        %v302 = vld [vmem:[%s301] sm:$0xff]
        %v303 = vld [vmem:[%s301 + $0x8] sm:$0xff]
        %v304 = vld [vmem:[%s301 + $0x10] sm:$0xff]
        %v305 = vld [vmem:[%s301 + $0x18] sm:$0xff]
        %v306 = vld [vmem:[%s301 + $0x20] sm:$0xff]
        %v307 = vld [vmem:[%s301 + $0x28] sm:$0xff]
        %v308 = vld [vmem:[%s301 + $0x30] sm:$0xff]
        %v309 = vld [vmem:[%s301 + $0x38] sm:$0xff]
        %v310 = vld [vmem:[%s301 + $0x40] sm:$0xff]
        %v311 = vld [vmem:[%s301 + $0x48] sm:$0xff]
        %v312 = vld [vmem:[%s301 + $0x50] sm:$0xff]
        %v313 = vld [vmem:[%s301 + $0x58] sm:$0xff]
        %v314 = vld [vmem:[%s301 + $0x60] sm:$0xff]
        %v315 = vld [vmem:[%s301 + $0x68] sm:$0xff]
        %v316 = vld [vmem:[%s301 + $0x70] sm:$0xff]
        %v317 = vld [vmem:[%s301 + $0x78] sm:$0xff]
        %v318 = vld [vmem:[%s301 + $0x80] sm:$0xff]
        %v319 = vld [vmem:[%s301 + $0x88] sm:$0xff]
        %v320 = vld [vmem:[%s301 + $0x90] sm:$0xff]
        %v321 = vld [vmem:[%s301 + $0x98] sm:$0xff]
        %v322 = vld [vmem:[%s301 + $0xa0] sm:$0xff]
        %v323 = vld [vmem:[%s301 + $0xa8] sm:$0xff]
        %v324 = vld [vmem:[%s301 + $0xb0] sm:$0xff]
        %v325 = vld [vmem:[%s301 + $0xb8] sm:$0xff]
        %v326 = vld [vmem:[%s301 + $0xc0] sm:$0xff]
        %v327 = vld [vmem:[%s301 + $0xc8] sm:$0xff]
        %v328 = vld [vmem:[%s301 + $0xd0] sm:$0xff]
        %v329 = vld [vmem:[%s301 + $0xd8] sm:$0xff]
        %v330 = vld [vmem:[%s301 + $0xe0] sm:$0xff]
        %v331 = vld [vmem:[%s301 + $0xe8] sm:$0xff]
        %v332 = vld [vmem:[%s301 + $0xf0] sm:$0xff]
        %v333 = vld [vmem:[%s301 + $0xf8] sm:$0xff]
        %v334 = vld [vmem:[%s301 + $0x100] sm:$0xff]
        %v335 = vld [vmem:[%s301 + $0x108] sm:$0xff]
        %v336 = vld [vmem:[%s301 + $0x110] sm:$0xff]
        %v337 = vld [vmem:[%s301 + $0x118] sm:$0xff]
        %v338 = vld [vmem:[%s301 + $0x120] sm:$0xff]
        %v339 = vld [vmem:[%s301 + $0x128] sm:$0xff]
        %v340 = vld [vmem:[%s301 + $0x130] sm:$0xff]
        %v341 = vld [vmem:[%s301 + $0x138] sm:$0xff]
        %v342 = vld [vmem:[%s1] sm:$0xf]
        %v343 = vld [vmem:[%s1 + $0x4] sm:$0xf]
        %v344 = vld [vmem:[%s1 + $0x8] sm:$0xf]
        %v345 = vld [vmem:[%s1 + $0xc] sm:$0xf]
        %v346 = vld [vmem:[%s1 + $0x10] sm:$0xf]
        %v347 = vld [vmem:[%s1 + $0x14] sm:$0xf]
        %v348 = vld [vmem:[%s1 + $0x18] sm:$0xf]
        %v349 = vld [vmem:[%s1 + $0x1c] sm:$0xf]
        %v350 = vld [vmem:[%s1 + $0x20] sm:$0xf]
        %v351 = vld [vmem:[%s1 + $0x24] sm:$0xf]
        %v352 = vld [vmem:[%s1 + $0x28] sm:$0xf]
        %v353 = vld [vmem:[%s1 + $0x2c] sm:$0xf]
        %v354 = vld [vmem:[%s1 + $0x30] sm:$0xf]
        %v355 = vld [vmem:[%s1 + $0x34] sm:$0xf]
        %v356 = vld [vmem:[%s1 + $0x38] sm:$0xf]
        %v357 = vld [vmem:[%s1 + $0x3c] sm:$0xf]
        %v358 = vld [vmem:[%s1 + $0x40] sm:$0xf]
        %v359 = vld [vmem:[%s1 + $0x44] sm:$0xf]
        %v360 = vld [vmem:[%s1 + $0x48] sm:$0xf]
        %v361 = vld [vmem:[%s1 + $0x4c] sm:$0xf]
        %v362 = vld [vmem:[%s1 + $0x50] sm:$0xf]
        %v363 = vld [vmem:[%s1 + $0x54] sm:$0xf]
        %v364 = vld [vmem:[%s1 + $0x58] sm:$0xf]
        %v365 = vld [vmem:[%s1 + $0x5c] sm:$0xf]
        %v366 = vld [vmem:[%s1 + $0x60] sm:$0xf]
        %v367 = vld [vmem:[%s1 + $0x64] sm:$0xf]
        %v368 = vld [vmem:[%s1 + $0x68] sm:$0xf]
        %v369 = vld [vmem:[%s1 + $0x6c] sm:$0xf]
        %v370 = vld [vmem:[%s1 + $0x70] sm:$0xf]
        %v371 = vld [vmem:[%s1 + $0x74] sm:$0xf]
        %v372 = vld [vmem:[%s1 + $0x78] sm:$0xf]
        %v373 = vld [vmem:[%s1 + $0x7c] sm:$0xf]
        %v374 = vld [vmem:[%s1 + $0x80] sm:$0xf]
        %v375 = vld [vmem:[%s1 + $0x84] sm:$0xf]
        %v376 = vld [vmem:[%s1 + $0x88] sm:$0xf]
        %v377 = vld [vmem:[%s1 + $0x8c] sm:$0xf]
        %v378 = vld [vmem:[%s1 + $0x90] sm:$0xf]
        %v379 = vld [vmem:[%s1 + $0x94] sm:$0xf]
        %v380 = vld [vmem:[%s1 + $0x98] sm:$0xf]
        %v381 = vld [vmem:[%s1 + $0x9c] sm:$0xf]
        %v382 = vld [vmem:[%s1 + $0xa0] sm:$0xf]
        %v383 = vld [vmem:[%s1 + $0xa4] sm:$0xf]
        %v384 = vld [vmem:[%s1 + $0xa8] sm:$0xf]
        %v385 = vld [vmem:[%s1 + $0xac] sm:$0xf]
        %v386 = vld [vmem:[%s1 + $0xb0] sm:$0xf]
        %v387 = vld [vmem:[%s1 + $0xb4] sm:$0xf]
        %v388 = vld [vmem:[%s1 + $0xb8] sm:$0xf]
        %v389 = vld [vmem:[%s1 + $0xbc] sm:$0xf]
        %v390 = vld [vmem:[%s1 + $0xc0] sm:$0xf]
        %v391 = vld [vmem:[%s1 + $0xc4] sm:$0xf]
        %v392 = vld [vmem:[%s1 + $0xc8] sm:$0xf]
        %v393 = vld [vmem:[%s1 + $0xcc] sm:$0xf]
        %v394 = vld [vmem:[%s1 + $0xd0] sm:$0xf]
        %v395 = vld [vmem:[%s1 + $0xd4] sm:$0xf]
        %v396 = vld [vmem:[%s1 + $0xd8] sm:$0xf]
        %v397 = vld [vmem:[%s1 + $0xdc] sm:$0xf]
        %v398 = vld [vmem:[%s1 + $0xe0] sm:$0xf]
        %v399 = vld [vmem:[%s1 + $0xe4] sm:$0xf]
        %v400 = vld [vmem:[%s1 + $0xe8] sm:$0xf]
        %v401 = vld [vmem:[%s1 + $0xec] sm:$0xf]
        %v402 = vld [vmem:[%s1 + $0xf0] sm:$0xf]
        %v403 = vld [vmem:[%s1 + $0xf4] sm:$0xf]
        %v404 = vld [vmem:[%s1 + $0xf8] sm:$0xf]
        %v405 = vld [vmem:[%s1 + $0xfc] sm:$0xf]
        %v406 = vld [vmem:[%s2] sm:$0x1]
        %v408 = vlaneseq
        %v409 = vshrl.u32 %v408, 7
        %v410 = vsub.s32 0, %v409
        %v411 = vrot.slane %v406, %v410
        %v453 = vunpack.c.l.b16 %v302
        %v454 = vunpack.c.h.b16 %v302
        %v455 = vunpack.c.l.b16 %v303
        %v456 = vunpack.c.h.b16 %v303
        %v457 = vunpack.c.l.b16 %v304
        %v458 = vunpack.c.h.b16 %v304
        %v459 = vunpack.c.l.b16 %v305
        %v460 = vunpack.c.h.b16 %v305
        %v461 = vunpack.c.l.b16 %v306
        %v462 = vunpack.c.h.b16 %v306
        %v463 = vunpack.c.l.b16 %v307
        %v464 = vunpack.c.h.b16 %v307
        %v465 = vunpack.c.l.b16 %v308
        %v466 = vunpack.c.h.b16 %v308
        %v467 = vunpack.c.l.b16 %v309
        %v468 = vunpack.c.h.b16 %v309
        %v469 = vunpack.c.l.b16 %v310
        %v470 = vunpack.c.h.b16 %v310
        %v471 = vunpack.c.l.b16 %v311
        %v472 = vunpack.c.h.b16 %v311
        %v473 = vunpack.c.l.b16 %v312
        %v474 = vunpack.c.h.b16 %v312
        %v475 = vunpack.c.l.b16 %v313
        %v476 = vunpack.c.h.b16 %v313
        %v477 = vunpack.c.l.b16 %v314
        %v478 = vunpack.c.h.b16 %v314
        %v479 = vunpack.c.l.b16 %v315
        %v480 = vunpack.c.h.b16 %v315
        %v481 = vunpack.c.l.b16 %v316
        %v482 = vunpack.c.h.b16 %v316
        %v483 = vunpack.c.l.b16 %v317
        %v484 = vunpack.c.h.b16 %v317
        %v485 = vunpack.c.l.b16 %v318
        %v486 = vunpack.c.h.b16 %v318
        %v487 = vunpack.c.l.b16 %v319
        %v488 = vunpack.c.h.b16 %v319
        %v489 = vunpack.c.l.b16 %v320
        %v490 = vunpack.c.h.b16 %v320
        %v491 = vunpack.c.l.b16 %v321
        %v492 = vunpack.c.h.b16 %v321
        %v493 = vunpack.c.l.b16 %v322
        %v494 = vunpack.c.h.b16 %v322
        %v495 = vunpack.c.l.b16 %v323
        %v496 = vunpack.c.h.b16 %v323
        %v497 = vunpack.c.l.b16 %v324
        %v498 = vunpack.c.h.b16 %v324
        %v499 = vunpack.c.l.b16 %v325
        %v500 = vunpack.c.h.b16 %v325
        %v501 = vunpack.c.l.b16 %v326
        %v502 = vunpack.c.h.b16 %v326
        %v503 = vunpack.c.l.b16 %v327
        %v504 = vunpack.c.h.b16 %v327
        %v505 = vunpack.c.l.b16 %v328
        %v506 = vunpack.c.h.b16 %v328
        %v507 = vunpack.c.l.b16 %v329
        %v508 = vunpack.c.h.b16 %v329
        %v509 = vunpack.c.l.b16 %v330
        %v510 = vunpack.c.h.b16 %v330
        %v511 = vunpack.c.l.b16 %v331
        %v512 = vunpack.c.h.b16 %v331
        %v513 = vunpack.c.l.b16 %v332
        %v514 = vunpack.c.h.b16 %v332
        %v515 = vunpack.c.l.b16 %v333
        %v516 = vunpack.c.h.b16 %v333
        %v517 = vunpack.c.l.b16 %v334
        %v518 = vunpack.c.h.b16 %v334
        %v519 = vunpack.c.l.b16 %v335
        %v520 = vunpack.c.h.b16 %v335
        %v521 = vunpack.c.l.b16 %v336
        %v522 = vunpack.c.h.b16 %v336
        %v523 = vunpack.c.l.b16 %v337
        %v524 = vunpack.c.h.b16 %v337
        %v525 = vunpack.c.l.b16 %v338
        %v526 = vunpack.c.h.b16 %v338
        %v527 = vunpack.c.l.b16 %v339
        %v528 = vunpack.c.h.b16 %v339
        %v529 = vunpack.c.l.b16 %v340
        %v530 = vunpack.c.h.b16 %v340
        %v531 = vunpack.c.l.b16 %v341
        %v532 = vunpack.c.h.b16 %v341
        %v533 = vpack.c.b16 %v457, %v453
        %v534 = vpack.c.b16 %v458, %v454
        %v535 = vpack.c.b16 %v459, %v455
        %v536 = vpack.c.b16 %v460, %v456
        %v537 = vpack.c.b16 %v465, %v461
        %v538 = vpack.c.b16 %v466, %v462
        %v539 = vpack.c.b16 %v467, %v463
        %v540 = vpack.c.b16 %v468, %v464
        %v541 = vpack.c.b16 %v473, %v469
        %v542 = vpack.c.b16 %v474, %v470
        %v543 = vpack.c.b16 %v475, %v471
        %v544 = vpack.c.b16 %v476, %v472
        %v545 = vpack.c.b16 %v481, %v477
        %v546 = vpack.c.b16 %v482, %v478
        %v547 = vpack.c.b16 %v483, %v479
        %v548 = vpack.c.b16 %v484, %v480
        %v549 = vpack.c.b16 %v489, %v485
        %v550 = vpack.c.b16 %v490, %v486
        %v551 = vpack.c.b16 %v491, %v487
        %v552 = vpack.c.b16 %v492, %v488
        %v553 = vpack.c.b16 %v497, %v493
        %v554 = vpack.c.b16 %v498, %v494
        %v555 = vpack.c.b16 %v499, %v495
        %v556 = vpack.c.b16 %v500, %v496
        %v557 = vpack.c.b16 %v505, %v501
        %v558 = vpack.c.b16 %v506, %v502
        %v559 = vpack.c.b16 %v507, %v503
        %v560 = vpack.c.b16 %v508, %v504
        %v561 = vpack.c.b16 %v513, %v509
        %v562 = vpack.c.b16 %v514, %v510
        %v563 = vpack.c.b16 %v515, %v511
        %v564 = vpack.c.b16 %v516, %v512
        %v565 = vpack.c.b16 %v521, %v517
        %v566 = vpack.c.b16 %v522, %v518
        %v567 = vpack.c.b16 %v523, %v519
        %v568 = vpack.c.b16 %v524, %v520
        %v569 = vpack.c.b16 %v529, %v525
        %v570 = vpack.c.b16 %v530, %v526
        %v571 = vpack.c.b16 %v531, %v527
        %v572 = vpack.c.b16 %v532, %v528
        %v677 = vunpack.c.l.b16 %v342
        %v678 = vunpack.c.l.b16 %v343
        %v679 = vunpack.c.l.b16 %v344
        %v680 = vunpack.c.l.b16 %v345
        %v681 = vunpack.c.l.b16 %v346
        %v682 = vunpack.c.l.b16 %v347
        %v683 = vunpack.c.l.b16 %v348
        %v684 = vunpack.c.l.b16 %v349
        %v685 = vunpack.c.l.b16 %v350
        %v686 = vunpack.c.l.b16 %v351
        %v687 = vunpack.c.l.b16 %v352
        %v688 = vunpack.c.l.b16 %v353
        %v689 = vunpack.c.l.b16 %v354
        %v690 = vunpack.c.l.b16 %v355
        %v691 = vunpack.c.l.b16 %v356
        %v692 = vunpack.c.l.b16 %v357
        %v693 = vunpack.c.l.b16 %v358
        %v694 = vunpack.c.l.b16 %v359
        %v695 = vunpack.c.l.b16 %v360
        %v696 = vunpack.c.l.b16 %v361
        %v697 = vunpack.c.l.b16 %v362
        %v698 = vunpack.c.l.b16 %v363
        %v699 = vunpack.c.l.b16 %v364
        %v700 = vunpack.c.l.b16 %v365
        %v701 = vunpack.c.l.b16 %v366
        %v702 = vunpack.c.l.b16 %v367
        %v703 = vunpack.c.l.b16 %v368
        %v704 = vunpack.c.l.b16 %v369
        %v705 = vunpack.c.l.b16 %v370
        %v706 = vunpack.c.l.b16 %v371
        %v707 = vunpack.c.l.b16 %v372
        %v708 = vunpack.c.l.b16 %v373
        %v709 = vunpack.c.l.b16 %v374
        %v710 = vunpack.c.l.b16 %v375
        %v711 = vunpack.c.l.b16 %v376
        %v712 = vunpack.c.l.b16 %v377
        %v713 = vunpack.c.l.b16 %v378
        %v714 = vunpack.c.l.b16 %v379
        %v715 = vunpack.c.l.b16 %v380
        %v716 = vunpack.c.l.b16 %v381
        %v717 = vunpack.c.l.b16 %v382
        %v718 = vunpack.c.l.b16 %v383
        %v719 = vunpack.c.l.b16 %v384
        %v720 = vunpack.c.l.b16 %v385
        %v721 = vunpack.c.l.b16 %v386
        %v722 = vunpack.c.l.b16 %v387
        %v723 = vunpack.c.l.b16 %v388
        %v724 = vunpack.c.l.b16 %v389
        %v725 = vunpack.c.l.b16 %v390
        %v726 = vunpack.c.l.b16 %v391
        %v727 = vunpack.c.l.b16 %v392
        %v728 = vunpack.c.l.b16 %v393
        %v729 = vunpack.c.l.b16 %v394
        %v730 = vunpack.c.l.b16 %v395
        %v731 = vunpack.c.l.b16 %v396
        %v732 = vunpack.c.l.b16 %v397
        %v733 = vunpack.c.l.b16 %v398
        %v734 = vunpack.c.l.b16 %v399
        %v735 = vunpack.c.l.b16 %v400
        %v736 = vunpack.c.l.b16 %v401
        %v737 = vunpack.c.l.b16 %v402
        %v738 = vunpack.c.l.b16 %v403
        %v739 = vunpack.c.l.b16 %v404
        %v740 = vunpack.c.l.b16 %v405
        %v741 = vpack.c.b16 %v678, %v677
        %v742 = vpack.c.b16 %v680, %v679
        %v743 = vpack.c.b16 %v682, %v681
        %v744 = vpack.c.b16 %v684, %v683
        %v745 = vpack.c.b16 %v686, %v685
        %v746 = vpack.c.b16 %v688, %v687
        %v747 = vpack.c.b16 %v690, %v689
        %v748 = vpack.c.b16 %v692, %v691
        %v749 = vpack.c.b16 %v694, %v693
        %v750 = vpack.c.b16 %v696, %v695
        %v751 = vpack.c.b16 %v698, %v697
        %v752 = vpack.c.b16 %v700, %v699
        %v753 = vpack.c.b16 %v702, %v701
        %v754 = vpack.c.b16 %v704, %v703
        %v755 = vpack.c.b16 %v706, %v705
        %v756 = vpack.c.b16 %v708, %v707
        %v757 = vpack.c.b16 %v710, %v709
        %v758 = vpack.c.b16 %v712, %v711
        %v759 = vpack.c.b16 %v714, %v713
        %v760 = vpack.c.b16 %v716, %v715
        %v761 = vpack.c.b16 %v718, %v717
        %v762 = vpack.c.b16 %v720, %v719
        %v763 = vpack.c.b16 %v722, %v721
        %v764 = vpack.c.b16 %v724, %v723
        %v765 = vpack.c.b16 %v726, %v725
        %v766 = vpack.c.b16 %v728, %v727
        %v767 = vpack.c.b16 %v730, %v729
        %v768 = vpack.c.b16 %v732, %v731
        %v769 = vpack.c.b16 %v734, %v733
        %v770 = vpack.c.b16 %v736, %v735
        %v771 = vpack.c.b16 %v738, %v737
        %v772 = vpack.c.b16 %v740, %v739
        %805 = vmatprep.subr.bf16.mxu0 0
        %806 = vmatpush1.bf16.msra.mxu0 %v741
        %807 = vmatprep.subr.bf16.mxu0 0
        %808 = vmatpush1.bf16.msra.mxu0 %v742
        %809 = vmatprep.subr.bf16.mxu0 0
        %810 = vmatpush1.bf16.msra.mxu0 %v743
        %811 = vmatprep.subr.bf16.mxu0 0
        %812 = vmatpush1.bf16.msra.mxu0 %v744
        %813 = vmatprep.subr.bf16.mxu0 0
        %814 = vmatpush1.bf16.msra.mxu0 %v745
        %815 = vmatprep.subr.bf16.mxu0 0
        %816 = vmatpush1.bf16.msra.mxu0 %v746
        %817 = vmatprep.subr.bf16.mxu0 0
        %818 = vmatpush1.bf16.msra.mxu0 %v747
        %819 = vmatprep.subr.bf16.mxu0 0
        %820 = vmatpush1.bf16.msra.mxu0 %v748
        %821 = vmatprep.subr.bf16.mxu0 0
        %822 = vmatpush1.bf16.msra.mxu0 %v749
        %823 = vmatprep.subr.bf16.mxu0 0
        %824 = vmatpush1.bf16.msra.mxu0 %v750
        %825 = vmatprep.subr.bf16.mxu0 0
        %826 = vmatpush1.bf16.msra.mxu0 %v751
        %827 = vmatprep.subr.bf16.mxu0 0
        %828 = vmatpush1.bf16.msra.mxu0 %v752
        %829 = vmatprep.subr.bf16.mxu0 0
        %830 = vmatpush1.bf16.msra.mxu0 %v753
        %831 = vmatprep.subr.bf16.mxu0 0
        %832 = vmatpush1.bf16.msra.mxu0 %v754
        %833 = vmatprep.subr.bf16.mxu0 0
        %834 = vmatpush1.bf16.msra.mxu0 %v755
        %835 = vmatprep.subr.bf16.mxu0 0
        %836 = vmatpush1.bf16.msra.mxu0 %v756
        %837 = vmatprep.mubr.bf16.mxu0 %v534
        %838 = vmatmul.mubr.bf16.gmra.mrb[0].mxu0 %v533
        %v839 = vpop.f32.mrb[0].mxu0
        %v840 = vadd.f32 %v411, %v839
        %v841 = vpop.f32.mrb[0].mxu0
        %v842 = vpop.f32.mrb[0].mxu0
        %v843 = vadd.f32 %v411, %v842
        %v844 = vpop.f32.mrb[0].mxu0
        %845 = vmatprep.mubr.bf16.mxu0 %v538
        %846 = vmatmul.mubr.bf16.gmra.mrb[0].mxu0 %v537
        %v847 = vpop.f32.mrb[0].mxu0
        %v848 = vadd.f32 %v411, %v847
        %v849 = vpop.f32.mrb[0].mxu0
        %v850 = vpop.f32.mrb[0].mxu0
        %v851 = vadd.f32 %v411, %v850
        %v852 = vpop.f32.mrb[0].mxu0
        %853 = vmatprep.mubr.bf16.mxu0 %v542
        %854 = vmatmul.mubr.bf16.gmra.mrb[0].mxu0 %v541
        %v855 = vpop.f32.mrb[0].mxu0
        %v856 = vadd.f32 %v411, %v855
        %v857 = vpop.f32.mrb[0].mxu0
        %v858 = vpop.f32.mrb[0].mxu0
        %v859 = vadd.f32 %v411, %v858
        %v860 = vpop.f32.mrb[0].mxu0
        %861 = vmatprep.mubr.bf16.mxu0 %v546
        %862 = vmatmul.mubr.bf16.gmra.mrb[0].mxu0 %v545
        %v863 = vpop.f32.mrb[0].mxu0
        %v864 = vadd.f32 %v411, %v863
        %v865 = vpop.f32.mrb[0].mxu0
        %v866 = vpop.f32.mrb[0].mxu0
        %v867 = vadd.f32 %v411, %v866
        %v868 = vpop.f32.mrb[0].mxu0
        %869 = vmatprep.mubr.bf16.mxu0 %v550
        %870 = vmatmul.mubr.bf16.gmra.mrb[0].mxu0 %v549
        %v871 = vpop.f32.mrb[0].mxu0
        %v872 = vadd.f32 %v411, %v871
        %v873 = vpop.f32.mrb[0].mxu0
        %v874 = vpop.f32.mrb[0].mxu0
        %v875 = vadd.f32 %v411, %v874
        %v876 = vpop.f32.mrb[0].mxu0
        %877 = vmatprep.mubr.bf16.mxu0 %v554
        %878 = vmatmul.mubr.bf16.gmra.mrb[0].mxu0 %v553
        %v879 = vpop.f32.mrb[0].mxu0
        %v880 = vadd.f32 %v411, %v879
        %v881 = vpop.f32.mrb[0].mxu0
        %v882 = vpop.f32.mrb[0].mxu0
        %v883 = vadd.f32 %v411, %v882
        %v884 = vpop.f32.mrb[0].mxu0
        %885 = vmatprep.mubr.bf16.mxu0 %v558
        %886 = vmatmul.mubr.bf16.gmra.mrb[0].mxu0 %v557
        %v887 = vpop.f32.mrb[0].mxu0
        %v888 = vadd.f32 %v411, %v887
        %v889 = vpop.f32.mrb[0].mxu0
        %v890 = vpop.f32.mrb[0].mxu0
        %v891 = vadd.f32 %v411, %v890
        %v892 = vpop.f32.mrb[0].mxu0
        %893 = vmatprep.mubr.bf16.mxu0 %v562
        %894 = vmatmul.mubr.bf16.gmra.mrb[0].mxu0 %v561
        %v895 = vpop.f32.mrb[0].mxu0
        %v896 = vadd.f32 %v411, %v895
        %v897 = vpop.f32.mrb[0].mxu0
        %v898 = vpop.f32.mrb[0].mxu0
        %v899 = vadd.f32 %v411, %v898
        %v900 = vpop.f32.mrb[0].mxu0
        %901 = vmatprep.mubr.bf16.mxu0 %v566
        %902 = vmatmul.mubr.bf16.gmra.mrb[0].mxu0 %v565
        %v903 = vpop.f32.mrb[0].mxu0
        %v904 = vadd.f32 %v411, %v903
        %v905 = vpop.f32.mrb[0].mxu0
        %v906 = vpop.f32.mrb[0].mxu0
        %v907 = vadd.f32 %v411, %v906
        %v908 = vpop.f32.mrb[0].mxu0
        %909 = vmatprep.mubr.bf16.mxu0 %v570
        %910 = vmatmul.mubr.bf16.gmra.mrb[0].mxu0 %v569
        %v911 = vpop.f32.mrb[0].mxu0
        %v912 = vadd.f32 %v411, %v911
        %v913 = vpop.f32.mrb[0].mxu0
        %v914 = vpop.f32.mrb[0].mxu0
        %v915 = vadd.f32 %v411, %v914
        %v916 = vpop.f32.mrb[0].mxu0
        %917 = vdwg.mxu0
        %918 = vmatprep.subr.bf16.mxu0 0
        %919 = vmatpush1.bf16.msra.mxu0 %v757
        %920 = vmatprep.subr.bf16.mxu0 0
        %921 = vmatpush1.bf16.msra.mxu0 %v758
        %922 = vmatprep.subr.bf16.mxu0 0
        %923 = vmatpush1.bf16.msra.mxu0 %v759
        %924 = vmatprep.subr.bf16.mxu0 0
        %925 = vmatpush1.bf16.msra.mxu0 %v760
        %926 = vmatprep.subr.bf16.mxu0 0
        %927 = vmatpush1.bf16.msra.mxu0 %v761
        %928 = vmatprep.subr.bf16.mxu0 0
        %929 = vmatpush1.bf16.msra.mxu0 %v762
        %930 = vmatprep.subr.bf16.mxu0 0
        %931 = vmatpush1.bf16.msra.mxu0 %v763
        %932 = vmatprep.subr.bf16.mxu0 0
        %933 = vmatpush1.bf16.msra.mxu0 %v764
        %934 = vmatprep.subr.bf16.mxu0 0
        %935 = vmatpush1.bf16.msra.mxu0 %v765
        %936 = vmatprep.subr.bf16.mxu0 0
        %937 = vmatpush1.bf16.msra.mxu0 %v766
        %938 = vmatprep.subr.bf16.mxu0 0
        %939 = vmatpush1.bf16.msra.mxu0 %v767
        %940 = vmatprep.subr.bf16.mxu0 0
        %941 = vmatpush1.bf16.msra.mxu0 %v768
        %942 = vmatprep.subr.bf16.mxu0 0
        %943 = vmatpush1.bf16.msra.mxu0 %v769
        %944 = vmatprep.subr.bf16.mxu0 0
        %945 = vmatpush1.bf16.msra.mxu0 %v770
        %946 = vmatprep.subr.bf16.mxu0 0
        %947 = vmatpush1.bf16.msra.mxu0 %v771
        %948 = vmatprep.subr.bf16.mxu0 0
        %949 = vmatpush1.bf16.msra.mxu0 %v772
        %950 = vmatprep.mubr.bf16.mxu0 %v536
        %951 = vmatmul.mubr.bf16.gmra.mrb[0].mxu0 %v535
        %v952 = vpop.f32.mrb[0].mxu0
        %v953 = vadd.f32 %v840, %v952
        %v954 = vpop.f32.mrb[0].mxu0
        %v955 = vpop.f32.mrb[0].mxu0
        %v956 = vadd.f32 %v843, %v955
        %v957 = vpop.f32.mrb[0].mxu0
        %958 = vmatprep.mubr.bf16.mxu0 %v540
        %959 = vmatmul.mubr.bf16.gmra.mrb[0].mxu0 %v539
        %v960 = vpop.f32.mrb[0].mxu0
        %v961 = vadd.f32 %v848, %v960
        %v962 = vpop.f32.mrb[0].mxu0
        %v963 = vpop.f32.mrb[0].mxu0
        %v964 = vadd.f32 %v851, %v963
        %v965 = vpop.f32.mrb[0].mxu0
        %966 = vmatprep.mubr.bf16.mxu0 %v544
        %967 = vmatmul.mubr.bf16.gmra.mrb[0].mxu0 %v543
        %v968 = vpop.f32.mrb[0].mxu0
        %v969 = vadd.f32 %v856, %v968
        %v970 = vpop.f32.mrb[0].mxu0
        %v971 = vpop.f32.mrb[0].mxu0
        %v972 = vadd.f32 %v859, %v971
        %v973 = vpop.f32.mrb[0].mxu0
        %974 = vmatprep.mubr.bf16.mxu0 %v548
        %975 = vmatmul.mubr.bf16.gmra.mrb[0].mxu0 %v547
        %v976 = vpop.f32.mrb[0].mxu0
        %v977 = vadd.f32 %v864, %v976
        %v978 = vpop.f32.mrb[0].mxu0
        %v979 = vpop.f32.mrb[0].mxu0
        %v980 = vadd.f32 %v867, %v979
        %v981 = vpop.f32.mrb[0].mxu0
        %982 = vmatprep.mubr.bf16.mxu0 %v552
        %983 = vmatmul.mubr.bf16.gmra.mrb[0].mxu0 %v551
        %v984 = vpop.f32.mrb[0].mxu0
        %v985 = vadd.f32 %v872, %v984
        %v986 = vpop.f32.mrb[0].mxu0
        %v987 = vpop.f32.mrb[0].mxu0
        %v988 = vadd.f32 %v875, %v987
        %v989 = vpop.f32.mrb[0].mxu0
        %990 = vmatprep.mubr.bf16.mxu0 %v556
        %991 = vmatmul.mubr.bf16.gmra.mrb[0].mxu0 %v555
        %v992 = vpop.f32.mrb[0].mxu0
        %v993 = vadd.f32 %v880, %v992
        %v994 = vpop.f32.mrb[0].mxu0
        %v995 = vpop.f32.mrb[0].mxu0
        %v996 = vadd.f32 %v883, %v995
        %v997 = vpop.f32.mrb[0].mxu0
        %998 = vmatprep.mubr.bf16.mxu0 %v560
        %999 = vmatmul.mubr.bf16.gmra.mrb[0].mxu0 %v559
        %v1000 = vpop.f32.mrb[0].mxu0
        %v1001 = vadd.f32 %v888, %v1000
        %v1002 = vpop.f32.mrb[0].mxu0
        %v1003 = vpop.f32.mrb[0].mxu0
        %v1004 = vadd.f32 %v891, %v1003
        %v1005 = vpop.f32.mrb[0].mxu0
        %1006 = vmatprep.mubr.bf16.mxu0 %v564
        %1007 = vmatmul.mubr.bf16.gmra.mrb[0].mxu0 %v563
        %v1008 = vpop.f32.mrb[0].mxu0
        %v1009 = vadd.f32 %v896, %v1008
        %v1010 = vpop.f32.mrb[0].mxu0
        %v1011 = vpop.f32.mrb[0].mxu0
        %v1012 = vadd.f32 %v899, %v1011
        %v1013 = vpop.f32.mrb[0].mxu0
        %1014 = vmatprep.mubr.bf16.mxu0 %v568
        %1015 = vmatmul.mubr.bf16.gmra.mrb[0].mxu0 %v567
        %v1016 = vpop.f32.mrb[0].mxu0
        %v1017 = vadd.f32 %v904, %v1016
        %v1018 = vpop.f32.mrb[0].mxu0
        %v1019 = vpop.f32.mrb[0].mxu0
        %v1020 = vadd.f32 %v907, %v1019
        %v1021 = vpop.f32.mrb[0].mxu0
        %1022 = vmatprep.mubr.bf16.mxu0 %v572
        %1023 = vmatmul.mubr.bf16.gmra.mrb[0].mxu0 %v571
        %v1024 = vpop.f32.mrb[0].mxu0
        %v1025 = vadd.f32 %v912, %v1024
        %v1026 = vpop.f32.mrb[0].mxu0
        %v1027 = vpop.f32.mrb[0].mxu0
        %v1028 = vadd.f32 %v915, %v1027
        %v1029 = vpop.f32.mrb[0].mxu0
        %1030 = vdwg.mxu0
        %v1031 = vmax.f32 %v953, 0.0
        %v1032 = vmax.f32 %v956, 0.0
        %v1033 = vmax.f32 %v961, 0.0
        %v1034 = vmax.f32 %v964, 0.0
        %v1035 = vmax.f32 %v969, 0.0
        %v1036 = vmax.f32 %v972, 0.0
        %v1037 = vmax.f32 %v977, 0.0
        %v1038 = vmax.f32 %v980, 0.0
        %v1039 = vmax.f32 %v985, 0.0
        %v1040 = vmax.f32 %v988, 0.0
        %v1041 = vmax.f32 %v993, 0.0
        %v1042 = vmax.f32 %v996, 0.0
        %v1043 = vmax.f32 %v1001, 0.0
        %v1044 = vmax.f32 %v1004, 0.0
        %v1045 = vmax.f32 %v1009, 0.0
        %v1046 = vmax.f32 %v1012, 0.0
        %v1047 = vmax.f32 %v1017, 0.0
        %v1048 = vmax.f32 %v1020, 0.0
        %v1049 = vmax.f32 %v1025, 0.0
        %v1050 = vmax.f32 %v1028, 0.0
        %v1051 = vpack.c.bf16 %v1032, %v1031
        %v1052 = vpack.c.bf16 %v1034, %v1033
        %v1053 = vpack.c.bf16 %v1036, %v1035
        %v1054 = vpack.c.bf16 %v1038, %v1037
        %v1055 = vpack.c.bf16 %v1040, %v1039
        %v1056 = vpack.c.bf16 %v1042, %v1041
        %v1057 = vpack.c.bf16 %v1044, %v1043
        %v1058 = vpack.c.bf16 %v1046, %v1045
        %v1059 = vpack.c.bf16 %v1048, %v1047
        %v1060 = vpack.c.bf16 %v1050, %v1049
        %1061 = vst [vmem:[#allocation2] sm:$0xf] 0
        %1062 = vst [vmem:[#allocation2 + $0x4] sm:$0xf] 0
        %1063 = vst [vmem:[#allocation2 + $0x8] sm:$0x1] 0
        %1064 = vst [vmem:[#allocation2 + $0xc] sm:$0xf] 0
        %1065 = vst [vmem:[#allocation2 + $0x10] sm:$0xf] 0
        %1066 = vst [vmem:[#allocation2 + $0x14] sm:$0x1] 0
        %1067 = vst [vmem:[#allocation2 + $0x18] sm:$0xf] 0
        %1068 = vst [vmem:[#allocation2 + $0x1c] sm:$0xf] 0
        %1069 = vst [vmem:[#allocation2 + $0x20] sm:$0x1] 0
        %1070 = vst [vmem:[#allocation2 + $0x24] sm:$0xf] 0
        %1071 = vst [vmem:[#allocation2 + $0x28] sm:$0xf] 0
        %1072 = vst [vmem:[#allocation2 + $0x2c] sm:$0x1] 0
        %1073 = vst [vmem:[#allocation2 + $0x30] sm:$0xf] 0
        %1074 = vst [vmem:[#allocation2 + $0x34] sm:$0xf] 0
        %1075 = vst [vmem:[#allocation2 + $0x38] sm:$0x1] 0
        %1076 = vst [vmem:[#allocation2 + $0x3c] sm:$0xf] 0
        %1077 = vst [vmem:[#allocation2 + $0x40] sm:$0xf] 0
        %1078 = vst [vmem:[#allocation2 + $0x44] sm:$0x1] 0
        %1079 = vst [vmem:[#allocation2 + $0x48] sm:$0xf] 0
        %1080 = vst [vmem:[#allocation2 + $0x4c] sm:$0xf] 0
        %1081 = vst [vmem:[#allocation2 + $0x50] sm:$0x1] 0
        %1082 = vst [vmem:[#allocation2 + $0x54] sm:$0xf] 0
        %1083 = vst [vmem:[#allocation2 + $0x58] sm:$0xf] 0
        %1084 = vst [vmem:[#allocation2 + $0x5c] sm:$0x1] 0
        %1085 = vst [vmem:[#allocation2 + $0x60] sm:$0xf] 0
        %1086 = vst [vmem:[#allocation2 + $0x64] sm:$0xf] 0
        %1087 = vst [vmem:[#allocation2 + $0x68] sm:$0x1] 0
        %1088 = vst [vmem:[#allocation2 + $0x6c] sm:$0xf] 0
        %1089 = vst [vmem:[#allocation2 + $0x70] sm:$0xf] 0
        %1090 = vst [vmem:[#allocation2 + $0x74] sm:$0x1] 0
        %p1091 = scmp.eq.s32.totalorder %s26, 0
        // Predicated region
        $region49: #{run.3} parent=47 // pred_check
          %p1092 = pneg %p1091
        $region50: #{run.3} parent=47 // pred_check_branch
          %1094 = sbr.rel (%p1092) target = $region52
        $region51: #{run.3} parent=47 // pred_region
          %v1104 = vunpack.c.l.b16 %v1051
          %v1105 = vunpack.c.h.b16 %v1051
          %v1106 = vunpack.c.l.b16 %v1052
          %v1107 = vunpack.c.h.b16 %v1052
          %v1108 = vunpack.c.l.b16 %v1053
          %v1109 = vunpack.c.h.b16 %v1053
          %v1110 = vunpack.c.l.b16 %v1054
          %v1111 = vunpack.c.h.b16 %v1054
          %v1112 = vunpack.c.l.b16 %v1055
          %v1113 = vunpack.c.h.b16 %v1055
          %v1114 = vunpack.c.l.b16 %v1056
          %v1115 = vunpack.c.h.b16 %v1056
          %v1116 = vunpack.c.l.b16 %v1057
          %v1117 = vunpack.c.h.b16 %v1057
          %v1118 = vunpack.c.l.b16 %v1058
          %v1119 = vunpack.c.h.b16 %v1058
          %v1120 = vunpack.c.l.b16 %v1059
          %v1121 = vunpack.c.h.b16 %v1059
          %v1122 = vpack.c.b16 %v1104, %v1104
          %v1123 = vpack.c.b16 %v1105, %v1105
          %v1124 = vpack.c.b16 %v1106, %v1106
          %v1125 = vpack.c.b16 %v1107, %v1107
          %v1126 = vpack.c.b16 %v1108, %v1108
          %v1127 = vpack.c.b16 %v1109, %v1109
          %v1128 = vpack.c.b16 %v1110, %v1110
          %v1129 = vpack.c.b16 %v1111, %v1111
          %v1130 = vpack.c.b16 %v1112, %v1112
          %v1131 = vpack.c.b16 %v1113, %v1113
          %v1132 = vpack.c.b16 %v1114, %v1114
          %v1133 = vpack.c.b16 %v1115, %v1115
          %v1134 = vpack.c.b16 %v1116, %v1116
          %v1135 = vpack.c.b16 %v1117, %v1117
          %v1136 = vpack.c.b16 %v1118, %v1118
          %v1137 = vpack.c.b16 %v1119, %v1119
          %v1138 = vpack.c.b16 %v1120, %v1120
          %v1139 = vpack.c.b16 %v1121, %v1121
          %vm1140 = vsmask.f32 256
          %vm1141 = vsmask.f32 4368
          %vm1142 = vmor %vm1140, %vm1141
          %v1144 = vshrl.u32 %v1122, 16
          %v1146 = vrot.slane %v1144, 7
          %v1147 = vshll.u32 %v1122, 16
          %v1149 = vor.u32 %v1146, %v1147
          %v1150 = vrot.slane %v1146, 4
          %v1152 = vshrl.u32 %v1123, 16
          %v1154 = vrot.slane %v1152, 7
          %v1155 = vshll.u32 %v1123, 16
          %v1157 = vor.u32 %v1154, %v1155
          %v1158 = vsel %vm1142, %v1150, %v1157
          %v1159 = vrot.slane %v1154, 4
          %v1161 = vshrl.u32 %v1124, 16
          %v1163 = vrot.slane %v1161, 7
          %v1164 = vshll.u32 %v1124, 16
          %v1166 = vor.u32 %v1163, %v1164
          %v1167 = vrot.slane %v1163, 4
          %v1169 = vshrl.u32 %v1125, 16
          %v1171 = vrot.slane %v1169, 7
          %v1172 = vshll.u32 %v1125, 16
          %v1174 = vor.u32 %v1171, %v1172
          %v1175 = vsel %vm1142, %v1167, %v1174
          %v1176 = vrot.slane %v1171, 4
          %v1178 = vshrl.u32 %v1126, 16
          %v1180 = vrot.slane %v1178, 7
          %v1181 = vshll.u32 %v1126, 16
          %v1183 = vor.u32 %v1180, %v1181
          %v1184 = vrot.slane %v1180, 4
          %v1186 = vshrl.u32 %v1127, 16
          %v1188 = vrot.slane %v1186, 7
          %v1189 = vshll.u32 %v1127, 16
          %v1191 = vor.u32 %v1188, %v1189
          %v1192 = vsel %vm1142, %v1184, %v1191
          %v1193 = vrot.slane %v1188, 4
          %v1195 = vshrl.u32 %v1128, 16
          %v1197 = vrot.slane %v1195, 7
          %v1198 = vshll.u32 %v1128, 16
          %v1200 = vor.u32 %v1197, %v1198
          %v1201 = vrot.slane %v1197, 4
          %v1203 = vshrl.u32 %v1129, 16
          %v1205 = vrot.slane %v1203, 7
          %v1206 = vshll.u32 %v1129, 16
          %v1208 = vor.u32 %v1205, %v1206
          %v1209 = vsel %vm1142, %v1201, %v1208
          %v1210 = vrot.slane %v1205, 4
          %v1212 = vshrl.u32 %v1130, 16
          %v1214 = vrot.slane %v1212, 7
          %v1215 = vshll.u32 %v1130, 16
          %v1217 = vor.u32 %v1214, %v1215
          %v1218 = vrot.slane %v1214, 4
          %v1220 = vshrl.u32 %v1131, 16
          %v1222 = vrot.slane %v1220, 7
          %v1223 = vshll.u32 %v1131, 16
          %v1225 = vor.u32 %v1222, %v1223
          %v1226 = vsel %vm1142, %v1218, %v1225
          %v1227 = vrot.slane %v1222, 4
          %v1229 = vshrl.u32 %v1132, 16
          %v1231 = vrot.slane %v1229, 7
          %v1232 = vshll.u32 %v1132, 16
          %v1234 = vor.u32 %v1231, %v1232
          %v1235 = vrot.slane %v1231, 4
          %v1237 = vshrl.u32 %v1133, 16
          %v1239 = vrot.slane %v1237, 7
          %v1240 = vshll.u32 %v1133, 16
          %v1242 = vor.u32 %v1239, %v1240
          %v1243 = vsel %vm1142, %v1235, %v1242
          %v1244 = vrot.slane %v1239, 4
          %v1246 = vshrl.u32 %v1134, 16
          %v1248 = vrot.slane %v1246, 7
          %v1249 = vshll.u32 %v1134, 16
          %v1251 = vor.u32 %v1248, %v1249
          %v1252 = vrot.slane %v1248, 4
          %v1254 = vshrl.u32 %v1135, 16
          %v1256 = vrot.slane %v1254, 7
          %v1257 = vshll.u32 %v1135, 16
          %v1259 = vor.u32 %v1256, %v1257
          %v1260 = vsel %vm1142, %v1252, %v1259
          %v1261 = vrot.slane %v1256, 4
          %v1263 = vshrl.u32 %v1136, 16
          %v1265 = vrot.slane %v1263, 7
          %v1266 = vshll.u32 %v1136, 16
          %v1268 = vor.u32 %v1265, %v1266
          %v1269 = vrot.slane %v1265, 4
          %v1271 = vshrl.u32 %v1137, 16
          %v1273 = vrot.slane %v1271, 7
          %v1274 = vshll.u32 %v1137, 16
          %v1276 = vor.u32 %v1273, %v1274
          %v1277 = vsel %vm1142, %v1269, %v1276
          %v1278 = vrot.slane %v1273, 4
          %v1280 = vshrl.u32 %v1138, 16
          %v1282 = vrot.slane %v1280, 7
          %v1283 = vshll.u32 %v1138, 16
          %v1285 = vor.u32 %v1282, %v1283
          %v1286 = vrot.slane %v1282, 4
          %v1288 = vshrl.u32 %v1139, 16
          %v1290 = vrot.slane %v1288, 7
          %v1291 = vshll.u32 %v1139, 16
          %v1293 = vor.u32 %v1290, %v1291
          %v1294 = vsel %vm1142, %v1286, %v1293
          %v1295 = vrot.slane %v1290, 4
          %s1323 = scalar_lea.vmem [#allocation2], 12
          %vm1324 = vcmask 1043456
          %vm1325 = vsmask.f32 7938
          %vm1326 = vmand %vm1324, %vm1325
          %v1327 = vld [vmem:[%s1323] sm:$0xf]
          %v1328 = vsel %vm1326, %v1149, %v1327
          %1329 = vst [vmem:[%s1323] sm:$0xf] %v1328
          %1330 = vst [vmem:[%s1323 + $0x4] sm:$0xf] %v1158
          %vm1331 = vcmask 1040384
          %vm1332 = vmand %vm1331, %vm1140
          %v1333 = vld [vmem:[%s1323 + $0x8] sm:$0x1]
          %v1334 = vsel %vm1332, %v1159, %v1333
          %1335 = vst [vmem:[%s1323 + $0x8] sm:$0x1] %v1334
          %v1336 = vld [vmem:[%s1323 + $0xc] sm:$0xf]
          %v1337 = vsel %vm1326, %v1166, %v1336
          %1338 = vst [vmem:[%s1323 + $0xc] sm:$0xf] %v1337
          %1339 = vst [vmem:[%s1323 + $0x10] sm:$0xf] %v1175
          %v1340 = vld [vmem:[%s1323 + $0x14] sm:$0x1]
          %v1341 = vsel %vm1332, %v1176, %v1340
          %1342 = vst [vmem:[%s1323 + $0x14] sm:$0x1] %v1341
          %v1343 = vld [vmem:[%s1323 + $0x18] sm:$0xf]
          %v1344 = vsel %vm1326, %v1183, %v1343
          %1345 = vst [vmem:[%s1323 + $0x18] sm:$0xf] %v1344
          %1346 = vst [vmem:[%s1323 + $0x1c] sm:$0xf] %v1192
          %v1347 = vld [vmem:[%s1323 + $0x20] sm:$0x1]
          %v1348 = vsel %vm1332, %v1193, %v1347
          %1349 = vst [vmem:[%s1323 + $0x20] sm:$0x1] %v1348
          %v1350 = vld [vmem:[%s1323 + $0x24] sm:$0xf]
          %v1351 = vsel %vm1326, %v1200, %v1350
          %1352 = vst [vmem:[%s1323 + $0x24] sm:$0xf] %v1351
          %1353 = vst [vmem:[%s1323 + $0x28] sm:$0xf] %v1209
          %v1354 = vld [vmem:[%s1323 + $0x2c] sm:$0x1]
          %v1355 = vsel %vm1332, %v1210, %v1354
          %1356 = vst [vmem:[%s1323 + $0x2c] sm:$0x1] %v1355
          %v1357 = vld [vmem:[%s1323 + $0x30] sm:$0xf]
          %v1358 = vsel %vm1326, %v1217, %v1357
          %1359 = vst [vmem:[%s1323 + $0x30] sm:$0xf] %v1358
          %1360 = vst [vmem:[%s1323 + $0x34] sm:$0xf] %v1226
          %v1361 = vld [vmem:[%s1323 + $0x38] sm:$0x1]
          %v1362 = vsel %vm1332, %v1227, %v1361
          %1363 = vst [vmem:[%s1323 + $0x38] sm:$0x1] %v1362
          %v1364 = vld [vmem:[%s1323 + $0x3c] sm:$0xf]
          %v1365 = vsel %vm1326, %v1234, %v1364
          %1366 = vst [vmem:[%s1323 + $0x3c] sm:$0xf] %v1365
          %1367 = vst [vmem:[%s1323 + $0x40] sm:$0xf] %v1243
          %v1368 = vld [vmem:[%s1323 + $0x44] sm:$0x1]
          %v1369 = vsel %vm1332, %v1244, %v1368
          %1370 = vst [vmem:[%s1323 + $0x44] sm:$0x1] %v1369
          %v1371 = vld [vmem:[%s1323 + $0x48] sm:$0xf]
          %v1372 = vsel %vm1326, %v1251, %v1371
          %1373 = vst [vmem:[%s1323 + $0x48] sm:$0xf] %v1372
          %1374 = vst [vmem:[%s1323 + $0x4c] sm:$0xf] %v1260
          %v1375 = vld [vmem:[%s1323 + $0x50] sm:$0x1]
          %v1376 = vsel %vm1332, %v1261, %v1375
          %1377 = vst [vmem:[%s1323 + $0x50] sm:$0x1] %v1376
          %v1378 = vld [vmem:[%s1323 + $0x54] sm:$0xf]
          %v1379 = vsel %vm1326, %v1268, %v1378
          %1380 = vst [vmem:[%s1323 + $0x54] sm:$0xf] %v1379
          %1381 = vst [vmem:[%s1323 + $0x58] sm:$0xf] %v1277
          %v1382 = vld [vmem:[%s1323 + $0x5c] sm:$0x1]
          %v1383 = vsel %vm1332, %v1278, %v1382
          %1384 = vst [vmem:[%s1323 + $0x5c] sm:$0x1] %v1383
          %v1385 = vld [vmem:[%s1323 + $0x60] sm:$0xf]
          %v1386 = vsel %vm1326, %v1285, %v1385
          %1387 = vst [vmem:[%s1323 + $0x60] sm:$0xf] %v1386
          %1388 = vst [vmem:[%s1323 + $0x64] sm:$0xf] %v1294
          %v1389 = vld [vmem:[%s1323 + $0x68] sm:$0x1]
          %v1390 = vsel %vm1332, %v1295, %v1389
          %1391 = vst [vmem:[%s1323 + $0x68] sm:$0x1] %v1390
        $region52: #{run.3} parent=47 // pred_fallthru
          _
        %p1392 = scmp.eq.s32.totalorder %s26, 1
        // Predicated region
        $region53: #{run.3} parent=47 // pred_check
          %p1393 = pneg %p1392
        $region54: #{run.3} parent=47 // pred_check_branch
          %1395 = sbr.rel (%p1393) target = $region56
        $region55: #{run.3} parent=47 // pred_region
          %v1405 = vunpack.c.l.b16 %v1052
          %v1406 = vunpack.c.h.b16 %v1052
          %v1407 = vunpack.c.l.b16 %v1053
          %v1408 = vunpack.c.h.b16 %v1053
          %v1409 = vunpack.c.l.b16 %v1054
          %v1410 = vunpack.c.h.b16 %v1054
          %v1411 = vunpack.c.l.b16 %v1055
          %v1412 = vunpack.c.h.b16 %v1055
          %v1413 = vunpack.c.l.b16 %v1056
          %v1414 = vunpack.c.h.b16 %v1056
          %v1415 = vunpack.c.l.b16 %v1057
          %v1416 = vunpack.c.h.b16 %v1057
          %v1417 = vunpack.c.l.b16 %v1058
          %v1418 = vunpack.c.h.b16 %v1058
          %v1419 = vunpack.c.l.b16 %v1059
          %v1420 = vunpack.c.h.b16 %v1059
          %v1421 = vunpack.c.l.b16 %v1060
          %v1422 = vunpack.c.h.b16 %v1060
          %v1423 = vpack.c.b16 %v1405, %v1405
          %v1424 = vpack.c.b16 %v1406, %v1406
          %v1425 = vpack.c.b16 %v1407, %v1407
          %v1426 = vpack.c.b16 %v1408, %v1408
          %v1427 = vpack.c.b16 %v1409, %v1409
          %v1428 = vpack.c.b16 %v1410, %v1410
          %v1429 = vpack.c.b16 %v1411, %v1411
          %v1430 = vpack.c.b16 %v1412, %v1412
          %v1431 = vpack.c.b16 %v1413, %v1413
          %v1432 = vpack.c.b16 %v1414, %v1414
          %v1433 = vpack.c.b16 %v1415, %v1415
          %v1434 = vpack.c.b16 %v1416, %v1416
          %v1435 = vpack.c.b16 %v1417, %v1417
          %v1436 = vpack.c.b16 %v1418, %v1418
          %v1437 = vpack.c.b16 %v1419, %v1419
          %v1438 = vpack.c.b16 %v1420, %v1420
          %v1439 = vpack.c.b16 %v1421, %v1421
          %v1440 = vpack.c.b16 %v1422, %v1422
          %vm1441 = vsmask.f32 256
          %vm1442 = vsmask.f32 4368
          %vm1443 = vmor %vm1441, %vm1442
          %v1445 = vshrl.u32 %v1423, 16
          %v1447 = vrot.slane %v1445, 7
          %v1448 = vshll.u32 %v1423, 16
          %v1450 = vor.u32 %v1447, %v1448
          %v1451 = vrot.slane %v1447, 4
          %v1453 = vshrl.u32 %v1424, 16
          %v1455 = vrot.slane %v1453, 7
          %v1456 = vshll.u32 %v1424, 16
          %v1458 = vor.u32 %v1455, %v1456
          %v1459 = vsel %vm1443, %v1451, %v1458
          %v1460 = vrot.slane %v1455, 4
          %v1462 = vshrl.u32 %v1425, 16
          %v1464 = vrot.slane %v1462, 7
          %v1465 = vshll.u32 %v1425, 16
          %v1467 = vor.u32 %v1464, %v1465
          %v1468 = vrot.slane %v1464, 4
          %v1470 = vshrl.u32 %v1426, 16
          %v1472 = vrot.slane %v1470, 7
          %v1473 = vshll.u32 %v1426, 16
          %v1475 = vor.u32 %v1472, %v1473
          %v1476 = vsel %vm1443, %v1468, %v1475
          %v1477 = vrot.slane %v1472, 4
          %v1479 = vshrl.u32 %v1427, 16
          %v1481 = vrot.slane %v1479, 7
          %v1482 = vshll.u32 %v1427, 16
          %v1484 = vor.u32 %v1481, %v1482
          %v1485 = vrot.slane %v1481, 4
          %v1487 = vshrl.u32 %v1428, 16
          %v1489 = vrot.slane %v1487, 7
          %v1490 = vshll.u32 %v1428, 16
          %v1492 = vor.u32 %v1489, %v1490
          %v1493 = vsel %vm1443, %v1485, %v1492
          %v1494 = vrot.slane %v1489, 4
          %v1496 = vshrl.u32 %v1429, 16
          %v1498 = vrot.slane %v1496, 7
          %v1499 = vshll.u32 %v1429, 16
          %v1501 = vor.u32 %v1498, %v1499
          %v1502 = vrot.slane %v1498, 4
          %v1504 = vshrl.u32 %v1430, 16
          %v1506 = vrot.slane %v1504, 7
          %v1507 = vshll.u32 %v1430, 16
          %v1509 = vor.u32 %v1506, %v1507
          %v1510 = vsel %vm1443, %v1502, %v1509
          %v1511 = vrot.slane %v1506, 4
          %v1513 = vshrl.u32 %v1431, 16
          %v1515 = vrot.slane %v1513, 7
          %v1516 = vshll.u32 %v1431, 16
          %v1518 = vor.u32 %v1515, %v1516
          %v1519 = vrot.slane %v1515, 4
          %v1521 = vshrl.u32 %v1432, 16
          %v1523 = vrot.slane %v1521, 7
          %v1524 = vshll.u32 %v1432, 16
          %v1526 = vor.u32 %v1523, %v1524
          %v1527 = vsel %vm1443, %v1519, %v1526
          %v1528 = vrot.slane %v1523, 4
          %v1530 = vshrl.u32 %v1433, 16
          %v1532 = vrot.slane %v1530, 7
          %v1533 = vshll.u32 %v1433, 16
          %v1535 = vor.u32 %v1532, %v1533
          %v1536 = vrot.slane %v1532, 4
          %v1538 = vshrl.u32 %v1434, 16
          %v1540 = vrot.slane %v1538, 7
          %v1541 = vshll.u32 %v1434, 16
          %v1543 = vor.u32 %v1540, %v1541
          %v1544 = vsel %vm1443, %v1536, %v1543
          %v1545 = vrot.slane %v1540, 4
          %v1547 = vshrl.u32 %v1435, 16
          %v1549 = vrot.slane %v1547, 7
          %v1550 = vshll.u32 %v1435, 16
          %v1552 = vor.u32 %v1549, %v1550
          %v1553 = vrot.slane %v1549, 4
          %v1555 = vshrl.u32 %v1436, 16
          %v1557 = vrot.slane %v1555, 7
          %v1558 = vshll.u32 %v1436, 16
          %v1560 = vor.u32 %v1557, %v1558
          %v1561 = vsel %vm1443, %v1553, %v1560
          %v1562 = vrot.slane %v1557, 4
          %v1564 = vshrl.u32 %v1437, 16
          %v1566 = vrot.slane %v1564, 7
          %v1567 = vshll.u32 %v1437, 16
          %v1569 = vor.u32 %v1566, %v1567
          %v1570 = vrot.slane %v1566, 4
          %v1572 = vshrl.u32 %v1438, 16
          %v1574 = vrot.slane %v1572, 7
          %v1575 = vshll.u32 %v1438, 16
          %v1577 = vor.u32 %v1574, %v1575
          %v1578 = vsel %vm1443, %v1570, %v1577
          %v1579 = vrot.slane %v1574, 4
          %v1581 = vshrl.u32 %v1439, 16
          %v1583 = vrot.slane %v1581, 7
          %v1584 = vshll.u32 %v1439, 16
          %v1586 = vor.u32 %v1583, %v1584
          %v1587 = vrot.slane %v1583, 4
          %v1589 = vshrl.u32 %v1440, 16
          %v1591 = vrot.slane %v1589, 7
          %v1592 = vshll.u32 %v1440, 16
          %v1594 = vor.u32 %v1591, %v1592
          %v1595 = vsel %vm1443, %v1587, %v1594
          %v1596 = vrot.slane %v1591, 4
          %vm1624 = vcmask 1043456
          %vm1625 = vsmask.f32 7938
          %vm1626 = vmand %vm1624, %vm1625
          %v1627 = vld [vmem:[#allocation2] sm:$0xf]
          %v1628 = vsel %vm1626, %v1450, %v1627
          %1629 = vst [vmem:[#allocation2] sm:$0xf] %v1628
          %1630 = vst [vmem:[#allocation2 + $0x4] sm:$0xf] %v1459
          %vm1631 = vcmask 1040384
          %vm1632 = vmand %vm1631, %vm1441
          %v1633 = vld [vmem:[#allocation2 + $0x8] sm:$0x1]
          %v1634 = vsel %vm1632, %v1460, %v1633
          %1635 = vst [vmem:[#allocation2 + $0x8] sm:$0x1] %v1634
          %v1636 = vld [vmem:[#allocation2 + $0xc] sm:$0xf]
          %v1637 = vsel %vm1626, %v1467, %v1636
          %1638 = vst [vmem:[#allocation2 + $0xc] sm:$0xf] %v1637
          %1639 = vst [vmem:[#allocation2 + $0x10] sm:$0xf] %v1476
          %v1640 = vld [vmem:[#allocation2 + $0x14] sm:$0x1]
          %v1641 = vsel %vm1632, %v1477, %v1640
          %1642 = vst [vmem:[#allocation2 + $0x14] sm:$0x1] %v1641
          %v1643 = vld [vmem:[#allocation2 + $0x18] sm:$0xf]
          %v1644 = vsel %vm1626, %v1484, %v1643
          %1645 = vst [vmem:[#allocation2 + $0x18] sm:$0xf] %v1644
          %1646 = vst [vmem:[#allocation2 + $0x1c] sm:$0xf] %v1493
          %v1647 = vld [vmem:[#allocation2 + $0x20] sm:$0x1]
          %v1648 = vsel %vm1632, %v1494, %v1647
          %1649 = vst [vmem:[#allocation2 + $0x20] sm:$0x1] %v1648
          %v1650 = vld [vmem:[#allocation2 + $0x24] sm:$0xf]
          %v1651 = vsel %vm1626, %v1501, %v1650
          %1652 = vst [vmem:[#allocation2 + $0x24] sm:$0xf] %v1651
          %1653 = vst [vmem:[#allocation2 + $0x28] sm:$0xf] %v1510
          %v1654 = vld [vmem:[#allocation2 + $0x2c] sm:$0x1]
          %v1655 = vsel %vm1632, %v1511, %v1654
          %1656 = vst [vmem:[#allocation2 + $0x2c] sm:$0x1] %v1655
          %v1657 = vld [vmem:[#allocation2 + $0x30] sm:$0xf]
          %v1658 = vsel %vm1626, %v1518, %v1657
          %1659 = vst [vmem:[#allocation2 + $0x30] sm:$0xf] %v1658
          %1660 = vst [vmem:[#allocation2 + $0x34] sm:$0xf] %v1527
          %v1661 = vld [vmem:[#allocation2 + $0x38] sm:$0x1]
          %v1662 = vsel %vm1632, %v1528, %v1661
          %1663 = vst [vmem:[#allocation2 + $0x38] sm:$0x1] %v1662
          %v1664 = vld [vmem:[#allocation2 + $0x3c] sm:$0xf]
          %v1665 = vsel %vm1626, %v1535, %v1664
          %1666 = vst [vmem:[#allocation2 + $0x3c] sm:$0xf] %v1665
          %1667 = vst [vmem:[#allocation2 + $0x40] sm:$0xf] %v1544
          %v1668 = vld [vmem:[#allocation2 + $0x44] sm:$0x1]
          %v1669 = vsel %vm1632, %v1545, %v1668
          %1670 = vst [vmem:[#allocation2 + $0x44] sm:$0x1] %v1669
          %v1671 = vld [vmem:[#allocation2 + $0x48] sm:$0xf]
          %v1672 = vsel %vm1626, %v1552, %v1671
          %1673 = vst [vmem:[#allocation2 + $0x48] sm:$0xf] %v1672
          %1674 = vst [vmem:[#allocation2 + $0x4c] sm:$0xf] %v1561
          %v1675 = vld [vmem:[#allocation2 + $0x50] sm:$0x1]
          %v1676 = vsel %vm1632, %v1562, %v1675
          %1677 = vst [vmem:[#allocation2 + $0x50] sm:$0x1] %v1676
          %v1678 = vld [vmem:[#allocation2 + $0x54] sm:$0xf]
          %v1679 = vsel %vm1626, %v1569, %v1678
          %1680 = vst [vmem:[#allocation2 + $0x54] sm:$0xf] %v1679
          %1681 = vst [vmem:[#allocation2 + $0x58] sm:$0xf] %v1578
          %v1682 = vld [vmem:[#allocation2 + $0x5c] sm:$0x1]
          %v1683 = vsel %vm1632, %v1579, %v1682
          %1684 = vst [vmem:[#allocation2 + $0x5c] sm:$0x1] %v1683
          %v1685 = vld [vmem:[#allocation2 + $0x60] sm:$0xf]
          %v1686 = vsel %vm1626, %v1586, %v1685
          %1687 = vst [vmem:[#allocation2 + $0x60] sm:$0xf] %v1686
          %1688 = vst [vmem:[#allocation2 + $0x64] sm:$0xf] %v1595
          %v1689 = vld [vmem:[#allocation2 + $0x68] sm:$0x1]
          %v1690 = vsel %vm1632, %v1596, %v1689
          %1691 = vst [vmem:[#allocation2 + $0x68] sm:$0x1] %v1690
        $region56: #{run.3} parent=47 // pred_fallthru
          _
        %v1692 = vld [vmem:[#allocation2] sm:$0xf]
        %v1693 = vld [vmem:[#allocation2 + $0x4] sm:$0xf]
        %v1694 = vld [vmem:[#allocation2 + $0xc] sm:$0xf]
        %v1695 = vld [vmem:[#allocation2 + $0x10] sm:$0xf]
        %v1696 = vld [vmem:[#allocation2 + $0x18] sm:$0xf]
        %v1697 = vld [vmem:[#allocation2 + $0x1c] sm:$0xf]
        %v1698 = vld [vmem:[#allocation2 + $0x24] sm:$0xf]
        %v1699 = vld [vmem:[#allocation2 + $0x28] sm:$0xf]
        %v1700 = vld [vmem:[#allocation2 + $0x30] sm:$0xf]
        %v1701 = vld [vmem:[#allocation2 + $0x34] sm:$0xf]
        %v1702 = vld [vmem:[#allocation2 + $0x3c] sm:$0xf]
        %v1703 = vld [vmem:[#allocation2 + $0x40] sm:$0xf]
        %v1704 = vld [vmem:[#allocation2 + $0x48] sm:$0xf]
        %v1705 = vld [vmem:[#allocation2 + $0x4c] sm:$0xf]
        %v1706 = vld [vmem:[#allocation2 + $0x54] sm:$0xf]
        %v1707 = vld [vmem:[#allocation2 + $0x58] sm:$0xf]
        %v1724 = vunpack.c.l.b16 %v1692
        %v1725 = vunpack.c.l.b16 %v1693
        %v1726 = vunpack.c.l.b16 %v1694
        %v1727 = vunpack.c.l.b16 %v1695
        %v1728 = vunpack.c.l.b16 %v1696
        %v1729 = vunpack.c.l.b16 %v1697
        %v1730 = vunpack.c.l.b16 %v1698
        %v1731 = vunpack.c.l.b16 %v1699
        %v1732 = vunpack.c.l.b16 %v1700
        %v1733 = vunpack.c.l.b16 %v1701
        %v1734 = vunpack.c.l.b16 %v1702
        %v1735 = vunpack.c.l.b16 %v1703
        %v1736 = vunpack.c.l.b16 %v1704
        %v1737 = vunpack.c.l.b16 %v1705
        %v1738 = vunpack.c.l.b16 %v1706
        %v1739 = vunpack.c.l.b16 %v1707
        %v1740 = vpack.c.b16 %v1725, %v1724
        %v1741 = vpack.c.b16 %v1727, %v1726
        %v1742 = vpack.c.b16 %v1729, %v1728
        %v1743 = vpack.c.b16 %v1731, %v1730
        %v1744 = vpack.c.b16 %v1733, %v1732
        %v1745 = vpack.c.b16 %v1735, %v1734
        %v1746 = vpack.c.b16 %v1737, %v1736
        %v1747 = vpack.c.b16 %v1739, %v1738
        %1756 = vst [vmem:[#allocation3] sm:$0xff] %v1740
        %1757 = vst [vmem:[#allocation3 + $0x48] sm:$0xff] %v1741
        %1758 = vst [vmem:[#allocation3 + $0x90] sm:$0xff] %v1742
        %1759 = vst [vmem:[#allocation3 + $0xd8] sm:$0xff] %v1743
        %1760 = vst [vmem:[#allocation3 + $0x120] sm:$0xff] %v1744
        %1761 = vst [vmem:[#allocation3 + $0x168] sm:$0xff] %v1745
        %1762 = vst [vmem:[#allocation3 + $0x1b0] sm:$0xff] %v1746
        %1763 = vst [vmem:[#allocation3 + $0x1f8] sm:$0xff] %v1747
        %v1764 = vld [vmem:[#allocation2] sm:$0xf]
        %v1765 = vld [vmem:[#allocation2 + $0x4] sm:$0xf]
        %v1766 = vld [vmem:[#allocation2 + $0x8] sm:$0x1]
        %v1767 = vld [vmem:[#allocation2 + $0xc] sm:$0xf]
        %v1768 = vld [vmem:[#allocation2 + $0x10] sm:$0xf]
        %v1769 = vld [vmem:[#allocation2 + $0x14] sm:$0x1]
        %v1770 = vld [vmem:[#allocation2 + $0x18] sm:$0xf]
        %v1771 = vld [vmem:[#allocation2 + $0x1c] sm:$0xf]
        %v1772 = vld [vmem:[#allocation2 + $0x20] sm:$0x1]
        %v1773 = vld [vmem:[#allocation2 + $0x24] sm:$0xf]
        %v1774 = vld [vmem:[#allocation2 + $0x28] sm:$0xf]
        %v1775 = vld [vmem:[#allocation2 + $0x2c] sm:$0x1]
        %v1776 = vld [vmem:[#allocation2 + $0x30] sm:$0xf]
        %v1777 = vld [vmem:[#allocation2 + $0x34] sm:$0xf]
        %v1778 = vld [vmem:[#allocation2 + $0x38] sm:$0x1]
        %v1779 = vld [vmem:[#allocation2 + $0x3c] sm:$0xf]
        %v1780 = vld [vmem:[#allocation2 + $0x40] sm:$0xf]
        %v1781 = vld [vmem:[#allocation2 + $0x44] sm:$0x1]
        %v1782 = vld [vmem:[#allocation2 + $0x48] sm:$0xf]
        %v1783 = vld [vmem:[#allocation2 + $0x4c] sm:$0xf]
        %v1784 = vld [vmem:[#allocation2 + $0x50] sm:$0x1]
        %v1785 = vld [vmem:[#allocation2 + $0x54] sm:$0xf]
        %v1786 = vld [vmem:[#allocation2 + $0x58] sm:$0xf]
        %v1787 = vld [vmem:[#allocation2 + $0x5c] sm:$0x1]
        %vm1788 = vsmask.f32 3328
        %vm1789 = vsmask.f32 7440
        %vm1790 = vmor %vm1788, %vm1789
        %v1792 = vshrl.u32 %v1764, 16
        %v1794 = vrot.slane %v1792, 4
        %v1795 = vshll.u32 %v1764, 16
        %v1797 = vrot.slane %v1795, 5
        %v1798 = vor.u32 %v1794, %v1797
        %v1799 = vrot.slane %v1798, 4
        %v1801 = vshll.u32 %v1765, 16
        %v1803 = vrot.slane %v1801, 5
        %v1804 = vsel %vm1790, %v1799, %v1803
        %v1805 = vshrl.u32 %v1765, 16
        %v1807 = vrot.slane %v1805, 4
        %v1808 = vor.u32 %v1807, %v1803
        %v1809 = vrot.slane %v1808, 4
        %v1811 = vshll.u32 %v1766, 16
        %v1813 = vrot.slane %v1811, 5
        %v1814 = vsel %vm1790, %v1809, %v1813
        %v1816 = vshrl.u32 %v1767, 16
        %v1818 = vrot.slane %v1816, 4
        %v1819 = vshll.u32 %v1767, 16
        %v1821 = vrot.slane %v1819, 5
        %v1822 = vor.u32 %v1818, %v1821
        %v1823 = vrot.slane %v1822, 4
        %v1825 = vshll.u32 %v1768, 16
        %v1827 = vrot.slane %v1825, 5
        %v1828 = vsel %vm1790, %v1823, %v1827
        %v1829 = vshrl.u32 %v1768, 16
        %v1831 = vrot.slane %v1829, 4
        %v1832 = vor.u32 %v1831, %v1827
        %v1833 = vrot.slane %v1832, 4
        %v1835 = vshll.u32 %v1769, 16
        %v1837 = vrot.slane %v1835, 5
        %v1838 = vsel %vm1790, %v1833, %v1837
        %v1840 = vshrl.u32 %v1770, 16
        %v1842 = vrot.slane %v1840, 4
        %v1843 = vshll.u32 %v1770, 16
        %v1845 = vrot.slane %v1843, 5
        %v1846 = vor.u32 %v1842, %v1845
        %v1847 = vrot.slane %v1846, 4
        %v1849 = vshll.u32 %v1771, 16
        %v1851 = vrot.slane %v1849, 5
        %v1852 = vsel %vm1790, %v1847, %v1851
        %v1853 = vshrl.u32 %v1771, 16
        %v1855 = vrot.slane %v1853, 4
        %v1856 = vor.u32 %v1855, %v1851
        %v1857 = vrot.slane %v1856, 4
        %v1859 = vshll.u32 %v1772, 16
        %v1861 = vrot.slane %v1859, 5
        %v1862 = vsel %vm1790, %v1857, %v1861
        %v1864 = vshrl.u32 %v1773, 16
        %v1866 = vrot.slane %v1864, 4
        %v1867 = vshll.u32 %v1773, 16
        %v1869 = vrot.slane %v1867, 5
        %v1870 = vor.u32 %v1866, %v1869
        %v1871 = vrot.slane %v1870, 4
        %v1873 = vshll.u32 %v1774, 16
        %v1875 = vrot.slane %v1873, 5
        %v1876 = vsel %vm1790, %v1871, %v1875
        %v1877 = vshrl.u32 %v1774, 16
        %v1879 = vrot.slane %v1877, 4
        %v1880 = vor.u32 %v1879, %v1875
        %v1881 = vrot.slane %v1880, 4
        %v1883 = vshll.u32 %v1775, 16
        %v1885 = vrot.slane %v1883, 5
        %v1886 = vsel %vm1790, %v1881, %v1885
        %v1888 = vshrl.u32 %v1776, 16
        %v1890 = vrot.slane %v1888, 4
        %v1891 = vshll.u32 %v1776, 16
        %v1893 = vrot.slane %v1891, 5
        %v1894 = vor.u32 %v1890, %v1893
        %v1895 = vrot.slane %v1894, 4
        %v1897 = vshll.u32 %v1777, 16
        %v1899 = vrot.slane %v1897, 5
        %v1900 = vsel %vm1790, %v1895, %v1899
        %v1901 = vshrl.u32 %v1777, 16
        %v1903 = vrot.slane %v1901, 4
        %v1904 = vor.u32 %v1903, %v1899
        %v1905 = vrot.slane %v1904, 4
        %v1907 = vshll.u32 %v1778, 16
        %v1909 = vrot.slane %v1907, 5
        %v1910 = vsel %vm1790, %v1905, %v1909
        %v1912 = vshrl.u32 %v1779, 16
        %v1914 = vrot.slane %v1912, 4
        %v1915 = vshll.u32 %v1779, 16
        %v1917 = vrot.slane %v1915, 5
        %v1918 = vor.u32 %v1914, %v1917
        %v1919 = vrot.slane %v1918, 4
        %v1921 = vshll.u32 %v1780, 16
        %v1923 = vrot.slane %v1921, 5
        %v1924 = vsel %vm1790, %v1919, %v1923
        %v1925 = vshrl.u32 %v1780, 16
        %v1927 = vrot.slane %v1925, 4
        %v1928 = vor.u32 %v1927, %v1923
        %v1929 = vrot.slane %v1928, 4
        %v1931 = vshll.u32 %v1781, 16
        %v1933 = vrot.slane %v1931, 5
        %v1934 = vsel %vm1790, %v1929, %v1933
        %v1936 = vshrl.u32 %v1782, 16
        %v1938 = vrot.slane %v1936, 4
        %v1939 = vshll.u32 %v1782, 16
        %v1941 = vrot.slane %v1939, 5
        %v1942 = vor.u32 %v1938, %v1941
        %v1943 = vrot.slane %v1942, 4
        %v1945 = vshll.u32 %v1783, 16
        %v1947 = vrot.slane %v1945, 5
        %v1948 = vsel %vm1790, %v1943, %v1947
        %v1949 = vshrl.u32 %v1783, 16
        %v1951 = vrot.slane %v1949, 4
        %v1952 = vor.u32 %v1951, %v1947
        %v1953 = vrot.slane %v1952, 4
        %v1955 = vshll.u32 %v1784, 16
        %v1957 = vrot.slane %v1955, 5
        %v1958 = vsel %vm1790, %v1953, %v1957
        %v1960 = vshrl.u32 %v1785, 16
        %v1962 = vrot.slane %v1960, 4
        %v1963 = vshll.u32 %v1785, 16
        %v1965 = vrot.slane %v1963, 5
        %v1966 = vor.u32 %v1962, %v1965
        %v1967 = vrot.slane %v1966, 4
        %v1969 = vshll.u32 %v1786, 16
        %v1971 = vrot.slane %v1969, 5
        %v1972 = vsel %vm1790, %v1967, %v1971
        %v1973 = vshrl.u32 %v1786, 16
        %v1975 = vrot.slane %v1973, 4
        %v1976 = vor.u32 %v1975, %v1971
        %v1977 = vrot.slane %v1976, 4
        %v1979 = vshll.u32 %v1787, 16
        %v1981 = vrot.slane %v1979, 5
        %v1982 = vsel %vm1790, %v1977, %v1981
        %v1983 = vunpack.c.l.b16 %v1804
        %v1984 = vunpack.c.l.b16 %v1814
        %v1985 = vunpack.c.l.b16 %v1828
        %v1986 = vunpack.c.l.b16 %v1838
        %v1987 = vunpack.c.l.b16 %v1852
        %v1988 = vunpack.c.l.b16 %v1862
        %v1989 = vunpack.c.l.b16 %v1876
        %v1990 = vunpack.c.l.b16 %v1886
        %v1991 = vunpack.c.l.b16 %v1900
        %v1992 = vunpack.c.l.b16 %v1910
        %v1993 = vunpack.c.l.b16 %v1924
        %v1994 = vunpack.c.l.b16 %v1934
        %v1995 = vunpack.c.l.b16 %v1948
        %v1996 = vunpack.c.l.b16 %v1958
        %v1997 = vunpack.c.l.b16 %v1972
        %v1998 = vunpack.c.l.b16 %v1982
        %v1999 = vpack.c.b16 %v1984, %v1983
        %v2000 = vpack.c.b16 %v1986, %v1985
        %v2001 = vpack.c.b16 %v1988, %v1987
        %v2002 = vpack.c.b16 %v1990, %v1989
        %v2003 = vpack.c.b16 %v1992, %v1991
        %v2004 = vpack.c.b16 %v1994, %v1993
        %v2005 = vpack.c.b16 %v1996, %v1995
        %v2006 = vpack.c.b16 %v1998, %v1997
        %2015 = vst [vmem:[#allocation3 + $0x8] sm:$0xff] %v1999
        %2016 = vst [vmem:[#allocation3 + $0x50] sm:$0xff] %v2000
        %2017 = vst [vmem:[#allocation3 + $0x98] sm:$0xff] %v2001
        %2018 = vst [vmem:[#allocation3 + $0xe0] sm:$0xff] %v2002
        %2019 = vst [vmem:[#allocation3 + $0x128] sm:$0xff] %v2003
        %2020 = vst [vmem:[#allocation3 + $0x170] sm:$0xff] %v2004
        %2021 = vst [vmem:[#allocation3 + $0x1b8] sm:$0xff] %v2005
        %2022 = vst [vmem:[#allocation3 + $0x200] sm:$0xff] %v2006
        %v2023 = vld [vmem:[#allocation2] sm:$0xe]
        %v2024 = vld [vmem:[#allocation2 + $0x4] sm:$0xf]
        %v2025 = vld [vmem:[#allocation2 + $0x8] sm:$0x1]
        %v2026 = vld [vmem:[#allocation2 + $0xc] sm:$0xe]
        %v2027 = vld [vmem:[#allocation2 + $0x10] sm:$0xf]
        %v2028 = vld [vmem:[#allocation2 + $0x14] sm:$0x1]
        %v2029 = vld [vmem:[#allocation2 + $0x18] sm:$0xe]
        %v2030 = vld [vmem:[#allocation2 + $0x1c] sm:$0xf]
        %v2031 = vld [vmem:[#allocation2 + $0x20] sm:$0x1]
        %v2032 = vld [vmem:[#allocation2 + $0x24] sm:$0xe]
        %v2033 = vld [vmem:[#allocation2 + $0x28] sm:$0xf]
        %v2034 = vld [vmem:[#allocation2 + $0x2c] sm:$0x1]
        %v2035 = vld [vmem:[#allocation2 + $0x30] sm:$0xe]
        %v2036 = vld [vmem:[#allocation2 + $0x34] sm:$0xf]
        %v2037 = vld [vmem:[#allocation2 + $0x38] sm:$0x1]
        %v2038 = vld [vmem:[#allocation2 + $0x3c] sm:$0xe]
        %v2039 = vld [vmem:[#allocation2 + $0x40] sm:$0xf]
        %v2040 = vld [vmem:[#allocation2 + $0x44] sm:$0x1]
        %v2041 = vld [vmem:[#allocation2 + $0x48] sm:$0xe]
        %v2042 = vld [vmem:[#allocation2 + $0x4c] sm:$0xf]
        %v2043 = vld [vmem:[#allocation2 + $0x50] sm:$0x1]
        %v2044 = vld [vmem:[#allocation2 + $0x54] sm:$0xe]
        %v2045 = vld [vmem:[#allocation2 + $0x58] sm:$0xf]
        %v2046 = vld [vmem:[#allocation2 + $0x5c] sm:$0x1]
        %vm2071 = vcmask 1042432
        %vm2072 = vcmask 1046532
        %vm2073 = vmor %vm2071, %vm2072
        %v2074 = vrot.slane %v2023, 5
        %v2075 = vrot.slane %v2074, 4
        %v2076 = vrot.slane %v2024, 5
        %v2077 = vsel %vm2073, %v2075, %v2076
        %v2078 = vrot.slane %v2076, 4
        %v2079 = vrot.slane %v2025, 5
        %v2080 = vsel %vm2073, %v2078, %v2079
        %v2081 = vrot.slane %v2026, 5
        %v2082 = vrot.slane %v2081, 4
        %v2083 = vrot.slane %v2027, 5
        %v2084 = vsel %vm2073, %v2082, %v2083
        %v2085 = vrot.slane %v2083, 4
        %v2086 = vrot.slane %v2028, 5
        %v2087 = vsel %vm2073, %v2085, %v2086
        %v2088 = vrot.slane %v2029, 5
        %v2089 = vrot.slane %v2088, 4
        %v2090 = vrot.slane %v2030, 5
        %v2091 = vsel %vm2073, %v2089, %v2090
        %v2092 = vrot.slane %v2090, 4
        %v2093 = vrot.slane %v2031, 5
        %v2094 = vsel %vm2073, %v2092, %v2093
        %v2095 = vrot.slane %v2032, 5
        %v2096 = vrot.slane %v2095, 4
        %v2097 = vrot.slane %v2033, 5
        %v2098 = vsel %vm2073, %v2096, %v2097
        %v2099 = vrot.slane %v2097, 4
        %v2100 = vrot.slane %v2034, 5
        %v2101 = vsel %vm2073, %v2099, %v2100
        %v2102 = vrot.slane %v2035, 5
        %v2103 = vrot.slane %v2102, 4
        %v2104 = vrot.slane %v2036, 5
        %v2105 = vsel %vm2073, %v2103, %v2104
        %v2106 = vrot.slane %v2104, 4
        %v2107 = vrot.slane %v2037, 5
        %v2108 = vsel %vm2073, %v2106, %v2107
        %v2109 = vrot.slane %v2038, 5
        %v2110 = vrot.slane %v2109, 4
        %v2111 = vrot.slane %v2039, 5
        %v2112 = vsel %vm2073, %v2110, %v2111
        %v2113 = vrot.slane %v2111, 4
        %v2114 = vrot.slane %v2040, 5
        %v2115 = vsel %vm2073, %v2113, %v2114
        %v2116 = vrot.slane %v2041, 5
        %v2117 = vrot.slane %v2116, 4
        %v2118 = vrot.slane %v2042, 5
        %v2119 = vsel %vm2073, %v2117, %v2118
        %v2120 = vrot.slane %v2118, 4
        %v2121 = vrot.slane %v2043, 5
        %v2122 = vsel %vm2073, %v2120, %v2121
        %v2123 = vrot.slane %v2044, 5
        %v2124 = vrot.slane %v2123, 4
        %v2125 = vrot.slane %v2045, 5
        %v2126 = vsel %vm2073, %v2124, %v2125
        %v2127 = vrot.slane %v2125, 4
        %v2128 = vrot.slane %v2046, 5
        %v2129 = vsel %vm2073, %v2127, %v2128
        %v2130 = vunpack.c.l.b16 %v2077
        %v2131 = vunpack.c.l.b16 %v2080
        %v2132 = vunpack.c.l.b16 %v2084
        %v2133 = vunpack.c.l.b16 %v2087
        %v2134 = vunpack.c.l.b16 %v2091
        %v2135 = vunpack.c.l.b16 %v2094
        %v2136 = vunpack.c.l.b16 %v2098
        %v2137 = vunpack.c.l.b16 %v2101
        %v2138 = vunpack.c.l.b16 %v2105
        %v2139 = vunpack.c.l.b16 %v2108
        %v2140 = vunpack.c.l.b16 %v2112
        %v2141 = vunpack.c.l.b16 %v2115
        %v2142 = vunpack.c.l.b16 %v2119
        %v2143 = vunpack.c.l.b16 %v2122
        %v2144 = vunpack.c.l.b16 %v2126
        %v2145 = vunpack.c.l.b16 %v2129
        %v2146 = vpack.c.b16 %v2131, %v2130
        %v2147 = vpack.c.b16 %v2133, %v2132
        %v2148 = vpack.c.b16 %v2135, %v2134
        %v2149 = vpack.c.b16 %v2137, %v2136
        %v2150 = vpack.c.b16 %v2139, %v2138
        %v2151 = vpack.c.b16 %v2141, %v2140
        %v2152 = vpack.c.b16 %v2143, %v2142
        %v2153 = vpack.c.b16 %v2145, %v2144
        %2162 = vst [vmem:[#allocation3 + $0x10] sm:$0xff] %v2146
        %2163 = vst [vmem:[#allocation3 + $0x58] sm:$0xff] %v2147
        %2164 = vst [vmem:[#allocation3 + $0xa0] sm:$0xff] %v2148
        %2165 = vst [vmem:[#allocation3 + $0xe8] sm:$0xff] %v2149
        %2166 = vst [vmem:[#allocation3 + $0x130] sm:$0xff] %v2150
        %2167 = vst [vmem:[#allocation3 + $0x178] sm:$0xff] %v2151
        %2168 = vst [vmem:[#allocation3 + $0x1c0] sm:$0xff] %v2152
        %2169 = vst [vmem:[#allocation3 + $0x208] sm:$0xff] %v2153
        %s2170 = scalar_lea.vmem [#allocation2], 12
        %v2171 = vld [vmem:[%s2170] sm:$0xf]
        %v2172 = vld [vmem:[%s2170 + $0x4] sm:$0xf]
        %v2173 = vld [vmem:[%s2170 + $0xc] sm:$0xf]
        %v2174 = vld [vmem:[%s2170 + $0x10] sm:$0xf]
        %v2175 = vld [vmem:[%s2170 + $0x18] sm:$0xf]
        %v2176 = vld [vmem:[%s2170 + $0x1c] sm:$0xf]
        %v2177 = vld [vmem:[%s2170 + $0x24] sm:$0xf]
        %v2178 = vld [vmem:[%s2170 + $0x28] sm:$0xf]
        %v2179 = vld [vmem:[%s2170 + $0x30] sm:$0xf]
        %v2180 = vld [vmem:[%s2170 + $0x34] sm:$0xf]
        %v2181 = vld [vmem:[%s2170 + $0x3c] sm:$0xf]
        %v2182 = vld [vmem:[%s2170 + $0x40] sm:$0xf]
        %v2183 = vld [vmem:[%s2170 + $0x48] sm:$0xf]
        %v2184 = vld [vmem:[%s2170 + $0x4c] sm:$0xf]
        %v2185 = vld [vmem:[%s2170 + $0x54] sm:$0xf]
        %v2186 = vld [vmem:[%s2170 + $0x58] sm:$0xf]
        %v2203 = vunpack.c.l.b16 %v2171
        %v2204 = vunpack.c.l.b16 %v2172
        %v2205 = vunpack.c.l.b16 %v2173
        %v2206 = vunpack.c.l.b16 %v2174
        %v2207 = vunpack.c.l.b16 %v2175
        %v2208 = vunpack.c.l.b16 %v2176
        %v2209 = vunpack.c.l.b16 %v2177
        %v2210 = vunpack.c.l.b16 %v2178
        %v2211 = vunpack.c.l.b16 %v2179
        %v2212 = vunpack.c.l.b16 %v2180
        %v2213 = vunpack.c.l.b16 %v2181
        %v2214 = vunpack.c.l.b16 %v2182
        %v2215 = vunpack.c.l.b16 %v2183
        %v2216 = vunpack.c.l.b16 %v2184
        %v2217 = vunpack.c.l.b16 %v2185
        %v2218 = vunpack.c.l.b16 %v2186
        %v2219 = vpack.c.b16 %v2204, %v2203
        %v2220 = vpack.c.b16 %v2206, %v2205
        %v2221 = vpack.c.b16 %v2208, %v2207
        %v2222 = vpack.c.b16 %v2210, %v2209
        %v2223 = vpack.c.b16 %v2212, %v2211
        %v2224 = vpack.c.b16 %v2214, %v2213
        %v2225 = vpack.c.b16 %v2216, %v2215
        %v2226 = vpack.c.b16 %v2218, %v2217
        %2235 = vst [vmem:[#allocation3 + $0x18] sm:$0xff] %v2219
        %2236 = vst [vmem:[#allocation3 + $0x60] sm:$0xff] %v2220
        %2237 = vst [vmem:[#allocation3 + $0xa8] sm:$0xff] %v2221
        %2238 = vst [vmem:[#allocation3 + $0xf0] sm:$0xff] %v2222
        %2239 = vst [vmem:[#allocation3 + $0x138] sm:$0xff] %v2223
        %2240 = vst [vmem:[#allocation3 + $0x180] sm:$0xff] %v2224
        %2241 = vst [vmem:[#allocation3 + $0x1c8] sm:$0xff] %v2225
        %2242 = vst [vmem:[#allocation3 + $0x210] sm:$0xff] %v2226
        %v2243 = vld [vmem:[%s2170] sm:$0xf]
        %v2244 = vld [vmem:[%s2170 + $0x4] sm:$0xf]
        %v2245 = vld [vmem:[%s2170 + $0x8] sm:$0x1]
        %v2246 = vld [vmem:[%s2170 + $0xc] sm:$0xf]
        %v2247 = vld [vmem:[%s2170 + $0x10] sm:$0xf]
        %v2248 = vld [vmem:[%s2170 + $0x14] sm:$0x1]
        %v2249 = vld [vmem:[%s2170 + $0x18] sm:$0xf]
        %v2250 = vld [vmem:[%s2170 + $0x1c] sm:$0xf]
        %v2251 = vld [vmem:[%s2170 + $0x20] sm:$0x1]
        %v2252 = vld [vmem:[%s2170 + $0x24] sm:$0xf]
        %v2253 = vld [vmem:[%s2170 + $0x28] sm:$0xf]
        %v2254 = vld [vmem:[%s2170 + $0x2c] sm:$0x1]
        %v2255 = vld [vmem:[%s2170 + $0x30] sm:$0xf]
        %v2256 = vld [vmem:[%s2170 + $0x34] sm:$0xf]
        %v2257 = vld [vmem:[%s2170 + $0x38] sm:$0x1]
        %v2258 = vld [vmem:[%s2170 + $0x3c] sm:$0xf]
        %v2259 = vld [vmem:[%s2170 + $0x40] sm:$0xf]
        %v2260 = vld [vmem:[%s2170 + $0x44] sm:$0x1]
        %v2261 = vld [vmem:[%s2170 + $0x48] sm:$0xf]
        %v2262 = vld [vmem:[%s2170 + $0x4c] sm:$0xf]
        %v2263 = vld [vmem:[%s2170 + $0x50] sm:$0x1]
        %v2264 = vld [vmem:[%s2170 + $0x54] sm:$0xf]
        %v2265 = vld [vmem:[%s2170 + $0x58] sm:$0xf]
        %v2266 = vld [vmem:[%s2170 + $0x5c] sm:$0x1]
        %v2268 = vshrl.u32 %v2243, 16
        %v2270 = vrot.slane %v2268, 4
        %v2271 = vshll.u32 %v2243, 16
        %v2273 = vrot.slane %v2271, 5
        %v2274 = vor.u32 %v2270, %v2273
        %v2275 = vrot.slane %v2274, 4
        %v2277 = vshll.u32 %v2244, 16
        %v2279 = vrot.slane %v2277, 5
        %v2280 = vsel %vm1790, %v2275, %v2279
        %v2281 = vshrl.u32 %v2244, 16
        %v2283 = vrot.slane %v2281, 4
        %v2284 = vor.u32 %v2283, %v2279
        %v2285 = vrot.slane %v2284, 4
        %v2287 = vshll.u32 %v2245, 16
        %v2289 = vrot.slane %v2287, 5
        %v2290 = vsel %vm1790, %v2285, %v2289
        %v2292 = vshrl.u32 %v2246, 16
        %v2294 = vrot.slane %v2292, 4
        %v2295 = vshll.u32 %v2246, 16
        %v2297 = vrot.slane %v2295, 5
        %v2298 = vor.u32 %v2294, %v2297
        %v2299 = vrot.slane %v2298, 4
        %v2301 = vshll.u32 %v2247, 16
        %v2303 = vrot.slane %v2301, 5
        %v2304 = vsel %vm1790, %v2299, %v2303
        %v2305 = vshrl.u32 %v2247, 16
        %v2307 = vrot.slane %v2305, 4
        %v2308 = vor.u32 %v2307, %v2303
        %v2309 = vrot.slane %v2308, 4
        %v2311 = vshll.u32 %v2248, 16
        %v2313 = vrot.slane %v2311, 5
        %v2314 = vsel %vm1790, %v2309, %v2313
        %v2316 = vshrl.u32 %v2249, 16
        %v2318 = vrot.slane %v2316, 4
        %v2319 = vshll.u32 %v2249, 16
        %v2321 = vrot.slane %v2319, 5
        %v2322 = vor.u32 %v2318, %v2321
        %v2323 = vrot.slane %v2322, 4
        %v2325 = vshll.u32 %v2250, 16
        %v2327 = vrot.slane %v2325, 5
        %v2328 = vsel %vm1790, %v2323, %v2327
        %v2329 = vshrl.u32 %v2250, 16
        %v2331 = vrot.slane %v2329, 4
        %v2332 = vor.u32 %v2331, %v2327
        %v2333 = vrot.slane %v2332, 4
        %v2335 = vshll.u32 %v2251, 16
        %v2337 = vrot.slane %v2335, 5
        %v2338 = vsel %vm1790, %v2333, %v2337
        %v2340 = vshrl.u32 %v2252, 16
        %v2342 = vrot.slane %v2340, 4
        %v2343 = vshll.u32 %v2252, 16
        %v2345 = vrot.slane %v2343, 5
        %v2346 = vor.u32 %v2342, %v2345
        %v2347 = vrot.slane %v2346, 4
        %v2349 = vshll.u32 %v2253, 16
        %v2351 = vrot.slane %v2349, 5
        %v2352 = vsel %vm1790, %v2347, %v2351
        %v2353 = vshrl.u32 %v2253, 16
        %v2355 = vrot.slane %v2353, 4
        %v2356 = vor.u32 %v2355, %v2351
        %v2357 = vrot.slane %v2356, 4
        %v2359 = vshll.u32 %v2254, 16
        %v2361 = vrot.slane %v2359, 5
        %v2362 = vsel %vm1790, %v2357, %v2361
        %v2364 = vshrl.u32 %v2255, 16
        %v2366 = vrot.slane %v2364, 4
        %v2367 = vshll.u32 %v2255, 16
        %v2369 = vrot.slane %v2367, 5
        %v2370 = vor.u32 %v2366, %v2369
        %v2371 = vrot.slane %v2370, 4
        %v2373 = vshll.u32 %v2256, 16
        %v2375 = vrot.slane %v2373, 5
        %v2376 = vsel %vm1790, %v2371, %v2375
        %v2377 = vshrl.u32 %v2256, 16
        %v2379 = vrot.slane %v2377, 4
        %v2380 = vor.u32 %v2379, %v2375
        %v2381 = vrot.slane %v2380, 4
        %v2383 = vshll.u32 %v2257, 16
        %v2385 = vrot.slane %v2383, 5
        %v2386 = vsel %vm1790, %v2381, %v2385
        %v2388 = vshrl.u32 %v2258, 16
        %v2390 = vrot.slane %v2388, 4
        %v2391 = vshll.u32 %v2258, 16
        %v2393 = vrot.slane %v2391, 5
        %v2394 = vor.u32 %v2390, %v2393
        %v2395 = vrot.slane %v2394, 4
        %v2397 = vshll.u32 %v2259, 16
        %v2399 = vrot.slane %v2397, 5
        %v2400 = vsel %vm1790, %v2395, %v2399
        %v2401 = vshrl.u32 %v2259, 16
        %v2403 = vrot.slane %v2401, 4
        %v2404 = vor.u32 %v2403, %v2399
        %v2405 = vrot.slane %v2404, 4
        %v2407 = vshll.u32 %v2260, 16
        %v2409 = vrot.slane %v2407, 5
        %v2410 = vsel %vm1790, %v2405, %v2409
        %v2412 = vshrl.u32 %v2261, 16
        %v2414 = vrot.slane %v2412, 4
        %v2415 = vshll.u32 %v2261, 16
        %v2417 = vrot.slane %v2415, 5
        %v2418 = vor.u32 %v2414, %v2417
        %v2419 = vrot.slane %v2418, 4
        %v2421 = vshll.u32 %v2262, 16
        %v2423 = vrot.slane %v2421, 5
        %v2424 = vsel %vm1790, %v2419, %v2423
        %v2425 = vshrl.u32 %v2262, 16
        %v2427 = vrot.slane %v2425, 4
        %v2428 = vor.u32 %v2427, %v2423
        %v2429 = vrot.slane %v2428, 4
        %v2431 = vshll.u32 %v2263, 16
        %v2433 = vrot.slane %v2431, 5
        %v2434 = vsel %vm1790, %v2429, %v2433
        %v2436 = vshrl.u32 %v2264, 16
        %v2438 = vrot.slane %v2436, 4
        %v2439 = vshll.u32 %v2264, 16
        %v2441 = vrot.slane %v2439, 5
        %v2442 = vor.u32 %v2438, %v2441
        %v2443 = vrot.slane %v2442, 4
        %v2445 = vshll.u32 %v2265, 16
        %v2447 = vrot.slane %v2445, 5
        %v2448 = vsel %vm1790, %v2443, %v2447
        %v2449 = vshrl.u32 %v2265, 16
        %v2451 = vrot.slane %v2449, 4
        %v2452 = vor.u32 %v2451, %v2447
        %v2453 = vrot.slane %v2452, 4
        %v2455 = vshll.u32 %v2266, 16
        %v2457 = vrot.slane %v2455, 5
        %v2458 = vsel %vm1790, %v2453, %v2457
        %v2459 = vunpack.c.l.b16 %v2280
        %v2460 = vunpack.c.l.b16 %v2290
        %v2461 = vunpack.c.l.b16 %v2304
        %v2462 = vunpack.c.l.b16 %v2314
        %v2463 = vunpack.c.l.b16 %v2328
        %v2464 = vunpack.c.l.b16 %v2338
        %v2465 = vunpack.c.l.b16 %v2352
        %v2466 = vunpack.c.l.b16 %v2362
        %v2467 = vunpack.c.l.b16 %v2376
        %v2468 = vunpack.c.l.b16 %v2386
        %v2469 = vunpack.c.l.b16 %v2400
        %v2470 = vunpack.c.l.b16 %v2410
        %v2471 = vunpack.c.l.b16 %v2424
        %v2472 = vunpack.c.l.b16 %v2434
        %v2473 = vunpack.c.l.b16 %v2448
        %v2474 = vunpack.c.l.b16 %v2458
        %v2475 = vpack.c.b16 %v2460, %v2459
        %v2476 = vpack.c.b16 %v2462, %v2461
        %v2477 = vpack.c.b16 %v2464, %v2463
        %v2478 = vpack.c.b16 %v2466, %v2465
        %v2479 = vpack.c.b16 %v2468, %v2467
        %v2480 = vpack.c.b16 %v2470, %v2469
        %v2481 = vpack.c.b16 %v2472, %v2471
        %v2482 = vpack.c.b16 %v2474, %v2473
        %2491 = vst [vmem:[#allocation3 + $0x20] sm:$0xff] %v2475
        %2492 = vst [vmem:[#allocation3 + $0x68] sm:$0xff] %v2476
        %2493 = vst [vmem:[#allocation3 + $0xb0] sm:$0xff] %v2477
        %2494 = vst [vmem:[#allocation3 + $0xf8] sm:$0xff] %v2478
        %2495 = vst [vmem:[#allocation3 + $0x140] sm:$0xff] %v2479
        %2496 = vst [vmem:[#allocation3 + $0x188] sm:$0xff] %v2480
        %2497 = vst [vmem:[#allocation3 + $0x1d0] sm:$0xff] %v2481
        %2498 = vst [vmem:[#allocation3 + $0x218] sm:$0xff] %v2482
        %v2499 = vld [vmem:[%s2170] sm:$0xe]
        %v2500 = vld [vmem:[%s2170 + $0x4] sm:$0xf]
        %v2501 = vld [vmem:[%s2170 + $0x8] sm:$0x1]
        %v2502 = vld [vmem:[%s2170 + $0xc] sm:$0xe]
        %v2503 = vld [vmem:[%s2170 + $0x10] sm:$0xf]
        %v2504 = vld [vmem:[%s2170 + $0x14] sm:$0x1]
        %v2505 = vld [vmem:[%s2170 + $0x18] sm:$0xe]
        %v2506 = vld [vmem:[%s2170 + $0x1c] sm:$0xf]
        %v2507 = vld [vmem:[%s2170 + $0x20] sm:$0x1]
        %v2508 = vld [vmem:[%s2170 + $0x24] sm:$0xe]
        %v2509 = vld [vmem:[%s2170 + $0x28] sm:$0xf]
        %v2510 = vld [vmem:[%s2170 + $0x2c] sm:$0x1]
        %v2511 = vld [vmem:[%s2170 + $0x30] sm:$0xe]
        %v2512 = vld [vmem:[%s2170 + $0x34] sm:$0xf]
        %v2513 = vld [vmem:[%s2170 + $0x38] sm:$0x1]
        %v2514 = vld [vmem:[%s2170 + $0x3c] sm:$0xe]
        %v2515 = vld [vmem:[%s2170 + $0x40] sm:$0xf]
        %v2516 = vld [vmem:[%s2170 + $0x44] sm:$0x1]
        %v2517 = vld [vmem:[%s2170 + $0x48] sm:$0xe]
        %v2518 = vld [vmem:[%s2170 + $0x4c] sm:$0xf]
        %v2519 = vld [vmem:[%s2170 + $0x50] sm:$0x1]
        %v2520 = vld [vmem:[%s2170 + $0x54] sm:$0xe]
        %v2521 = vld [vmem:[%s2170 + $0x58] sm:$0xf]
        %v2522 = vld [vmem:[%s2170 + $0x5c] sm:$0x1]
        %v2547 = vrot.slane %v2499, 5
        %v2548 = vrot.slane %v2547, 4
        %v2549 = vrot.slane %v2500, 5
        %v2550 = vsel %vm2073, %v2548, %v2549
        %v2551 = vrot.slane %v2549, 4
        %v2552 = vrot.slane %v2501, 5
        %v2553 = vsel %vm2073, %v2551, %v2552
        %v2554 = vrot.slane %v2502, 5
        %v2555 = vrot.slane %v2554, 4
        %v2556 = vrot.slane %v2503, 5
        %v2557 = vsel %vm2073, %v2555, %v2556
        %v2558 = vrot.slane %v2556, 4
        %v2559 = vrot.slane %v2504, 5
        %v2560 = vsel %vm2073, %v2558, %v2559
        %v2561 = vrot.slane %v2505, 5
        %v2562 = vrot.slane %v2561, 4
        %v2563 = vrot.slane %v2506, 5
        %v2564 = vsel %vm2073, %v2562, %v2563
        %v2565 = vrot.slane %v2563, 4
        %v2566 = vrot.slane %v2507, 5
        %v2567 = vsel %vm2073, %v2565, %v2566
        %v2568 = vrot.slane %v2508, 5
        %v2569 = vrot.slane %v2568, 4
        %v2570 = vrot.slane %v2509, 5
        %v2571 = vsel %vm2073, %v2569, %v2570
        %v2572 = vrot.slane %v2570, 4
        %v2573 = vrot.slane %v2510, 5
        %v2574 = vsel %vm2073, %v2572, %v2573
        %v2575 = vrot.slane %v2511, 5
        %v2576 = vrot.slane %v2575, 4
        %v2577 = vrot.slane %v2512, 5
        %v2578 = vsel %vm2073, %v2576, %v2577
        %v2579 = vrot.slane %v2577, 4
        %v2580 = vrot.slane %v2513, 5
        %v2581 = vsel %vm2073, %v2579, %v2580
        %v2582 = vrot.slane %v2514, 5
        %v2583 = vrot.slane %v2582, 4
        %v2584 = vrot.slane %v2515, 5
        %v2585 = vsel %vm2073, %v2583, %v2584
        %v2586 = vrot.slane %v2584, 4
        %v2587 = vrot.slane %v2516, 5
        %v2588 = vsel %vm2073, %v2586, %v2587
        %v2589 = vrot.slane %v2517, 5
        %v2590 = vrot.slane %v2589, 4
        %v2591 = vrot.slane %v2518, 5
        %v2592 = vsel %vm2073, %v2590, %v2591
        %v2593 = vrot.slane %v2591, 4
        %v2594 = vrot.slane %v2519, 5
        %v2595 = vsel %vm2073, %v2593, %v2594
        %v2596 = vrot.slane %v2520, 5
        %v2597 = vrot.slane %v2596, 4
        %v2598 = vrot.slane %v2521, 5
        %v2599 = vsel %vm2073, %v2597, %v2598
        %v2600 = vrot.slane %v2598, 4
        %v2601 = vrot.slane %v2522, 5
        %v2602 = vsel %vm2073, %v2600, %v2601
        %v2603 = vunpack.c.l.b16 %v2550
        %v2604 = vunpack.c.l.b16 %v2553
        %v2605 = vunpack.c.l.b16 %v2557
        %v2606 = vunpack.c.l.b16 %v2560
        %v2607 = vunpack.c.l.b16 %v2564
        %v2608 = vunpack.c.l.b16 %v2567
        %v2609 = vunpack.c.l.b16 %v2571
        %v2610 = vunpack.c.l.b16 %v2574
        %v2611 = vunpack.c.l.b16 %v2578
        %v2612 = vunpack.c.l.b16 %v2581
        %v2613 = vunpack.c.l.b16 %v2585
        %v2614 = vunpack.c.l.b16 %v2588
        %v2615 = vunpack.c.l.b16 %v2592
        %v2616 = vunpack.c.l.b16 %v2595
        %v2617 = vunpack.c.l.b16 %v2599
        %v2618 = vunpack.c.l.b16 %v2602
        %v2619 = vpack.c.b16 %v2604, %v2603
        %v2620 = vpack.c.b16 %v2606, %v2605
        %v2621 = vpack.c.b16 %v2608, %v2607
        %v2622 = vpack.c.b16 %v2610, %v2609
        %v2623 = vpack.c.b16 %v2612, %v2611
        %v2624 = vpack.c.b16 %v2614, %v2613
        %v2625 = vpack.c.b16 %v2616, %v2615
        %v2626 = vpack.c.b16 %v2618, %v2617
        %2635 = vst [vmem:[#allocation3 + $0x28] sm:$0xff] %v2619
        %2636 = vst [vmem:[#allocation3 + $0x70] sm:$0xff] %v2620
        %2637 = vst [vmem:[#allocation3 + $0xb8] sm:$0xff] %v2621
        %2638 = vst [vmem:[#allocation3 + $0x100] sm:$0xff] %v2622
        %2639 = vst [vmem:[#allocation3 + $0x148] sm:$0xff] %v2623
        %2640 = vst [vmem:[#allocation3 + $0x190] sm:$0xff] %v2624
        %2641 = vst [vmem:[#allocation3 + $0x1d8] sm:$0xff] %v2625
        %2642 = vst [vmem:[#allocation3 + $0x220] sm:$0xff] %v2626
        %s2643 = scalar_lea.vmem [#allocation2], 24
        %v2644 = vld [vmem:[%s2643] sm:$0xf]
        %v2645 = vld [vmem:[%s2643 + $0x4] sm:$0xf]
        %v2646 = vld [vmem:[%s2643 + $0xc] sm:$0xf]
        %v2647 = vld [vmem:[%s2643 + $0x10] sm:$0xf]
        %v2648 = vld [vmem:[%s2643 + $0x18] sm:$0xf]
        %v2649 = vld [vmem:[%s2643 + $0x1c] sm:$0xf]
        %v2650 = vld [vmem:[%s2643 + $0x24] sm:$0xf]
        %v2651 = vld [vmem:[%s2643 + $0x28] sm:$0xf]
        %v2652 = vld [vmem:[%s2643 + $0x30] sm:$0xf]
        %v2653 = vld [vmem:[%s2643 + $0x34] sm:$0xf]
        %v2654 = vld [vmem:[%s2643 + $0x3c] sm:$0xf]
        %v2655 = vld [vmem:[%s2643 + $0x40] sm:$0xf]
        %v2656 = vld [vmem:[%s2643 + $0x48] sm:$0xf]
        %v2657 = vld [vmem:[%s2643 + $0x4c] sm:$0xf]
        %v2658 = vld [vmem:[%s2643 + $0x54] sm:$0xf]
        %v2659 = vld [vmem:[%s2643 + $0x58] sm:$0xf]
        %v2676 = vunpack.c.l.b16 %v2644
        %v2677 = vunpack.c.l.b16 %v2645
        %v2678 = vunpack.c.l.b16 %v2646
        %v2679 = vunpack.c.l.b16 %v2647
        %v2680 = vunpack.c.l.b16 %v2648
        %v2681 = vunpack.c.l.b16 %v2649
        %v2682 = vunpack.c.l.b16 %v2650
        %v2683 = vunpack.c.l.b16 %v2651
        %v2684 = vunpack.c.l.b16 %v2652
        %v2685 = vunpack.c.l.b16 %v2653
        %v2686 = vunpack.c.l.b16 %v2654
        %v2687 = vunpack.c.l.b16 %v2655
        %v2688 = vunpack.c.l.b16 %v2656
        %v2689 = vunpack.c.l.b16 %v2657
        %v2690 = vunpack.c.l.b16 %v2658
        %v2691 = vunpack.c.l.b16 %v2659
        %v2692 = vpack.c.b16 %v2677, %v2676
        %v2693 = vpack.c.b16 %v2679, %v2678
        %v2694 = vpack.c.b16 %v2681, %v2680
        %v2695 = vpack.c.b16 %v2683, %v2682
        %v2696 = vpack.c.b16 %v2685, %v2684
        %v2697 = vpack.c.b16 %v2687, %v2686
        %v2698 = vpack.c.b16 %v2689, %v2688
        %v2699 = vpack.c.b16 %v2691, %v2690
        %2708 = vst [vmem:[#allocation3 + $0x30] sm:$0xff] %v2692
        %2709 = vst [vmem:[#allocation3 + $0x78] sm:$0xff] %v2693
        %2710 = vst [vmem:[#allocation3 + $0xc0] sm:$0xff] %v2694
        %2711 = vst [vmem:[#allocation3 + $0x108] sm:$0xff] %v2695
        %2712 = vst [vmem:[#allocation3 + $0x150] sm:$0xff] %v2696
        %2713 = vst [vmem:[#allocation3 + $0x198] sm:$0xff] %v2697
        %2714 = vst [vmem:[#allocation3 + $0x1e0] sm:$0xff] %v2698
        %2715 = vst [vmem:[#allocation3 + $0x228] sm:$0xff] %v2699
        %v2716 = vld [vmem:[%s2643] sm:$0xf]
        %v2717 = vld [vmem:[%s2643 + $0x4] sm:$0xf]
        %v2718 = vld [vmem:[%s2643 + $0x8] sm:$0x1]
        %v2719 = vld [vmem:[%s2643 + $0xc] sm:$0xf]
        %v2720 = vld [vmem:[%s2643 + $0x10] sm:$0xf]
        %v2721 = vld [vmem:[%s2643 + $0x14] sm:$0x1]
        %v2722 = vld [vmem:[%s2643 + $0x18] sm:$0xf]
        %v2723 = vld [vmem:[%s2643 + $0x1c] sm:$0xf]
        %v2724 = vld [vmem:[%s2643 + $0x20] sm:$0x1]
        %v2725 = vld [vmem:[%s2643 + $0x24] sm:$0xf]
        %v2726 = vld [vmem:[%s2643 + $0x28] sm:$0xf]
        %v2727 = vld [vmem:[%s2643 + $0x2c] sm:$0x1]
        %v2728 = vld [vmem:[%s2643 + $0x30] sm:$0xf]
        %v2729 = vld [vmem:[%s2643 + $0x34] sm:$0xf]
        %v2730 = vld [vmem:[%s2643 + $0x38] sm:$0x1]
        %v2731 = vld [vmem:[%s2643 + $0x3c] sm:$0xf]
        %v2732 = vld [vmem:[%s2643 + $0x40] sm:$0xf]
        %v2733 = vld [vmem:[%s2643 + $0x44] sm:$0x1]
        %v2734 = vld [vmem:[%s2643 + $0x48] sm:$0xf]
        %v2735 = vld [vmem:[%s2643 + $0x4c] sm:$0xf]
        %v2736 = vld [vmem:[%s2643 + $0x50] sm:$0x1]
        %v2737 = vld [vmem:[%s2643 + $0x54] sm:$0xf]
        %v2738 = vld [vmem:[%s2643 + $0x58] sm:$0xf]
        %v2739 = vld [vmem:[%s2643 + $0x5c] sm:$0x1]
        %v2741 = vshrl.u32 %v2716, 16
        %v2743 = vrot.slane %v2741, 4
        %v2744 = vshll.u32 %v2716, 16
        %v2746 = vrot.slane %v2744, 5
        %v2747 = vor.u32 %v2743, %v2746
        %v2748 = vrot.slane %v2747, 4
        %v2750 = vshll.u32 %v2717, 16
        %v2752 = vrot.slane %v2750, 5
        %v2753 = vsel %vm1790, %v2748, %v2752
        %v2754 = vshrl.u32 %v2717, 16
        %v2756 = vrot.slane %v2754, 4
        %v2757 = vor.u32 %v2756, %v2752
        %v2758 = vrot.slane %v2757, 4
        %v2760 = vshll.u32 %v2718, 16
        %v2762 = vrot.slane %v2760, 5
        %v2763 = vsel %vm1790, %v2758, %v2762
        %v2765 = vshrl.u32 %v2719, 16
        %v2767 = vrot.slane %v2765, 4
        %v2768 = vshll.u32 %v2719, 16
        %v2770 = vrot.slane %v2768, 5
        %v2771 = vor.u32 %v2767, %v2770
        %v2772 = vrot.slane %v2771, 4
        %v2774 = vshll.u32 %v2720, 16
        %v2776 = vrot.slane %v2774, 5
        %v2777 = vsel %vm1790, %v2772, %v2776
        %v2778 = vshrl.u32 %v2720, 16
        %v2780 = vrot.slane %v2778, 4
        %v2781 = vor.u32 %v2780, %v2776
        %v2782 = vrot.slane %v2781, 4
        %v2784 = vshll.u32 %v2721, 16
        %v2786 = vrot.slane %v2784, 5
        %v2787 = vsel %vm1790, %v2782, %v2786
        %v2789 = vshrl.u32 %v2722, 16
        %v2791 = vrot.slane %v2789, 4
        %v2792 = vshll.u32 %v2722, 16
        %v2794 = vrot.slane %v2792, 5
        %v2795 = vor.u32 %v2791, %v2794
        %v2796 = vrot.slane %v2795, 4
        %v2798 = vshll.u32 %v2723, 16
        %v2800 = vrot.slane %v2798, 5
        %v2801 = vsel %vm1790, %v2796, %v2800
        %v2802 = vshrl.u32 %v2723, 16
        %v2804 = vrot.slane %v2802, 4
        %v2805 = vor.u32 %v2804, %v2800
        %v2806 = vrot.slane %v2805, 4
        %v2808 = vshll.u32 %v2724, 16
        %v2810 = vrot.slane %v2808, 5
        %v2811 = vsel %vm1790, %v2806, %v2810
        %v2813 = vshrl.u32 %v2725, 16
        %v2815 = vrot.slane %v2813, 4
        %v2816 = vshll.u32 %v2725, 16
        %v2818 = vrot.slane %v2816, 5
        %v2819 = vor.u32 %v2815, %v2818
        %v2820 = vrot.slane %v2819, 4
        %v2822 = vshll.u32 %v2726, 16
        %v2824 = vrot.slane %v2822, 5
        %v2825 = vsel %vm1790, %v2820, %v2824
        %v2826 = vshrl.u32 %v2726, 16
        %v2828 = vrot.slane %v2826, 4
        %v2829 = vor.u32 %v2828, %v2824
        %v2830 = vrot.slane %v2829, 4
        %v2832 = vshll.u32 %v2727, 16
        %v2834 = vrot.slane %v2832, 5
        %v2835 = vsel %vm1790, %v2830, %v2834
        %v2837 = vshrl.u32 %v2728, 16
        %v2839 = vrot.slane %v2837, 4
        %v2840 = vshll.u32 %v2728, 16
        %v2842 = vrot.slane %v2840, 5
        %v2843 = vor.u32 %v2839, %v2842
        %v2844 = vrot.slane %v2843, 4
        %v2846 = vshll.u32 %v2729, 16
        %v2848 = vrot.slane %v2846, 5
        %v2849 = vsel %vm1790, %v2844, %v2848
        %v2850 = vshrl.u32 %v2729, 16
        %v2852 = vrot.slane %v2850, 4
        %v2853 = vor.u32 %v2852, %v2848
        %v2854 = vrot.slane %v2853, 4
        %v2856 = vshll.u32 %v2730, 16
        %v2858 = vrot.slane %v2856, 5
        %v2859 = vsel %vm1790, %v2854, %v2858
        %v2861 = vshrl.u32 %v2731, 16
        %v2863 = vrot.slane %v2861, 4
        %v2864 = vshll.u32 %v2731, 16
        %v2866 = vrot.slane %v2864, 5
        %v2867 = vor.u32 %v2863, %v2866
        %v2868 = vrot.slane %v2867, 4
        %v2870 = vshll.u32 %v2732, 16
        %v2872 = vrot.slane %v2870, 5
        %v2873 = vsel %vm1790, %v2868, %v2872
        %v2874 = vshrl.u32 %v2732, 16
        %v2876 = vrot.slane %v2874, 4
        %v2877 = vor.u32 %v2876, %v2872
        %v2878 = vrot.slane %v2877, 4
        %v2880 = vshll.u32 %v2733, 16
        %v2882 = vrot.slane %v2880, 5
        %v2883 = vsel %vm1790, %v2878, %v2882
        %v2885 = vshrl.u32 %v2734, 16
        %v2887 = vrot.slane %v2885, 4
        %v2888 = vshll.u32 %v2734, 16
        %v2890 = vrot.slane %v2888, 5
        %v2891 = vor.u32 %v2887, %v2890
        %v2892 = vrot.slane %v2891, 4
        %v2894 = vshll.u32 %v2735, 16
        %v2896 = vrot.slane %v2894, 5
        %v2897 = vsel %vm1790, %v2892, %v2896
        %v2898 = vshrl.u32 %v2735, 16
        %v2900 = vrot.slane %v2898, 4
        %v2901 = vor.u32 %v2900, %v2896
        %v2902 = vrot.slane %v2901, 4
        %v2904 = vshll.u32 %v2736, 16
        %v2906 = vrot.slane %v2904, 5
        %v2907 = vsel %vm1790, %v2902, %v2906
        %v2909 = vshrl.u32 %v2737, 16
        %v2911 = vrot.slane %v2909, 4
        %v2912 = vshll.u32 %v2737, 16
        %v2914 = vrot.slane %v2912, 5
        %v2915 = vor.u32 %v2911, %v2914
        %v2916 = vrot.slane %v2915, 4
        %v2918 = vshll.u32 %v2738, 16
        %v2920 = vrot.slane %v2918, 5
        %v2921 = vsel %vm1790, %v2916, %v2920
        %v2922 = vshrl.u32 %v2738, 16
        %v2924 = vrot.slane %v2922, 4
        %v2925 = vor.u32 %v2924, %v2920
        %v2926 = vrot.slane %v2925, 4
        %v2928 = vshll.u32 %v2739, 16
        %v2930 = vrot.slane %v2928, 5
        %v2931 = vsel %vm1790, %v2926, %v2930
        %v2932 = vunpack.c.l.b16 %v2753
        %v2933 = vunpack.c.l.b16 %v2763
        %v2934 = vunpack.c.l.b16 %v2777
        %v2935 = vunpack.c.l.b16 %v2787
        %v2936 = vunpack.c.l.b16 %v2801
        %v2937 = vunpack.c.l.b16 %v2811
        %v2938 = vunpack.c.l.b16 %v2825
        %v2939 = vunpack.c.l.b16 %v2835
        %v2940 = vunpack.c.l.b16 %v2849
        %v2941 = vunpack.c.l.b16 %v2859
        %v2942 = vunpack.c.l.b16 %v2873
        %v2943 = vunpack.c.l.b16 %v2883
        %v2944 = vunpack.c.l.b16 %v2897
        %v2945 = vunpack.c.l.b16 %v2907
        %v2946 = vunpack.c.l.b16 %v2921
        %v2947 = vunpack.c.l.b16 %v2931
        %v2948 = vpack.c.b16 %v2933, %v2932
        %v2949 = vpack.c.b16 %v2935, %v2934
        %v2950 = vpack.c.b16 %v2937, %v2936
        %v2951 = vpack.c.b16 %v2939, %v2938
        %v2952 = vpack.c.b16 %v2941, %v2940
        %v2953 = vpack.c.b16 %v2943, %v2942
        %v2954 = vpack.c.b16 %v2945, %v2944
        %v2955 = vpack.c.b16 %v2947, %v2946
        %2964 = vst [vmem:[#allocation3 + $0x38] sm:$0xff] %v2948
        %2965 = vst [vmem:[#allocation3 + $0x80] sm:$0xff] %v2949
        %2966 = vst [vmem:[#allocation3 + $0xc8] sm:$0xff] %v2950
        %2967 = vst [vmem:[#allocation3 + $0x110] sm:$0xff] %v2951
        %2968 = vst [vmem:[#allocation3 + $0x158] sm:$0xff] %v2952
        %2969 = vst [vmem:[#allocation3 + $0x1a0] sm:$0xff] %v2953
        %2970 = vst [vmem:[#allocation3 + $0x1e8] sm:$0xff] %v2954
        %2971 = vst [vmem:[#allocation3 + $0x230] sm:$0xff] %v2955
        %v2972 = vld [vmem:[%s2643] sm:$0xe]
        %v2973 = vld [vmem:[%s2643 + $0x4] sm:$0xf]
        %v2974 = vld [vmem:[%s2643 + $0x8] sm:$0x1]
        %v2975 = vld [vmem:[%s2643 + $0xc] sm:$0xe]
        %v2976 = vld [vmem:[%s2643 + $0x10] sm:$0xf]
        %v2977 = vld [vmem:[%s2643 + $0x14] sm:$0x1]
        %v2978 = vld [vmem:[%s2643 + $0x18] sm:$0xe]
        %v2979 = vld [vmem:[%s2643 + $0x1c] sm:$0xf]
        %v2980 = vld [vmem:[%s2643 + $0x20] sm:$0x1]
        %v2981 = vld [vmem:[%s2643 + $0x24] sm:$0xe]
        %v2982 = vld [vmem:[%s2643 + $0x28] sm:$0xf]
        %v2983 = vld [vmem:[%s2643 + $0x2c] sm:$0x1]
        %v2984 = vld [vmem:[%s2643 + $0x30] sm:$0xe]
        %v2985 = vld [vmem:[%s2643 + $0x34] sm:$0xf]
        %v2986 = vld [vmem:[%s2643 + $0x38] sm:$0x1]
        %v2987 = vld [vmem:[%s2643 + $0x3c] sm:$0xe]
        %v2988 = vld [vmem:[%s2643 + $0x40] sm:$0xf]
        %v2989 = vld [vmem:[%s2643 + $0x44] sm:$0x1]
        %v2990 = vld [vmem:[%s2643 + $0x48] sm:$0xe]
        %v2991 = vld [vmem:[%s2643 + $0x4c] sm:$0xf]
        %v2992 = vld [vmem:[%s2643 + $0x50] sm:$0x1]
        %v2993 = vld [vmem:[%s2643 + $0x54] sm:$0xe]
        %v2994 = vld [vmem:[%s2643 + $0x58] sm:$0xf]
        %v2995 = vld [vmem:[%s2643 + $0x5c] sm:$0x1]
        %v3020 = vrot.slane %v2972, 5
        %v3021 = vrot.slane %v3020, 4
        %v3022 = vrot.slane %v2973, 5
        %v3023 = vsel %vm2073, %v3021, %v3022
        %v3024 = vrot.slane %v3022, 4
        %v3025 = vrot.slane %v2974, 5
        %v3026 = vsel %vm2073, %v3024, %v3025
        %v3027 = vrot.slane %v2975, 5
        %v3028 = vrot.slane %v3027, 4
        %v3029 = vrot.slane %v2976, 5
        %v3030 = vsel %vm2073, %v3028, %v3029
        %v3031 = vrot.slane %v3029, 4
        %v3032 = vrot.slane %v2977, 5
        %v3033 = vsel %vm2073, %v3031, %v3032
        %v3034 = vrot.slane %v2978, 5
        %v3035 = vrot.slane %v3034, 4
        %v3036 = vrot.slane %v2979, 5
        %v3037 = vsel %vm2073, %v3035, %v3036
        %v3038 = vrot.slane %v3036, 4
        %v3039 = vrot.slane %v2980, 5
        %v3040 = vsel %vm2073, %v3038, %v3039
        %v3041 = vrot.slane %v2981, 5
        %v3042 = vrot.slane %v3041, 4
        %v3043 = vrot.slane %v2982, 5
        %v3044 = vsel %vm2073, %v3042, %v3043
        %v3045 = vrot.slane %v3043, 4
        %v3046 = vrot.slane %v2983, 5
        %v3047 = vsel %vm2073, %v3045, %v3046
        %v3048 = vrot.slane %v2984, 5
        %v3049 = vrot.slane %v3048, 4
        %v3050 = vrot.slane %v2985, 5
        %v3051 = vsel %vm2073, %v3049, %v3050
        %v3052 = vrot.slane %v3050, 4
        %v3053 = vrot.slane %v2986, 5
        %v3054 = vsel %vm2073, %v3052, %v3053
        %v3055 = vrot.slane %v2987, 5
        %v3056 = vrot.slane %v3055, 4
        %v3057 = vrot.slane %v2988, 5
        %v3058 = vsel %vm2073, %v3056, %v3057
        %v3059 = vrot.slane %v3057, 4
        %v3060 = vrot.slane %v2989, 5
        %v3061 = vsel %vm2073, %v3059, %v3060
        %v3062 = vrot.slane %v2990, 5
        %v3063 = vrot.slane %v3062, 4
        %v3064 = vrot.slane %v2991, 5
        %v3065 = vsel %vm2073, %v3063, %v3064
        %v3066 = vrot.slane %v3064, 4
        %v3067 = vrot.slane %v2992, 5
        %v3068 = vsel %vm2073, %v3066, %v3067
        %v3069 = vrot.slane %v2993, 5
        %v3070 = vrot.slane %v3069, 4
        %v3071 = vrot.slane %v2994, 5
        %v3072 = vsel %vm2073, %v3070, %v3071
        %v3073 = vrot.slane %v3071, 4
        %v3074 = vrot.slane %v2995, 5
        %v3075 = vsel %vm2073, %v3073, %v3074
        %v3076 = vunpack.c.l.b16 %v3023
        %v3077 = vunpack.c.l.b16 %v3026
        %v3078 = vunpack.c.l.b16 %v3030
        %v3079 = vunpack.c.l.b16 %v3033
        %v3080 = vunpack.c.l.b16 %v3037
        %v3081 = vunpack.c.l.b16 %v3040
        %v3082 = vunpack.c.l.b16 %v3044
        %v3083 = vunpack.c.l.b16 %v3047
        %v3084 = vunpack.c.l.b16 %v3051
        %v3085 = vunpack.c.l.b16 %v3054
        %v3086 = vunpack.c.l.b16 %v3058
        %v3087 = vunpack.c.l.b16 %v3061
        %v3088 = vunpack.c.l.b16 %v3065
        %v3089 = vunpack.c.l.b16 %v3068
        %v3090 = vunpack.c.l.b16 %v3072
        %v3091 = vunpack.c.l.b16 %v3075
        %v3092 = vpack.c.b16 %v3077, %v3076
        %v3093 = vpack.c.b16 %v3079, %v3078
        %v3094 = vpack.c.b16 %v3081, %v3080
        %v3095 = vpack.c.b16 %v3083, %v3082
        %v3096 = vpack.c.b16 %v3085, %v3084
        %v3097 = vpack.c.b16 %v3087, %v3086
        %v3098 = vpack.c.b16 %v3089, %v3088
        %v3099 = vpack.c.b16 %v3091, %v3090
        %3108 = vst [vmem:[#allocation3 + $0x40] sm:$0xff] %v3092
        %3109 = vst [vmem:[#allocation3 + $0x88] sm:$0xff] %v3093
        %3110 = vst [vmem:[#allocation3 + $0xd0] sm:$0xff] %v3094
        %3111 = vst [vmem:[#allocation3 + $0x118] sm:$0xff] %v3095
        %3112 = vst [vmem:[#allocation3 + $0x160] sm:$0xff] %v3096
        %3113 = vst [vmem:[#allocation3 + $0x1a8] sm:$0xff] %v3097
        %3114 = vst [vmem:[#allocation3 + $0x1f0] sm:$0xff] %v3098
        %3115 = vst [vmem:[#allocation3 + $0x238] sm:$0xff] %v3099
        %v3116 = vld [vmem:[#allocation3] sm:$0xff]
        %v3117 = vld [vmem:[#allocation3 + $0x8] sm:$0xff]
        %v3118 = vld [vmem:[#allocation3 + $0x10] sm:$0xff]
        %v3119 = vld [vmem:[#allocation3 + $0x18] sm:$0xff]
        %v3120 = vld [vmem:[#allocation3 + $0x20] sm:$0xff]
        %v3121 = vld [vmem:[#allocation3 + $0x28] sm:$0xff]
        %v3122 = vld [vmem:[#allocation3 + $0x30] sm:$0xff]
        %v3123 = vld [vmem:[#allocation3 + $0x38] sm:$0xff]
        %v3124 = vld [vmem:[#allocation3 + $0x40] sm:$0xff]
        %v3125 = vld [vmem:[#allocation3 + $0x48] sm:$0xff]
        %v3126 = vld [vmem:[#allocation3 + $0x50] sm:$0xff]
        %v3127 = vld [vmem:[#allocation3 + $0x58] sm:$0xff]
        %v3128 = vld [vmem:[#allocation3 + $0x60] sm:$0xff]
        %v3129 = vld [vmem:[#allocation3 + $0x68] sm:$0xff]
        %v3130 = vld [vmem:[#allocation3 + $0x70] sm:$0xff]
        %v3131 = vld [vmem:[#allocation3 + $0x78] sm:$0xff]
        %v3132 = vld [vmem:[#allocation3 + $0x80] sm:$0xff]
        %v3133 = vld [vmem:[#allocation3 + $0x88] sm:$0xff]
        %v3134 = vld [vmem:[#allocation3 + $0x90] sm:$0xff]
        %v3135 = vld [vmem:[#allocation3 + $0x98] sm:$0xff]
        %v3136 = vld [vmem:[#allocation3 + $0xa0] sm:$0xff]
        %v3137 = vld [vmem:[#allocation3 + $0xa8] sm:$0xff]
        %v3138 = vld [vmem:[#allocation3 + $0xb0] sm:$0xff]
        %v3139 = vld [vmem:[#allocation3 + $0xb8] sm:$0xff]
        %v3140 = vld [vmem:[#allocation3 + $0xc0] sm:$0xff]
        %v3141 = vld [vmem:[#allocation3 + $0xc8] sm:$0xff]
        %v3142 = vld [vmem:[#allocation3 + $0xd0] sm:$0xff]
        %v3143 = vld [vmem:[#allocation3 + $0xd8] sm:$0xff]
        %v3144 = vld [vmem:[#allocation3 + $0xe0] sm:$0xff]
        %v3145 = vld [vmem:[#allocation3 + $0xe8] sm:$0xff]
        %v3146 = vld [vmem:[#allocation3 + $0xf0] sm:$0xff]
        %v3147 = vld [vmem:[#allocation3 + $0xf8] sm:$0xff]
        %v3148 = vld [vmem:[#allocation3 + $0x100] sm:$0xff]
        %v3149 = vld [vmem:[#allocation3 + $0x108] sm:$0xff]
        %v3150 = vld [vmem:[#allocation3 + $0x110] sm:$0xff]
        %v3151 = vld [vmem:[#allocation3 + $0x118] sm:$0xff]
        %v3152 = vld [vmem:[#allocation3 + $0x120] sm:$0xff]
        %v3153 = vld [vmem:[#allocation3 + $0x128] sm:$0xff]
        %v3154 = vld [vmem:[#allocation3 + $0x130] sm:$0xff]
        %v3155 = vld [vmem:[#allocation3 + $0x138] sm:$0xff]
        %v3156 = vld [vmem:[#allocation3 + $0x140] sm:$0xff]
        %v3157 = vld [vmem:[#allocation3 + $0x148] sm:$0xff]
        %v3158 = vld [vmem:[#allocation3 + $0x150] sm:$0xff]
        %v3159 = vld [vmem:[#allocation3 + $0x158] sm:$0xff]
        %v3160 = vld [vmem:[#allocation3 + $0x160] sm:$0xff]
        %v3161 = vld [vmem:[#allocation3 + $0x168] sm:$0xff]
        %v3162 = vld [vmem:[#allocation3 + $0x170] sm:$0xff]
        %v3163 = vld [vmem:[#allocation3 + $0x178] sm:$0xff]
        %v3164 = vld [vmem:[#allocation3 + $0x180] sm:$0xff]
        %v3165 = vld [vmem:[#allocation3 + $0x188] sm:$0xff]
        %v3166 = vld [vmem:[#allocation3 + $0x190] sm:$0xff]
        %v3167 = vld [vmem:[#allocation3 + $0x198] sm:$0xff]
        %v3168 = vld [vmem:[#allocation3 + $0x1a0] sm:$0xff]
        %v3169 = vld [vmem:[#allocation3 + $0x1a8] sm:$0xff]
        %v3170 = vld [vmem:[#allocation3 + $0x1b0] sm:$0xff]
        %v3171 = vld [vmem:[#allocation3 + $0x1b8] sm:$0xff]
        %v3172 = vld [vmem:[#allocation3 + $0x1c0] sm:$0xff]
        %v3173 = vld [vmem:[#allocation3 + $0x1c8] sm:$0xff]
        %v3174 = vld [vmem:[#allocation3 + $0x1d0] sm:$0xff]
        %v3175 = vld [vmem:[#allocation3 + $0x1d8] sm:$0xff]
        %v3176 = vld [vmem:[#allocation3 + $0x1e0] sm:$0xff]
        %v3177 = vld [vmem:[#allocation3 + $0x1e8] sm:$0xff]
        %v3178 = vld [vmem:[#allocation3 + $0x1f0] sm:$0xff]
        %v3179 = vld [vmem:[#allocation3 + $0x1f8] sm:$0xff]
        %v3180 = vld [vmem:[#allocation3 + $0x200] sm:$0xff]
        %v3181 = vld [vmem:[#allocation3 + $0x208] sm:$0xff]
        %v3182 = vld [vmem:[#allocation3 + $0x210] sm:$0xff]
        %v3183 = vld [vmem:[#allocation3 + $0x218] sm:$0xff]
        %v3184 = vld [vmem:[#allocation3 + $0x220] sm:$0xff]
        %v3185 = vld [vmem:[#allocation3 + $0x228] sm:$0xff]
        %v3186 = vld [vmem:[#allocation3 + $0x230] sm:$0xff]
        %v3187 = vld [vmem:[#allocation3 + $0x238] sm:$0xff]
        %v3188 = vld [vmem:[%s3] sm:$0xf]
        %v3189 = vld [vmem:[%s3 + $0x4] sm:$0xf]
        %v3190 = vld [vmem:[%s3 + $0x8] sm:$0xf]
        %v3191 = vld [vmem:[%s3 + $0xc] sm:$0xf]
        %v3192 = vld [vmem:[%s3 + $0x10] sm:$0xf]
        %v3193 = vld [vmem:[%s3 + $0x14] sm:$0xf]
        %v3194 = vld [vmem:[%s3 + $0x18] sm:$0xf]
        %v3195 = vld [vmem:[%s3 + $0x1c] sm:$0xf]
        %v3196 = vld [vmem:[%s3 + $0x20] sm:$0xf]
        %v3197 = vld [vmem:[%s3 + $0x24] sm:$0xf]
        %v3198 = vld [vmem:[%s3 + $0x28] sm:$0xf]
        %v3199 = vld [vmem:[%s3 + $0x2c] sm:$0xf]
        %v3200 = vld [vmem:[%s3 + $0x30] sm:$0xf]
        %v3201 = vld [vmem:[%s3 + $0x34] sm:$0xf]
        %v3202 = vld [vmem:[%s3 + $0x38] sm:$0xf]
        %v3203 = vld [vmem:[%s3 + $0x3c] sm:$0xf]
        %v3204 = vld [vmem:[%s3 + $0x40] sm:$0xf]
        %v3205 = vld [vmem:[%s3 + $0x44] sm:$0xf]
        %v3206 = vld [vmem:[%s3 + $0x48] sm:$0xf]
        %v3207 = vld [vmem:[%s3 + $0x4c] sm:$0xf]
        %v3208 = vld [vmem:[%s3 + $0x50] sm:$0xf]
        %v3209 = vld [vmem:[%s3 + $0x54] sm:$0xf]
        %v3210 = vld [vmem:[%s3 + $0x58] sm:$0xf]
        %v3211 = vld [vmem:[%s3 + $0x5c] sm:$0xf]
        %v3212 = vld [vmem:[%s3 + $0x60] sm:$0xf]
        %v3213 = vld [vmem:[%s3 + $0x64] sm:$0xf]
        %v3214 = vld [vmem:[%s3 + $0x68] sm:$0xf]
        %v3215 = vld [vmem:[%s3 + $0x6c] sm:$0xf]
        %v3216 = vld [vmem:[%s3 + $0x70] sm:$0xf]
        %v3217 = vld [vmem:[%s3 + $0x74] sm:$0xf]
        %v3218 = vld [vmem:[%s3 + $0x78] sm:$0xf]
        %v3219 = vld [vmem:[%s3 + $0x7c] sm:$0xf]
        %v3220 = vld [vmem:[%s3 + $0x80] sm:$0xf]
        %v3221 = vld [vmem:[%s3 + $0x84] sm:$0xf]
        %v3222 = vld [vmem:[%s3 + $0x88] sm:$0xf]
        %v3223 = vld [vmem:[%s3 + $0x8c] sm:$0xf]
        %v3224 = vld [vmem:[%s3 + $0x90] sm:$0xf]
        %v3225 = vld [vmem:[%s3 + $0x94] sm:$0xf]
        %v3226 = vld [vmem:[%s3 + $0x98] sm:$0xf]
        %v3227 = vld [vmem:[%s3 + $0x9c] sm:$0xf]
        %v3228 = vld [vmem:[%s3 + $0xa0] sm:$0xf]
        %v3229 = vld [vmem:[%s3 + $0xa4] sm:$0xf]
        %v3230 = vld [vmem:[%s3 + $0xa8] sm:$0xf]
        %v3231 = vld [vmem:[%s3 + $0xac] sm:$0xf]
        %v3232 = vld [vmem:[%s3 + $0xb0] sm:$0xf]
        %v3233 = vld [vmem:[%s3 + $0xb4] sm:$0xf]
        %v3234 = vld [vmem:[%s3 + $0xb8] sm:$0xf]
        %v3235 = vld [vmem:[%s3 + $0xbc] sm:$0xf]
        %v3236 = vld [vmem:[%s3 + $0xc0] sm:$0xf]
        %v3237 = vld [vmem:[%s3 + $0xc4] sm:$0xf]
        %v3238 = vld [vmem:[%s3 + $0xc8] sm:$0xf]
        %v3239 = vld [vmem:[%s3 + $0xcc] sm:$0xf]
        %v3240 = vld [vmem:[%s3 + $0xd0] sm:$0xf]
        %v3241 = vld [vmem:[%s3 + $0xd4] sm:$0xf]
        %v3242 = vld [vmem:[%s3 + $0xd8] sm:$0xf]
        %v3243 = vld [vmem:[%s3 + $0xdc] sm:$0xf]
        %v3244 = vld [vmem:[%s3 + $0xe0] sm:$0xf]
        %v3245 = vld [vmem:[%s3 + $0xe4] sm:$0xf]
        %v3246 = vld [vmem:[%s3 + $0xe8] sm:$0xf]
        %v3247 = vld [vmem:[%s3 + $0xec] sm:$0xf]
        %v3248 = vld [vmem:[%s3 + $0xf0] sm:$0xf]
        %v3249 = vld [vmem:[%s3 + $0xf4] sm:$0xf]
        %v3250 = vld [vmem:[%s3 + $0xf8] sm:$0xf]
        %v3251 = vld [vmem:[%s3 + $0xfc] sm:$0xf]
        %v3252 = vld [vmem:[%s3 + $0x100] sm:$0xf]
        %v3253 = vld [vmem:[%s3 + $0x104] sm:$0xf]
        %v3254 = vld [vmem:[%s3 + $0x108] sm:$0xf]
        %v3255 = vld [vmem:[%s3 + $0x10c] sm:$0xf]
        %v3256 = vld [vmem:[%s3 + $0x110] sm:$0xf]
        %v3257 = vld [vmem:[%s3 + $0x114] sm:$0xf]
        %v3258 = vld [vmem:[%s3 + $0x118] sm:$0xf]
        %v3259 = vld [vmem:[%s3 + $0x11c] sm:$0xf]
        %v3260 = vld [vmem:[%s3 + $0x120] sm:$0xf]
        %v3261 = vld [vmem:[%s3 + $0x124] sm:$0xf]
        %v3262 = vld [vmem:[%s3 + $0x128] sm:$0xf]
        %v3263 = vld [vmem:[%s3 + $0x12c] sm:$0xf]
        %v3264 = vld [vmem:[%s3 + $0x130] sm:$0xf]
        %v3265 = vld [vmem:[%s3 + $0x134] sm:$0xf]
        %v3266 = vld [vmem:[%s3 + $0x138] sm:$0xf]
        %v3267 = vld [vmem:[%s3 + $0x13c] sm:$0xf]
        %v3268 = vld [vmem:[%s3 + $0x140] sm:$0xf]
        %v3269 = vld [vmem:[%s3 + $0x144] sm:$0xf]
        %v3270 = vld [vmem:[%s3 + $0x148] sm:$0xf]
        %v3271 = vld [vmem:[%s3 + $0x14c] sm:$0xf]
        %v3272 = vld [vmem:[%s3 + $0x150] sm:$0xf]
        %v3273 = vld [vmem:[%s3 + $0x154] sm:$0xf]
        %v3274 = vld [vmem:[%s3 + $0x158] sm:$0xf]
        %v3275 = vld [vmem:[%s3 + $0x15c] sm:$0xf]
        %v3276 = vld [vmem:[%s3 + $0x160] sm:$0xf]
        %v3277 = vld [vmem:[%s3 + $0x164] sm:$0xf]
        %v3278 = vld [vmem:[%s3 + $0x168] sm:$0xf]
        %v3279 = vld [vmem:[%s3 + $0x16c] sm:$0xf]
        %v3280 = vld [vmem:[%s3 + $0x170] sm:$0xf]
        %v3281 = vld [vmem:[%s3 + $0x174] sm:$0xf]
        %v3282 = vld [vmem:[%s3 + $0x178] sm:$0xf]
        %v3283 = vld [vmem:[%s3 + $0x17c] sm:$0xf]
        %v3284 = vld [vmem:[%s3 + $0x180] sm:$0xf]
        %v3285 = vld [vmem:[%s3 + $0x184] sm:$0xf]
        %v3286 = vld [vmem:[%s3 + $0x188] sm:$0xf]
        %v3287 = vld [vmem:[%s3 + $0x18c] sm:$0xf]
        %v3288 = vld [vmem:[%s3 + $0x190] sm:$0xf]
        %v3289 = vld [vmem:[%s3 + $0x194] sm:$0xf]
        %v3290 = vld [vmem:[%s3 + $0x198] sm:$0xf]
        %v3291 = vld [vmem:[%s3 + $0x19c] sm:$0xf]
        %v3292 = vld [vmem:[%s3 + $0x1a0] sm:$0xf]
        %v3293 = vld [vmem:[%s3 + $0x1a4] sm:$0xf]
        %v3294 = vld [vmem:[%s3 + $0x1a8] sm:$0xf]
        %v3295 = vld [vmem:[%s3 + $0x1ac] sm:$0xf]
        %v3296 = vld [vmem:[%s3 + $0x1b0] sm:$0xf]
        %v3297 = vld [vmem:[%s3 + $0x1b4] sm:$0xf]
        %v3298 = vld [vmem:[%s3 + $0x1b8] sm:$0xf]
        %v3299 = vld [vmem:[%s3 + $0x1bc] sm:$0xf]
        %v3300 = vld [vmem:[%s3 + $0x1c0] sm:$0xf]
        %v3301 = vld [vmem:[%s3 + $0x1c4] sm:$0xf]
        %v3302 = vld [vmem:[%s3 + $0x1c8] sm:$0xf]
        %v3303 = vld [vmem:[%s3 + $0x1cc] sm:$0xf]
        %v3304 = vld [vmem:[%s3 + $0x1d0] sm:$0xf]
        %v3305 = vld [vmem:[%s3 + $0x1d4] sm:$0xf]
        %v3306 = vld [vmem:[%s3 + $0x1d8] sm:$0xf]
        %v3307 = vld [vmem:[%s3 + $0x1dc] sm:$0xf]
        %v3308 = vld [vmem:[%s3 + $0x1e0] sm:$0xf]
        %v3309 = vld [vmem:[%s3 + $0x1e4] sm:$0xf]
        %v3310 = vld [vmem:[%s3 + $0x1e8] sm:$0xf]
        %v3311 = vld [vmem:[%s3 + $0x1ec] sm:$0xf]
        %v3312 = vld [vmem:[%s3 + $0x1f0] sm:$0xf]
        %v3313 = vld [vmem:[%s3 + $0x1f4] sm:$0xf]
        %v3314 = vld [vmem:[%s3 + $0x1f8] sm:$0xf]
        %v3315 = vld [vmem:[%s3 + $0x1fc] sm:$0xf]
        %v3316 = vld [vmem:[%s3 + $0x200] sm:$0xf]
        %v3317 = vld [vmem:[%s3 + $0x204] sm:$0xf]
        %v3318 = vld [vmem:[%s3 + $0x208] sm:$0xf]
        %v3319 = vld [vmem:[%s3 + $0x20c] sm:$0xf]
        %v3320 = vld [vmem:[%s3 + $0x210] sm:$0xf]
        %v3321 = vld [vmem:[%s3 + $0x214] sm:$0xf]
        %v3322 = vld [vmem:[%s3 + $0x218] sm:$0xf]
        %v3323 = vld [vmem:[%s3 + $0x21c] sm:$0xf]
        %v3324 = vld [vmem:[%s3 + $0x220] sm:$0xf]
        %v3325 = vld [vmem:[%s3 + $0x224] sm:$0xf]
        %v3326 = vld [vmem:[%s3 + $0x228] sm:$0xf]
        %v3327 = vld [vmem:[%s3 + $0x22c] sm:$0xf]
        %v3328 = vld [vmem:[%s3 + $0x230] sm:$0xf]
        %v3329 = vld [vmem:[%s3 + $0x234] sm:$0xf]
        %v3330 = vld [vmem:[%s3 + $0x238] sm:$0xf]
        %v3331 = vld [vmem:[%s3 + $0x23c] sm:$0xf]
        %v3332 = vld [vmem:[%s4] sm:$0x1]
        %v3334 = vlaneseq
        %v3335 = vshrl.u32 %v3334, 7
        %v3336 = vsub.s32 0, %v3335
        %v3337 = vrot.slane %v3332, %v3336
        %v3483 = vunpack.c.l.b16 %v3188
        %v3484 = vunpack.c.l.b16 %v3189
        %v3485 = vunpack.c.l.b16 %v3190
        %v3486 = vunpack.c.l.b16 %v3191
        %v3487 = vunpack.c.l.b16 %v3192
        %v3488 = vunpack.c.l.b16 %v3193
        %v3489 = vunpack.c.l.b16 %v3194
        %v3490 = vunpack.c.l.b16 %v3195
        %v3491 = vunpack.c.l.b16 %v3196
        %v3492 = vunpack.c.l.b16 %v3197
        %v3493 = vunpack.c.l.b16 %v3198
        %v3494 = vunpack.c.l.b16 %v3199
        %v3495 = vunpack.c.l.b16 %v3200
        %v3496 = vunpack.c.l.b16 %v3201
        %v3497 = vunpack.c.l.b16 %v3202
        %v3498 = vunpack.c.l.b16 %v3203
        %v3499 = vunpack.c.l.b16 %v3204
        %v3500 = vunpack.c.l.b16 %v3205
        %v3501 = vunpack.c.l.b16 %v3206
        %v3502 = vunpack.c.l.b16 %v3207
        %v3503 = vunpack.c.l.b16 %v3208
        %v3504 = vunpack.c.l.b16 %v3209
        %v3505 = vunpack.c.l.b16 %v3210
        %v3506 = vunpack.c.l.b16 %v3211
        %v3507 = vunpack.c.l.b16 %v3212
        %v3508 = vunpack.c.l.b16 %v3213
        %v3509 = vunpack.c.l.b16 %v3214
        %v3510 = vunpack.c.l.b16 %v3215
        %v3511 = vunpack.c.l.b16 %v3216
        %v3512 = vunpack.c.l.b16 %v3217
        %v3513 = vunpack.c.l.b16 %v3218
        %v3514 = vunpack.c.l.b16 %v3219
        %v3515 = vunpack.c.l.b16 %v3220
        %v3516 = vunpack.c.l.b16 %v3221
        %v3517 = vunpack.c.l.b16 %v3222
        %v3518 = vunpack.c.l.b16 %v3223
        %v3519 = vunpack.c.l.b16 %v3224
        %v3520 = vunpack.c.l.b16 %v3225
        %v3521 = vunpack.c.l.b16 %v3226
        %v3522 = vunpack.c.l.b16 %v3227
        %v3523 = vunpack.c.l.b16 %v3228
        %v3524 = vunpack.c.l.b16 %v3229
        %v3525 = vunpack.c.l.b16 %v3230
        %v3526 = vunpack.c.l.b16 %v3231
        %v3527 = vunpack.c.l.b16 %v3232
        %v3528 = vunpack.c.l.b16 %v3233
        %v3529 = vunpack.c.l.b16 %v3234
        %v3530 = vunpack.c.l.b16 %v3235
        %v3531 = vunpack.c.l.b16 %v3236
        %v3532 = vunpack.c.l.b16 %v3237
        %v3533 = vunpack.c.l.b16 %v3238
        %v3534 = vunpack.c.l.b16 %v3239
        %v3535 = vunpack.c.l.b16 %v3240
        %v3536 = vunpack.c.l.b16 %v3241
        %v3537 = vunpack.c.l.b16 %v3242
        %v3538 = vunpack.c.l.b16 %v3243
        %v3539 = vunpack.c.l.b16 %v3244
        %v3540 = vunpack.c.l.b16 %v3245
        %v3541 = vunpack.c.l.b16 %v3246
        %v3542 = vunpack.c.l.b16 %v3247
        %v3543 = vunpack.c.l.b16 %v3248
        %v3544 = vunpack.c.l.b16 %v3249
        %v3545 = vunpack.c.l.b16 %v3250
        %v3546 = vunpack.c.l.b16 %v3251
        %v3547 = vunpack.c.l.b16 %v3252
        %v3548 = vunpack.c.l.b16 %v3253
        %v3549 = vunpack.c.l.b16 %v3254
        %v3550 = vunpack.c.l.b16 %v3255
        %v3551 = vunpack.c.l.b16 %v3256
        %v3552 = vunpack.c.l.b16 %v3257
        %v3553 = vunpack.c.l.b16 %v3258
        %v3554 = vunpack.c.l.b16 %v3259
        %v3555 = vunpack.c.l.b16 %v3260
        %v3556 = vunpack.c.l.b16 %v3261
        %v3557 = vunpack.c.l.b16 %v3262
        %v3558 = vunpack.c.l.b16 %v3263
        %v3559 = vunpack.c.l.b16 %v3264
        %v3560 = vunpack.c.l.b16 %v3265
        %v3561 = vunpack.c.l.b16 %v3266
        %v3562 = vunpack.c.l.b16 %v3267
        %v3563 = vunpack.c.l.b16 %v3268
        %v3564 = vunpack.c.l.b16 %v3269
        %v3565 = vunpack.c.l.b16 %v3270
        %v3566 = vunpack.c.l.b16 %v3271
        %v3567 = vunpack.c.l.b16 %v3272
        %v3568 = vunpack.c.l.b16 %v3273
        %v3569 = vunpack.c.l.b16 %v3274
        %v3570 = vunpack.c.l.b16 %v3275
        %v3571 = vunpack.c.l.b16 %v3276
        %v3572 = vunpack.c.l.b16 %v3277
        %v3573 = vunpack.c.l.b16 %v3278
        %v3574 = vunpack.c.l.b16 %v3279
        %v3575 = vunpack.c.l.b16 %v3280
        %v3576 = vunpack.c.l.b16 %v3281
        %v3577 = vunpack.c.l.b16 %v3282
        %v3578 = vunpack.c.l.b16 %v3283
        %v3579 = vunpack.c.l.b16 %v3284
        %v3580 = vunpack.c.l.b16 %v3285
        %v3581 = vunpack.c.l.b16 %v3286
        %v3582 = vunpack.c.l.b16 %v3287
        %v3583 = vunpack.c.l.b16 %v3288
        %v3584 = vunpack.c.l.b16 %v3289
        %v3585 = vunpack.c.l.b16 %v3290
        %v3586 = vunpack.c.l.b16 %v3291
        %v3587 = vunpack.c.l.b16 %v3292
        %v3588 = vunpack.c.l.b16 %v3293
        %v3589 = vunpack.c.l.b16 %v3294
        %v3590 = vunpack.c.l.b16 %v3295
        %v3591 = vunpack.c.l.b16 %v3296
        %v3592 = vunpack.c.l.b16 %v3297
        %v3593 = vunpack.c.l.b16 %v3298
        %v3594 = vunpack.c.l.b16 %v3299
        %v3595 = vunpack.c.l.b16 %v3300
        %v3596 = vunpack.c.l.b16 %v3301
        %v3597 = vunpack.c.l.b16 %v3302
        %v3598 = vunpack.c.l.b16 %v3303
        %v3599 = vunpack.c.l.b16 %v3304
        %v3600 = vunpack.c.l.b16 %v3305
        %v3601 = vunpack.c.l.b16 %v3306
        %v3602 = vunpack.c.l.b16 %v3307
        %v3603 = vunpack.c.l.b16 %v3308
        %v3604 = vunpack.c.l.b16 %v3309
        %v3605 = vunpack.c.l.b16 %v3310
        %v3606 = vunpack.c.l.b16 %v3311
        %v3607 = vunpack.c.l.b16 %v3312
        %v3608 = vunpack.c.l.b16 %v3313
        %v3609 = vunpack.c.l.b16 %v3314
        %v3610 = vunpack.c.l.b16 %v3315
        %v3611 = vunpack.c.l.b16 %v3316
        %v3612 = vunpack.c.l.b16 %v3317
        %v3613 = vunpack.c.l.b16 %v3318
        %v3614 = vunpack.c.l.b16 %v3319
        %v3615 = vunpack.c.l.b16 %v3320
        %v3616 = vunpack.c.l.b16 %v3321
        %v3617 = vunpack.c.l.b16 %v3322
        %v3618 = vunpack.c.l.b16 %v3323
        %v3619 = vunpack.c.l.b16 %v3324
        %v3620 = vunpack.c.l.b16 %v3325
        %v3621 = vunpack.c.l.b16 %v3326
        %v3622 = vunpack.c.l.b16 %v3327
        %v3623 = vunpack.c.l.b16 %v3328
        %v3624 = vunpack.c.l.b16 %v3329
        %v3625 = vunpack.c.l.b16 %v3330
        %v3626 = vunpack.c.l.b16 %v3331
        %v3627 = vpack.c.b16 %v3484, %v3483
        %v3628 = vpack.c.b16 %v3486, %v3485
        %v3629 = vpack.c.b16 %v3488, %v3487
        %v3630 = vpack.c.b16 %v3490, %v3489
        %v3631 = vpack.c.b16 %v3492, %v3491
        %v3632 = vpack.c.b16 %v3494, %v3493
        %v3633 = vpack.c.b16 %v3496, %v3495
        %v3634 = vpack.c.b16 %v3498, %v3497
        %v3635 = vpack.c.b16 %v3500, %v3499
        %v3636 = vpack.c.b16 %v3502, %v3501
        %v3637 = vpack.c.b16 %v3504, %v3503
        %v3638 = vpack.c.b16 %v3506, %v3505
        %v3639 = vpack.c.b16 %v3508, %v3507
        %v3640 = vpack.c.b16 %v3510, %v3509
        %v3641 = vpack.c.b16 %v3512, %v3511
        %v3642 = vpack.c.b16 %v3514, %v3513
        %v3643 = vpack.c.b16 %v3516, %v3515
        %v3644 = vpack.c.b16 %v3518, %v3517
        %v3645 = vpack.c.b16 %v3520, %v3519
        %v3646 = vpack.c.b16 %v3522, %v3521
        %v3647 = vpack.c.b16 %v3524, %v3523
        %v3648 = vpack.c.b16 %v3526, %v3525
        %v3649 = vpack.c.b16 %v3528, %v3527
        %v3650 = vpack.c.b16 %v3530, %v3529
        %v3651 = vpack.c.b16 %v3532, %v3531
        %v3652 = vpack.c.b16 %v3534, %v3533
        %v3653 = vpack.c.b16 %v3536, %v3535
        %v3654 = vpack.c.b16 %v3538, %v3537
        %v3655 = vpack.c.b16 %v3540, %v3539
        %v3656 = vpack.c.b16 %v3542, %v3541
        %v3657 = vpack.c.b16 %v3544, %v3543
        %v3658 = vpack.c.b16 %v3546, %v3545
        %v3659 = vpack.c.b16 %v3548, %v3547
        %v3660 = vpack.c.b16 %v3550, %v3549
        %v3661 = vpack.c.b16 %v3552, %v3551
        %v3662 = vpack.c.b16 %v3554, %v3553
        %v3663 = vpack.c.b16 %v3556, %v3555
        %v3664 = vpack.c.b16 %v3558, %v3557
        %v3665 = vpack.c.b16 %v3560, %v3559
        %v3666 = vpack.c.b16 %v3562, %v3561
        %v3667 = vpack.c.b16 %v3564, %v3563
        %v3668 = vpack.c.b16 %v3566, %v3565
        %v3669 = vpack.c.b16 %v3568, %v3567
        %v3670 = vpack.c.b16 %v3570, %v3569
        %v3671 = vpack.c.b16 %v3572, %v3571
        %v3672 = vpack.c.b16 %v3574, %v3573
        %v3673 = vpack.c.b16 %v3576, %v3575
        %v3674 = vpack.c.b16 %v3578, %v3577
        %v3675 = vpack.c.b16 %v3580, %v3579
        %v3676 = vpack.c.b16 %v3582, %v3581
        %v3677 = vpack.c.b16 %v3584, %v3583
        %v3678 = vpack.c.b16 %v3586, %v3585
        %v3679 = vpack.c.b16 %v3588, %v3587
        %v3680 = vpack.c.b16 %v3590, %v3589
        %v3681 = vpack.c.b16 %v3592, %v3591
        %v3682 = vpack.c.b16 %v3594, %v3593
        %v3683 = vpack.c.b16 %v3596, %v3595
        %v3684 = vpack.c.b16 %v3598, %v3597
        %v3685 = vpack.c.b16 %v3600, %v3599
        %v3686 = vpack.c.b16 %v3602, %v3601
        %v3687 = vpack.c.b16 %v3604, %v3603
        %v3688 = vpack.c.b16 %v3606, %v3605
        %v3689 = vpack.c.b16 %v3608, %v3607
        %v3690 = vpack.c.b16 %v3610, %v3609
        %v3691 = vpack.c.b16 %v3612, %v3611
        %v3692 = vpack.c.b16 %v3614, %v3613
        %v3693 = vpack.c.b16 %v3616, %v3615
        %v3694 = vpack.c.b16 %v3618, %v3617
        %v3695 = vpack.c.b16 %v3620, %v3619
        %v3696 = vpack.c.b16 %v3622, %v3621
        %v3697 = vpack.c.b16 %v3624, %v3623
        %v3698 = vpack.c.b16 %v3626, %v3625
        %3771 = vmatprep.subr.bf16.mxu0 0
        %3772 = vmatpush1.bf16.msra.mxu0 %v3627
        %3773 = vmatprep.subr.bf16.mxu0 0
        %3774 = vmatpush1.bf16.msra.mxu0 %v3628
        %3775 = vmatprep.subr.bf16.mxu0 0
        %3776 = vmatpush1.bf16.msra.mxu0 %v3629
        %3777 = vmatprep.subr.bf16.mxu0 0
        %3778 = vmatpush1.bf16.msra.mxu0 %v3630
        %3779 = vmatprep.subr.bf16.mxu0 0
        %3780 = vmatpush1.bf16.msra.mxu0 %v3631
        %3781 = vmatprep.subr.bf16.mxu0 0
        %3782 = vmatpush1.bf16.msra.mxu0 %v3632
        %3783 = vmatprep.subr.bf16.mxu0 0
        %3784 = vmatpush1.bf16.msra.mxu0 %v3633
        %3785 = vmatprep.subr.bf16.mxu0 0
        %3786 = vmatpush1.bf16.msra.mxu0 %v3634
        %3787 = vmatprep.subr.bf16.mxu0 0
        %3788 = vmatpush1.bf16.msra.mxu0 %v3635
        %3789 = vmatprep.subr.bf16.mxu0 0
        %3790 = vmatpush1.bf16.msra.mxu0 %v3636
        %3791 = vmatprep.subr.bf16.mxu0 0
        %3792 = vmatpush1.bf16.msra.mxu0 %v3637
        %3793 = vmatprep.subr.bf16.mxu0 0
        %3794 = vmatpush1.bf16.msra.mxu0 %v3638
        %3795 = vmatprep.subr.bf16.mxu0 0
        %3796 = vmatpush1.bf16.msra.mxu0 %v3639
        %3797 = vmatprep.subr.bf16.mxu0 0
        %3798 = vmatpush1.bf16.msra.mxu0 %v3640
        %3799 = vmatprep.subr.bf16.mxu0 0
        %3800 = vmatpush1.bf16.msra.mxu0 %v3641
        %3801 = vmatprep.subr.bf16.mxu0 0
        %3802 = vmatpush1.bf16.msra.mxu0 %v3642
        %3803 = vmatprep.mubr.bf16.mxu0 %v3117
        %3804 = vmatmul.mubr.bf16.gmra.mrb[0].mxu0 %v3116
        %v3805 = vpop.f32.mrb[0].mxu0
        %v3806 = vadd.f32 %v3337, %v3805
        %v3807 = vpop.f32.mrb[0].mxu0
        %v3808 = vpop.f32.mrb[0].mxu0
        %v3809 = vadd.f32 %v3337, %v3808
        %v3810 = vpop.f32.mrb[0].mxu0
        %3811 = vmatprep.mubr.bf16.mxu0 %v3126
        %3812 = vmatmul.mubr.bf16.gmra.mrb[0].mxu0 %v3125
        %v3813 = vpop.f32.mrb[0].mxu0
        %v3814 = vadd.f32 %v3337, %v3813
        %v3815 = vpop.f32.mrb[0].mxu0
        %v3816 = vpop.f32.mrb[0].mxu0
        %v3817 = vadd.f32 %v3337, %v3816
        %v3818 = vpop.f32.mrb[0].mxu0
        %3819 = vmatprep.mubr.bf16.mxu0 %v3135
        %3820 = vmatmul.mubr.bf16.gmra.mrb[0].mxu0 %v3134
        %v3821 = vpop.f32.mrb[0].mxu0
        %v3822 = vadd.f32 %v3337, %v3821
        %v3823 = vpop.f32.mrb[0].mxu0
        %v3824 = vpop.f32.mrb[0].mxu0
        %v3825 = vadd.f32 %v3337, %v3824
        %v3826 = vpop.f32.mrb[0].mxu0
        %3827 = vmatprep.mubr.bf16.mxu0 %v3144
        %3828 = vmatmul.mubr.bf16.gmra.mrb[0].mxu0 %v3143
        %v3829 = vpop.f32.mrb[0].mxu0
        %v3830 = vadd.f32 %v3337, %v3829
        %v3831 = vpop.f32.mrb[0].mxu0
        %v3832 = vpop.f32.mrb[0].mxu0
        %v3833 = vadd.f32 %v3337, %v3832
        %v3834 = vpop.f32.mrb[0].mxu0
        %3835 = vmatprep.mubr.bf16.mxu0 %v3153
        %3836 = vmatmul.mubr.bf16.gmra.mrb[0].mxu0 %v3152
        %v3837 = vpop.f32.mrb[0].mxu0
        %v3838 = vadd.f32 %v3337, %v3837
        %v3839 = vpop.f32.mrb[0].mxu0
        %v3840 = vpop.f32.mrb[0].mxu0
        %v3841 = vadd.f32 %v3337, %v3840
        %v3842 = vpop.f32.mrb[0].mxu0
        %3843 = vmatprep.mubr.bf16.mxu0 %v3162
        %3844 = vmatmul.mubr.bf16.gmra.mrb[0].mxu0 %v3161
        %v3845 = vpop.f32.mrb[0].mxu0
        %v3846 = vadd.f32 %v3337, %v3845
        %v3847 = vpop.f32.mrb[0].mxu0
        %v3848 = vpop.f32.mrb[0].mxu0
        %v3849 = vadd.f32 %v3337, %v3848
        %v3850 = vpop.f32.mrb[0].mxu0
        %3851 = vmatprep.mubr.bf16.mxu0 %v3171
        %3852 = vmatmul.mubr.bf16.gmra.mrb[0].mxu0 %v3170
        %v3853 = vpop.f32.mrb[0].mxu0
        %v3854 = vadd.f32 %v3337, %v3853
        %v3855 = vpop.f32.mrb[0].mxu0
        %v3856 = vpop.f32.mrb[0].mxu0
        %v3857 = vadd.f32 %v3337, %v3856
        %v3858 = vpop.f32.mrb[0].mxu0
        %3859 = vmatprep.mubr.bf16.mxu0 %v3180
        %3860 = vmatmul.mubr.bf16.gmra.mrb[0].mxu0 %v3179
        %v3861 = vpop.f32.mrb[0].mxu0
        %v3862 = vadd.f32 %v3337, %v3861
        %v3863 = vpop.f32.mrb[0].mxu0
        %v3864 = vpop.f32.mrb[0].mxu0
        %v3865 = vadd.f32 %v3337, %v3864
        %v3866 = vpop.f32.mrb[0].mxu0
        %3867 = vdwg.mxu0
        %3868 = vmatprep.subr.bf16.mxu0 0
        %3869 = vmatpush1.bf16.msra.mxu0 %v3643
        %3870 = vmatprep.subr.bf16.mxu0 0
        %3871 = vmatpush1.bf16.msra.mxu0 %v3644
        %3872 = vmatprep.subr.bf16.mxu0 0
        %3873 = vmatpush1.bf16.msra.mxu0 %v3645
        %3874 = vmatprep.subr.bf16.mxu0 0
        %3875 = vmatpush1.bf16.msra.mxu0 %v3646
        %3876 = vmatprep.subr.bf16.mxu0 0
        %3877 = vmatpush1.bf16.msra.mxu0 %v3647
        %3878 = vmatprep.subr.bf16.mxu0 0
        %3879 = vmatpush1.bf16.msra.mxu0 %v3648
        %3880 = vmatprep.subr.bf16.mxu0 0
        %3881 = vmatpush1.bf16.msra.mxu0 %v3649
        %3882 = vmatprep.subr.bf16.mxu0 0
        %3883 = vmatpush1.bf16.msra.mxu0 %v3650
        %3884 = vmatprep.subr.bf16.mxu0 0
        %3885 = vmatpush1.bf16.msra.mxu0 %v3651
        %3886 = vmatprep.subr.bf16.mxu0 0
        %3887 = vmatpush1.bf16.msra.mxu0 %v3652
        %3888 = vmatprep.subr.bf16.mxu0 0
        %3889 = vmatpush1.bf16.msra.mxu0 %v3653
        %3890 = vmatprep.subr.bf16.mxu0 0
        %3891 = vmatpush1.bf16.msra.mxu0 %v3654
        %3892 = vmatprep.subr.bf16.mxu0 0
        %3893 = vmatpush1.bf16.msra.mxu0 %v3655
        %3894 = vmatprep.subr.bf16.mxu0 0
        %3895 = vmatpush1.bf16.msra.mxu0 %v3656
        %3896 = vmatprep.subr.bf16.mxu0 0
        %3897 = vmatpush1.bf16.msra.mxu0 %v3657
        %3898 = vmatprep.subr.bf16.mxu0 0
        %3899 = vmatpush1.bf16.msra.mxu0 %v3658
        %3900 = vmatprep.mubr.bf16.mxu0 %v3119
        %3901 = vmatmul.mubr.bf16.gmra.mrb[0].mxu0 %v3118
        %v3902 = vpop.f32.mrb[0].mxu0
        %v3903 = vadd.f32 %v3806, %v3902
        %v3904 = vpop.f32.mrb[0].mxu0
        %v3905 = vpop.f32.mrb[0].mxu0
        %v3906 = vadd.f32 %v3809, %v3905
        %v3907 = vpop.f32.mrb[0].mxu0
        %3908 = vmatprep.mubr.bf16.mxu0 %v3128
        %3909 = vmatmul.mubr.bf16.gmra.mrb[0].mxu0 %v3127
        %v3910 = vpop.f32.mrb[0].mxu0
        %v3911 = vadd.f32 %v3814, %v3910
        %v3912 = vpop.f32.mrb[0].mxu0
        %v3913 = vpop.f32.mrb[0].mxu0
        %v3914 = vadd.f32 %v3817, %v3913
        %v3915 = vpop.f32.mrb[0].mxu0
        %3916 = vmatprep.mubr.bf16.mxu0 %v3137
        %3917 = vmatmul.mubr.bf16.gmra.mrb[0].mxu0 %v3136
        %v3918 = vpop.f32.mrb[0].mxu0
        %v3919 = vadd.f32 %v3822, %v3918
        %v3920 = vpop.f32.mrb[0].mxu0
        %v3921 = vpop.f32.mrb[0].mxu0
        %v3922 = vadd.f32 %v3825, %v3921
        %v3923 = vpop.f32.mrb[0].mxu0
        %3924 = vmatprep.mubr.bf16.mxu0 %v3146
        %3925 = vmatmul.mubr.bf16.gmra.mrb[0].mxu0 %v3145
        %v3926 = vpop.f32.mrb[0].mxu0
        %v3927 = vadd.f32 %v3830, %v3926
        %v3928 = vpop.f32.mrb[0].mxu0
        %v3929 = vpop.f32.mrb[0].mxu0
        %v3930 = vadd.f32 %v3833, %v3929
        %v3931 = vpop.f32.mrb[0].mxu0
        %3932 = vmatprep.mubr.bf16.mxu0 %v3155
        %3933 = vmatmul.mubr.bf16.gmra.mrb[0].mxu0 %v3154
        %v3934 = vpop.f32.mrb[0].mxu0
        %v3935 = vadd.f32 %v3838, %v3934
        %v3936 = vpop.f32.mrb[0].mxu0
        %v3937 = vpop.f32.mrb[0].mxu0
        %v3938 = vadd.f32 %v3841, %v3937
        %v3939 = vpop.f32.mrb[0].mxu0
        %3940 = vmatprep.mubr.bf16.mxu0 %v3164
        %3941 = vmatmul.mubr.bf16.gmra.mrb[0].mxu0 %v3163
        %v3942 = vpop.f32.mrb[0].mxu0
        %v3943 = vadd.f32 %v3846, %v3942
        %v3944 = vpop.f32.mrb[0].mxu0
        %v3945 = vpop.f32.mrb[0].mxu0
        %v3946 = vadd.f32 %v3849, %v3945
        %v3947 = vpop.f32.mrb[0].mxu0
        %3948 = vmatprep.mubr.bf16.mxu0 %v3173
        %3949 = vmatmul.mubr.bf16.gmra.mrb[0].mxu0 %v3172
        %v3950 = vpop.f32.mrb[0].mxu0
        %v3951 = vadd.f32 %v3854, %v3950
        %v3952 = vpop.f32.mrb[0].mxu0
        %v3953 = vpop.f32.mrb[0].mxu0
        %v3954 = vadd.f32 %v3857, %v3953
        %v3955 = vpop.f32.mrb[0].mxu0
        %3956 = vmatprep.mubr.bf16.mxu0 %v3182
        %3957 = vmatmul.mubr.bf16.gmra.mrb[0].mxu0 %v3181
        %v3958 = vpop.f32.mrb[0].mxu0
        %v3959 = vadd.f32 %v3862, %v3958
        %v3960 = vpop.f32.mrb[0].mxu0
        %v3961 = vpop.f32.mrb[0].mxu0
        %v3962 = vadd.f32 %v3865, %v3961
        %v3963 = vpop.f32.mrb[0].mxu0
        %3964 = vdwg.mxu0
        %3965 = vmatprep.subr.bf16.mxu0 0
        %3966 = vmatpush1.bf16.msra.mxu0 %v3659
        %3967 = vmatprep.subr.bf16.mxu0 0
        %3968 = vmatpush1.bf16.msra.mxu0 %v3660
        %3969 = vmatprep.subr.bf16.mxu0 0
        %3970 = vmatpush1.bf16.msra.mxu0 %v3661
        %3971 = vmatprep.subr.bf16.mxu0 0
        %3972 = vmatpush1.bf16.msra.mxu0 %v3662
        %3973 = vmatprep.subr.bf16.mxu0 0
        %3974 = vmatpush1.bf16.msra.mxu0 %v3663
        %3975 = vmatprep.subr.bf16.mxu0 0
        %3976 = vmatpush1.bf16.msra.mxu0 %v3664
        %3977 = vmatprep.subr.bf16.mxu0 0
        %3978 = vmatpush1.bf16.msra.mxu0 %v3665
        %3979 = vmatprep.subr.bf16.mxu0 0
        %3980 = vmatpush1.bf16.msra.mxu0 %v3666
        %3981 = vmatprep.subr.bf16.mxu0 0
        %3982 = vmatpush1.bf16.msra.mxu0 %v3667
        %3983 = vmatprep.subr.bf16.mxu0 0
        %3984 = vmatpush1.bf16.msra.mxu0 %v3668
        %3985 = vmatprep.subr.bf16.mxu0 0
        %3986 = vmatpush1.bf16.msra.mxu0 %v3669
        %3987 = vmatprep.subr.bf16.mxu0 0
        %3988 = vmatpush1.bf16.msra.mxu0 %v3670
        %3989 = vmatprep.subr.bf16.mxu0 0
        %3990 = vmatpush1.bf16.msra.mxu0 %v3671
        %3991 = vmatprep.subr.bf16.mxu0 0
        %3992 = vmatpush1.bf16.msra.mxu0 %v3672
        %3993 = vmatprep.subr.bf16.mxu0 0
        %3994 = vmatpush1.bf16.msra.mxu0 %v3673
        %3995 = vmatprep.subr.bf16.mxu0 0
        %3996 = vmatpush1.bf16.msra.mxu0 %v3674
        %3997 = vmatprep.mubr.bf16.mxu0 %v3121
        %3998 = vmatmul.mubr.bf16.gmra.mrb[0].mxu0 %v3120
        %v3999 = vpop.f32.mrb[0].mxu0
        %v4000 = vadd.f32 %v3903, %v3999
        %v4001 = vpop.f32.mrb[0].mxu0
        %v4002 = vpop.f32.mrb[0].mxu0
        %v4003 = vadd.f32 %v3906, %v4002
        %v4004 = vpop.f32.mrb[0].mxu0
        %4005 = vmatprep.mubr.bf16.mxu0 %v3130
        %4006 = vmatmul.mubr.bf16.gmra.mrb[0].mxu0 %v3129
        %v4007 = vpop.f32.mrb[0].mxu0
        %v4008 = vadd.f32 %v3911, %v4007
        %v4009 = vpop.f32.mrb[0].mxu0
        %v4010 = vpop.f32.mrb[0].mxu0
        %v4011 = vadd.f32 %v3914, %v4010
        %v4012 = vpop.f32.mrb[0].mxu0
        %4013 = vmatprep.mubr.bf16.mxu0 %v3139
        %4014 = vmatmul.mubr.bf16.gmra.mrb[0].mxu0 %v3138
        %v4015 = vpop.f32.mrb[0].mxu0
        %v4016 = vadd.f32 %v3919, %v4015
        %v4017 = vpop.f32.mrb[0].mxu0
        %v4018 = vpop.f32.mrb[0].mxu0
        %v4019 = vadd.f32 %v3922, %v4018
        %v4020 = vpop.f32.mrb[0].mxu0
        %4021 = vmatprep.mubr.bf16.mxu0 %v3148
        %4022 = vmatmul.mubr.bf16.gmra.mrb[0].mxu0 %v3147
        %v4023 = vpop.f32.mrb[0].mxu0
        %v4024 = vadd.f32 %v3927, %v4023
        %v4025 = vpop.f32.mrb[0].mxu0
        %v4026 = vpop.f32.mrb[0].mxu0
        %v4027 = vadd.f32 %v3930, %v4026
        %v4028 = vpop.f32.mrb[0].mxu0
        %4029 = vmatprep.mubr.bf16.mxu0 %v3157
        %4030 = vmatmul.mubr.bf16.gmra.mrb[0].mxu0 %v3156
        %v4031 = vpop.f32.mrb[0].mxu0
        %v4032 = vadd.f32 %v3935, %v4031
        %v4033 = vpop.f32.mrb[0].mxu0
        %v4034 = vpop.f32.mrb[0].mxu0
        %v4035 = vadd.f32 %v3938, %v4034
        %v4036 = vpop.f32.mrb[0].mxu0
        %4037 = vmatprep.mubr.bf16.mxu0 %v3166
        %4038 = vmatmul.mubr.bf16.gmra.mrb[0].mxu0 %v3165
        %v4039 = vpop.f32.mrb[0].mxu0
        %v4040 = vadd.f32 %v3943, %v4039
        %v4041 = vpop.f32.mrb[0].mxu0
        %v4042 = vpop.f32.mrb[0].mxu0
        %v4043 = vadd.f32 %v3946, %v4042
        %v4044 = vpop.f32.mrb[0].mxu0
        %4045 = vmatprep.mubr.bf16.mxu0 %v3175
        %4046 = vmatmul.mubr.bf16.gmra.mrb[0].mxu0 %v3174
        %v4047 = vpop.f32.mrb[0].mxu0
        %v4048 = vadd.f32 %v3951, %v4047
        %v4049 = vpop.f32.mrb[0].mxu0
        %v4050 = vpop.f32.mrb[0].mxu0
        %v4051 = vadd.f32 %v3954, %v4050
        %v4052 = vpop.f32.mrb[0].mxu0
        %4053 = vmatprep.mubr.bf16.mxu0 %v3184
        %4054 = vmatmul.mubr.bf16.gmra.mrb[0].mxu0 %v3183
        %v4055 = vpop.f32.mrb[0].mxu0
        %v4056 = vadd.f32 %v3959, %v4055
        %v4057 = vpop.f32.mrb[0].mxu0
        %v4058 = vpop.f32.mrb[0].mxu0
        %v4059 = vadd.f32 %v3962, %v4058
        %v4060 = vpop.f32.mrb[0].mxu0
        %4061 = vdwg.mxu0
        %4062 = vmatprep.subr.bf16.mxu0 0
        %4063 = vmatpush1.bf16.msra.mxu0 %v3675
        %4064 = vmatprep.subr.bf16.mxu0 0
        %4065 = vmatpush1.bf16.msra.mxu0 %v3676
        %4066 = vmatprep.subr.bf16.mxu0 0
        %4067 = vmatpush1.bf16.msra.mxu0 %v3677
        %4068 = vmatprep.subr.bf16.mxu0 0
        %4069 = vmatpush1.bf16.msra.mxu0 %v3678
        %4070 = vmatprep.subr.bf16.mxu0 0
        %4071 = vmatpush1.bf16.msra.mxu0 %v3679
        %4072 = vmatprep.subr.bf16.mxu0 0
        %4073 = vmatpush1.bf16.msra.mxu0 %v3680
        %4074 = vmatprep.subr.bf16.mxu0 0
        %4075 = vmatpush1.bf16.msra.mxu0 %v3681
        %4076 = vmatprep.subr.bf16.mxu0 0
        %4077 = vmatpush1.bf16.msra.mxu0 %v3682
        %4078 = vmatprep.subr.bf16.mxu0 0
        %4079 = vmatpush1.bf16.msra.mxu0 %v3683
        %4080 = vmatprep.subr.bf16.mxu0 0
        %4081 = vmatpush1.bf16.msra.mxu0 %v3684
        %4082 = vmatprep.subr.bf16.mxu0 0
        %4083 = vmatpush1.bf16.msra.mxu0 %v3685
        %4084 = vmatprep.subr.bf16.mxu0 0
        %4085 = vmatpush1.bf16.msra.mxu0 %v3686
        %4086 = vmatprep.subr.bf16.mxu0 0
        %4087 = vmatpush1.bf16.msra.mxu0 %v3687
        %4088 = vmatprep.subr.bf16.mxu0 0
        %4089 = vmatpush1.bf16.msra.mxu0 %v3688
        %4090 = vmatprep.subr.bf16.mxu0 0
        %4091 = vmatpush1.bf16.msra.mxu0 %v3689
        %4092 = vmatprep.subr.bf16.mxu0 0
        %4093 = vmatpush1.bf16.msra.mxu0 %v3690
        %4094 = vmatprep.mubr.bf16.mxu0 %v3123
        %4095 = vmatmul.mubr.bf16.gmra.mrb[0].mxu0 %v3122
        %v4096 = vpop.f32.mrb[0].mxu0
        %v4097 = vadd.f32 %v4000, %v4096
        %v4098 = vpop.f32.mrb[0].mxu0
        %v4099 = vpop.f32.mrb[0].mxu0
        %v4100 = vadd.f32 %v4003, %v4099
        %v4101 = vpop.f32.mrb[0].mxu0
        %4102 = vmatprep.mubr.bf16.mxu0 %v3132
        %4103 = vmatmul.mubr.bf16.gmra.mrb[0].mxu0 %v3131
        %v4104 = vpop.f32.mrb[0].mxu0
        %v4105 = vadd.f32 %v4008, %v4104
        %v4106 = vpop.f32.mrb[0].mxu0
        %v4107 = vpop.f32.mrb[0].mxu0
        %v4108 = vadd.f32 %v4011, %v4107
        %v4109 = vpop.f32.mrb[0].mxu0
        %4110 = vmatprep.mubr.bf16.mxu0 %v3141
        %4111 = vmatmul.mubr.bf16.gmra.mrb[0].mxu0 %v3140
        %v4112 = vpop.f32.mrb[0].mxu0
        %v4113 = vadd.f32 %v4016, %v4112
        %v4114 = vpop.f32.mrb[0].mxu0
        %v4115 = vpop.f32.mrb[0].mxu0
        %v4116 = vadd.f32 %v4019, %v4115
        %v4117 = vpop.f32.mrb[0].mxu0
        %4118 = vmatprep.mubr.bf16.mxu0 %v3150
        %4119 = vmatmul.mubr.bf16.gmra.mrb[0].mxu0 %v3149
        %v4120 = vpop.f32.mrb[0].mxu0
        %v4121 = vadd.f32 %v4024, %v4120
        %v4122 = vpop.f32.mrb[0].mxu0
        %v4123 = vpop.f32.mrb[0].mxu0
        %v4124 = vadd.f32 %v4027, %v4123
        %v4125 = vpop.f32.mrb[0].mxu0
        %4126 = vmatprep.mubr.bf16.mxu0 %v3159
        %4127 = vmatmul.mubr.bf16.gmra.mrb[0].mxu0 %v3158
        %v4128 = vpop.f32.mrb[0].mxu0
        %v4129 = vadd.f32 %v4032, %v4128
        %v4130 = vpop.f32.mrb[0].mxu0
        %v4131 = vpop.f32.mrb[0].mxu0
        %v4132 = vadd.f32 %v4035, %v4131
        %v4133 = vpop.f32.mrb[0].mxu0
        %4134 = vmatprep.mubr.bf16.mxu0 %v3168
        %4135 = vmatmul.mubr.bf16.gmra.mrb[0].mxu0 %v3167
        %v4136 = vpop.f32.mrb[0].mxu0
        %v4137 = vadd.f32 %v4040, %v4136
        %v4138 = vpop.f32.mrb[0].mxu0
        %v4139 = vpop.f32.mrb[0].mxu0
        %v4140 = vadd.f32 %v4043, %v4139
        %v4141 = vpop.f32.mrb[0].mxu0
        %4142 = vmatprep.mubr.bf16.mxu0 %v3177
        %4143 = vmatmul.mubr.bf16.gmra.mrb[0].mxu0 %v3176
        %v4144 = vpop.f32.mrb[0].mxu0
        %v4145 = vadd.f32 %v4048, %v4144
        %v4146 = vpop.f32.mrb[0].mxu0
        %v4147 = vpop.f32.mrb[0].mxu0
        %v4148 = vadd.f32 %v4051, %v4147
        %v4149 = vpop.f32.mrb[0].mxu0
        %4150 = vmatprep.mubr.bf16.mxu0 %v3186
        %4151 = vmatmul.mubr.bf16.gmra.mrb[0].mxu0 %v3185
        %v4152 = vpop.f32.mrb[0].mxu0
        %v4153 = vadd.f32 %v4056, %v4152
        %v4154 = vpop.f32.mrb[0].mxu0
        %v4155 = vpop.f32.mrb[0].mxu0
        %v4156 = vadd.f32 %v4059, %v4155
        %v4157 = vpop.f32.mrb[0].mxu0
        %4158 = vdwg.mxu0
        %4159 = vmatprep.subr.bf16.mxu0 0
        %4160 = vmatpush1.bf16.msra.mxu0 %v3691
        %4161 = vmatprep.subr.bf16.mxu0 0
        %4162 = vmatpush1.bf16.msra.mxu0 %v3692
        %4163 = vmatprep.subr.bf16.mxu0 0
        %4164 = vmatpush1.bf16.msra.mxu0 %v3693
        %4165 = vmatprep.subr.bf16.mxu0 0
        %4166 = vmatpush1.bf16.msra.mxu0 %v3694
        %4167 = vmatprep.subr.bf16.mxu0 0
        %4168 = vmatpush1.bf16.msra.mxu0 %v3695
        %4169 = vmatprep.subr.bf16.mxu0 0
        %4170 = vmatpush1.bf16.msra.mxu0 %v3696
        %4171 = vmatprep.subr.bf16.mxu0 0
        %4172 = vmatpush1.bf16.msra.mxu0 %v3697
        %4173 = vmatprep.subr.bf16.mxu0 0
        %4174 = vmatpush1.bf16.msra.mxu0 %v3698
        %4175 = vmatprep.subr.bf16.mxu0 0
        %4176 = vmatpush1.bf16.msra.mxu0 0
        %4177 = vmatprep.subr.bf16.mxu0 0
        %4178 = vmatpush1.bf16.msra.mxu0 0
        %4179 = vmatprep.subr.bf16.mxu0 0
        %4180 = vmatpush1.bf16.msra.mxu0 0
        %4181 = vmatprep.subr.bf16.mxu0 0
        %4182 = vmatpush1.bf16.msra.mxu0 0
        %4183 = vmatprep.subr.bf16.mxu0 0
        %4184 = vmatpush1.bf16.msra.mxu0 0
        %4185 = vmatprep.subr.bf16.mxu0 0
        %4186 = vmatpush1.bf16.msra.mxu0 0
        %4187 = vmatprep.subr.bf16.mxu0 0
        %4188 = vmatpush1.bf16.msra.mxu0 0
        %4189 = vmatprep.subr.bf16.mxu0 0
        %4190 = vmatpush1.bf16.msra.mxu0 0
        %4191 = vmatprep.mubr.bf16.mxu0 0
        %4192 = vmatmul.mubr.bf16.gmra.mrb[0].mxu0 %v3124
        %v4193 = vpop.f32.mrb[0].mxu0
        %v4194 = vadd.f32 %v4097, %v4193
        %v4195 = vpop.f32.mrb[0].mxu0
        %v4196 = vpop.f32.mrb[0].mxu0
        %v4197 = vadd.f32 %v4100, %v4196
        %v4198 = vpop.f32.mrb[0].mxu0
        %4199 = vmatprep.mubr.bf16.mxu0 0
        %4200 = vmatmul.mubr.bf16.gmra.mrb[0].mxu0 %v3133
        %v4201 = vpop.f32.mrb[0].mxu0
        %v4202 = vadd.f32 %v4105, %v4201
        %v4203 = vpop.f32.mrb[0].mxu0
        %v4204 = vpop.f32.mrb[0].mxu0
        %v4205 = vadd.f32 %v4108, %v4204
        %v4206 = vpop.f32.mrb[0].mxu0
        %4207 = vmatprep.mubr.bf16.mxu0 0
        %4208 = vmatmul.mubr.bf16.gmra.mrb[0].mxu0 %v3142
        %v4209 = vpop.f32.mrb[0].mxu0
        %v4210 = vadd.f32 %v4113, %v4209
        %v4211 = vpop.f32.mrb[0].mxu0
        %v4212 = vpop.f32.mrb[0].mxu0
        %v4213 = vadd.f32 %v4116, %v4212
        %v4214 = vpop.f32.mrb[0].mxu0
        %4215 = vmatprep.mubr.bf16.mxu0 0
        %4216 = vmatmul.mubr.bf16.gmra.mrb[0].mxu0 %v3151
        %v4217 = vpop.f32.mrb[0].mxu0
        %v4218 = vadd.f32 %v4121, %v4217
        %v4219 = vpop.f32.mrb[0].mxu0
        %v4220 = vpop.f32.mrb[0].mxu0
        %v4221 = vadd.f32 %v4124, %v4220
        %v4222 = vpop.f32.mrb[0].mxu0
        %4223 = vmatprep.mubr.bf16.mxu0 0
        %4224 = vmatmul.mubr.bf16.gmra.mrb[0].mxu0 %v3160
        %v4225 = vpop.f32.mrb[0].mxu0
        %v4226 = vadd.f32 %v4129, %v4225
        %v4227 = vpop.f32.mrb[0].mxu0
        %v4228 = vpop.f32.mrb[0].mxu0
        %v4229 = vadd.f32 %v4132, %v4228
        %v4230 = vpop.f32.mrb[0].mxu0
        %4231 = vmatprep.mubr.bf16.mxu0 0
        %4232 = vmatmul.mubr.bf16.gmra.mrb[0].mxu0 %v3169
        %v4233 = vpop.f32.mrb[0].mxu0
        %v4234 = vadd.f32 %v4137, %v4233
        %v4235 = vpop.f32.mrb[0].mxu0
        %v4236 = vpop.f32.mrb[0].mxu0
        %v4237 = vadd.f32 %v4140, %v4236
        %v4238 = vpop.f32.mrb[0].mxu0
        %4239 = vmatprep.mubr.bf16.mxu0 0
        %4240 = vmatmul.mubr.bf16.gmra.mrb[0].mxu0 %v3178
        %v4241 = vpop.f32.mrb[0].mxu0
        %v4242 = vadd.f32 %v4145, %v4241
        %v4243 = vpop.f32.mrb[0].mxu0
        %v4244 = vpop.f32.mrb[0].mxu0
        %v4245 = vadd.f32 %v4148, %v4244
        %v4246 = vpop.f32.mrb[0].mxu0
        %4247 = vmatprep.mubr.bf16.mxu0 0
        %4248 = vmatmul.mubr.bf16.gmra.mrb[0].mxu0 %v3187
        %v4249 = vpop.f32.mrb[0].mxu0
        %v4250 = vadd.f32 %v4153, %v4249
        %v4251 = vpop.f32.mrb[0].mxu0
        %v4252 = vpop.f32.mrb[0].mxu0
        %v4253 = vadd.f32 %v4156, %v4252
        %v4254 = vpop.f32.mrb[0].mxu0
        %4255 = vdwg.mxu0
        %v4256 = vmax.f32 %v4194, 0.0
        %v4257 = vmax.f32 %v4197, 0.0
        %v4258 = vmax.f32 %v4202, 0.0
        %v4259 = vmax.f32 %v4205, 0.0
        %v4260 = vmax.f32 %v4210, 0.0
        %v4261 = vmax.f32 %v4213, 0.0
        %v4262 = vmax.f32 %v4218, 0.0
        %v4263 = vmax.f32 %v4221, 0.0
        %v4264 = vmax.f32 %v4226, 0.0
        %v4265 = vmax.f32 %v4229, 0.0
        %v4266 = vmax.f32 %v4234, 0.0
        %v4267 = vmax.f32 %v4237, 0.0
        %v4268 = vmax.f32 %v4242, 0.0
        %v4269 = vmax.f32 %v4245, 0.0
        %v4270 = vmax.f32 %v4250, 0.0
        %v4271 = vmax.f32 %v4253, 0.0
        %v4272 = vpack.c.bf16 %v4257, %v4256
        %v4273 = vpack.c.bf16 %v4259, %v4258
        %v4274 = vpack.c.bf16 %v4261, %v4260
        %v4275 = vpack.c.bf16 %v4263, %v4262
        %v4276 = vpack.c.bf16 %v4265, %v4264
        %v4277 = vpack.c.bf16 %v4267, %v4266
        %v4278 = vpack.c.bf16 %v4269, %v4268
        %v4279 = vpack.c.bf16 %v4271, %v4270
        %v4280 = vld [vmem:[%s5] sm:$0xff]
        %v4281 = vld [vmem:[%s5 + $0x8] sm:$0xff]
        %v4282 = vld [vmem:[%s5 + $0x10] sm:$0xff]
        %v4283 = vld [vmem:[%s5 + $0x18] sm:$0xff]
        %v4284 = vld [vmem:[%s5 + $0x20] sm:$0xff]
        %v4285 = vld [vmem:[%s5 + $0x28] sm:$0xff]
        %v4286 = vld [vmem:[%s5 + $0x30] sm:$0xff]
        %v4287 = vld [vmem:[%s5 + $0x38] sm:$0xff]
        %v4288 = vld [vmem:[%s5 + $0x40] sm:$0xff]
        %v4289 = vld [vmem:[%s5 + $0x48] sm:$0xff]
        %v4290 = vld [vmem:[%s5 + $0x50] sm:$0xff]
        %v4291 = vld [vmem:[%s5 + $0x58] sm:$0xff]
        %v4292 = vld [vmem:[%s5 + $0x60] sm:$0xff]
        %v4293 = vld [vmem:[%s5 + $0x68] sm:$0xff]
        %v4294 = vld [vmem:[%s5 + $0x70] sm:$0xff]
        %v4295 = vld [vmem:[%s5 + $0x78] sm:$0xff]
        %v4296 = vld [vmem:[%s5 + $0x80] sm:$0xff]
        %v4297 = vld [vmem:[%s5 + $0x88] sm:$0xff]
        %v4298 = vld [vmem:[%s5 + $0x90] sm:$0xff]
        %v4299 = vld [vmem:[%s5 + $0x98] sm:$0xff]
        %v4300 = vld [vmem:[%s5 + $0xa0] sm:$0xff]
        %v4301 = vld [vmem:[%s5 + $0xa8] sm:$0xff]
        %v4302 = vld [vmem:[%s5 + $0xb0] sm:$0xff]
        %v4303 = vld [vmem:[%s5 + $0xb8] sm:$0xff]
        %v4304 = vld [vmem:[%s5 + $0xc0] sm:$0xff]
        %v4305 = vld [vmem:[%s5 + $0xc8] sm:$0xff]
        %v4306 = vld [vmem:[%s5 + $0xd0] sm:$0xff]
        %v4307 = vld [vmem:[%s5 + $0xd8] sm:$0xff]
        %v4308 = vld [vmem:[%s5 + $0xe0] sm:$0xff]
        %v4309 = vld [vmem:[%s5 + $0xe8] sm:$0xff]
        %v4310 = vld [vmem:[%s5 + $0xf0] sm:$0xff]
        %v4311 = vld [vmem:[%s5 + $0xf8] sm:$0xff]
        %v4312 = vld [vmem:[%s6] sm:$0xf]
        %v4314 = vlaneseq
        %v4315 = vshrl.u32 %v4314, 7
        %v4316 = vsub.s32 0, %v4315
        %v4317 = vrot.slane %v4312, %v4316
        %v4318 = vlaneseq
        %v4319 = vshrl.u32 %v4318, 7
        %v4320 = vsub.s32 1, %v4319
        %v4321 = vrot.slane %v4312, %v4320
        %v4322 = vlaneseq
        %v4323 = vshrl.u32 %v4322, 7
        %v4324 = vsub.s32 2, %v4323
        %v4325 = vrot.slane %v4312, %v4324
        %v4326 = vlaneseq
        %v4327 = vshrl.u32 %v4326, 7
        %v4328 = vsub.s32 3, %v4327
        %v4329 = vrot.slane %v4312, %v4328
        %v4366 = vunpack.c.l.b16 %v4280
        %v4367 = vunpack.c.h.b16 %v4280
        %v4368 = vunpack.c.l.b16 %v4281
        %v4369 = vunpack.c.h.b16 %v4281
        %v4370 = vunpack.c.l.b16 %v4282
        %v4371 = vunpack.c.h.b16 %v4282
        %v4372 = vunpack.c.l.b16 %v4283
        %v4373 = vunpack.c.h.b16 %v4283
        %v4374 = vunpack.c.l.b16 %v4284
        %v4375 = vunpack.c.h.b16 %v4284
        %v4376 = vunpack.c.l.b16 %v4285
        %v4377 = vunpack.c.h.b16 %v4285
        %v4378 = vunpack.c.l.b16 %v4286
        %v4379 = vunpack.c.h.b16 %v4286
        %v4380 = vunpack.c.l.b16 %v4287
        %v4381 = vunpack.c.h.b16 %v4287
        %v4382 = vunpack.c.l.b16 %v4288
        %v4383 = vunpack.c.h.b16 %v4288
        %v4384 = vunpack.c.l.b16 %v4289
        %v4385 = vunpack.c.h.b16 %v4289
        %v4386 = vunpack.c.l.b16 %v4290
        %v4387 = vunpack.c.h.b16 %v4290
        %v4388 = vunpack.c.l.b16 %v4291
        %v4389 = vunpack.c.h.b16 %v4291
        %v4390 = vunpack.c.l.b16 %v4292
        %v4391 = vunpack.c.h.b16 %v4292
        %v4392 = vunpack.c.l.b16 %v4293
        %v4393 = vunpack.c.h.b16 %v4293
        %v4394 = vunpack.c.l.b16 %v4294
        %v4395 = vunpack.c.h.b16 %v4294
        %v4396 = vunpack.c.l.b16 %v4295
        %v4397 = vunpack.c.h.b16 %v4295
        %v4398 = vunpack.c.l.b16 %v4296
        %v4399 = vunpack.c.h.b16 %v4296
        %v4400 = vunpack.c.l.b16 %v4297
        %v4401 = vunpack.c.h.b16 %v4297
        %v4402 = vunpack.c.l.b16 %v4298
        %v4403 = vunpack.c.h.b16 %v4298
        %v4404 = vunpack.c.l.b16 %v4299
        %v4405 = vunpack.c.h.b16 %v4299
        %v4406 = vunpack.c.l.b16 %v4300
        %v4407 = vunpack.c.h.b16 %v4300
        %v4408 = vunpack.c.l.b16 %v4301
        %v4409 = vunpack.c.h.b16 %v4301
        %v4410 = vunpack.c.l.b16 %v4302
        %v4411 = vunpack.c.h.b16 %v4302
        %v4412 = vunpack.c.l.b16 %v4303
        %v4413 = vunpack.c.h.b16 %v4303
        %v4414 = vunpack.c.l.b16 %v4304
        %v4415 = vunpack.c.h.b16 %v4304
        %v4416 = vunpack.c.l.b16 %v4305
        %v4417 = vunpack.c.h.b16 %v4305
        %v4418 = vunpack.c.l.b16 %v4306
        %v4419 = vunpack.c.h.b16 %v4306
        %v4420 = vunpack.c.l.b16 %v4307
        %v4421 = vunpack.c.h.b16 %v4307
        %v4422 = vunpack.c.l.b16 %v4308
        %v4423 = vunpack.c.h.b16 %v4308
        %v4424 = vunpack.c.l.b16 %v4309
        %v4425 = vunpack.c.h.b16 %v4309
        %v4426 = vunpack.c.l.b16 %v4310
        %v4427 = vunpack.c.h.b16 %v4310
        %v4428 = vunpack.c.l.b16 %v4311
        %v4429 = vunpack.c.h.b16 %v4311
        %v4430 = vpack.c.b16 %v4370, %v4366
        %v4431 = vpack.c.b16 %v4371, %v4367
        %v4432 = vpack.c.b16 %v4372, %v4368
        %v4433 = vpack.c.b16 %v4373, %v4369
        %v4434 = vpack.c.b16 %v4378, %v4374
        %v4435 = vpack.c.b16 %v4379, %v4375
        %v4436 = vpack.c.b16 %v4380, %v4376
        %v4437 = vpack.c.b16 %v4381, %v4377
        %v4438 = vpack.c.b16 %v4386, %v4382
        %v4439 = vpack.c.b16 %v4387, %v4383
        %v4440 = vpack.c.b16 %v4388, %v4384
        %v4441 = vpack.c.b16 %v4389, %v4385
        %v4442 = vpack.c.b16 %v4394, %v4390
        %v4443 = vpack.c.b16 %v4395, %v4391
        %v4444 = vpack.c.b16 %v4396, %v4392
        %v4445 = vpack.c.b16 %v4397, %v4393
        %v4446 = vpack.c.b16 %v4402, %v4398
        %v4447 = vpack.c.b16 %v4403, %v4399
        %v4448 = vpack.c.b16 %v4404, %v4400
        %v4449 = vpack.c.b16 %v4405, %v4401
        %v4450 = vpack.c.b16 %v4410, %v4406
        %v4451 = vpack.c.b16 %v4411, %v4407
        %v4452 = vpack.c.b16 %v4412, %v4408
        %v4453 = vpack.c.b16 %v4413, %v4409
        %v4454 = vpack.c.b16 %v4418, %v4414
        %v4455 = vpack.c.b16 %v4419, %v4415
        %v4456 = vpack.c.b16 %v4420, %v4416
        %v4457 = vpack.c.b16 %v4421, %v4417
        %v4458 = vpack.c.b16 %v4426, %v4422
        %v4459 = vpack.c.b16 %v4427, %v4423
        %v4460 = vpack.c.b16 %v4428, %v4424
        %v4461 = vpack.c.b16 %v4429, %v4425
        %4494 = vmatprep.subr.bf16.mxu0 %v4431
        %4495 = vmatpush1.bf16.msra.mxu0 %v4430
        %4496 = vmatprep.subr.bf16.mxu0 %v4435
        %4497 = vmatpush1.bf16.msra.mxu0 %v4434
        %4498 = vmatprep.subr.bf16.mxu0 %v4439
        %4499 = vmatpush1.bf16.msra.mxu0 %v4438
        %4500 = vmatprep.subr.bf16.mxu0 %v4443
        %4501 = vmatpush1.bf16.msra.mxu0 %v4442
        %4502 = vmatprep.subr.bf16.mxu0 %v4447
        %4503 = vmatpush1.bf16.msra.mxu0 %v4446
        %4504 = vmatprep.subr.bf16.mxu0 %v4451
        %4505 = vmatpush1.bf16.msra.mxu0 %v4450
        %4506 = vmatprep.subr.bf16.mxu0 %v4455
        %4507 = vmatpush1.bf16.msra.mxu0 %v4454
        %4508 = vmatprep.subr.bf16.mxu0 %v4459
        %4509 = vmatpush1.bf16.msra.mxu0 %v4458
        %4510 = vmatprep.subr.bf16.mxu0 0
        %4511 = vmatpush1.bf16.msra.mxu0 0
        %4512 = vmatprep.subr.bf16.mxu0 0
        %4513 = vmatpush1.bf16.msra.mxu0 0
        %4514 = vmatprep.subr.bf16.mxu0 0
        %4515 = vmatpush1.bf16.msra.mxu0 0
        %4516 = vmatprep.subr.bf16.mxu0 0
        %4517 = vmatpush1.bf16.msra.mxu0 0
        %4518 = vmatprep.subr.bf16.mxu0 0
        %4519 = vmatpush1.bf16.msra.mxu0 0
        %4520 = vmatprep.subr.bf16.mxu0 0
        %4521 = vmatpush1.bf16.msra.mxu0 0
        %4522 = vmatprep.subr.bf16.mxu0 0
        %4523 = vmatpush1.bf16.msra.mxu0 0
        %4524 = vmatprep.subr.bf16.mxu0 0
        %4525 = vmatpush1.bf16.msra.mxu0 0
        %4526 = vmatprep.mubr.bf16.mxu0 0
        %4527 = vmatmul.mubr.bf16.gmra.mrb[0].mxu0 %v4272
        %v4528 = vpop.f32.mrb[0].mxu0
        %v4529 = vadd.f32 %v4317, %v4528
        %v4530 = vpop.f32.mrb[0].mxu0
        %v4531 = vadd.f32 %v4321, %v4530
        %v4532 = vpop.f32.mrb[0].mxu0
        %v4533 = vadd.f32 %v4317, %v4532
        %v4534 = vpop.f32.mrb[0].mxu0
        %v4535 = vadd.f32 %v4321, %v4534
        %4536 = vmatprep.mubr.bf16.mxu0 0
        %4537 = vmatmul.mubr.bf16.gmra.mrb[0].mxu0 %v4273
        %v4538 = vpop.f32.mrb[0].mxu0
        %v4539 = vadd.f32 %v4317, %v4538
        %v4540 = vpop.f32.mrb[0].mxu0
        %v4541 = vadd.f32 %v4321, %v4540
        %v4542 = vpop.f32.mrb[0].mxu0
        %v4543 = vadd.f32 %v4317, %v4542
        %v4544 = vpop.f32.mrb[0].mxu0
        %v4545 = vadd.f32 %v4321, %v4544
        %4546 = vmatprep.mubr.bf16.mxu0 0
        %4547 = vmatmul.mubr.bf16.gmra.mrb[0].mxu0 %v4274
        %v4548 = vpop.f32.mrb[0].mxu0
        %v4549 = vadd.f32 %v4317, %v4548
        %v4550 = vpop.f32.mrb[0].mxu0
        %v4551 = vadd.f32 %v4321, %v4550
        %v4552 = vpop.f32.mrb[0].mxu0
        %v4553 = vadd.f32 %v4317, %v4552
        %v4554 = vpop.f32.mrb[0].mxu0
        %v4555 = vadd.f32 %v4321, %v4554
        %4556 = vmatprep.mubr.bf16.mxu0 0
        %4557 = vmatmul.mubr.bf16.gmra.mrb[0].mxu0 %v4275
        %v4558 = vpop.f32.mrb[0].mxu0
        %v4559 = vadd.f32 %v4317, %v4558
        %v4560 = vpop.f32.mrb[0].mxu0
        %v4561 = vadd.f32 %v4321, %v4560
        %v4562 = vpop.f32.mrb[0].mxu0
        %v4563 = vadd.f32 %v4317, %v4562
        %v4564 = vpop.f32.mrb[0].mxu0
        %v4565 = vadd.f32 %v4321, %v4564
        %4566 = vmatprep.mubr.bf16.mxu0 0
        %4567 = vmatmul.mubr.bf16.gmra.mrb[0].mxu0 %v4276
        %v4568 = vpop.f32.mrb[0].mxu0
        %v4569 = vadd.f32 %v4317, %v4568
        %v4570 = vpop.f32.mrb[0].mxu0
        %v4571 = vadd.f32 %v4321, %v4570
        %v4572 = vpop.f32.mrb[0].mxu0
        %v4573 = vadd.f32 %v4317, %v4572
        %v4574 = vpop.f32.mrb[0].mxu0
        %v4575 = vadd.f32 %v4321, %v4574
        %4576 = vmatprep.mubr.bf16.mxu0 0
        %4577 = vmatmul.mubr.bf16.gmra.mrb[0].mxu0 %v4277
        %v4578 = vpop.f32.mrb[0].mxu0
        %v4579 = vadd.f32 %v4317, %v4578
        %v4580 = vpop.f32.mrb[0].mxu0
        %v4581 = vadd.f32 %v4321, %v4580
        %v4582 = vpop.f32.mrb[0].mxu0
        %v4583 = vadd.f32 %v4317, %v4582
        %v4584 = vpop.f32.mrb[0].mxu0
        %v4585 = vadd.f32 %v4321, %v4584
        %4586 = vmatprep.mubr.bf16.mxu0 0
        %4587 = vmatmul.mubr.bf16.gmra.mrb[0].mxu0 %v4278
        %v4588 = vpop.f32.mrb[0].mxu0
        %v4589 = vadd.f32 %v4317, %v4588
        %v4590 = vpop.f32.mrb[0].mxu0
        %v4591 = vadd.f32 %v4321, %v4590
        %v4592 = vpop.f32.mrb[0].mxu0
        %v4593 = vadd.f32 %v4317, %v4592
        %v4594 = vpop.f32.mrb[0].mxu0
        %v4595 = vadd.f32 %v4321, %v4594
        %4596 = vmatprep.mubr.bf16.mxu0 0
        %4597 = vmatmul.mubr.bf16.gmra.mrb[0].mxu0 %v4279
        %v4598 = vpop.f32.mrb[0].mxu0
        %v4599 = vadd.f32 %v4317, %v4598
        %v4600 = vpop.f32.mrb[0].mxu0
        %v4601 = vadd.f32 %v4321, %v4600
        %v4602 = vpop.f32.mrb[0].mxu0
        %v4603 = vadd.f32 %v4317, %v4602
        %v4604 = vpop.f32.mrb[0].mxu0
        %v4605 = vadd.f32 %v4321, %v4604
        %4606 = vdwg.mxu0
        %4607 = vmatprep.subr.bf16.mxu0 %v4433
        %4608 = vmatpush1.bf16.msra.mxu0 %v4432
        %4609 = vmatprep.subr.bf16.mxu0 %v4437
        %4610 = vmatpush1.bf16.msra.mxu0 %v4436
        %4611 = vmatprep.subr.bf16.mxu0 %v4441
        %4612 = vmatpush1.bf16.msra.mxu0 %v4440
        %4613 = vmatprep.subr.bf16.mxu0 %v4445
        %4614 = vmatpush1.bf16.msra.mxu0 %v4444
        %4615 = vmatprep.subr.bf16.mxu0 %v4449
        %4616 = vmatpush1.bf16.msra.mxu0 %v4448
        %4617 = vmatprep.subr.bf16.mxu0 %v4453
        %4618 = vmatpush1.bf16.msra.mxu0 %v4452
        %4619 = vmatprep.subr.bf16.mxu0 %v4457
        %4620 = vmatpush1.bf16.msra.mxu0 %v4456
        %4621 = vmatprep.subr.bf16.mxu0 %v4461
        %4622 = vmatpush1.bf16.msra.mxu0 %v4460
        %4623 = vmatprep.subr.bf16.mxu0 0
        %4624 = vmatpush1.bf16.msra.mxu0 0
        %4625 = vmatprep.subr.bf16.mxu0 0
        %4626 = vmatpush1.bf16.msra.mxu0 0
        %4627 = vmatprep.subr.bf16.mxu0 0
        %4628 = vmatpush1.bf16.msra.mxu0 0
        %4629 = vmatprep.subr.bf16.mxu0 0
        %4630 = vmatpush1.bf16.msra.mxu0 0
        %4631 = vmatprep.subr.bf16.mxu0 0
        %4632 = vmatpush1.bf16.msra.mxu0 0
        %4633 = vmatprep.subr.bf16.mxu0 0
        %4634 = vmatpush1.bf16.msra.mxu0 0
        %4635 = vmatprep.subr.bf16.mxu0 0
        %4636 = vmatpush1.bf16.msra.mxu0 0
        %4637 = vmatprep.subr.bf16.mxu0 0
        %4638 = vmatpush1.bf16.msra.mxu0 0
        %4639 = vmatprep.mubr.bf16.mxu0 0
        %4640 = vmatmul.mubr.bf16.gmra.mrb[0].mxu0 %v4272
        %v4641 = vpop.f32.mrb[0].mxu0
        %v4642 = vadd.f32 %v4325, %v4641
        %v4643 = vpop.f32.mrb[0].mxu0
        %v4644 = vadd.f32 %v4329, %v4643
        %v4645 = vpop.f32.mrb[0].mxu0
        %v4646 = vadd.f32 %v4325, %v4645
        %v4647 = vpop.f32.mrb[0].mxu0
        %v4648 = vadd.f32 %v4329, %v4647
        %4649 = vmatprep.mubr.bf16.mxu0 0
        %4650 = vmatmul.mubr.bf16.gmra.mrb[0].mxu0 %v4273
        %v4651 = vpop.f32.mrb[0].mxu0
        %v4652 = vadd.f32 %v4325, %v4651
        %v4653 = vpop.f32.mrb[0].mxu0
        %v4654 = vadd.f32 %v4329, %v4653
        %v4655 = vpop.f32.mrb[0].mxu0
        %v4656 = vadd.f32 %v4325, %v4655
        %v4657 = vpop.f32.mrb[0].mxu0
        %v4658 = vadd.f32 %v4329, %v4657
        %4659 = vmatprep.mubr.bf16.mxu0 0
        %4660 = vmatmul.mubr.bf16.gmra.mrb[0].mxu0 %v4274
        %v4661 = vpop.f32.mrb[0].mxu0
        %v4662 = vadd.f32 %v4325, %v4661
        %v4663 = vpop.f32.mrb[0].mxu0
        %v4664 = vadd.f32 %v4329, %v4663
        %v4665 = vpop.f32.mrb[0].mxu0
        %v4666 = vadd.f32 %v4325, %v4665
        %v4667 = vpop.f32.mrb[0].mxu0
        %v4668 = vadd.f32 %v4329, %v4667
        %4669 = vmatprep.mubr.bf16.mxu0 0
        %4670 = vmatmul.mubr.bf16.gmra.mrb[0].mxu0 %v4275
        %v4671 = vpop.f32.mrb[0].mxu0
        %v4672 = vadd.f32 %v4325, %v4671
        %v4673 = vpop.f32.mrb[0].mxu0
        %v4674 = vadd.f32 %v4329, %v4673
        %v4675 = vpop.f32.mrb[0].mxu0
        %v4676 = vadd.f32 %v4325, %v4675
        %v4677 = vpop.f32.mrb[0].mxu0
        %v4678 = vadd.f32 %v4329, %v4677
        %4679 = vmatprep.mubr.bf16.mxu0 0
        %4680 = vmatmul.mubr.bf16.gmra.mrb[0].mxu0 %v4276
        %v4681 = vpop.f32.mrb[0].mxu0
        %v4682 = vadd.f32 %v4325, %v4681
        %v4683 = vpop.f32.mrb[0].mxu0
        %v4684 = vadd.f32 %v4329, %v4683
        %v4685 = vpop.f32.mrb[0].mxu0
        %v4686 = vadd.f32 %v4325, %v4685
        %v4687 = vpop.f32.mrb[0].mxu0
        %v4688 = vadd.f32 %v4329, %v4687
        %4689 = vmatprep.mubr.bf16.mxu0 0
        %4690 = vmatmul.mubr.bf16.gmra.mrb[0].mxu0 %v4277
        %v4691 = vpop.f32.mrb[0].mxu0
        %v4692 = vadd.f32 %v4325, %v4691
        %v4693 = vpop.f32.mrb[0].mxu0
        %v4694 = vadd.f32 %v4329, %v4693
        %v4695 = vpop.f32.mrb[0].mxu0
        %v4696 = vadd.f32 %v4325, %v4695
        %v4697 = vpop.f32.mrb[0].mxu0
        %v4698 = vadd.f32 %v4329, %v4697
        %4699 = vmatprep.mubr.bf16.mxu0 0
        %4700 = vmatmul.mubr.bf16.gmra.mrb[0].mxu0 %v4278
        %v4701 = vpop.f32.mrb[0].mxu0
        %v4702 = vadd.f32 %v4325, %v4701
        %v4703 = vpop.f32.mrb[0].mxu0
        %v4704 = vadd.f32 %v4329, %v4703
        %v4705 = vpop.f32.mrb[0].mxu0
        %v4706 = vadd.f32 %v4325, %v4705
        %v4707 = vpop.f32.mrb[0].mxu0
        %v4708 = vadd.f32 %v4329, %v4707
        %4709 = vmatprep.mubr.bf16.mxu0 0
        %4710 = vmatmul.mubr.bf16.gmra.mrb[0].mxu0 %v4279
        %v4711 = vpop.f32.mrb[0].mxu0
        %v4712 = vadd.f32 %v4325, %v4711
        %v4713 = vpop.f32.mrb[0].mxu0
        %v4714 = vadd.f32 %v4329, %v4713
        %v4715 = vpop.f32.mrb[0].mxu0
        %v4716 = vadd.f32 %v4325, %v4715
        %v4717 = vpop.f32.mrb[0].mxu0
        %v4718 = vadd.f32 %v4329, %v4717
        %4719 = vdwg.mxu0
        %s4720 = smul.u32 %s293, 8
        %s4721 = smul.addr %s4720, 4
        %s4722 = scalar_lea.vmem %s290, %s4721
        %v4723 = vld [vmem:[%s4722] sm:$0xff]
        %v4724 = vld [vmem:[%s4722 + $0x8] sm:$0xff]
        %v4725 = vld [vmem:[%s4722 + $0x10] sm:$0xff]
        %v4726 = vld [vmem:[%s4722 + $0x18] sm:$0xff]
        %v4727 = vld [vmem:[%s4722 + $0x20] sm:$0xff]
        %v4728 = vld [vmem:[%s4722 + $0x28] sm:$0xff]
        %v4729 = vld [vmem:[%s4722 + $0x30] sm:$0xff]
        %v4730 = vld [vmem:[%s4722 + $0x38] sm:$0xff]
        %v4731 = vld [vmem:[%s4722 + $0x40] sm:$0xff]
        %v4732 = vld [vmem:[%s4722 + $0x48] sm:$0xff]
        %v4733 = vld [vmem:[%s4722 + $0x50] sm:$0xff]
        %v4734 = vld [vmem:[%s4722 + $0x58] sm:$0xff]
        %v4735 = vld [vmem:[%s4722 + $0x60] sm:$0xff]
        %v4736 = vld [vmem:[%s4722 + $0x68] sm:$0xff]
        %v4737 = vld [vmem:[%s4722 + $0x70] sm:$0xff]
        %v4738 = vld [vmem:[%s4722 + $0x78] sm:$0xff]
        %v4739 = vld [vmem:[%s4722 + $0x80] sm:$0xff]
        %v4740 = vld [vmem:[%s4722 + $0x88] sm:$0xff]
        %v4741 = vld [vmem:[%s4722 + $0x90] sm:$0xff]
        %v4742 = vld [vmem:[%s4722 + $0x98] sm:$0xff]
        %v4743 = vld [vmem:[%s4722 + $0xa0] sm:$0xff]
        %v4744 = vld [vmem:[%s4722 + $0xa8] sm:$0xff]
        %v4745 = vld [vmem:[%s4722 + $0xb0] sm:$0xff]
        %v4746 = vld [vmem:[%s4722 + $0xb8] sm:$0xff]
        %v4747 = vld [vmem:[%s4722 + $0xc0] sm:$0xff]
        %v4748 = vld [vmem:[%s4722 + $0xc8] sm:$0xff]
        %v4749 = vld [vmem:[%s4722 + $0xd0] sm:$0xff]
        %v4750 = vld [vmem:[%s4722 + $0xd8] sm:$0xff]
        %v4751 = vld [vmem:[%s4722 + $0xe0] sm:$0xff]
        %v4752 = vld [vmem:[%s4722 + $0xe8] sm:$0xff]
        %v4753 = vld [vmem:[%s4722 + $0xf0] sm:$0xff]
        %v4754 = vld [vmem:[%s4722 + $0xf8] sm:$0xff]
        %v4755 = vunpack.c.l.bf16 %v4723
        %v4756 = vunpack.c.h.bf16 %v4723
        %v4757 = vunpack.c.l.bf16 %v4724
        %v4758 = vunpack.c.h.bf16 %v4724
        %v4759 = vunpack.c.l.bf16 %v4725
        %v4760 = vunpack.c.h.bf16 %v4725
        %v4761 = vunpack.c.l.bf16 %v4726
        %v4762 = vunpack.c.h.bf16 %v4726
        %v4763 = vunpack.c.l.bf16 %v4727
        %v4764 = vunpack.c.h.bf16 %v4727
        %v4765 = vunpack.c.l.bf16 %v4728
        %v4766 = vunpack.c.h.bf16 %v4728
        %v4767 = vunpack.c.l.bf16 %v4729
        %v4768 = vunpack.c.h.bf16 %v4729
        %v4769 = vunpack.c.l.bf16 %v4730
        %v4770 = vunpack.c.h.bf16 %v4730
        %v4771 = vunpack.c.l.bf16 %v4731
        %v4772 = vunpack.c.h.bf16 %v4731
        %v4773 = vunpack.c.l.bf16 %v4732
        %v4774 = vunpack.c.h.bf16 %v4732
        %v4775 = vunpack.c.l.bf16 %v4733
        %v4776 = vunpack.c.h.bf16 %v4733
        %v4777 = vunpack.c.l.bf16 %v4734
        %v4778 = vunpack.c.h.bf16 %v4734
        %v4779 = vunpack.c.l.bf16 %v4735
        %v4780 = vunpack.c.h.bf16 %v4735
        %v4781 = vunpack.c.l.bf16 %v4736
        %v4782 = vunpack.c.h.bf16 %v4736
        %v4783 = vunpack.c.l.bf16 %v4737
        %v4784 = vunpack.c.h.bf16 %v4737
        %v4785 = vunpack.c.l.bf16 %v4738
        %v4786 = vunpack.c.h.bf16 %v4738
        %v4787 = vunpack.c.l.bf16 %v4739
        %v4788 = vunpack.c.h.bf16 %v4739
        %v4789 = vunpack.c.l.bf16 %v4740
        %v4790 = vunpack.c.h.bf16 %v4740
        %v4791 = vunpack.c.l.bf16 %v4741
        %v4792 = vunpack.c.h.bf16 %v4741
        %v4793 = vunpack.c.l.bf16 %v4742
        %v4794 = vunpack.c.h.bf16 %v4742
        %v4795 = vunpack.c.l.bf16 %v4743
        %v4796 = vunpack.c.h.bf16 %v4743
        %v4797 = vunpack.c.l.bf16 %v4744
        %v4798 = vunpack.c.h.bf16 %v4744
        %v4799 = vunpack.c.l.bf16 %v4745
        %v4800 = vunpack.c.h.bf16 %v4745
        %v4801 = vunpack.c.l.bf16 %v4746
        %v4802 = vunpack.c.h.bf16 %v4746
        %v4803 = vunpack.c.l.bf16 %v4747
        %v4804 = vunpack.c.h.bf16 %v4747
        %v4805 = vunpack.c.l.bf16 %v4748
        %v4806 = vunpack.c.h.bf16 %v4748
        %v4807 = vunpack.c.l.bf16 %v4749
        %v4808 = vunpack.c.h.bf16 %v4749
        %v4809 = vunpack.c.l.bf16 %v4750
        %v4810 = vunpack.c.h.bf16 %v4750
        %v4811 = vunpack.c.l.bf16 %v4751
        %v4812 = vunpack.c.h.bf16 %v4751
        %v4813 = vunpack.c.l.bf16 %v4752
        %v4814 = vunpack.c.h.bf16 %v4752
        %v4815 = vunpack.c.l.bf16 %v4753
        %v4816 = vunpack.c.h.bf16 %v4753
        %v4817 = vunpack.c.l.bf16 %v4754
        %v4818 = vunpack.c.h.bf16 %v4754
        %v4819 = vadd.f32 %v4529, %v4755
        %v4820 = vadd.f32 %v4531, %v4756
        %v4821 = vadd.f32 %v4642, %v4757
        %v4822 = vadd.f32 %v4644, %v4758
        %v4823 = vadd.f32 %v4533, %v4759
        %v4824 = vadd.f32 %v4535, %v4760
        %v4825 = vadd.f32 %v4646, %v4761
        %v4826 = vadd.f32 %v4648, %v4762
        %v4827 = vadd.f32 %v4539, %v4763
        %v4828 = vadd.f32 %v4541, %v4764
        %v4829 = vadd.f32 %v4652, %v4765
        %v4830 = vadd.f32 %v4654, %v4766
        %v4831 = vadd.f32 %v4543, %v4767
        %v4832 = vadd.f32 %v4545, %v4768
        %v4833 = vadd.f32 %v4656, %v4769
        %v4834 = vadd.f32 %v4658, %v4770
        %v4835 = vadd.f32 %v4549, %v4771
        %v4836 = vadd.f32 %v4551, %v4772
        %v4837 = vadd.f32 %v4662, %v4773
        %v4838 = vadd.f32 %v4664, %v4774
        %v4839 = vadd.f32 %v4553, %v4775
        %v4840 = vadd.f32 %v4555, %v4776
        %v4841 = vadd.f32 %v4666, %v4777
        %v4842 = vadd.f32 %v4668, %v4778
        %v4843 = vadd.f32 %v4559, %v4779
        %v4844 = vadd.f32 %v4561, %v4780
        %v4845 = vadd.f32 %v4672, %v4781
        %v4846 = vadd.f32 %v4674, %v4782
        %v4847 = vadd.f32 %v4563, %v4783
        %v4848 = vadd.f32 %v4565, %v4784
        %v4849 = vadd.f32 %v4676, %v4785
        %v4850 = vadd.f32 %v4678, %v4786
        %v4851 = vadd.f32 %v4569, %v4787
        %v4852 = vadd.f32 %v4571, %v4788
        %v4853 = vadd.f32 %v4682, %v4789
        %v4854 = vadd.f32 %v4684, %v4790
        %v4855 = vadd.f32 %v4573, %v4791
        %v4856 = vadd.f32 %v4575, %v4792
        %v4857 = vadd.f32 %v4686, %v4793
        %v4858 = vadd.f32 %v4688, %v4794
        %v4859 = vadd.f32 %v4579, %v4795
        %v4860 = vadd.f32 %v4581, %v4796
        %v4861 = vadd.f32 %v4692, %v4797
        %v4862 = vadd.f32 %v4694, %v4798
        %v4863 = vadd.f32 %v4583, %v4799
        %v4864 = vadd.f32 %v4585, %v4800
        %v4865 = vadd.f32 %v4696, %v4801
        %v4866 = vadd.f32 %v4698, %v4802
        %v4867 = vadd.f32 %v4589, %v4803
        %v4868 = vadd.f32 %v4591, %v4804
        %v4869 = vadd.f32 %v4702, %v4805
        %v4870 = vadd.f32 %v4704, %v4806
        %v4871 = vadd.f32 %v4593, %v4807
        %v4872 = vadd.f32 %v4595, %v4808
        %v4873 = vadd.f32 %v4706, %v4809
        %v4874 = vadd.f32 %v4708, %v4810
        %v4875 = vadd.f32 %v4599, %v4811
        %v4876 = vadd.f32 %v4601, %v4812
        %v4877 = vadd.f32 %v4712, %v4813
        %v4878 = vadd.f32 %v4714, %v4814
        %v4879 = vadd.f32 %v4603, %v4815
        %v4880 = vadd.f32 %v4605, %v4816
        %v4881 = vadd.f32 %v4716, %v4817
        %v4882 = vadd.f32 %v4718, %v4818
        %v4883 = vmax.f32 %v4819, 0.0
        %v4884 = vmax.f32 %v4820, 0.0
        %v4885 = vmax.f32 %v4821, 0.0
        %v4886 = vmax.f32 %v4822, 0.0
        %v4887 = vmax.f32 %v4823, 0.0
        %v4888 = vmax.f32 %v4824, 0.0
        %v4889 = vmax.f32 %v4825, 0.0
        %v4890 = vmax.f32 %v4826, 0.0
        %v4891 = vmax.f32 %v4827, 0.0
        %v4892 = vmax.f32 %v4828, 0.0
        %v4893 = vmax.f32 %v4829, 0.0
        %v4894 = vmax.f32 %v4830, 0.0
        %v4895 = vmax.f32 %v4831, 0.0
        %v4896 = vmax.f32 %v4832, 0.0
        %v4897 = vmax.f32 %v4833, 0.0
        %v4898 = vmax.f32 %v4834, 0.0
        %v4899 = vmax.f32 %v4835, 0.0
        %v4900 = vmax.f32 %v4836, 0.0
        %v4901 = vmax.f32 %v4837, 0.0
        %v4902 = vmax.f32 %v4838, 0.0
        %v4903 = vmax.f32 %v4839, 0.0
        %v4904 = vmax.f32 %v4840, 0.0
        %v4905 = vmax.f32 %v4841, 0.0
        %v4906 = vmax.f32 %v4842, 0.0
        %v4907 = vmax.f32 %v4843, 0.0
        %v4908 = vmax.f32 %v4844, 0.0
        %v4909 = vmax.f32 %v4845, 0.0
        %v4910 = vmax.f32 %v4846, 0.0
        %v4911 = vmax.f32 %v4847, 0.0
        %v4912 = vmax.f32 %v4848, 0.0
        %v4913 = vmax.f32 %v4849, 0.0
        %v4914 = vmax.f32 %v4850, 0.0
        %v4915 = vmax.f32 %v4851, 0.0
        %v4916 = vmax.f32 %v4852, 0.0
        %v4917 = vmax.f32 %v4853, 0.0
        %v4918 = vmax.f32 %v4854, 0.0
        %v4919 = vmax.f32 %v4855, 0.0
        %v4920 = vmax.f32 %v4856, 0.0
        %v4921 = vmax.f32 %v4857, 0.0
        %v4922 = vmax.f32 %v4858, 0.0
        %v4923 = vmax.f32 %v4859, 0.0
        %v4924 = vmax.f32 %v4860, 0.0
        %v4925 = vmax.f32 %v4861, 0.0
        %v4926 = vmax.f32 %v4862, 0.0
        %v4927 = vmax.f32 %v4863, 0.0
        %v4928 = vmax.f32 %v4864, 0.0
        %v4929 = vmax.f32 %v4865, 0.0
        %v4930 = vmax.f32 %v4866, 0.0
        %v4931 = vmax.f32 %v4867, 0.0
        %v4932 = vmax.f32 %v4868, 0.0
        %v4933 = vmax.f32 %v4869, 0.0
        %v4934 = vmax.f32 %v4870, 0.0
        %v4935 = vmax.f32 %v4871, 0.0
        %v4936 = vmax.f32 %v4872, 0.0
        %v4937 = vmax.f32 %v4873, 0.0
        %v4938 = vmax.f32 %v4874, 0.0
        %v4939 = vmax.f32 %v4875, 0.0
        %v4940 = vmax.f32 %v4876, 0.0
        %v4941 = vmax.f32 %v4877, 0.0
        %v4942 = vmax.f32 %v4878, 0.0
        %v4943 = vmax.f32 %v4879, 0.0
        %v4944 = vmax.f32 %v4880, 0.0
        %v4945 = vmax.f32 %v4881, 0.0
        %v4946 = vmax.f32 %v4882, 0.0
        %v4947 = vpack.c.bf16 %v4887, %v4883
        %v4948 = vpack.c.bf16 %v4888, %v4884
        %v4949 = vpack.c.bf16 %v4889, %v4885
        %v4950 = vpack.c.bf16 %v4890, %v4886
        %v4951 = vpack.c.bf16 %v4895, %v4891
        %v4952 = vpack.c.bf16 %v4896, %v4892
        %v4953 = vpack.c.bf16 %v4897, %v4893
        %v4954 = vpack.c.bf16 %v4898, %v4894
        %v4955 = vpack.c.bf16 %v4903, %v4899
        %v4956 = vpack.c.bf16 %v4904, %v4900
        %v4957 = vpack.c.bf16 %v4905, %v4901
        %v4958 = vpack.c.bf16 %v4906, %v4902
        %v4959 = vpack.c.bf16 %v4911, %v4907
        %v4960 = vpack.c.bf16 %v4912, %v4908
        %v4961 = vpack.c.bf16 %v4913, %v4909
        %v4962 = vpack.c.bf16 %v4914, %v4910
        %v4963 = vpack.c.bf16 %v4919, %v4915
        %v4964 = vpack.c.bf16 %v4920, %v4916
        %v4965 = vpack.c.bf16 %v4921, %v4917
        %v4966 = vpack.c.bf16 %v4922, %v4918
        %v4967 = vpack.c.bf16 %v4927, %v4923
        %v4968 = vpack.c.bf16 %v4928, %v4924
        %v4969 = vpack.c.bf16 %v4929, %v4925
        %v4970 = vpack.c.bf16 %v4930, %v4926
        %v4971 = vpack.c.bf16 %v4935, %v4931
        %v4972 = vpack.c.bf16 %v4936, %v4932
        %v4973 = vpack.c.bf16 %v4937, %v4933
        %v4974 = vpack.c.bf16 %v4938, %v4934
        %v4975 = vpack.c.bf16 %v4943, %v4939
        %v4976 = vpack.c.bf16 %v4944, %v4940
        %v4977 = vpack.c.bf16 %v4945, %v4941
        %v4978 = vpack.c.bf16 %v4946, %v4942
        %v5011 = vunpack.c.l.b16 %v4947
        %v5012 = vunpack.c.l.b16 %v4948
        %v5013 = vunpack.c.l.b16 %v4949
        %v5014 = vunpack.c.l.b16 %v4950
        %v5015 = vunpack.c.h.b16 %v4947
        %v5016 = vunpack.c.h.b16 %v4948
        %v5017 = vunpack.c.h.b16 %v4949
        %v5018 = vunpack.c.h.b16 %v4950
        %v5019 = vunpack.c.l.b16 %v4951
        %v5020 = vunpack.c.l.b16 %v4952
        %v5021 = vunpack.c.l.b16 %v4953
        %v5022 = vunpack.c.l.b16 %v4954
        %v5023 = vunpack.c.h.b16 %v4951
        %v5024 = vunpack.c.h.b16 %v4952
        %v5025 = vunpack.c.h.b16 %v4953
        %v5026 = vunpack.c.h.b16 %v4954
        %v5027 = vunpack.c.l.b16 %v4955
        %v5028 = vunpack.c.l.b16 %v4956
        %v5029 = vunpack.c.l.b16 %v4957
        %v5030 = vunpack.c.l.b16 %v4958
        %v5031 = vunpack.c.h.b16 %v4955
        %v5032 = vunpack.c.h.b16 %v4956
        %v5033 = vunpack.c.h.b16 %v4957
        %v5034 = vunpack.c.h.b16 %v4958
        %v5035 = vunpack.c.l.b16 %v4959
        %v5036 = vunpack.c.l.b16 %v4960
        %v5037 = vunpack.c.l.b16 %v4961
        %v5038 = vunpack.c.l.b16 %v4962
        %v5039 = vunpack.c.h.b16 %v4959
        %v5040 = vunpack.c.h.b16 %v4960
        %v5041 = vunpack.c.h.b16 %v4961
        %v5042 = vunpack.c.h.b16 %v4962
        %v5043 = vunpack.c.l.b16 %v4963
        %v5044 = vunpack.c.l.b16 %v4964
        %v5045 = vunpack.c.l.b16 %v4965
        %v5046 = vunpack.c.l.b16 %v4966
        %v5047 = vunpack.c.h.b16 %v4963
        %v5048 = vunpack.c.h.b16 %v4964
        %v5049 = vunpack.c.h.b16 %v4965
        %v5050 = vunpack.c.h.b16 %v4966
        %v5051 = vunpack.c.l.b16 %v4967
        %v5052 = vunpack.c.l.b16 %v4968
        %v5053 = vunpack.c.l.b16 %v4969
        %v5054 = vunpack.c.l.b16 %v4970
        %v5055 = vunpack.c.h.b16 %v4967
        %v5056 = vunpack.c.h.b16 %v4968
        %v5057 = vunpack.c.h.b16 %v4969
        %v5058 = vunpack.c.h.b16 %v4970
        %v5059 = vunpack.c.l.b16 %v4971
        %v5060 = vunpack.c.l.b16 %v4972
        %v5061 = vunpack.c.l.b16 %v4973
        %v5062 = vunpack.c.l.b16 %v4974
        %v5063 = vunpack.c.h.b16 %v4971
        %v5064 = vunpack.c.h.b16 %v4972
        %v5065 = vunpack.c.h.b16 %v4973
        %v5066 = vunpack.c.h.b16 %v4974
        %v5067 = vunpack.c.l.b16 %v4975
        %v5068 = vunpack.c.l.b16 %v4976
        %v5069 = vunpack.c.l.b16 %v4977
        %v5070 = vunpack.c.l.b16 %v4978
        %v5071 = vunpack.c.h.b16 %v4975
        %v5072 = vunpack.c.h.b16 %v4976
        %v5073 = vunpack.c.h.b16 %v4977
        %v5074 = vunpack.c.h.b16 %v4978
        %v5075 = vpack.c.b16 %v5012, %v5011
        %v5076 = vpack.c.b16 %v5014, %v5013
        %v5077 = vpack.c.b16 %v5016, %v5015
        %v5078 = vpack.c.b16 %v5018, %v5017
        %v5079 = vpack.c.b16 %v5020, %v5019
        %v5080 = vpack.c.b16 %v5022, %v5021
        %v5081 = vpack.c.b16 %v5024, %v5023
        %v5082 = vpack.c.b16 %v5026, %v5025
        %v5083 = vpack.c.b16 %v5028, %v5027
        %v5084 = vpack.c.b16 %v5030, %v5029
        %v5085 = vpack.c.b16 %v5032, %v5031
        %v5086 = vpack.c.b16 %v5034, %v5033
        %v5087 = vpack.c.b16 %v5036, %v5035
        %v5088 = vpack.c.b16 %v5038, %v5037
        %v5089 = vpack.c.b16 %v5040, %v5039
        %v5090 = vpack.c.b16 %v5042, %v5041
        %v5091 = vpack.c.b16 %v5044, %v5043
        %v5092 = vpack.c.b16 %v5046, %v5045
        %v5093 = vpack.c.b16 %v5048, %v5047
        %v5094 = vpack.c.b16 %v5050, %v5049
        %v5095 = vpack.c.b16 %v5052, %v5051
        %v5096 = vpack.c.b16 %v5054, %v5053
        %v5097 = vpack.c.b16 %v5056, %v5055
        %v5098 = vpack.c.b16 %v5058, %v5057
        %v5099 = vpack.c.b16 %v5060, %v5059
        %v5100 = vpack.c.b16 %v5062, %v5061
        %v5101 = vpack.c.b16 %v5064, %v5063
        %v5102 = vpack.c.b16 %v5066, %v5065
        %v5103 = vpack.c.b16 %v5068, %v5067
        %v5104 = vpack.c.b16 %v5070, %v5069
        %v5105 = vpack.c.b16 %v5072, %v5071
        %v5106 = vpack.c.b16 %v5074, %v5073
        %5139 = vst [vmem:[%s285] sm:$0xff] %v5075
        %5140 = vst [vmem:[%s285 + $0x8] sm:$0xff] %v5076
        %5141 = vst [vmem:[%s285 + $0x10] sm:$0xff] %v5077
        %5142 = vst [vmem:[%s285 + $0x18] sm:$0xff] %v5078
        %5143 = vst [vmem:[%s285 + $0x20] sm:$0xff] %v5079
        %5144 = vst [vmem:[%s285 + $0x28] sm:$0xff] %v5080
        %5145 = vst [vmem:[%s285 + $0x30] sm:$0xff] %v5081
        %5146 = vst [vmem:[%s285 + $0x38] sm:$0xff] %v5082
        %5147 = vst [vmem:[%s285 + $0x40] sm:$0xff] %v5083
        %5148 = vst [vmem:[%s285 + $0x48] sm:$0xff] %v5084
        %5149 = vst [vmem:[%s285 + $0x50] sm:$0xff] %v5085
        %5150 = vst [vmem:[%s285 + $0x58] sm:$0xff] %v5086
        %5151 = vst [vmem:[%s285 + $0x60] sm:$0xff] %v5087
        %5152 = vst [vmem:[%s285 + $0x68] sm:$0xff] %v5088
        %5153 = vst [vmem:[%s285 + $0x70] sm:$0xff] %v5089
        %5154 = vst [vmem:[%s285 + $0x78] sm:$0xff] %v5090
        %5155 = vst [vmem:[%s285 + $0x80] sm:$0xff] %v5091
        %5156 = vst [vmem:[%s285 + $0x88] sm:$0xff] %v5092
        %5157 = vst [vmem:[%s285 + $0x90] sm:$0xff] %v5093
        %5158 = vst [vmem:[%s285 + $0x98] sm:$0xff] %v5094
        %5159 = vst [vmem:[%s285 + $0xa0] sm:$0xff] %v5095
        %5160 = vst [vmem:[%s285 + $0xa8] sm:$0xff] %v5096
        %5161 = vst [vmem:[%s285 + $0xb0] sm:$0xff] %v5097
        %5162 = vst [vmem:[%s285 + $0xb8] sm:$0xff] %v5098
        %5163 = vst [vmem:[%s285 + $0xc0] sm:$0xff] %v5099
        %5164 = vst [vmem:[%s285 + $0xc8] sm:$0xff] %v5100
        %5165 = vst [vmem:[%s285 + $0xd0] sm:$0xff] %v5101
        %5166 = vst [vmem:[%s285 + $0xd8] sm:$0xff] %v5102
        %5167 = vst [vmem:[%s285 + $0xe0] sm:$0xff] %v5103
        %5168 = vst [vmem:[%s285 + $0xe8] sm:$0xff] %v5104
        %5169 = vst [vmem:[%s285 + $0xf0] sm:$0xff] %v5105
        %5170 = vst [vmem:[%s285 + $0xf8] sm:$0xff] %v5106
        %s5171 = sand.u32 %s195, 1
        %s5172 = scalar_lea.sflag [#allocation5], %s5171
        %s5173 = sand.u32 %s195, 1
        %s5174 = smul.addr %s5173, 256
        %s5175 = scalar_lea.vmem [#allocation4], %s5174
        // Predicated region
        $region57: #{run.3} parent=47 // pred_check
          %p5176 = pneg %p205
        $region58: #{run.3} parent=47 // pred_check_branch
          %5178 = sbr.rel (%p5176) target = $region60
        $region59: #{run.3} parent=47 // pred_region
          %s5179 = smul.u32 16, %s26
          %s5181 = ssub.s32 4096, 4096
          %5182 = vsyncadd %s5172, %s5181
          %s5183 = smul.addr %s5179, 4
          %s5184 = smul.addr %s25, 128
          %s5185 = sadd.s32 %s5183, %s5184
          %s5186 = smul.addr %s5185, 64
          %s5187 = scalar_lea.hbm %s7, %s5186
          %s5188 = sshll.u32 %s5175, 4
          %s5189 = int_to_ptr.vmem [resolvable:$true] %s5188
          %5194 = dma.vmem_to_hbm [thread:$0]  %s5189, 4096, %s5187, %s5172, 256, 256, 16
        $region60: #{run.3} parent=47 // pred_fallthru
          _
      $region48: #{run.3} parent=5 // pred_fallthru
        _
      %p5195 = scmp.le.s32.totalorder 2, %s16
      // Predicated region
      $region61: #{run.3} parent=5 // pred_check
        %p5196 = pneg %p5195
      $region62: #{run.3} parent=5 // pred_check_branch
        %5198 = sbr.rel (%p5196) target = $region64
      $region63: #{run.3} parent=5 // pred_region
        %s5199 = ssub.s32 %s16, 2
        // Predicated region
        $region65: #{run.3} parent=63 // pred_check
          %p5200 = pneg %p211
        $region66: #{run.3} parent=63 // pred_check_branch
          %5202 = sbr.rel (%p5200) target = $region68
        $region67: #{run.3} parent=63 // pred_region
          %s5203 = sand.u32 %s196, 1
          %s5204 = scalar_lea.sflag [#allocation5], %s5203
          %s5205 = sand.u32 %s196, 1
          %s5206 = smul.addr %s5205, 256
          %s5207 = scalar_lea.vmem [#allocation4], %s5206
          %5208 = dma.done %s5204, 4096
        $region68: #{run.3} parent=63 // pred_fallthru
          _
      $region64: #{run.3} parent=5 // pred_fallthru
        _
    $region6: #{run.3} parent=1 // loop_footer
      %s20 = sadd.s32 1, %s16
    $region7: #{run.3} parent=1 // loop_footer_branch
      %15 = sbr.rel target = $region3
    $region8: #{run.3} parent=1 // loop_exit
      _
    %5209 = vsyncpa [#allocation5], 1
    %s5210 = scalar_lea.sflag [#allocation5], 1
    %5211 = vsyncpa %s5210, 1

</llo_original>
